<compile_context>
chip_gen: v7x
topology: tpu7x:2x2x1
jax: 0.10.0
libtpu: 0.0.40
codegen_flags: <defaults>
</compile_context>

<pallas_src>
import jax
import jax.numpy as jnp
from jax import lax
from jax.experimental import pallas as pl
from jax.experimental.pallas import tpu as pltpu

KSIZE = 5
STRIDE = 2
BN_EPS = 1e-5
WP = 16                                     # wrow padded to the bf16 sublane tile

_CHANNELS = [(3, 16), (16, 32), (32, 32)]   # (Cin, Cout) per conv stage
_W_S2D = [8, 4, 2]                          # W space-to-depth modulus of each stage's INPUT


# ----------------------------- static geometry -------------------------------
def _stage_plans(h0, w0):
    """Static geometry for the three k=5, s=2, VALID conv stages."""
    assert h0 % 2 == 0, "input height must be even for the H-parity layout"
    plans = []
    h_in, w_in = h0, w0
    for (cin, cout), m_src in zip(_CHANNELS, _W_S2D):
        m_out = m_src // 2                          # output W-s2d modulus (1 == dense)
        h_out = (h_in - KSIZE) // STRIDE + 1
        w_out = (w_in - KSIZE) // STRIDE + 1
        wrow = -(-w_out // m_out)                   # ceil(w_out / m_out)
        hh_src = -(-h_in // 2)                      # source H-parity plane length
        u_span = 2 * (m_out - 1) + KSIZE            # distinct source W-phase offsets
        wq_needed = (u_span - 1) // m_src + wrow    # wq extent the gathers touch
        plans.append(dict(cin=cin, cout=cout, m_src=m_src, m_out=m_out,
                          h_in=h_in, w_in=w_in, h_out=h_out, w_out=w_out,
                          hh_src=hh_src, wrow=wrow, wq_needed=wq_needed,
                          u_span=u_span, kcols=KSIZE * u_span * cin,
                          out_lanes=m_out * cout))
        # every H row the taps read must exist in the source parity plane
        assert (KSIZE - 1) // 2 + h_out <= hh_src
        h_in, w_in = h_out, w_out
    for s in (1, 2):  # producer layout must cover the consumer's gathers
        assert plans[s]["wq_needed"] <= plans[s - 1]["wrow"]
        assert plans[s]["m_src"] == plans[s - 1]["m_out"]
        assert plans[s]["cin"] == plans[s - 1]["cout"]
    return plans


# ------------------------------ kernel body -----------------------------------
def _gather_patches(src_ref, p_ref, plan):
    """In-kernel im2col from the (H-parity, W-space-to-depth) source layout.

    Banded-weight patch columns: col = (ki*U + u)*cin + c with u = 2*pq + kj,
    so every source element is copied exactly once; each (ki, source-wq-shift)
    pair is one static contiguous copy whose source lanes start at 0.
    """
    cin, m_src, u_span = plan["cin"], plan["m_src"], plan["u_span"]
    h_out, wrow = plan["h_out"], plan["wrow"]
    for ki in range(KSIZE):
        hp, hh0 = ki % 2, ki // 2
        for q in range((u_span - 1) // m_src + 1):
            u_lo = q * m_src
            u_hi = min(u_lo + m_src, u_span)
            width = (u_hi - u_lo) * cin
            dst0 = (ki * u_span + u_lo) * cin
            p_ref[:, 0:wrow, dst0:dst0 + width] = src_ref[
                hp, hh0:hh0 + h_out, q:q + wrow, 0:width]


def _stage_output(p_ref, w_ref, s_ref, plan):
    """One MXU matmul for the whole stage: [h_out*WP, K] @ [K, lanes] (bf16 in,
    f32 accumulate), then folded-BN shift + ReLU once on the full f32 slab."""
    m = plan["h_out"] * WP
    lhs = p_ref[...].reshape(m, plan["kcols"])          # layout-trivial collapse
    acc = jnp.dot(lhs, w_ref[...], preferred_element_type=jnp.float32)
    return jnp.maximum(acc + s_ref[...], 0.0)           # (m, out_lanes) f32


def _make_kernel(plans):
    plan1, plan2, plan3 = plans

    def kernel(x_ref, w1_ref, w2_ref, w3_ref, s1_ref, s2_ref, s3_ref,
               o_ref, p1_ref, a1_ref, p2_ref, a2_ref, p3_ref):
        # ----- stage 1: conv1 + bn1 + relu  (output: H-parity, W-s2d-4) -----
        _gather_patches(x_ref, p1_ref, plan1)
        y1 = _stage_output(p1_ref, w1_ref, s1_ref, plan1).astype(jnp.bfloat16)
        for oh in range(plan1["h_out"]):
            a1_ref[oh % 2, oh // 2] = y1[oh * WP:oh * WP + plan1["wrow"], :]

        # ----- stage 2: conv2 + bn2 + relu  (output: H-parity, W-s2d-2) -----
        _gather_patches(a1_ref, p2_ref, plan2)
        y2 = _stage_output(p2_ref, w2_ref, s2_ref, plan2).astype(jnp.bfloat16)
        for oh in range(plan2["h_out"]):
            a2_ref[oh % 2, oh // 2] = y2[oh * WP:oh * WP + plan2["wrow"], :]

        # ----- stage 3: conv3 + bn3 + relu  (dense NHWC f32 output) -----
        _gather_patches(a2_ref, p3_ref, plan3)
        y3 = _stage_output(p3_ref, w3_ref, s3_ref, plan3)
        for oh in range(plan3["h_out"]):
            o_ref[0, oh] = y3[oh * WP:oh * WP + plan3["wrow"], :]

    return kernel


# ------------------------------ host-side glue --------------------------------
def _fold_bn_weight(w_torch, bias, gamma, beta, rmean, rvar, m_out):
    """Fold eval-mode BN into the conv weight/bias, then build the banded
    (source-phase x output-phase) weight for the W space-to-depth layout:
       Wb[(ki, u, c), (pq, co)] = w[co, c, ki, u - 2*pq]  if 0 <= u-2*pq < K.
    """
    cout, cin = w_torch.shape[0], w_torch.shape[1]
    u_span = 2 * (m_out - 1) + KSIZE
    inv_std = gamma / jnp.sqrt(rvar + BN_EPS)
    # torch [Cout, Cin, kh, kw] -> [kh, kw, Cin, Cout], BN scale folded in
    w_t = jnp.transpose(w_torch, (2, 3, 1, 0)) * inv_std[None, None, None, :]
    wb = jnp.zeros((KSIZE, u_span, cin, m_out, cout), jnp.float32)
    for pq in range(m_out):
        for kj in range(KSIZE):
            wb = wb.at[:, 2 * pq + kj, :, pq, :].set(w_t[:, kj, :, :])
    wb = wb.reshape(KSIZE * u_span * cin, m_out * cout).astype(jnp.bfloat16)
    shift = (bias - rmean) * inv_std + beta                       # per-channel shift
    shift = jnp.tile(shift, m_out)[None, :].astype(jnp.float32)   # [1, m_out*Cout]
    return wb, shift


def _prep_input(x_nchw, plan1):
    """NCHW -> batch-major (H-parity, W space-to-depth by 8) bf16 layout,
    zero-padded in W.  Row index = 2*b + parity, lane = (w % 8)*C + c."""
    b, c, h, w = x_nchw.shape
    m = plan1["m_src"]
    wq = plan1["wq_needed"]
    wpad = m * wq
    x = jnp.transpose(x_nchw, (0, 2, 3, 1))                       # NHWC
    x = jnp.pad(x, ((0, 0), (0, 0), (0, wpad - w), (0, 0)))
    x = x.reshape(b, h // 2, 2, wq, m, c)                         # h=2*hh+hp, w=wq*m+wp
    x = jnp.transpose(x, (0, 2, 1, 3, 4, 5))                      # [B, hp, hh, wq, wp, c]
    return x.reshape(b * 2, h // 2, wq, m * c).astype(jnp.bfloat16)


@jax.jit
def convnn_forward(x_nchw, params):
    b, _, h, w = x_nchw.shape
    plans = _stage_plans(h, w)
    plan1, plan2, plan3 = plans

    w1, s1 = _fold_bn_weight(params["conv1_w"], params["conv1_b"],
                             *params["bn1"], m_out=plan1["m_out"])
    w2, s2 = _fold_bn_weight(params["conv2_w"], params["conv2_b"],
                             *params["bn2"], m_out=plan2["m_out"])
    w3, s3 = _fold_bn_weight(params["conv3_w"], params["conv3_b"],
                             *params["bn3"], m_out=plan3["m_out"])
    xp = _prep_input(x_nchw, plan1)                               # [2B, hh, wq, 8*C]

    def full_spec(arr):
        return pl.BlockSpec(arr.shape, lambda i: (0,) * arr.ndim)

    out_shape = (b, plan3["h_out"], plan3["wrow"], plan3["cout"])

    scratch = [
        pltpu.VMEM((plan1["h_out"], WP, plan1["kcols"]), jnp.bfloat16),                     # patches 1
        pltpu.VMEM((2, plan2["hh_src"], plan1["wrow"], plan1["out_lanes"]), jnp.bfloat16),  # act1
        pltpu.VMEM((plan2["h_out"], WP, plan2["kcols"]), jnp.bfloat16),                     # patches 2
        pltpu.VMEM((2, plan3["hh_src"], plan2["wrow"], plan2["out_lanes"]), jnp.bfloat16),  # act2
        pltpu.VMEM((plan3["h_out"], WP, plan3["kcols"]), jnp.bfloat16),                     # patches 3
    ]

    out = pl.pallas_call(
        _make_kernel(plans),
        out_shape=jax.ShapeDtypeStruct(out_shape, jnp.float32),
        grid=(b,),                                                # one image per grid step
        in_specs=[
            pl.BlockSpec((2,) + xp.shape[1:], lambda i: (i, 0, 0, 0)),
            full_spec(w1), full_spec(w2), full_spec(w3),
            full_spec(s1), full_spec(s2), full_spec(s3),
        ],
        out_specs=pl.BlockSpec((1,) + out_shape[1:], lambda i: (i, 0, 0, 0)),
        scratch_shapes=scratch,
        compiler_params=pltpu.CompilerParams(
            dimension_semantics=("parallel",)),                   # shards batch across TCs on v7x
    )(xp, w1, w2, w3, s1, s2, s3)

    # [B, 2, 7, 32] (NHWC) -> [B, 32, 2, 7] (NCHW, PyTorch convention)
    return jnp.transpose(out, (0, 3, 1, 2))


# ------------------------------ params / reference ----------------------------
def init_params(key):
    ks = jax.random.split(key, 6)

    def conv_params(kw, kb, cout, cin):
        fan_in = cin * KSIZE * KSIZE
        bound = 1.0 / jnp.sqrt(fan_in)
        wgt = jax.random.uniform(kw, (cout, cin, KSIZE, KSIZE),
                                 minval=-bound, maxval=bound, dtype=jnp.float32)
        bia = jax.random.uniform(kb, (cout,),
                                 minval=-bound, maxval=bound, dtype=jnp.float32)
        return wgt, bia

    def bn_params(c):
        return (jnp.ones((c,), jnp.float32), jnp.zeros((c,), jnp.float32),
                jnp.zeros((c,), jnp.float32), jnp.ones((c,), jnp.float32))

    p = {}
    p["conv1_w"], p["conv1_b"] = conv_params(ks[0], ks[1], 16, 3)
    p["conv2_w"], p["conv2_b"] = conv_params(ks[2], ks[3], 32, 16)
    p["conv3_w"], p["conv3_b"] = conv_params(ks[4], ks[5], 32, 32)
    p["bn1"] = bn_params(16)
    p["bn2"] = bn_params(32)
    p["bn3"] = bn_params(32)
    return p


def convnn_reference(x_nchw, params):
    """Pure-JAX f32 reference (lax.conv) for correctness checking."""
    def stage(x, wgt, bia, bn):
        gamma, beta, rmean, rvar = bn
        y = lax.conv_general_dilated(
            x, wgt, window_strides=(STRIDE, STRIDE), padding="VALID",
            dimension_numbers=("NCHW", "OIHW", "NCHW"))
        y = y + bia[None, :, None, None]
        inv_std = 1.0 / jnp.sqrt(rvar + BN_EPS)
        y = (y - rmean[None, :, None, None]) * (gamma * inv_std)[None, :, None, None] \
            + beta[None, :, None, None]
        return jnp.maximum(y, 0.0)

    x = stage(x_nchw, params["conv1_w"], params["conv1_b"], params["bn1"])
    x = stage(x, params["conv2_w"], params["conv2_b"], params["bn2"])
    x = stage(x, params["conv3_w"], params["conv3_b"], params["bn3"])
    return x


if __name__ == "__main__":
    key = jax.random.PRNGKey(0)
    kx, kp = jax.random.split(key)

    # Input implied by the module: head=Linear(448,2) <=> 32*2*7 final features
    # <=> input spatial (40, 80) with three k=5, s=2 VALID convs.
    x = jax.random.normal(kx, (2, 3, 40, 80), dtype=jnp.float32)
    params = init_params(kp)

    out = jax.block_until_ready(convnn_forward(x, params))
    assert out.shape == (2, 32, 2, 7), out.shape

    ref = jax.block_until_ready(convnn_reference(x, params))
    # bf16 operands with f32 accumulation: tolerance relaxed vs the f32 kernel.
    err = float(jnp.max(jnp.abs(out - ref)))
    assert jnp.allclose(out, ref, atol=3e-2, rtol=3e-2), err

    print("KERNEL_OK")
</pallas_src>

<mosaic_0001>
module attributes {stable_mosaic.version = 11 : i64} {
  func.func @kernel(%arg0: i32, %arg1: memref<2x20x11x24xbf16, #tpu.memory_space<vmem>>, %arg2: memref<165x64xbf16, #tpu.memory_space<vmem>>, %arg3: memref<560x64xbf16, #tpu.memory_space<vmem>>, %arg4: memref<800x32xbf16, #tpu.memory_space<vmem>>, %arg5: memref<1x64xf32, #tpu.memory_space<vmem>>, %arg6: memref<1x64xf32, #tpu.memory_space<vmem>>, %arg7: memref<1x32xf32, #tpu.memory_space<vmem>>, %arg8: memref<1x2x7x32xf32, #tpu.memory_space<vmem>>, %arg9: memref<18x16x165xbf16, #tpu.memory_space<vmem>>, %arg10: memref<2x9x10x64xbf16, #tpu.memory_space<vmem>>, %arg11: memref<7x16x560xbf16, #tpu.memory_space<vmem>>, %arg12: memref<2x4x9x64xbf16, #tpu.memory_space<vmem>>, %arg13: memref<2x16x800xbf16, #tpu.memory_space<vmem>>) attributes {dimension_semantics = [#tpu.dimension_semantics<parallel>], iteration_bounds = array<i64: 2>, scalar_prefetch = 0 : i64, scratch_operands = 5 : i64, tpu.core_type = #tpu.core_type<tc>, window_params = [{transform_indices = @transform_0, window_bounds = array<i64: 2, 20, 11, 24>}, {pipeline_mode = #tpu.pipeline_mode<synchronous>, transform_indices = @transform_1, window_bounds = array<i64: 165, 64>}, {pipeline_mode = #tpu.pipeline_mode<synchronous>, transform_indices = @transform_2, window_bounds = array<i64: 560, 64>}, {pipeline_mode = #tpu.pipeline_mode<synchronous>, transform_indices = @transform_3, window_bounds = array<i64: 800, 32>}, {pipeline_mode = #tpu.pipeline_mode<synchronous>, transform_indices = @transform_4, window_bounds = array<i64: 1, 64>}, {pipeline_mode = #tpu.pipeline_mode<synchronous>, transform_indices = @transform_5, window_bounds = array<i64: 1, 64>}, {pipeline_mode = #tpu.pipeline_mode<synchronous>, transform_indices = @transform_6, window_bounds = array<i64: 1, 32>}, {transform_indices = @transform_7, window_bounds = array<i64: 1, 2, 7, 32>}]} {
    %c0 = arith.constant 0 : index
    %c0_0 = arith.constant 0 : index
    %c0_1 = arith.constant 0 : index
    %c0_2 = arith.constant 0 : index
    %0 = vector.load %arg1[%c0, %c0_0, %c0_1, %c0_2] : memref<2x20x11x24xbf16, #tpu.memory_space<vmem>>, vector<1x18x10x24xbf16>
    %1 = vector.shape_cast %0 : vector<1x18x10x24xbf16> to vector<18x10x24xbf16>
    %c0_3 = arith.constant 0 : index
    %c0_4 = arith.constant 0 : index
    %c0_5 = arith.constant 0 : index
    %2 = vector.load %arg9[%c0_3, %c0_4, %c0_5] : memref<18x16x165xbf16, #tpu.memory_space<vmem>>, vector<18x10x24xbf16>
    tpu.vector_store %arg9[%c0_3, %c0_4, %c0_5], %1 {strides = array<i32>} : memref<18x16x165xbf16, #tpu.memory_space<vmem>>, vector<18x10x24xbf16>,
    %c0_6 = arith.constant 0 : index
    %c0_7 = arith.constant 0 : index
    %c1 = arith.constant 1 : index
    %c0_8 = arith.constant 0 : index
    %3 = vector.load %arg1[%c0_6, %c0_7, %c1, %c0_8] : memref<2x20x11x24xbf16, #tpu.memory_space<vmem>>, vector<1x18x10x9xbf16>
    %4 = vector.shape_cast %3 : vector<1x18x10x9xbf16> to vector<18x10x9xbf16>
    %c0_9 = arith.constant 0 : index
    %c0_10 = arith.constant 0 : index
    %c24 = arith.constant 24 : index
    %5 = vector.load %arg9[%c0_9, %c0_10, %c24] : memref<18x16x165xbf16, #tpu.memory_space<vmem>>, vector<18x10x9xbf16>
    tpu.vector_store %arg9[%c0_9, %c0_10, %c24], %4 {strides = array<i32>} : memref<18x16x165xbf16, #tpu.memory_space<vmem>>, vector<18x10x9xbf16>,
    %c1_11 = arith.constant 1 : index
    %c0_12 = arith.constant 0 : index
    %c0_13 = arith.constant 0 : index
    %c0_14 = arith.constant 0 : index
    %6 = vector.load %arg1[%c1_11, %c0_12, %c0_13, %c0_14] : memref<2x20x11x24xbf16, #tpu.memory_space<vmem>>, vector<1x18x10x24xbf16>
    %7 = vector.shape_cast %6 : vector<1x18x10x24xbf16> to vector<18x10x24xbf16>
    %c0_15 = arith.constant 0 : index
    %c0_16 = arith.constant 0 : index
    %c33 = arith.constant 33 : index
    %8 = vector.load %arg9[%c0_15, %c0_16, %c33] : memref<18x16x165xbf16, #tpu.memory_space<vmem>>, vector<18x10x24xbf16>
    tpu.vector_store %arg9[%c0_15, %c0_16, %c33], %7 {strides = array<i32>} : memref<18x16x165xbf16, #tpu.memory_space<vmem>>, vector<18x10x24xbf16>,
    %c1_17 = arith.constant 1 : index
    %c0_18 = arith.constant 0 : index
    %c1_19 = arith.constant 1 : index
    %c0_20 = arith.constant 0 : index
    %9 = vector.load %arg1[%c1_17, %c0_18, %c1_19, %c0_20] : memref<2x20x11x24xbf16, #tpu.memory_space<vmem>>, vector<1x18x10x9xbf16>
    %10 = vector.shape_cast %9 : vector<1x18x10x9xbf16> to vector<18x10x9xbf16>
    %c0_21 = arith.constant 0 : index
    %c0_22 = arith.constant 0 : index
    %c57 = arith.constant 57 : index
    %11 = vector.load %arg9[%c0_21, %c0_22, %c57] : memref<18x16x165xbf16, #tpu.memory_space<vmem>>, vector<18x10x9xbf16>
    tpu.vector_store %arg9[%c0_21, %c0_22, %c57], %10 {strides = array<i32>} : memref<18x16x165xbf16, #tpu.memory_space<vmem>>, vector<18x10x9xbf16>,
    %c0_23 = arith.constant 0 : index
    %c1_24 = arith.constant 1 : index
    %c0_25 = arith.constant 0 : index
    %c0_26 = arith.constant 0 : index
    %12 = vector.load %arg1[%c0_23, %c1_24, %c0_25, %c0_26] : memref<2x20x11x24xbf16, #tpu.memory_space<vmem>>, vector<1x18x10x24xbf16>
    %13 = vector.shape_cast %12 : vector<1x18x10x24xbf16> to vector<18x10x24xbf16>
    %c0_27 = arith.constant 0 : index
    %c0_28 = arith.constant 0 : index
    %c66 = arith.constant 66 : index
    %14 = vector.load %arg9[%c0_27, %c0_28, %c66] : memref<18x16x165xbf16, #tpu.memory_space<vmem>>, vector<18x10x24xbf16>
    tpu.vector_store %arg9[%c0_27, %c0_28, %c66], %13 {strides = array<i32>} : memref<18x16x165xbf16, #tpu.memory_space<vmem>>, vector<18x10x24xbf16>,
    %c0_29 = arith.constant 0 : index
    %c1_30 = arith.constant 1 : index
    %c1_31 = arith.constant 1 : index
    %c0_32 = arith.constant 0 : index
    %15 = vector.load %arg1[%c0_29, %c1_30, %c1_31, %c0_32] : memref<2x20x11x24xbf16, #tpu.memory_space<vmem>>, vector<1x18x10x9xbf16>
    %16 = vector.shape_cast %15 : vector<1x18x10x9xbf16> to vector<18x10x9xbf16>
    %c0_33 = arith.constant 0 : index
    %c0_34 = arith.constant 0 : index
    %c90 = arith.constant 90 : index
    %17 = vector.load %arg9[%c0_33, %c0_34, %c90] : memref<18x16x165xbf16, #tpu.memory_space<vmem>>, vector<18x10x9xbf16>
    tpu.vector_store %arg9[%c0_33, %c0_34, %c90], %16 {strides = array<i32>} : memref<18x16x165xbf16, #tpu.memory_space<vmem>>, vector<18x10x9xbf16>,
    %c1_35 = arith.constant 1 : index
    %c1_36 = arith.constant 1 : index
    %c0_37 = arith.constant 0 : index
    %c0_38 = arith.constant 0 : index
    %18 = vector.load %arg1[%c1_35, %c1_36, %c0_37, %c0_38] : memref<2x20x11x24xbf16, #tpu.memory_space<vmem>>, vector<1x18x10x24xbf16>
    %19 = vector.shape_cast %18 : vector<1x18x10x24xbf16> to vector<18x10x24xbf16>
    %c0_39 = arith.constant 0 : index
    %c0_40 = arith.constant 0 : index
    %c99 = arith.constant 99 : index
    %20 = vector.load %arg9[%c0_39, %c0_40, %c99] : memref<18x16x165xbf16, #tpu.memory_space<vmem>>, vector<18x10x24xbf16>
    tpu.vector_store %arg9[%c0_39, %c0_40, %c99], %19 {strides = array<i32>} : memref<18x16x165xbf16, #tpu.memory_space<vmem>>, vector<18x10x24xbf16>,
    %c1_41 = arith.constant 1 : index
    %c1_42 = arith.constant 1 : index
    %c1_43 = arith.constant 1 : index
    %c0_44 = arith.constant 0 : index
    %21 = vector.load %arg1[%c1_41, %c1_42, %c1_43, %c0_44] : memref<2x20x11x24xbf16, #tpu.memory_space<vmem>>, vector<1x18x10x9xbf16>
    %22 = vector.shape_cast %21 : vector<1x18x10x9xbf16> to vector<18x10x9xbf16>
    %c0_45 = arith.constant 0 : index
    %c0_46 = arith.constant 0 : index
    %c123 = arith.constant 123 : index
    %23 = vector.load %arg9[%c0_45, %c0_46, %c123] : memref<18x16x165xbf16, #tpu.memory_space<vmem>>, vector<18x10x9xbf16>
    tpu.vector_store %arg9[%c0_45, %c0_46, %c123], %22 {strides = array<i32>} : memref<18x16x165xbf16, #tpu.memory_space<vmem>>, vector<18x10x9xbf16>,
    %c0_47 = arith.constant 0 : index
    %c2 = arith.constant 2 : index
    %c0_48 = arith.constant 0 : index
    %c0_49 = arith.constant 0 : index
    %24 = vector.load %arg1[%c0_47, %c2, %c0_48, %c0_49] : memref<2x20x11x24xbf16, #tpu.memory_space<vmem>>, vector<1x18x10x24xbf16>
    %25 = vector.shape_cast %24 : vector<1x18x10x24xbf16> to vector<18x10x24xbf16>
    %c0_50 = arith.constant 0 : index
    %c0_51 = arith.constant 0 : index
    %c132 = arith.constant 132 : index
    %26 = vector.load %arg9[%c0_50, %c0_51, %c132] : memref<18x16x165xbf16, #tpu.memory_space<vmem>>, vector<18x10x24xbf16>
    tpu.vector_store %arg9[%c0_50, %c0_51, %c132], %25 {strides = array<i32>} : memref<18x16x165xbf16, #tpu.memory_space<vmem>>, vector<18x10x24xbf16>,
    %c0_52 = arith.constant 0 : index
    %c2_53 = arith.constant 2 : index
    %c1_54 = arith.constant 1 : index
    %c0_55 = arith.constant 0 : index
    %27 = vector.load %arg1[%c0_52, %c2_53, %c1_54, %c0_55] : memref<2x20x11x24xbf16, #tpu.memory_space<vmem>>, vector<1x18x10x9xbf16>
    %28 = vector.shape_cast %27 : vector<1x18x10x9xbf16> to vector<18x10x9xbf16>
    %c0_56 = arith.constant 0 : index
    %c0_57 = arith.constant 0 : index
    %c156 = arith.constant 156 : index
    %29 = vector.load %arg9[%c0_56, %c0_57, %c156] : memref<18x16x165xbf16, #tpu.memory_space<vmem>>, vector<18x10x9xbf16>
    tpu.vector_store %arg9[%c0_56, %c0_57, %c156], %28 {strides = array<i32>} : memref<18x16x165xbf16, #tpu.memory_space<vmem>>, vector<18x10x9xbf16>,
    %c0_58 = arith.constant 0 : index
    %c0_59 = arith.constant 0 : index
    %c0_60 = arith.constant 0 : index
    %30 = vector.load %arg9[%c0_58, %c0_59, %c0_60] : memref<18x16x165xbf16, #tpu.memory_space<vmem>>, vector<18x16x165xbf16>
    %31 = vector.shape_cast %30 : vector<18x16x165xbf16> to vector<288x165xbf16>
    %c0_61 = arith.constant 0 : index
    %c0_62 = arith.constant 0 : index
    %32 = vector.load %arg2[%c0_61, %c0_62] : memref<165x64xbf16, #tpu.memory_space<vmem>>, vector<165x64xbf16>
    %cst = arith.constant dense<0.000000e+00> : vector<288x64xf32>
    %33 = tpu.matmul %31, %32, %cst {dimension_numbers = #tpu.dot_dimension_numbers<[1], [0], [0], [1], [0, 0, 1, 1], [], []>} : vector<288x165xbf16>, vector<165x64xbf16>, vector<288x64xf32> -> vector<288x64xf32>
    %c0_63 = arith.constant 0 : index
    %c0_64 = arith.constant 0 : index
    %34 = vector.load %arg5[%c0_63, %c0_64] : memref<1x64xf32, #tpu.memory_space<vmem>>, vector<1x64xf32>
    %35 = vector.broadcast %34 : vector<1x64xf32> to vector<288x64xf32>
    %36 = arith.addf %33, %35 : vector<288x64xf32>
    %cst_65 = arith.constant 0.000000e+00 : f32
    %37 = vector.broadcast %cst_65 : f32 to vector<288x64xf32>
    %38 = arith.maximumf %36, %37 : vector<288x64xf32>
    %39 = arith.truncf %38 : vector<288x64xf32> to vector<288x64xbf16>
    %40 = vector.extract_strided_slice %39 {offsets = [0, 0], sizes = [10, 64], strides = [1, 1]} : vector<288x64xbf16> to vector<10x64xbf16>
    %c0_66 = arith.constant 0 : index
    %c0_67 = arith.constant 0 : index
    %c0_68 = arith.constant 0 : index
    %c0_69 = arith.constant 0 : index
    %41 = vector.load %arg10[%c0_66, %c0_67, %c0_68, %c0_69] : memref<2x9x10x64xbf16, #tpu.memory_space<vmem>>, vector<1x1x10x64xbf16>
    %42 = vector.shape_cast %41 : vector<1x1x10x64xbf16> to vector<10x64xbf16>
    %43 = vector.shape_cast %40 : vector<10x64xbf16> to vector<1x1x10x64xbf16>
    tpu.vector_store %arg10[%c0_66, %c0_67, %c0_68, %c0_69], %43 {strides = array<i32>} : memref<2x9x10x64xbf16, #tpu.memory_space<vmem>>, vector<1x1x10x64xbf16>,
    %44 = vector.extract_strided_slice %39 {offsets = [16, 0], sizes = [10, 64], strides = [1, 1]} : vector<288x64xbf16> to vector<10x64xbf16>
    %c1_70 = arith.constant 1 : index
    %c0_71 = arith.constant 0 : index
    %c0_72 = arith.constant 0 : index
    %c0_73 = arith.constant 0 : index
    %45 = vector.load %arg10[%c1_70, %c0_71, %c0_72, %c0_73] : memref<2x9x10x64xbf16, #tpu.memory_space<vmem>>, vector<1x1x10x64xbf16>
    %46 = vector.shape_cast %45 : vector<1x1x10x64xbf16> to vector<10x64xbf16>
    %47 = vector.shape_cast %44 : vector<10x64xbf16> to vector<1x1x10x64xbf16>
    tpu.vector_store %arg10[%c1_70, %c0_71, %c0_72, %c0_73], %47 {strides = array<i32>} : memref<2x9x10x64xbf16, #tpu.memory_space<vmem>>, vector<1x1x10x64xbf16>,
    %48 = vector.extract_strided_slice %39 {offsets = [32, 0], sizes = [10, 64], strides = [1, 1]} : vector<288x64xbf16> to vector<10x64xbf16>
    %c0_74 = arith.constant 0 : index
    %c1_75 = arith.constant 1 : index
    %c0_76 = arith.constant 0 : index
    %c0_77 = arith.constant 0 : index
    %49 = vector.load %arg10[%c0_74, %c1_75, %c0_76, %c0_77] : memref<2x9x10x64xbf16, #tpu.memory_space<vmem>>, vector<1x1x10x64xbf16>
    %50 = vector.shape_cast %49 : vector<1x1x10x64xbf16> to vector<10x64xbf16>
    %51 = vector.shape_cast %48 : vector<10x64xbf16> to vector<1x1x10x64xbf16>
    tpu.vector_store %arg10[%c0_74, %c1_75, %c0_76, %c0_77], %51 {strides = array<i32>} : memref<2x9x10x64xbf16, #tpu.memory_space<vmem>>, vector<1x1x10x64xbf16>,
    %52 = vector.extract_strided_slice %39 {offsets = [48, 0], sizes = [10, 64], strides = [1, 1]} : vector<288x64xbf16> to vector<10x64xbf16>
    %c1_78 = arith.constant 1 : index
    %c1_79 = arith.constant 1 : index
    %c0_80 = arith.constant 0 : index
    %c0_81 = arith.constant 0 : index
    %53 = vector.load %arg10[%c1_78, %c1_79, %c0_80, %c0_81] : memref<2x9x10x64xbf16, #tpu.memory_space<vmem>>, vector<1x1x10x64xbf16>
    %54 = vector.shape_cast %53 : vector<1x1x10x64xbf16> to vector<10x64xbf16>
    %55 = vector.shape_cast %52 : vector<10x64xbf16> to vector<1x1x10x64xbf16>
    tpu.vector_store %arg10[%c1_78, %c1_79, %c0_80, %c0_81], %55 {strides = array<i32>} : memref<2x9x10x64xbf16, #tpu.memory_space<vmem>>, vector<1x1x10x64xbf16>,
    %56 = vector.extract_strided_slice %39 {offsets = [64, 0], sizes = [10, 64], strides = [1, 1]} : vector<288x64xbf16> to vector<10x64xbf16>
    %c0_82 = arith.constant 0 : index
    %c2_83 = arith.constant 2 : index
    %c0_84 = arith.constant 0 : index
    %c0_85 = arith.constant 0 : index
    %57 = vector.load %arg10[%c0_82, %c2_83, %c0_84, %c0_85] : memref<2x9x10x64xbf16, #tpu.memory_space<vmem>>, vector<1x1x10x64xbf16>
    %58 = vector.shape_cast %57 : vector<1x1x10x64xbf16> to vector<10x64xbf16>
    %59 = vector.shape_cast %56 : vector<10x64xbf16> to vector<1x1x10x64xbf16>
    tpu.vector_store %arg10[%c0_82, %c2_83, %c0_84, %c0_85], %59 {strides = array<i32>} : memref<2x9x10x64xbf16, #tpu.memory_space<vmem>>, vector<1x1x10x64xbf16>,
    %60 = vector.extract_strided_slice %39 {offsets = [80, 0], sizes = [10, 64], strides = [1, 1]} : vector<288x64xbf16> to vector<10x64xbf16>
    %c1_86 = arith.constant 1 : index
    %c2_87 = arith.constant 2 : index
    %c0_88 = arith.constant 0 : index
    %c0_89 = arith.constant 0 : index
    %61 = vector.load %arg10[%c1_86, %c2_87, %c0_88, %c0_89] : memref<2x9x10x64xbf16, #tpu.memory_space<vmem>>, vector<1x1x10x64xbf16>
    %62 = vector.shape_cast %61 : vector<1x1x10x64xbf16> to vector<10x64xbf16>
    %63 = vector.shape_cast %60 : vector<10x64xbf16> to vector<1x1x10x64xbf16>
    tpu.vector_store %arg10[%c1_86, %c2_87, %c0_88, %c0_89], %63 {strides = array<i32>} : memref<2x9x10x64xbf16, #tpu.memory_space<vmem>>, vector<1x1x10x64xbf16>,
    %64 = vector.extract_strided_slice %39 {offsets = [96, 0], sizes = [10, 64], strides = [1, 1]} : vector<288x64xbf16> to vector<10x64xbf16>
    %c0_90 = arith.constant 0 : index
    %c3 = arith.constant 3 : index
    %c0_91 = arith.constant 0 : index
    %c0_92 = arith.constant 0 : index
    %65 = vector.load %arg10[%c0_90, %c3, %c0_91, %c0_92] : memref<2x9x10x64xbf16, #tpu.memory_space<vmem>>, vector<1x1x10x64xbf16>
    %66 = vector.shape_cast %65 : vector<1x1x10x64xbf16> to vector<10x64xbf16>
    %67 = vector.shape_cast %64 : vector<10x64xbf16> to vector<1x1x10x64xbf16>
    tpu.vector_store %arg10[%c0_90, %c3, %c0_91, %c0_92], %67 {strides = array<i32>} : memref<2x9x10x64xbf16, #tpu.memory_space<vmem>>, vector<1x1x10x64xbf16>,
    %68 = vector.extract_strided_slice %39 {offsets = [112, 0], sizes = [10, 64], strides = [1, 1]} : vector<288x64xbf16> to vector<10x64xbf16>
    %c1_93 = arith.constant 1 : index
    %c3_94 = arith.constant 3 : index
    %c0_95 = arith.constant 0 : index
    %c0_96 = arith.constant 0 : index
    %69 = vector.load %arg10[%c1_93, %c3_94, %c0_95, %c0_96] : memref<2x9x10x64xbf16, #tpu.memory_space<vmem>>, vector<1x1x10x64xbf16>
    %70 = vector.shape_cast %69 : vector<1x1x10x64xbf16> to vector<10x64xbf16>
    %71 = vector.shape_cast %68 : vector<10x64xbf16> to vector<1x1x10x64xbf16>
    tpu.vector_store %arg10[%c1_93, %c3_94, %c0_95, %c0_96], %71 {strides = array<i32>} : memref<2x9x10x64xbf16, #tpu.memory_space<vmem>>, vector<1x1x10x64xbf16>,
    %72 = vector.extract_strided_slice %39 {offsets = [128, 0], sizes = [10, 64], strides = [1, 1]} : vector<288x64xbf16> to vector<10x64xbf16>
    %c0_97 = arith.constant 0 : index
    %c4 = arith.constant 4 : index
    %c0_98 = arith.constant 0 : index
    %c0_99 = arith.constant 0 : index
    %73 = vector.load %arg10[%c0_97, %c4, %c0_98, %c0_99] : memref<2x9x10x64xbf16, #tpu.memory_space<vmem>>, vector<1x1x10x64xbf16>
    %74 = vector.shape_cast %73 : vector<1x1x10x64xbf16> to vector<10x64xbf16>
    %75 = vector.shape_cast %72 : vector<10x64xbf16> to vector<1x1x10x64xbf16>
    tpu.vector_store %arg10[%c0_97, %c4, %c0_98, %c0_99], %75 {strides = array<i32>} : memref<2x9x10x64xbf16, #tpu.memory_space<vmem>>, vector<1x1x10x64xbf16>,
    %76 = vector.extract_strided_slice %39 {offsets = [144, 0], sizes = [10, 64], strides = [1, 1]} : vector<288x64xbf16> to vector<10x64xbf16>
    %c1_100 = arith.constant 1 : index
    %c4_101 = arith.constant 4 : index
    %c0_102 = arith.constant 0 : index
    %c0_103 = arith.constant 0 : index
    %77 = vector.load %arg10[%c1_100, %c4_101, %c0_102, %c0_103] : memref<2x9x10x64xbf16, #tpu.memory_space<vmem>>, vector<1x1x10x64xbf16>
    %78 = vector.shape_cast %77 : vector<1x1x10x64xbf16> to vector<10x64xbf16>
    %79 = vector.shape_cast %76 : vector<10x64xbf16> to vector<1x1x10x64xbf16>
    tpu.vector_store %arg10[%c1_100, %c4_101, %c0_102, %c0_103], %79 {strides = array<i32>} : memref<2x9x10x64xbf16, #tpu.memory_space<vmem>>, vector<1x1x10x64xbf16>,
    %80 = vector.extract_strided_slice %39 {offsets = [160, 0], sizes = [10, 64], strides = [1, 1]} : vector<288x64xbf16> to vector<10x64xbf16>
    %c0_104 = arith.constant 0 : index
    %c5 = arith.constant 5 : index
    %c0_105 = arith.constant 0 : index
    %c0_106 = arith.constant 0 : index
    %81 = vector.load %arg10[%c0_104, %c5, %c0_105, %c0_106] : memref<2x9x10x64xbf16, #tpu.memory_space<vmem>>, vector<1x1x10x64xbf16>
    %82 = vector.shape_cast %81 : vector<1x1x10x64xbf16> to vector<10x64xbf16>
    %83 = vector.shape_cast %80 : vector<10x64xbf16> to vector<1x1x10x64xbf16>
    tpu.vector_store %arg10[%c0_104, %c5, %c0_105, %c0_106], %83 {strides = array<i32>} : memref<2x9x10x64xbf16, #tpu.memory_space<vmem>>, vector<1x1x10x64xbf16>,
    %84 = vector.extract_strided_slice %39 {offsets = [176, 0], sizes = [10, 64], strides = [1, 1]} : vector<288x64xbf16> to vector<10x64xbf16>
    %c1_107 = arith.constant 1 : index
    %c5_108 = arith.constant 5 : index
    %c0_109 = arith.constant 0 : index
    %c0_110 = arith.constant 0 : index
    %85 = vector.load %arg10[%c1_107, %c5_108, %c0_109, %c0_110] : memref<2x9x10x64xbf16, #tpu.memory_space<vmem>>, vector<1x1x10x64xbf16>
    %86 = vector.shape_cast %85 : vector<1x1x10x64xbf16> to vector<10x64xbf16>
    %87 = vector.shape_cast %84 : vector<10x64xbf16> to vector<1x1x10x64xbf16>
    tpu.vector_store %arg10[%c1_107, %c5_108, %c0_109, %c0_110], %87 {strides = array<i32>} : memref<2x9x10x64xbf16, #tpu.memory_space<vmem>>, vector<1x1x10x64xbf16>,
    %88 = vector.extract_strided_slice %39 {offsets = [192, 0], sizes = [10, 64], strides = [1, 1]} : vector<288x64xbf16> to vector<10x64xbf16>
    %c0_111 = arith.constant 0 : index
    %c6 = arith.constant 6 : index
    %c0_112 = arith.constant 0 : index
    %c0_113 = arith.constant 0 : index
    %89 = vector.load %arg10[%c0_111, %c6, %c0_112, %c0_113] : memref<2x9x10x64xbf16, #tpu.memory_space<vmem>>, vector<1x1x10x64xbf16>
    %90 = vector.shape_cast %89 : vector<1x1x10x64xbf16> to vector<10x64xbf16>
    %91 = vector.shape_cast %88 : vector<10x64xbf16> to vector<1x1x10x64xbf16>
    tpu.vector_store %arg10[%c0_111, %c6, %c0_112, %c0_113], %91 {strides = array<i32>} : memref<2x9x10x64xbf16, #tpu.memory_space<vmem>>, vector<1x1x10x64xbf16>,
    %92 = vector.extract_strided_slice %39 {offsets = [208, 0], sizes = [10, 64], strides = [1, 1]} : vector<288x64xbf16> to vector<10x64xbf16>
    %c1_114 = arith.constant 1 : index
    %c6_115 = arith.constant 6 : index
    %c0_116 = arith.constant 0 : index
    %c0_117 = arith.constant 0 : index
    %93 = vector.load %arg10[%c1_114, %c6_115, %c0_116, %c0_117] : memref<2x9x10x64xbf16, #tpu.memory_space<vmem>>, vector<1x1x10x64xbf16>
    %94 = vector.shape_cast %93 : vector<1x1x10x64xbf16> to vector<10x64xbf16>
    %95 = vector.shape_cast %92 : vector<10x64xbf16> to vector<1x1x10x64xbf16>
    tpu.vector_store %arg10[%c1_114, %c6_115, %c0_116, %c0_117], %95 {strides = array<i32>} : memref<2x9x10x64xbf16, #tpu.memory_space<vmem>>, vector<1x1x10x64xbf16>,
    %96 = vector.extract_strided_slice %39 {offsets = [224, 0], sizes = [10, 64], strides = [1, 1]} : vector<288x64xbf16> to vector<10x64xbf16>
    %c0_118 = arith.constant 0 : index
    %c7 = arith.constant 7 : index
    %c0_119 = arith.constant 0 : index
    %c0_120 = arith.constant 0 : index
    %97 = vector.load %arg10[%c0_118, %c7, %c0_119, %c0_120] : memref<2x9x10x64xbf16, #tpu.memory_space<vmem>>, vector<1x1x10x64xbf16>
    %98 = vector.shape_cast %97 : vector<1x1x10x64xbf16> to vector<10x64xbf16>
    %99 = vector.shape_cast %96 : vector<10x64xbf16> to vector<1x1x10x64xbf16>
    tpu.vector_store %arg10[%c0_118, %c7, %c0_119, %c0_120], %99 {strides = array<i32>} : memref<2x9x10x64xbf16, #tpu.memory_space<vmem>>, vector<1x1x10x64xbf16>,
    %100 = vector.extract_strided_slice %39 {offsets = [240, 0], sizes = [10, 64], strides = [1, 1]} : vector<288x64xbf16> to vector<10x64xbf16>
    %c1_121 = arith.constant 1 : index
    %c7_122 = arith.constant 7 : index
    %c0_123 = arith.constant 0 : index
    %c0_124 = arith.constant 0 : index
    %101 = vector.load %arg10[%c1_121, %c7_122, %c0_123, %c0_124] : memref<2x9x10x64xbf16, #tpu.memory_space<vmem>>, vector<1x1x10x64xbf16>
    %102 = vector.shape_cast %101 : vector<1x1x10x64xbf16> to vector<10x64xbf16>
    %103 = vector.shape_cast %100 : vector<10x64xbf16> to vector<1x1x10x64xbf16>
    tpu.vector_store %arg10[%c1_121, %c7_122, %c0_123, %c0_124], %103 {strides = array<i32>} : memref<2x9x10x64xbf16, #tpu.memory_space<vmem>>, vector<1x1x10x64xbf16>,
    %104 = vector.extract_strided_slice %39 {offsets = [256, 0], sizes = [10, 64], strides = [1, 1]} : vector<288x64xbf16> to vector<10x64xbf16>
    %c0_125 = arith.constant 0 : index
    %c8 = arith.constant 8 : index
    %c0_126 = arith.constant 0 : index
    %c0_127 = arith.constant 0 : index
    %105 = vector.load %arg10[%c0_125, %c8, %c0_126, %c0_127] : memref<2x9x10x64xbf16, #tpu.memory_space<vmem>>, vector<1x1x10x64xbf16>
    %106 = vector.shape_cast %105 : vector<1x1x10x64xbf16> to vector<10x64xbf16>
    %107 = vector.shape_cast %104 : vector<10x64xbf16> to vector<1x1x10x64xbf16>
    tpu.vector_store %arg10[%c0_125, %c8, %c0_126, %c0_127], %107 {strides = array<i32>} : memref<2x9x10x64xbf16, #tpu.memory_space<vmem>>, vector<1x1x10x64xbf16>,
    %108 = vector.extract_strided_slice %39 {offsets = [272, 0], sizes = [10, 64], strides = [1, 1]} : vector<288x64xbf16> to vector<10x64xbf16>
    %c1_128 = arith.constant 1 : index
    %c8_129 = arith.constant 8 : index
    %c0_130 = arith.constant 0 : index
    %c0_131 = arith.constant 0 : index
    %109 = vector.load %arg10[%c1_128, %c8_129, %c0_130, %c0_131] : memref<2x9x10x64xbf16, #tpu.memory_space<vmem>>, vector<1x1x10x64xbf16>
    %110 = vector.shape_cast %109 : vector<1x1x10x64xbf16> to vector<10x64xbf16>
    %111 = vector.shape_cast %108 : vector<10x64xbf16> to vector<1x1x10x64xbf16>
    tpu.vector_store %arg10[%c1_128, %c8_129, %c0_130, %c0_131], %111 {strides = array<i32>} : memref<2x9x10x64xbf16, #tpu.memory_space<vmem>>, vector<1x1x10x64xbf16>,
    %c0_132 = arith.constant 0 : index
    %c0_133 = arith.constant 0 : index
    %c0_134 = arith.constant 0 : index
    %c0_135 = arith.constant 0 : index
    %112 = vector.load %arg10[%c0_132, %c0_133, %c0_134, %c0_135] : memref<2x9x10x64xbf16, #tpu.memory_space<vmem>>, vector<1x7x9x64xbf16>
    %113 = vector.shape_cast %112 : vector<1x7x9x64xbf16> to vector<7x9x64xbf16>
    %c0_136 = arith.constant 0 : index
    %c0_137 = arith.constant 0 : index
    %c0_138 = arith.constant 0 : index
    %114 = vector.load %arg11[%c0_136, %c0_137, %c0_138] : memref<7x16x560xbf16, #tpu.memory_space<vmem>>, vector<7x9x64xbf16>
    tpu.vector_store %arg11[%c0_136, %c0_137, %c0_138], %113 {strides = array<i32>} : memref<7x16x560xbf16, #tpu.memory_space<vmem>>, vector<7x9x64xbf16>,
    %c0_139 = arith.constant 0 : index
    %c0_140 = arith.constant 0 : index
    %c1_141 = arith.constant 1 : index
    %c0_142 = arith.constant 0 : index
    %115 = vector.load %arg10[%c0_139, %c0_140, %c1_141, %c0_142] : memref<2x9x10x64xbf16, #tpu.memory_space<vmem>>, vector<1x7x9x48xbf16>
    %116 = vector.shape_cast %115 : vector<1x7x9x48xbf16> to vector<7x9x48xbf16>
    %c0_143 = arith.constant 0 : index
    %c0_144 = arith.constant 0 : index
    %c64 = arith.constant 64 : index
    %117 = vector.load %arg11[%c0_143, %c0_144, %c64] : memref<7x16x560xbf16, #tpu.memory_space<vmem>>, vector<7x9x48xbf16>
    tpu.vector_store %arg11[%c0_143, %c0_144, %c64], %116 {strides = array<i32>} : memref<7x16x560xbf16, #tpu.memory_space<vmem>>, vector<7x9x48xbf16>,
    %c1_145 = arith.constant 1 : index
    %c0_146 = arith.constant 0 : index
    %c0_147 = arith.constant 0 : index
    %c0_148 = arith.constant 0 : index
    %118 = vector.load %arg10[%c1_145, %c0_146, %c0_147, %c0_148] : memref<2x9x10x64xbf16, #tpu.memory_space<vmem>>, vector<1x7x9x64xbf16>
    %119 = vector.shape_cast %118 : vector<1x7x9x64xbf16> to vector<7x9x64xbf16>
    %c0_149 = arith.constant 0 : index
    %c0_150 = arith.constant 0 : index
    %c112 = arith.constant 112 : index
    %120 = vector.load %arg11[%c0_149, %c0_150, %c112] : memref<7x16x560xbf16, #tpu.memory_space<vmem>>, vector<7x9x64xbf16>
    tpu.vector_store %arg11[%c0_149, %c0_150, %c112], %119 {strides = array<i32>} : memref<7x16x560xbf16, #tpu.memory_space<vmem>>, vector<7x9x64xbf16>,
    %c1_151 = arith.constant 1 : index
    %c0_152 = arith.constant 0 : index
    %c1_153 = arith.constant 1 : index
    %c0_154 = arith.constant 0 : index
    %121 = vector.load %arg10[%c1_151, %c0_152, %c1_153, %c0_154] : memref<2x9x10x64xbf16, #tpu.memory_space<vmem>>, vector<1x7x9x48xbf16>
    %122 = vector.shape_cast %121 : vector<1x7x9x48xbf16> to vector<7x9x48xbf16>
    %c0_155 = arith.constant 0 : index
    %c0_156 = arith.constant 0 : index
    %c176 = arith.constant 176 : index
    %123 = vector.load %arg11[%c0_155, %c0_156, %c176] : memref<7x16x560xbf16, #tpu.memory_space<vmem>>, vector<7x9x48xbf16>
    tpu.vector_store %arg11[%c0_155, %c0_156, %c176], %122 {strides = array<i32>} : memref<7x16x560xbf16, #tpu.memory_space<vmem>>, vector<7x9x48xbf16>,
    %c0_157 = arith.constant 0 : index
    %c1_158 = arith.constant 1 : index
    %c0_159 = arith.constant 0 : index
    %c0_160 = arith.constant 0 : index
    %124 = vector.load %arg10[%c0_157, %c1_158, %c0_159, %c0_160] : memref<2x9x10x64xbf16, #tpu.memory_space<vmem>>, vector<1x7x9x64xbf16>
    %125 = vector.shape_cast %124 : vector<1x7x9x64xbf16> to vector<7x9x64xbf16>
    %c0_161 = arith.constant 0 : index
    %c0_162 = arith.constant 0 : index
    %c224 = arith.constant 224 : index
    %126 = vector.load %arg11[%c0_161, %c0_162, %c224] : memref<7x16x560xbf16, #tpu.memory_space<vmem>>, vector<7x9x64xbf16>
    tpu.vector_store %arg11[%c0_161, %c0_162, %c224], %125 {strides = array<i32>} : memref<7x16x560xbf16, #tpu.memory_space<vmem>>, vector<7x9x64xbf16>,
    %c0_163 = arith.constant 0 : index
    %c1_164 = arith.constant 1 : index
    %c1_165 = arith.constant 1 : index
    %c0_166 = arith.constant 0 : index
    %127 = vector.load %arg10[%c0_163, %c1_164, %c1_165, %c0_166] : memref<2x9x10x64xbf16, #tpu.memory_space<vmem>>, vector<1x7x9x48xbf16>
    %128 = vector.shape_cast %127 : vector<1x7x9x48xbf16> to vector<7x9x48xbf16>
    %c0_167 = arith.constant 0 : index
    %c0_168 = arith.constant 0 : index
    %c288 = arith.constant 288 : index
    %129 = vector.load %arg11[%c0_167, %c0_168, %c288] : memref<7x16x560xbf16, #tpu.memory_space<vmem>>, vector<7x9x48xbf16>
    tpu.vector_store %arg11[%c0_167, %c0_168, %c288], %128 {strides = array<i32>} : memref<7x16x560xbf16, #tpu.memory_space<vmem>>, vector<7x9x48xbf16>,
    %c1_169 = arith.constant 1 : index
    %c1_170 = arith.constant 1 : index
    %c0_171 = arith.constant 0 : index
    %c0_172 = arith.constant 0 : index
    %130 = vector.load %arg10[%c1_169, %c1_170, %c0_171, %c0_172] : memref<2x9x10x64xbf16, #tpu.memory_space<vmem>>, vector<1x7x9x64xbf16>
    %131 = vector.shape_cast %130 : vector<1x7x9x64xbf16> to vector<7x9x64xbf16>
    %c0_173 = arith.constant 0 : index
    %c0_174 = arith.constant 0 : index
    %c336 = arith.constant 336 : index
    %132 = vector.load %arg11[%c0_173, %c0_174, %c336] : memref<7x16x560xbf16, #tpu.memory_space<vmem>>, vector<7x9x64xbf16>
    tpu.vector_store %arg11[%c0_173, %c0_174, %c336], %131 {strides = array<i32>} : memref<7x16x560xbf16, #tpu.memory_space<vmem>>, vector<7x9x64xbf16>,
    %c1_175 = arith.constant 1 : index
    %c1_176 = arith.constant 1 : index
    %c1_177 = arith.constant 1 : index
    %c0_178 = arith.constant 0 : index
    %133 = vector.load %arg10[%c1_175, %c1_176, %c1_177, %c0_178] : memref<2x9x10x64xbf16, #tpu.memory_space<vmem>>, vector<1x7x9x48xbf16>
    %134 = vector.shape_cast %133 : vector<1x7x9x48xbf16> to vector<7x9x48xbf16>
    %c0_179 = arith.constant 0 : index
    %c0_180 = arith.constant 0 : index
    %c400 = arith.constant 400 : index
    %135 = vector.load %arg11[%c0_179, %c0_180, %c400] : memref<7x16x560xbf16, #tpu.memory_space<vmem>>, vector<7x9x48xbf16>
    tpu.vector_store %arg11[%c0_179, %c0_180, %c400], %134 {strides = array<i32>} : memref<7x16x560xbf16, #tpu.memory_space<vmem>>, vector<7x9x48xbf16>,
    %c0_181 = arith.constant 0 : index
    %c2_182 = arith.constant 2 : index
    %c0_183 = arith.constant 0 : index
    %c0_184 = arith.constant 0 : index
    %136 = vector.load %arg10[%c0_181, %c2_182, %c0_183, %c0_184] : memref<2x9x10x64xbf16, #tpu.memory_space<vmem>>, vector<1x7x9x64xbf16>
    %137 = vector.shape_cast %136 : vector<1x7x9x64xbf16> to vector<7x9x64xbf16>
    %c0_185 = arith.constant 0 : index
    %c0_186 = arith.constant 0 : index
    %c448 = arith.constant 448 : index
    %138 = vector.load %arg11[%c0_185, %c0_186, %c448] : memref<7x16x560xbf16, #tpu.memory_space<vmem>>, vector<7x9x64xbf16>
    tpu.vector_store %arg11[%c0_185, %c0_186, %c448], %137 {strides = array<i32>} : memref<7x16x560xbf16, #tpu.memory_space<vmem>>, vector<7x9x64xbf16>,
    %c0_187 = arith.constant 0 : index
    %c2_188 = arith.constant 2 : index
    %c1_189 = arith.constant 1 : index
    %c0_190 = arith.constant 0 : index
    %139 = vector.load %arg10[%c0_187, %c2_188, %c1_189, %c0_190] : memref<2x9x10x64xbf16, #tpu.memory_space<vmem>>, vector<1x7x9x48xbf16>
    %140 = vector.shape_cast %139 : vector<1x7x9x48xbf16> to vector<7x9x48xbf16>
    %c0_191 = arith.constant 0 : index
    %c0_192 = arith.constant 0 : index
    %c512 = arith.constant 512 : index
    %141 = vector.load %arg11[%c0_191, %c0_192, %c512] : memref<7x16x560xbf16, #tpu.memory_space<vmem>>, vector<7x9x48xbf16>
    tpu.vector_store %arg11[%c0_191, %c0_192, %c512], %140 {strides = array<i32>} : memref<7x16x560xbf16, #tpu.memory_space<vmem>>, vector<7x9x48xbf16>,
    %c0_193 = arith.constant 0 : index
    %c0_194 = arith.constant 0 : index
    %c0_195 = arith.constant 0 : index
    %142 = vector.load %arg11[%c0_193, %c0_194, %c0_195] : memref<7x16x560xbf16, #tpu.memory_space<vmem>>, vector<7x16x560xbf16>
    %143 = vector.shape_cast %142 : vector<7x16x560xbf16> to vector<112x560xbf16>
    %c0_196 = arith.constant 0 : index
    %c0_197 = arith.constant 0 : index
    %144 = vector.load %arg3[%c0_196, %c0_197] : memref<560x64xbf16, #tpu.memory_space<vmem>>, vector<560x64xbf16>
    %cst_198 = arith.constant dense<0.000000e+00> : vector<112x64xf32>
    %145 = tpu.matmul %143, %144, %cst_198 {dimension_numbers = #tpu.dot_dimension_numbers<[1], [0], [0], [1], [0, 0, 1, 1], [], []>} : vector<112x560xbf16>, vector<560x64xbf16>, vector<112x64xf32> -> vector<112x64xf32>
    %c0_199 = arith.constant 0 : index
    %c0_200 = arith.constant 0 : index
    %146 = vector.load %arg6[%c0_199, %c0_200] : memref<1x64xf32, #tpu.memory_space<vmem>>, vector<1x64xf32>
    %147 = vector.broadcast %146 : vector<1x64xf32> to vector<112x64xf32>
    %148 = arith.addf %145, %147 : vector<112x64xf32>
    %cst_201 = arith.constant 0.000000e+00 : f32
    %149 = vector.broadcast %cst_201 : f32 to vector<112x64xf32>
    %150 = arith.maximumf %148, %149 : vector<112x64xf32>
    %151 = arith.truncf %150 : vector<112x64xf32> to vector<112x64xbf16>
    %152 = vector.extract_strided_slice %151 {offsets = [0, 0], sizes = [9, 64], strides = [1, 1]} : vector<112x64xbf16> to vector<9x64xbf16>
    %c0_202 = arith.constant 0 : index
    %c0_203 = arith.constant 0 : index
    %c0_204 = arith.constant 0 : index
    %c0_205 = arith.constant 0 : index
    %153 = vector.load %arg12[%c0_202, %c0_203, %c0_204, %c0_205] : memref<2x4x9x64xbf16, #tpu.memory_space<vmem>>, vector<1x1x9x64xbf16>
    %154 = vector.shape_cast %153 : vector<1x1x9x64xbf16> to vector<9x64xbf16>
    %155 = vector.shape_cast %152 : vector<9x64xbf16> to vector<1x1x9x64xbf16>
    tpu.vector_store %arg12[%c0_202, %c0_203, %c0_204, %c0_205], %155 {strides = array<i32>} : memref<2x4x9x64xbf16, #tpu.memory_space<vmem>>, vector<1x1x9x64xbf16>,
    %156 = vector.extract_strided_slice %151 {offsets = [16, 0], sizes = [9, 64], strides = [1, 1]} : vector<112x64xbf16> to vector<9x64xbf16>
    %c1_206 = arith.constant 1 : index
    %c0_207 = arith.constant 0 : index
    %c0_208 = arith.constant 0 : index
    %c0_209 = arith.constant 0 : index
    %157 = vector.load %arg12[%c1_206, %c0_207, %c0_208, %c0_209] : memref<2x4x9x64xbf16, #tpu.memory_space<vmem>>, vector<1x1x9x64xbf16>
    %158 = vector.shape_cast %157 : vector<1x1x9x64xbf16> to vector<9x64xbf16>
    %159 = vector.shape_cast %156 : vector<9x64xbf16> to vector<1x1x9x64xbf16>
    tpu.vector_store %arg12[%c1_206, %c0_207, %c0_208, %c0_209], %159 {strides = array<i32>} : memref<2x4x9x64xbf16, #tpu.memory_space<vmem>>, vector<1x1x9x64xbf16>,
    %160 = vector.extract_strided_slice %151 {offsets = [32, 0], sizes = [9, 64], strides = [1, 1]} : vector<112x64xbf16> to vector<9x64xbf16>
    %c0_210 = arith.constant 0 : index
    %c1_211 = arith.constant 1 : index
    %c0_212 = arith.constant 0 : index
    %c0_213 = arith.constant 0 : index
    %161 = vector.load %arg12[%c0_210, %c1_211, %c0_212, %c0_213] : memref<2x4x9x64xbf16, #tpu.memory_space<vmem>>, vector<1x1x9x64xbf16>
    %162 = vector.shape_cast %161 : vector<1x1x9x64xbf16> to vector<9x64xbf16>
    %163 = vector.shape_cast %160 : vector<9x64xbf16> to vector<1x1x9x64xbf16>
    tpu.vector_store %arg12[%c0_210, %c1_211, %c0_212, %c0_213], %163 {strides = array<i32>} : memref<2x4x9x64xbf16, #tpu.memory_space<vmem>>, vector<1x1x9x64xbf16>,
    %164 = vector.extract_strided_slice %151 {offsets = [48, 0], sizes = [9, 64], strides = [1, 1]} : vector<112x64xbf16> to vector<9x64xbf16>
    %c1_214 = arith.constant 1 : index
    %c1_215 = arith.constant 1 : index
    %c0_216 = arith.constant 0 : index
    %c0_217 = arith.constant 0 : index
    %165 = vector.load %arg12[%c1_214, %c1_215, %c0_216, %c0_217] : memref<2x4x9x64xbf16, #tpu.memory_space<vmem>>, vector<1x1x9x64xbf16>
    %166 = vector.shape_cast %165 : vector<1x1x9x64xbf16> to vector<9x64xbf16>
    %167 = vector.shape_cast %164 : vector<9x64xbf16> to vector<1x1x9x64xbf16>
    tpu.vector_store %arg12[%c1_214, %c1_215, %c0_216, %c0_217], %167 {strides = array<i32>} : memref<2x4x9x64xbf16, #tpu.memory_space<vmem>>, vector<1x1x9x64xbf16>,
    %168 = vector.extract_strided_slice %151 {offsets = [64, 0], sizes = [9, 64], strides = [1, 1]} : vector<112x64xbf16> to vector<9x64xbf16>
    %c0_218 = arith.constant 0 : index
    %c2_219 = arith.constant 2 : index
    %c0_220 = arith.constant 0 : index
    %c0_221 = arith.constant 0 : index
    %169 = vector.load %arg12[%c0_218, %c2_219, %c0_220, %c0_221] : memref<2x4x9x64xbf16, #tpu.memory_space<vmem>>, vector<1x1x9x64xbf16>
    %170 = vector.shape_cast %169 : vector<1x1x9x64xbf16> to vector<9x64xbf16>
    %171 = vector.shape_cast %168 : vector<9x64xbf16> to vector<1x1x9x64xbf16>
    tpu.vector_store %arg12[%c0_218, %c2_219, %c0_220, %c0_221], %171 {strides = array<i32>} : memref<2x4x9x64xbf16, #tpu.memory_space<vmem>>, vector<1x1x9x64xbf16>,
    %172 = vector.extract_strided_slice %151 {offsets = [80, 0], sizes = [9, 64], strides = [1, 1]} : vector<112x64xbf16> to vector<9x64xbf16>
    %c1_222 = arith.constant 1 : index
    %c2_223 = arith.constant 2 : index
    %c0_224 = arith.constant 0 : index
    %c0_225 = arith.constant 0 : index
    %173 = vector.load %arg12[%c1_222, %c2_223, %c0_224, %c0_225] : memref<2x4x9x64xbf16, #tpu.memory_space<vmem>>, vector<1x1x9x64xbf16>
    %174 = vector.shape_cast %173 : vector<1x1x9x64xbf16> to vector<9x64xbf16>
    %175 = vector.shape_cast %172 : vector<9x64xbf16> to vector<1x1x9x64xbf16>
    tpu.vector_store %arg12[%c1_222, %c2_223, %c0_224, %c0_225], %175 {strides = array<i32>} : memref<2x4x9x64xbf16, #tpu.memory_space<vmem>>, vector<1x1x9x64xbf16>,
    %176 = vector.extract_strided_slice %151 {offsets = [96, 0], sizes = [9, 64], strides = [1, 1]} : vector<112x64xbf16> to vector<9x64xbf16>
    %c0_226 = arith.constant 0 : index
    %c3_227 = arith.constant 3 : index
    %c0_228 = arith.constant 0 : index
    %c0_229 = arith.constant 0 : index
    %177 = vector.load %arg12[%c0_226, %c3_227, %c0_228, %c0_229] : memref<2x4x9x64xbf16, #tpu.memory_space<vmem>>, vector<1x1x9x64xbf16>
    %178 = vector.shape_cast %177 : vector<1x1x9x64xbf16> to vector<9x64xbf16>
    %179 = vector.shape_cast %176 : vector<9x64xbf16> to vector<1x1x9x64xbf16>
    tpu.vector_store %arg12[%c0_226, %c3_227, %c0_228, %c0_229], %179 {strides = array<i32>} : memref<2x4x9x64xbf16, #tpu.memory_space<vmem>>, vector<1x1x9x64xbf16>,
    %c0_230 = arith.constant 0 : index
    %c0_231 = arith.constant 0 : index
    %c0_232 = arith.constant 0 : index
    %c0_233 = arith.constant 0 : index
    %180 = vector.load %arg12[%c0_230, %c0_231, %c0_232, %c0_233] : memref<2x4x9x64xbf16, #tpu.memory_space<vmem>>, vector<1x2x7x64xbf16>
    %181 = vector.shape_cast %180 : vector<1x2x7x64xbf16> to vector<2x7x64xbf16>
    %c0_234 = arith.constant 0 : index
    %c0_235 = arith.constant 0 : index
    %c0_236 = arith.constant 0 : index
    %182 = vector.load %arg13[%c0_234, %c0_235, %c0_236] : memref<2x16x800xbf16, #tpu.memory_space<vmem>>, vector<2x7x64xbf16>
    tpu.vector_store %arg13[%c0_234, %c0_235, %c0_236], %181 {strides = array<i32>} : memref<2x16x800xbf16, #tpu.memory_space<vmem>>, vector<2x7x64xbf16>,
    %c0_237 = arith.constant 0 : index
    %c0_238 = arith.constant 0 : index
    %c1_239 = arith.constant 1 : index
    %c0_240 = arith.constant 0 : index
    %183 = vector.load %arg12[%c0_237, %c0_238, %c1_239, %c0_240] : memref<2x4x9x64xbf16, #tpu.memory_space<vmem>>, vector<1x2x7x64xbf16>
    %184 = vector.shape_cast %183 : vector<1x2x7x64xbf16> to vector<2x7x64xbf16>
    %c0_241 = arith.constant 0 : index
    %c0_242 = arith.constant 0 : index
    %c64_243 = arith.constant 64 : index
    %185 = vector.load %arg13[%c0_241, %c0_242, %c64_243] : memref<2x16x800xbf16, #tpu.memory_space<vmem>>, vector<2x7x64xbf16>
    tpu.vector_store %arg13[%c0_241, %c0_242, %c64_243], %184 {strides = array<i32>} : memref<2x16x800xbf16, #tpu.memory_space<vmem>>, vector<2x7x64xbf16>,
    %c0_244 = arith.constant 0 : index
    %c0_245 = arith.constant 0 : index
    %c2_246 = arith.constant 2 : index
    %c0_247 = arith.constant 0 : index
    %186 = vector.load %arg12[%c0_244, %c0_245, %c2_246, %c0_247] : memref<2x4x9x64xbf16, #tpu.memory_space<vmem>>, vector<1x2x7x32xbf16>
    %187 = vector.shape_cast %186 : vector<1x2x7x32xbf16> to vector<2x7x32xbf16>
    %c0_248 = arith.constant 0 : index
    %c0_249 = arith.constant 0 : index
    %c128 = arith.constant 128 : index
    %188 = vector.load %arg13[%c0_248, %c0_249, %c128] : memref<2x16x800xbf16, #tpu.memory_space<vmem>>, vector<2x7x32xbf16>
    tpu.vector_store %arg13[%c0_248, %c0_249, %c128], %187 {strides = array<i32>} : memref<2x16x800xbf16, #tpu.memory_space<vmem>>, vector<2x7x32xbf16>,
    %c1_250 = arith.constant 1 : index
    %c0_251 = arith.constant 0 : index
    %c0_252 = arith.constant 0 : index
    %c0_253 = arith.constant 0 : index
    %189 = vector.load %arg12[%c1_250, %c0_251, %c0_252, %c0_253] : memref<2x4x9x64xbf16, #tpu.memory_space<vmem>>, vector<1x2x7x64xbf16>
    %190 = vector.shape_cast %189 : vector<1x2x7x64xbf16> to vector<2x7x64xbf16>
    %c0_254 = arith.constant 0 : index
    %c0_255 = arith.constant 0 : index
    %c160 = arith.constant 160 : index
    %191 = vector.load %arg13[%c0_254, %c0_255, %c160] : memref<2x16x800xbf16, #tpu.memory_space<vmem>>, vector<2x7x64xbf16>
    tpu.vector_store %arg13[%c0_254, %c0_255, %c160], %190 {strides = array<i32>} : memref<2x16x800xbf16, #tpu.memory_space<vmem>>, vector<2x7x64xbf16>,
    %c1_256 = arith.constant 1 : index
    %c0_257 = arith.constant 0 : index
    %c1_258 = arith.constant 1 : index
    %c0_259 = arith.constant 0 : index
    %192 = vector.load %arg12[%c1_256, %c0_257, %c1_258, %c0_259] : memref<2x4x9x64xbf16, #tpu.memory_space<vmem>>, vector<1x2x7x64xbf16>
    %193 = vector.shape_cast %192 : vector<1x2x7x64xbf16> to vector<2x7x64xbf16>
    %c0_260 = arith.constant 0 : index
    %c0_261 = arith.constant 0 : index
    %c224_262 = arith.constant 224 : index
    %194 = vector.load %arg13[%c0_260, %c0_261, %c224_262] : memref<2x16x800xbf16, #tpu.memory_space<vmem>>, vector<2x7x64xbf16>
    tpu.vector_store %arg13[%c0_260, %c0_261, %c224_262], %193 {strides = array<i32>} : memref<2x16x800xbf16, #tpu.memory_space<vmem>>, vector<2x7x64xbf16>,
    %c1_263 = arith.constant 1 : index
    %c0_264 = arith.constant 0 : index
    %c2_265 = arith.constant 2 : index
    %c0_266 = arith.constant 0 : index
    %195 = vector.load %arg12[%c1_263, %c0_264, %c2_265, %c0_266] : memref<2x4x9x64xbf16, #tpu.memory_space<vmem>>, vector<1x2x7x32xbf16>
    %196 = vector.shape_cast %195 : vector<1x2x7x32xbf16> to vector<2x7x32xbf16>
    %c0_267 = arith.constant 0 : index
    %c0_268 = arith.constant 0 : index
    %c288_269 = arith.constant 288 : index
    %197 = vector.load %arg13[%c0_267, %c0_268, %c288_269] : memref<2x16x800xbf16, #tpu.memory_space<vmem>>, vector<2x7x32xbf16>
    tpu.vector_store %arg13[%c0_267, %c0_268, %c288_269], %196 {strides = array<i32>} : memref<2x16x800xbf16, #tpu.memory_space<vmem>>, vector<2x7x32xbf16>,
    %c0_270 = arith.constant 0 : index
    %c1_271 = arith.constant 1 : index
    %c0_272 = arith.constant 0 : index
    %c0_273 = arith.constant 0 : index
    %198 = vector.load %arg12[%c0_270, %c1_271, %c0_272, %c0_273] : memref<2x4x9x64xbf16, #tpu.memory_space<vmem>>, vector<1x2x7x64xbf16>
    %199 = vector.shape_cast %198 : vector<1x2x7x64xbf16> to vector<2x7x64xbf16>
    %c0_274 = arith.constant 0 : index
    %c0_275 = arith.constant 0 : index
    %c320 = arith.constant 320 : index
    %200 = vector.load %arg13[%c0_274, %c0_275, %c320] : memref<2x16x800xbf16, #tpu.memory_space<vmem>>, vector<2x7x64xbf16>
    tpu.vector_store %arg13[%c0_274, %c0_275, %c320], %199 {strides = array<i32>} : memref<2x16x800xbf16, #tpu.memory_space<vmem>>, vector<2x7x64xbf16>,
    %c0_276 = arith.constant 0 : index
    %c1_277 = arith.constant 1 : index
    %c1_278 = arith.constant 1 : index
    %c0_279 = arith.constant 0 : index
    %201 = vector.load %arg12[%c0_276, %c1_277, %c1_278, %c0_279] : memref<2x4x9x64xbf16, #tpu.memory_space<vmem>>, vector<1x2x7x64xbf16>
    %202 = vector.shape_cast %201 : vector<1x2x7x64xbf16> to vector<2x7x64xbf16>
    %c0_280 = arith.constant 0 : index
    %c0_281 = arith.constant 0 : index
    %c384 = arith.constant 384 : index
    %203 = vector.load %arg13[%c0_280, %c0_281, %c384] : memref<2x16x800xbf16, #tpu.memory_space<vmem>>, vector<2x7x64xbf16>
    tpu.vector_store %arg13[%c0_280, %c0_281, %c384], %202 {strides = array<i32>} : memref<2x16x800xbf16, #tpu.memory_space<vmem>>, vector<2x7x64xbf16>,
    %c0_282 = arith.constant 0 : index
    %c1_283 = arith.constant 1 : index
    %c2_284 = arith.constant 2 : index
    %c0_285 = arith.constant 0 : index
    %204 = vector.load %arg12[%c0_282, %c1_283, %c2_284, %c0_285] : memref<2x4x9x64xbf16, #tpu.memory_space<vmem>>, vector<1x2x7x32xbf16>
    %205 = vector.shape_cast %204 : vector<1x2x7x32xbf16> to vector<2x7x32xbf16>
    %c0_286 = arith.constant 0 : index
    %c0_287 = arith.constant 0 : index
    %c448_288 = arith.constant 448 : index
    %206 = vector.load %arg13[%c0_286, %c0_287, %c448_288] : memref<2x16x800xbf16, #tpu.memory_space<vmem>>, vector<2x7x32xbf16>
    tpu.vector_store %arg13[%c0_286, %c0_287, %c448_288], %205 {strides = array<i32>} : memref<2x16x800xbf16, #tpu.memory_space<vmem>>, vector<2x7x32xbf16>,
    %c1_289 = arith.constant 1 : index
    %c1_290 = arith.constant 1 : index
    %c0_291 = arith.constant 0 : index
    %c0_292 = arith.constant 0 : index
    %207 = vector.load %arg12[%c1_289, %c1_290, %c0_291, %c0_292] : memref<2x4x9x64xbf16, #tpu.memory_space<vmem>>, vector<1x2x7x64xbf16>
    %208 = vector.shape_cast %207 : vector<1x2x7x64xbf16> to vector<2x7x64xbf16>
    %c0_293 = arith.constant 0 : index
    %c0_294 = arith.constant 0 : index
    %c480 = arith.constant 480 : index
    %209 = vector.load %arg13[%c0_293, %c0_294, %c480] : memref<2x16x800xbf16, #tpu.memory_space<vmem>>, vector<2x7x64xbf16>
    tpu.vector_store %arg13[%c0_293, %c0_294, %c480], %208 {strides = array<i32>} : memref<2x16x800xbf16, #tpu.memory_space<vmem>>, vector<2x7x64xbf16>,
    %c1_295 = arith.constant 1 : index
    %c1_296 = arith.constant 1 : index
    %c1_297 = arith.constant 1 : index
    %c0_298 = arith.constant 0 : index
    %210 = vector.load %arg12[%c1_295, %c1_296, %c1_297, %c0_298] : memref<2x4x9x64xbf16, #tpu.memory_space<vmem>>, vector<1x2x7x64xbf16>
    %211 = vector.shape_cast %210 : vector<1x2x7x64xbf16> to vector<2x7x64xbf16>
    %c0_299 = arith.constant 0 : index
    %c0_300 = arith.constant 0 : index
    %c544 = arith.constant 544 : index
    %212 = vector.load %arg13[%c0_299, %c0_300, %c544] : memref<2x16x800xbf16, #tpu.memory_space<vmem>>, vector<2x7x64xbf16>
    tpu.vector_store %arg13[%c0_299, %c0_300, %c544], %211 {strides = array<i32>} : memref<2x16x800xbf16, #tpu.memory_space<vmem>>, vector<2x7x64xbf16>,
    %c1_301 = arith.constant 1 : index
    %c1_302 = arith.constant 1 : index
    %c2_303 = arith.constant 2 : index
    %c0_304 = arith.constant 0 : index
    %213 = vector.load %arg12[%c1_301, %c1_302, %c2_303, %c0_304] : memref<2x4x9x64xbf16, #tpu.memory_space<vmem>>, vector<1x2x7x32xbf16>
    %214 = vector.shape_cast %213 : vector<1x2x7x32xbf16> to vector<2x7x32xbf16>
    %c0_305 = arith.constant 0 : index
    %c0_306 = arith.constant 0 : index
    %c608 = arith.constant 608 : index
    %215 = vector.load %arg13[%c0_305, %c0_306, %c608] : memref<2x16x800xbf16, #tpu.memory_space<vmem>>, vector<2x7x32xbf16>
    tpu.vector_store %arg13[%c0_305, %c0_306, %c608], %214 {strides = array<i32>} : memref<2x16x800xbf16, #tpu.memory_space<vmem>>, vector<2x7x32xbf16>,
    %c0_307 = arith.constant 0 : index
    %c2_308 = arith.constant 2 : index
    %c0_309 = arith.constant 0 : index
    %c0_310 = arith.constant 0 : index
    %216 = vector.load %arg12[%c0_307, %c2_308, %c0_309, %c0_310] : memref<2x4x9x64xbf16, #tpu.memory_space<vmem>>, vector<1x2x7x64xbf16>
    %217 = vector.shape_cast %216 : vector<1x2x7x64xbf16> to vector<2x7x64xbf16>
    %c0_311 = arith.constant 0 : index
    %c0_312 = arith.constant 0 : index
    %c640 = arith.constant 640 : index
    %218 = vector.load %arg13[%c0_311, %c0_312, %c640] : memref<2x16x800xbf16, #tpu.memory_space<vmem>>, vector<2x7x64xbf16>
    tpu.vector_store %arg13[%c0_311, %c0_312, %c640], %217 {strides = array<i32>} : memref<2x16x800xbf16, #tpu.memory_space<vmem>>, vector<2x7x64xbf16>,
    %c0_313 = arith.constant 0 : index
    %c2_314 = arith.constant 2 : index
    %c1_315 = arith.constant 1 : index
    %c0_316 = arith.constant 0 : index
    %219 = vector.load %arg12[%c0_313, %c2_314, %c1_315, %c0_316] : memref<2x4x9x64xbf16, #tpu.memory_space<vmem>>, vector<1x2x7x64xbf16>
    %220 = vector.shape_cast %219 : vector<1x2x7x64xbf16> to vector<2x7x64xbf16>
    %c0_317 = arith.constant 0 : index
    %c0_318 = arith.constant 0 : index
    %c704 = arith.constant 704 : index
    %221 = vector.load %arg13[%c0_317, %c0_318, %c704] : memref<2x16x800xbf16, #tpu.memory_space<vmem>>, vector<2x7x64xbf16>
    tpu.vector_store %arg13[%c0_317, %c0_318, %c704], %220 {strides = array<i32>} : memref<2x16x800xbf16, #tpu.memory_space<vmem>>, vector<2x7x64xbf16>,
    %c0_319 = arith.constant 0 : index
    %c2_320 = arith.constant 2 : index
    %c2_321 = arith.constant 2 : index
    %c0_322 = arith.constant 0 : index
    %222 = vector.load %arg12[%c0_319, %c2_320, %c2_321, %c0_322] : memref<2x4x9x64xbf16, #tpu.memory_space<vmem>>, vector<1x2x7x32xbf16>
    %223 = vector.shape_cast %222 : vector<1x2x7x32xbf16> to vector<2x7x32xbf16>
    %c0_323 = arith.constant 0 : index
    %c0_324 = arith.constant 0 : index
    %c768 = arith.constant 768 : index
    %224 = vector.load %arg13[%c0_323, %c0_324, %c768] : memref<2x16x800xbf16, #tpu.memory_space<vmem>>, vector<2x7x32xbf16>
    tpu.vector_store %arg13[%c0_323, %c0_324, %c768], %223 {strides = array<i32>} : memref<2x16x800xbf16, #tpu.memory_space<vmem>>, vector<2x7x32xbf16>,
    %c0_325 = arith.constant 0 : index
    %c0_326 = arith.constant 0 : index
    %c0_327 = arith.constant 0 : index
    %225 = vector.load %arg13[%c0_325, %c0_326, %c0_327] : memref<2x16x800xbf16, #tpu.memory_space<vmem>>, vector<2x16x800xbf16>
    %226 = vector.shape_cast %225 : vector<2x16x800xbf16> to vector<32x800xbf16>
    %c0_328 = arith.constant 0 : index
    %c0_329 = arith.constant 0 : index
    %227 = vector.load %arg4[%c0_328, %c0_329] : memref<800x32xbf16, #tpu.memory_space<vmem>>, vector<800x32xbf16>
    %cst_330 = arith.constant dense<0.000000e+00> : vector<32x32xf32>
    %228 = tpu.matmul %226, %227, %cst_330 {dimension_numbers = #tpu.dot_dimension_numbers<[1], [0], [0], [1], [0, 0, 1, 1], [], []>} : vector<32x800xbf16>, vector<800x32xbf16>, vector<32x32xf32> -> vector<32x32xf32>
    %c0_331 = arith.constant 0 : index
    %c0_332 = arith.constant 0 : index
    %229 = vector.load %arg7[%c0_331, %c0_332] : memref<1x32xf32, #tpu.memory_space<vmem>>, vector<1x32xf32>
    %230 = vector.broadcast %229 : vector<1x32xf32> to vector<32x32xf32>
    %231 = arith.addf %228, %230 : vector<32x32xf32>
    %cst_333 = arith.constant 0.000000e+00 : f32
    %232 = vector.broadcast %cst_333 : f32 to vector<32x32xf32>
    %233 = arith.maximumf %231, %232 : vector<32x32xf32>
    %234 = vector.extract_strided_slice %233 {offsets = [0, 0], sizes = [7, 32], strides = [1, 1]} : vector<32x32xf32> to vector<7x32xf32>
    %c0_334 = arith.constant 0 : index
    %c0_335 = arith.constant 0 : index
    %c0_336 = arith.constant 0 : index
    %c0_337 = arith.constant 0 : index
    %235 = vector.load %arg8[%c0_334, %c0_335, %c0_336, %c0_337] : memref<1x2x7x32xf32, #tpu.memory_space<vmem>>, vector<1x1x7x32xf32>
    %236 = vector.shape_cast %235 : vector<1x1x7x32xf32> to vector<7x32xf32>
    %237 = vector.shape_cast %234 : vector<7x32xf32> to vector<1x1x7x32xf32>
    tpu.vector_store %arg8[%c0_334, %c0_335, %c0_336, %c0_337], %237 {strides = array<i32>} : memref<1x2x7x32xf32, #tpu.memory_space<vmem>>, vector<1x1x7x32xf32>,
    %238 = vector.extract_strided_slice %233 {offsets = [16, 0], sizes = [7, 32], strides = [1, 1]} : vector<32x32xf32> to vector<7x32xf32>
    %c0_338 = arith.constant 0 : index
    %c1_339 = arith.constant 1 : index
    %c0_340 = arith.constant 0 : index
    %c0_341 = arith.constant 0 : index
    %239 = vector.load %arg8[%c0_338, %c1_339, %c0_340, %c0_341] : memref<1x2x7x32xf32, #tpu.memory_space<vmem>>, vector<1x1x7x32xf32>
    %240 = vector.shape_cast %239 : vector<1x1x7x32xf32> to vector<7x32xf32>
    %241 = vector.shape_cast %238 : vector<7x32xf32> to vector<1x1x7x32xf32>
    tpu.vector_store %arg8[%c0_338, %c1_339, %c0_340, %c0_341], %241 {strides = array<i32>} : memref<1x2x7x32xf32, #tpu.memory_space<vmem>>, vector<1x1x7x32xf32>,
    return
  }
  func.func @transform_0(%arg0: i32) -> (i32, i32, i32, i32) {
    %c0_i32 = arith.constant 0 : i32
    %c0_i32_0 = arith.constant 0 : i32
    %c0_i32_1 = arith.constant 0 : i32
    %c0_i32_2 = arith.constant 0 : i32
    return %arg0, %c0_i32, %c0_i32_0, %c0_i32_1 : i32, i32, i32, i32
  }
  func.func @transform_1(%arg0: i32) -> (i32, i32) {
    %c0_i32 = arith.constant 0 : i32
    %c0_i32_0 = arith.constant 0 : i32
    %c0_i32_1 = arith.constant 0 : i32
    return %c0_i32, %c0_i32_0 : i32, i32
  }
  func.func @transform_2(%arg0: i32) -> (i32, i32) {
    %c0_i32 = arith.constant 0 : i32
    %c0_i32_0 = arith.constant 0 : i32
    %c0_i32_1 = arith.constant 0 : i32
    return %c0_i32, %c0_i32_0 : i32, i32
  }
  func.func @transform_3(%arg0: i32) -> (i32, i32) {
    %c0_i32 = arith.constant 0 : i32
    %c0_i32_0 = arith.constant 0 : i32
    %c0_i32_1 = arith.constant 0 : i32
    return %c0_i32, %c0_i32_0 : i32, i32
  }
  func.func @transform_4(%arg0: i32) -> (i32, i32) {
    %c0_i32 = arith.constant 0 : i32
    %c0_i32_0 = arith.constant 0 : i32
    %c0_i32_1 = arith.constant 0 : i32
    return %c0_i32, %c0_i32_0 : i32, i32
  }
  func.func @transform_5(%arg0: i32) -> (i32, i32) {
    %c0_i32 = arith.constant 0 : i32
    %c0_i32_0 = arith.constant 0 : i32
    %c0_i32_1 = arith.constant 0 : i32
    return %c0_i32, %c0_i32_0 : i32, i32
  }
  func.func @transform_6(%arg0: i32) -> (i32, i32) {
    %c0_i32 = arith.constant 0 : i32
    %c0_i32_0 = arith.constant 0 : i32
    %c0_i32_1 = arith.constant 0 : i32
    return %c0_i32, %c0_i32_0 : i32, i32
  }
  func.func @transform_7(%arg0: i32) -> (i32, i32, i32, i32) {
    %c0_i32 = arith.constant 0 : i32
    %c0_i32_0 = arith.constant 0 : i32
    %c0_i32_1 = arith.constant 0 : i32
    %c0_i32_2 = arith.constant 0 : i32
    return %arg0, %c0_i32, %c0_i32_0, %c0_i32_1 : i32, i32, i32, i32
  }
}

</mosaic_0001>

<llo_original>
// kernel: tile.14
$region0: #{tile.14}
  #allocation0 [shape = 's32[1]{0}', space=sflag, size = 0x4, scoped, tag = 'scoped memory for tile.14']
  %s0 = inlined_call_operand.vmem [shape: f32[16], index: 0, kind: input, shape index: {}]
  %s1 = inlined_call_operand.vmem [shape: f32[4,16], index: 1, kind: output, shape index: {}]
  // Predicated region
  $region2: #{tile.14} parent=0 // pred_check
    _
  $region3: #{tile.14} parent=0 // pred_check_branch
    %3 = sbr.rel (0) target = $region5
  $region4: #{tile.14} parent=0 // pred_region
    _
  $region5: #{tile.14} parent=0 // pred_fallthru
    _
  %v4 = vld [vmem:[%s0] ss:$0 sm:$0xff]
  %5 = vst [vmem:[%s1] sm:$0xf] %v4

// kernel: tile.15
$region0: #{tile.15}
  %s0 = inlined_call_operand.vmem [shape: f32[4,16], index: 0, kind: input, shape index: {}]
  %s1 = inlined_call_operand.vmem [shape: f32[1,64], index: 1, kind: output, shape index: {}]
  $region1: #{tile.15} parent=0
    #allocation0 [shape = 'u8[4096]{0}', space=vmem, size = 0x1000, scoped, tag = 'scoped mem for output reshape']
    #allocation1 [shape = 'u8[4096]{0}', space=vmem, size = 0x1000, scoped, tag = 'scoped mem for input reshape']
    %s3 = sshllo.u32 0, 4
    %v4 = vld [vmem:[%s0] sm:%s3]
    %5 = vst [vmem:[#allocation1] sm:%s3] %v4
    %v6 = vld [vmem:[#allocation1] sm:$0x1]
    %vm7 = vcmask 130048
    %8 = vst.msk [vmem:[#allocation0] sm:$0x1] %vm7, %v6
    %s9 = scalar_lea.vmem [#allocation1], 3
    %v10 = vld [vmem:[%s9] sm:$0x1]
    %11 = vrot.lane.b32.xlu0 %v10, 48
    %v12 = vpop.permute.xlu0 %11
    %vm13 = vcmask 523648
    %14 = vst.msk [vmem:[#allocation0] sm:$0x1] %vm13, %v12
    %s15 = scalar_lea.vmem [#allocation1], 2
    %v16 = vld [vmem:[%s15] sm:$0x1]
    %17 = vrot.lane.b32.xlu0 %v16, 32
    %v18 = vpop.permute.xlu0 %17
    %vm19 = vcmask 392448
    %20 = vst.msk [vmem:[#allocation0] sm:$0x1] %vm19, %v18
    %s21 = scalar_lea.vmem [#allocation1], 1
    %v22 = vld [vmem:[%s21] sm:$0x1]
    %23 = vrot.lane.b32.xlu0 %v22, 16
    %v24 = vpop.permute.xlu0 %23
    %vm25 = vcmask 261248
    %26 = vst.msk [vmem:[#allocation0] sm:$0x1] %vm25, %v24
    %s28 = sshllo.u32 0, 1
    %v30 = vld [vmem:[#allocation0] sm:%s28]
    %s31 = sshllo.u32 0, 1
    %32 = vst [vmem:[%s1] sm:%s31] %v30

// kernel: tile.19
$region0: #{tile.19}
  #allocation0 [shape = 's32[1]{0}', space=sflag, size = 0x4, scoped, tag = 'scoped memory for tile.19']
  %s0 = inlined_call_operand.vmem [shape: f32[32], index: 0, kind: input, shape index: {}]
  %s1 = inlined_call_operand.vmem [shape: f32[2,32], index: 1, kind: output, shape index: {}]
  // Predicated region
  $region2: #{tile.19} parent=0 // pred_check
    _
  $region3: #{tile.19} parent=0 // pred_check_branch
    %3 = sbr.rel (0) target = $region5
  $region4: #{tile.19} parent=0 // pred_region
    _
  $region5: #{tile.19} parent=0 // pred_fallthru
    _
  %v4 = vld [vmem:[%s0] ss:$0 sm:$0xff]
  %5 = vst [vmem:[%s1] sm:$0x3] %v4

// kernel: tile.20
$region0: #{tile.20}
  %s0 = inlined_call_operand.vmem [shape: f32[2,32], index: 0, kind: input, shape index: {}]
  %s1 = inlined_call_operand.vmem [shape: f32[1,64], index: 1, kind: output, shape index: {}]
  $region1: #{tile.20} parent=0
    #allocation0 [shape = 'u8[4096]{0}', space=vmem, size = 0x1000, scoped, tag = 'scoped mem for output reshape']
    #allocation1 [shape = 'u8[4096]{0}', space=vmem, size = 0x1000, scoped, tag = 'scoped mem for input reshape']
    %s3 = sshllo.u32 0, 2
    %v4 = vld [vmem:[%s0] sm:%s3]
    %5 = vst [vmem:[#allocation1] sm:%s3] %v4
    %v6 = vld [vmem:[#allocation1] sm:$0x1]
    %vm7 = vcmask 261120
    %8 = vst.msk [vmem:[#allocation0] sm:$0x1] %vm7, %v6
    %s9 = scalar_lea.vmem [#allocation1], 1
    %v10 = vld [vmem:[%s9] sm:$0x1]
    %11 = vrot.lane.b32.xlu0 %v10, 32
    %v12 = vpop.permute.xlu0 %11
    %vm13 = vcmask 523520
    %14 = vst.msk [vmem:[#allocation0] sm:$0x1] %vm13, %v12
    %s16 = sshllo.u32 0, 1
    %v18 = vld [vmem:[#allocation0] sm:%s16]
    %s19 = sshllo.u32 0, 1
    %20 = vst [vmem:[%s1] sm:%s19] %v18

// kernel: convnn_forward.1
$region0: #{convnn_forward.1}
  #allocation0 [shape = 'u32[]', space=smem, size = 0x4, offset = 0x4, fixed_abs, tag = 'smem constant byte address 0x4 - core index']
  #allocation1 [shape = 'u32[144,128]{1,0:T(1,128)}', space=vmem, size = 0x12000, scoped, tag = 'internal scratch']
  #allocation2 [shape = 'bf16[18,16,165]{2,1,0:T(16,128)(2,1)}', space=vmem, size = 0x24000, scoped, tag = 'scratch operand']
  #allocation3 [shape = 'bf16[2,9,10,64]{3,2,1,0:T(8,128)(2,1)}', space=vmem, size = 0x12000, scoped, tag = 'scratch operand']
  #allocation4 [shape = 'bf16[7,16,560]{2,1,0:T(16,128)(2,1)}', space=vmem, size = 0x23000, scoped, tag = 'scratch operand']
  #allocation5 [shape = 'bf16[2,4,9,64]{3,2,1,0:T(8,128)(2,1)}', space=vmem, size = 0x8000, scoped, tag = 'scratch operand']
  #allocation6 [shape = 'bf16[2,16,800]{2,1,0:T(16,128)(2,1)}', space=vmem, size = 0xe000, scoped, tag = 'scratch operand']
  %s0 = inlined_call_operand.vmem [shape: bf16[4,20,11,24], index: 0, kind: input, shape index: {}]
  %s1 = inlined_call_operand.vmem [shape: bf16[165,64], index: 1, kind: input, shape index: {}]
  %s2 = inlined_call_operand.vmem [shape: bf16[560,64], index: 2, kind: input, shape index: {}]
  %s3 = inlined_call_operand.vmem [shape: bf16[800,32], index: 3, kind: input, shape index: {}]
  %s4 = inlined_call_operand.vmem [shape: f32[1,64], index: 4, kind: input, shape index: {}]
  %s5 = inlined_call_operand.vmem [shape: f32[1,64], index: 5, kind: input, shape index: {}]
  %s6 = inlined_call_operand.vmem [shape: f32[1,32], index: 6, kind: input, shape index: {}]
  %s7 = inlined_call_operand.vmem [shape: f32[2,2,7,32], index: 7, kind: output, shape index: {}]
  %s8 = sld [smem:[#allocation0]]
  $region61: #{convnn_forward.1} parent=0
    _
  %s10 = ssub.s32 1, %s8
  %s11 = scalar_select 0, %s10, %s8
  loop: start=0, step=1, limit=4
  $region2: #{convnn_forward.1} parent=0 // loop_pre_header
    _
  $region3: #{convnn_forward.1} parent=0 // loop_header
    %s13 = sphi 0, %s17
    %p14 = scmp.ge.s32.totalorder %s13, 4
    %s23 = sphi 0, %s25
    %s26 = sphi 0, %s23
    %s27 = sphi 0, %s26
    %s43 = sphi 0, %s27
    %s47 = sphi 0, %s47
    %s49 = sphi 0, %s47
    %s50 = sphi 0, %s49
    %s64 = sphi 0, %s50
    %s68 = sphi 0, %s68
    %s70 = sphi 0, %s68
    %s71 = sphi 0, %s70
    %s85 = sphi 0, %s71
    %s89 = sphi 0, %s89
    %s91 = sphi 0, %s89
    %s92 = sphi 0, %s91
    %s106 = sphi 0, %s92
    %s110 = sphi 0, %s110
    %s112 = sphi 0, %s110
    %s113 = sphi 0, %s112
    %s127 = sphi 0, %s113
    %s131 = sphi 0, %s131
    %s133 = sphi 0, %s131
    %s134 = sphi 0, %s133
    %s148 = sphi 0, %s134
    %s152 = sphi 0, %s152
    %s154 = sphi 0, %s152
    %s155 = sphi 0, %s154
    %s169 = sphi 0, %s155
    %s175 = sphi 0, %s177
    %s178 = sphi 0, %s175
    %s179 = sphi 0, %s178
    %s195 = sphi 0, %s179
  $region4: #{convnn_forward.1} parent=0 // loop_header_branch
    %16 = sbr.rel (%p14) target = $region8
  $region5: #{convnn_forward.1} parent=0 // loop_body
    %s18 = ssub.s32 %s13, 1
    %s19 = ssub.s32 %s13, 2
    %s20 = sadd.s32 %s13, 1
    %s21 = ssub.s32 %s13, %s20
    %p22 = scmp.eq.s32.totalorder %s21, 0
    %s24 = sadd.s32 %s23, 1
    %s25 = scalar_select %p22, %s23, %s24
    %p28 = pneg %p22
    %p29 = scmp.eq.s32.totalorder %s13, 1
    %p30 = por %p28, %p29
    %p31 = scmp.ne.s32.totalorder %s23, %s26
    %p32 = scmp.eq.s32.totalorder %s13, 0
    %p33 = por %p31, %p32
    %p34 = scmp.ne.s32.totalorder %s23, %s26
    %p35 = scmp.eq.s32.totalorder %s18, 1
    %p36 = por %p34, %p35
    %p37 = scmp.ne.s32.totalorder %s26, %s27
    %p38 = scmp.eq.s32.totalorder %s18, 0
    %p39 = por %p37, %p38
    %p40 = scmp.ne.s32.totalorder %s26, %s27
    %p41 = scmp.eq.s32.totalorder %s19, 1
    %p42 = por %p40, %p41
    %p44 = scmp.ne.s32.totalorder %s27, %s43
    %p45 = scmp.eq.s32.totalorder %s19, 0
    %p46 = por %p44, %p45
    %s48 = sadd.s32 %s47, 1
    %p51 = scmp.eq.s32.totalorder %s13, 1
    %p52 = scmp.ne.s32.totalorder %s47, %s49
    %p53 = scmp.eq.s32.totalorder %s13, 0
    %p54 = por %p52, %p53
    %p55 = scmp.ne.s32.totalorder %s47, %s49
    %p56 = scmp.eq.s32.totalorder %s18, 1
    %p57 = por %p55, %p56
    %p58 = scmp.ne.s32.totalorder %s49, %s50
    %p59 = scmp.eq.s32.totalorder %s18, 0
    %p60 = por %p58, %p59
    %p61 = scmp.ne.s32.totalorder %s49, %s50
    %p62 = scmp.eq.s32.totalorder %s19, 1
    %p63 = por %p61, %p62
    %p65 = scmp.ne.s32.totalorder %s50, %s64
    %p66 = scmp.eq.s32.totalorder %s19, 0
    %p67 = por %p65, %p66
    %s69 = sadd.s32 %s68, 1
    %p72 = scmp.eq.s32.totalorder %s13, 1
    %p73 = scmp.ne.s32.totalorder %s68, %s70
    %p74 = scmp.eq.s32.totalorder %s13, 0
    %p75 = por %p73, %p74
    %p76 = scmp.ne.s32.totalorder %s68, %s70
    %p77 = scmp.eq.s32.totalorder %s18, 1
    %p78 = por %p76, %p77
    %p79 = scmp.ne.s32.totalorder %s70, %s71
    %p80 = scmp.eq.s32.totalorder %s18, 0
    %p81 = por %p79, %p80
    %p82 = scmp.ne.s32.totalorder %s70, %s71
    %p83 = scmp.eq.s32.totalorder %s19, 1
    %p84 = por %p82, %p83
    %p86 = scmp.ne.s32.totalorder %s71, %s85
    %p87 = scmp.eq.s32.totalorder %s19, 0
    %p88 = por %p86, %p87
    %s90 = sadd.s32 %s89, 1
    %p93 = scmp.eq.s32.totalorder %s13, 1
    %p94 = scmp.ne.s32.totalorder %s89, %s91
    %p95 = scmp.eq.s32.totalorder %s13, 0
    %p96 = por %p94, %p95
    %p97 = scmp.ne.s32.totalorder %s89, %s91
    %p98 = scmp.eq.s32.totalorder %s18, 1
    %p99 = por %p97, %p98
    %p100 = scmp.ne.s32.totalorder %s91, %s92
    %p101 = scmp.eq.s32.totalorder %s18, 0
    %p102 = por %p100, %p101
    %p103 = scmp.ne.s32.totalorder %s91, %s92
    %p104 = scmp.eq.s32.totalorder %s19, 1
    %p105 = por %p103, %p104
    %p107 = scmp.ne.s32.totalorder %s92, %s106
    %p108 = scmp.eq.s32.totalorder %s19, 0
    %p109 = por %p107, %p108
    %s111 = sadd.s32 %s110, 1
    %p114 = scmp.eq.s32.totalorder %s13, 1
    %p115 = scmp.ne.s32.totalorder %s110, %s112
    %p116 = scmp.eq.s32.totalorder %s13, 0
    %p117 = por %p115, %p116
    %p118 = scmp.ne.s32.totalorder %s110, %s112
    %p119 = scmp.eq.s32.totalorder %s18, 1
    %p120 = por %p118, %p119
    %p121 = scmp.ne.s32.totalorder %s112, %s113
    %p122 = scmp.eq.s32.totalorder %s18, 0
    %p123 = por %p121, %p122
    %p124 = scmp.ne.s32.totalorder %s112, %s113
    %p125 = scmp.eq.s32.totalorder %s19, 1
    %p126 = por %p124, %p125
    %p128 = scmp.ne.s32.totalorder %s113, %s127
    %p129 = scmp.eq.s32.totalorder %s19, 0
    %p130 = por %p128, %p129
    %s132 = sadd.s32 %s131, 1
    %p135 = scmp.eq.s32.totalorder %s13, 1
    %p136 = scmp.ne.s32.totalorder %s131, %s133
    %p137 = scmp.eq.s32.totalorder %s13, 0
    %p138 = por %p136, %p137
    %p139 = scmp.ne.s32.totalorder %s131, %s133
    %p140 = scmp.eq.s32.totalorder %s18, 1
    %p141 = por %p139, %p140
    %p142 = scmp.ne.s32.totalorder %s133, %s134
    %p143 = scmp.eq.s32.totalorder %s18, 0
    %p144 = por %p142, %p143
    %p145 = scmp.ne.s32.totalorder %s133, %s134
    %p146 = scmp.eq.s32.totalorder %s19, 1
    %p147 = por %p145, %p146
    %p149 = scmp.ne.s32.totalorder %s134, %s148
    %p150 = scmp.eq.s32.totalorder %s19, 0
    %p151 = por %p149, %p150
    %s153 = sadd.s32 %s152, 1
    %p156 = scmp.eq.s32.totalorder %s13, 1
    %p157 = scmp.ne.s32.totalorder %s152, %s154
    %p158 = scmp.eq.s32.totalorder %s13, 0
    %p159 = por %p157, %p158
    %p160 = scmp.ne.s32.totalorder %s152, %s154
    %p161 = scmp.eq.s32.totalorder %s18, 1
    %p162 = por %p160, %p161
    %p163 = scmp.ne.s32.totalorder %s154, %s155
    %p164 = scmp.eq.s32.totalorder %s18, 0
    %p165 = por %p163, %p164
    %p166 = scmp.ne.s32.totalorder %s154, %s155
    %p167 = scmp.eq.s32.totalorder %s19, 1
    %p168 = por %p166, %p167
    %p170 = scmp.ne.s32.totalorder %s155, %s169
    %p171 = scmp.eq.s32.totalorder %s19, 0
    %p172 = por %p170, %p171
    %s173 = ssub.s32 %s13, %s20
    %p174 = scmp.eq.s32.totalorder %s173, 0
    %s176 = sadd.s32 %s175, 1
    %s177 = scalar_select %p174, %s175, %s176
    %p180 = pneg %p174
    %p181 = scmp.eq.s32.totalorder %s13, 1
    %p182 = por %p180, %p181
    %p183 = scmp.ne.s32.totalorder %s175, %s178
    %p184 = scmp.eq.s32.totalorder %s13, 0
    %p185 = por %p183, %p184
    %p186 = scmp.ne.s32.totalorder %s175, %s178
    %p187 = scmp.eq.s32.totalorder %s18, 1
    %p188 = por %p186, %p187
    %p189 = scmp.ne.s32.totalorder %s178, %s179
    %p190 = scmp.eq.s32.totalorder %s18, 0
    %p191 = por %p189, %p190
    %p192 = scmp.ne.s32.totalorder %s178, %s179
    %p193 = scmp.eq.s32.totalorder %s19, 1
    %p194 = por %p192, %p193
    %p196 = scmp.ne.s32.totalorder %s179, %s195
    %p197 = scmp.eq.s32.totalorder %s19, 0
    %p198 = por %p196, %p197
    %p199 = scmp.le.s32.totalorder 1, %s13
    %p200 = scmp.lt.s32.totalorder %s13, 3
    %p201 = pnand %p199, %p200
    %p202 = pneg %p201
    // Predicated region
    $region9: #{convnn_forward.1} parent=5 // pred_check
      _
    $region10: #{convnn_forward.1} parent=5 // pred_check_branch
      %204 = sbr.rel (%p201) target = $region12
    $region11: #{convnn_forward.1} parent=5 // pred_region
      %s205 = ssub.s32 %s13, 1
      // Predicated region
      $region13: #{convnn_forward.1} parent=11 // pred_check
        %p206 = pneg %p60
      $region14: #{convnn_forward.1} parent=11 // pred_check_branch
        %208 = sbr.rel (%p206) target = $region16
      $region15: #{convnn_forward.1} parent=11 // pred_region
        _
      $region16: #{convnn_forward.1} parent=11 // pred_fallthru
        _
      // Predicated region
      $region17: #{convnn_forward.1} parent=11 // pred_check
        %p209 = pneg %p81
      $region18: #{convnn_forward.1} parent=11 // pred_check_branch
        %211 = sbr.rel (%p209) target = $region20
      $region19: #{convnn_forward.1} parent=11 // pred_region
        _
      $region20: #{convnn_forward.1} parent=11 // pred_fallthru
        _
      // Predicated region
      $region21: #{convnn_forward.1} parent=11 // pred_check
        %p212 = pneg %p102
      $region22: #{convnn_forward.1} parent=11 // pred_check_branch
        %214 = sbr.rel (%p212) target = $region24
      $region23: #{convnn_forward.1} parent=11 // pred_region
        _
      $region24: #{convnn_forward.1} parent=11 // pred_fallthru
        _
      // Predicated region
      $region25: #{convnn_forward.1} parent=11 // pred_check
        %p215 = pneg %p123
      $region26: #{convnn_forward.1} parent=11 // pred_check_branch
        %217 = sbr.rel (%p215) target = $region28
      $region27: #{convnn_forward.1} parent=11 // pred_region
        _
      $region28: #{convnn_forward.1} parent=11 // pred_fallthru
        _
      // Predicated region
      $region29: #{convnn_forward.1} parent=11 // pred_check
        %p218 = pneg %p144
      $region30: #{convnn_forward.1} parent=11 // pred_check_branch
        %220 = sbr.rel (%p218) target = $region32
      $region31: #{convnn_forward.1} parent=11 // pred_region
        _
      $region32: #{convnn_forward.1} parent=11 // pred_fallthru
        _
      // Predicated region
      $region33: #{convnn_forward.1} parent=11 // pred_check
        %p221 = pneg %p165
      $region34: #{convnn_forward.1} parent=11 // pred_check_branch
        %223 = sbr.rel (%p221) target = $region36
      $region35: #{convnn_forward.1} parent=11 // pred_region
        _
      $region36: #{convnn_forward.1} parent=11 // pred_fallthru
        _
    $region12: #{convnn_forward.1} parent=5 // pred_fallthru
      _
    %p224 = scmp.lt.s32.totalorder %s13, 2
    // Predicated region
    $region37: #{convnn_forward.1} parent=5 // pred_check
      %p225 = pneg %p224
    $region38: #{convnn_forward.1} parent=5 // pred_check_branch
      %227 = sbr.rel (%p225) target = $region40
    $region39: #{convnn_forward.1} parent=5 // pred_region
      // Predicated region
      $region41: #{convnn_forward.1} parent=39 // pred_check
        %p228 = pneg %p33
      $region42: #{convnn_forward.1} parent=39 // pred_check_branch
        %230 = sbr.rel (%p228) target = $region44
      $region43: #{convnn_forward.1} parent=39 // pred_region
        %s231 = smul.u32 2, %s13
        %p232 = scmp.lt.s32.totalorder %s231, 3
        %s233 = scalar_select %p232, %s231, 3
        %s234 = smul.addr %s233, 40
        %s235 = smul.addr %s234, 4
        %s236 = scalar_lea.vmem %s0, %s235
        %s237 = smul.u32 2, %s13
      $region44: #{convnn_forward.1} parent=39 // pred_fallthru
        _
    $region40: #{convnn_forward.1} parent=5 // pred_fallthru
      _
    %p238 = scmp.le.s32.totalorder 1, %s13
    %p239 = scmp.lt.s32.totalorder %s13, 3
    %p240 = pnand %p238, %p239
    %p241 = pneg %p240
    // Predicated region
    $region45: #{convnn_forward.1} parent=5 // pred_check
      _
    $region46: #{convnn_forward.1} parent=5 // pred_check_branch
      %243 = sbr.rel (%p240) target = $region48
    $region47: #{convnn_forward.1} parent=5 // pred_region
      %s244 = ssub.s32 %s13, 1
      %s245 = smul.u32 2, %s18
      %p246 = scmp.lt.s32.totalorder %s245, 3
      %s247 = scalar_select %p246, %s245, 3
      %s248 = smul.addr %s247, 40
      %s249 = smul.addr %s248, 4
      %s250 = scalar_lea.vmem %s0, %s249
      %p251 = pneg %p39
      %p252 = pneg %p36
      %p253 = pneg %p60
      %p254 = pneg %p57
      %p255 = pneg %p81
      %p256 = pneg %p78
      %p257 = pneg %p102
      %p258 = pneg %p99
      %p259 = pneg %p123
      %p260 = pneg %p120
      %p261 = pneg %p144
      %p262 = pneg %p141
      %p263 = pneg %p165
      %p264 = pneg %p162
      %p265 = pneg %p191
      %p266 = pneg %p188
      %p267 = scmp.lt.s32.totalorder %s18, 1
      %s268 = scalar_select %p267, %s18, 1
      %s269 = smul.addr %s268, 2
      %s270 = smul.addr %s269, 8
      %s271 = scalar_lea.vmem %s7, %s270
      %s272 = smul.u32 2, %s18
      %p273 = scmp.lt.s32.totalorder %s272, 3
      %s274 = scalar_select %p273, %s272, 3
      %s275 = smul.addr %s274, 40
      %s276 = smul.addr %s275, 4
      %s277 = scalar_lea.vmem %s0, %s276
      %s278 = smul.u32 2, %s18
      %p279 = scmp.lt.s32.totalorder %s18, 1
      %s280 = scalar_select %p279, %s18, 1
      %s281 = smul.addr %s280, 2
      %s282 = smul.addr %s281, 8
      %s283 = scalar_lea.vmem %s7, %s282
      %v285 = vld [vmem:[%s277] sm:$0xf]
      %v286 = vld [vmem:[%s277 + $0x4] sm:$0x1]
      %v287 = vld [vmem:[%s277 + $0x8] sm:$0xf]
      %v288 = vld [vmem:[%s277 + $0xc] sm:$0x1]
      %v289 = vld [vmem:[%s277 + $0x10] sm:$0xf]
      %v290 = vld [vmem:[%s277 + $0x14] sm:$0x1]
      %v291 = vld [vmem:[%s277 + $0x18] sm:$0xf]
      %v292 = vld [vmem:[%s277 + $0x1c] sm:$0x1]
      %v293 = vld [vmem:[%s277 + $0x20] sm:$0xf]
      %v294 = vld [vmem:[%s277 + $0x24] sm:$0x1]
      %v295 = vld [vmem:[%s277 + $0x28] sm:$0xf]
      %v296 = vld [vmem:[%s277 + $0x2c] sm:$0x1]
      %v297 = vld [vmem:[%s277 + $0x30] sm:$0xf]
      %v298 = vld [vmem:[%s277 + $0x34] sm:$0x1]
      %v299 = vld [vmem:[%s277 + $0x38] sm:$0xf]
      %v300 = vld [vmem:[%s277 + $0x3c] sm:$0x1]
      %v301 = vld [vmem:[%s277 + $0x40] sm:$0xf]
      %v302 = vld [vmem:[%s277 + $0x44] sm:$0x1]
      %v303 = vld [vmem:[%s277 + $0x48] sm:$0xf]
      %v304 = vld [vmem:[%s277 + $0x4c] sm:$0x1]
      %v305 = vld [vmem:[%s277 + $0x50] sm:$0xf]
      %v306 = vld [vmem:[%s277 + $0x54] sm:$0x1]
      %v307 = vld [vmem:[%s277 + $0x58] sm:$0xf]
      %v308 = vld [vmem:[%s277 + $0x5c] sm:$0x1]
      %v309 = vld [vmem:[%s277 + $0x60] sm:$0xf]
      %v310 = vld [vmem:[%s277 + $0x64] sm:$0x1]
      %v311 = vld [vmem:[%s277 + $0x68] sm:$0xf]
      %v312 = vld [vmem:[%s277 + $0x6c] sm:$0x1]
      %v313 = vld [vmem:[%s277 + $0x70] sm:$0xf]
      %v314 = vld [vmem:[%s277 + $0x74] sm:$0x1]
      %v315 = vld [vmem:[%s277 + $0x78] sm:$0xf]
      %v316 = vld [vmem:[%s277 + $0x7c] sm:$0x1]
      %v317 = vld [vmem:[%s277 + $0x80] sm:$0xf]
      %v318 = vld [vmem:[%s277 + $0x84] sm:$0x1]
      %v319 = vld [vmem:[%s277 + $0x88] sm:$0xf]
      %v320 = vld [vmem:[%s277 + $0x8c] sm:$0x1]
      %v357 = vunpack.c.l.b16 %v285
      %v358 = vunpack.c.l.b16 %v286
      %v359 = vunpack.c.l.b16 %v287
      %v360 = vunpack.c.l.b16 %v288
      %v361 = vunpack.c.l.b16 %v289
      %v362 = vunpack.c.l.b16 %v290
      %v363 = vunpack.c.l.b16 %v291
      %v364 = vunpack.c.l.b16 %v292
      %v365 = vunpack.c.l.b16 %v293
      %v366 = vunpack.c.l.b16 %v294
      %v367 = vunpack.c.l.b16 %v295
      %v368 = vunpack.c.l.b16 %v296
      %v369 = vunpack.c.l.b16 %v297
      %v370 = vunpack.c.l.b16 %v298
      %v371 = vunpack.c.l.b16 %v299
      %v372 = vunpack.c.l.b16 %v300
      %v373 = vunpack.c.l.b16 %v301
      %v374 = vunpack.c.l.b16 %v302
      %v375 = vunpack.c.l.b16 %v303
      %v376 = vunpack.c.l.b16 %v304
      %v377 = vunpack.c.l.b16 %v305
      %v378 = vunpack.c.l.b16 %v306
      %v379 = vunpack.c.l.b16 %v307
      %v380 = vunpack.c.l.b16 %v308
      %v381 = vunpack.c.l.b16 %v309
      %v382 = vunpack.c.l.b16 %v310
      %v383 = vunpack.c.l.b16 %v311
      %v384 = vunpack.c.l.b16 %v312
      %v385 = vunpack.c.l.b16 %v313
      %v386 = vunpack.c.l.b16 %v314
      %v387 = vunpack.c.l.b16 %v315
      %v388 = vunpack.c.l.b16 %v316
      %v389 = vunpack.c.l.b16 %v317
      %v390 = vunpack.c.l.b16 %v318
      %v391 = vunpack.c.l.b16 %v319
      %v392 = vunpack.c.l.b16 %v320
      %v393 = vpack.c.b16 %v358, %v357
      %v394 = vpack.c.b16 %v360, %v359
      %v395 = vpack.c.b16 %v362, %v361
      %v396 = vpack.c.b16 %v364, %v363
      %v397 = vpack.c.b16 %v366, %v365
      %v398 = vpack.c.b16 %v368, %v367
      %v399 = vpack.c.b16 %v370, %v369
      %v400 = vpack.c.b16 %v372, %v371
      %v401 = vpack.c.b16 %v374, %v373
      %v402 = vpack.c.b16 %v376, %v375
      %v403 = vpack.c.b16 %v378, %v377
      %v404 = vpack.c.b16 %v380, %v379
      %v405 = vpack.c.b16 %v382, %v381
      %v406 = vpack.c.b16 %v384, %v383
      %v407 = vpack.c.b16 %v386, %v385
      %v408 = vpack.c.b16 %v388, %v387
      %v409 = vpack.c.b16 %v390, %v389
      %v410 = vpack.c.b16 %v392, %v391
      %vm429 = vcmask 192512
      %430 = vst.msk [vmem:[#allocation2] sm:$0x1f] %vm429, %v393
      %431 = vst.msk [vmem:[#allocation2 + $0x10] sm:$0x1f] %vm429, %v394
      %432 = vst.msk [vmem:[#allocation2 + $0x20] sm:$0x1f] %vm429, %v395
      %433 = vst.msk [vmem:[#allocation2 + $0x30] sm:$0x1f] %vm429, %v396
      %434 = vst.msk [vmem:[#allocation2 + $0x40] sm:$0x1f] %vm429, %v397
      %435 = vst.msk [vmem:[#allocation2 + $0x50] sm:$0x1f] %vm429, %v398
      %436 = vst.msk [vmem:[#allocation2 + $0x60] sm:$0x1f] %vm429, %v399
      %437 = vst.msk [vmem:[#allocation2 + $0x70] sm:$0x1f] %vm429, %v400
      %438 = vst.msk [vmem:[#allocation2 + $0x80] sm:$0x1f] %vm429, %v401
      %439 = vst.msk [vmem:[#allocation2 + $0x90] sm:$0x1f] %vm429, %v402
      %440 = vst.msk [vmem:[#allocation2 + $0xa0] sm:$0x1f] %vm429, %v403
      %441 = vst.msk [vmem:[#allocation2 + $0xb0] sm:$0x1f] %vm429, %v404
      %442 = vst.msk [vmem:[#allocation2 + $0xc0] sm:$0x1f] %vm429, %v405
      %443 = vst.msk [vmem:[#allocation2 + $0xd0] sm:$0x1f] %vm429, %v406
      %444 = vst.msk [vmem:[#allocation2 + $0xe0] sm:$0x1f] %vm429, %v407
      %445 = vst.msk [vmem:[#allocation2 + $0xf0] sm:$0x1f] %vm429, %v408
      %446 = vst.msk [vmem:[#allocation2 + $0x100] sm:$0x1f] %vm429, %v409
      %447 = vst.msk [vmem:[#allocation2 + $0x110] sm:$0x1f] %vm429, %v410
      %v448 = vld [vmem:[%s277] sm:$0xf]
      %v449 = vld [vmem:[%s277 + $0x4] sm:$0x3]
      %v450 = vld [vmem:[%s277 + $0x8] sm:$0xf]
      %v451 = vld [vmem:[%s277 + $0xc] sm:$0x3]
      %v452 = vld [vmem:[%s277 + $0x10] sm:$0xf]
      %v453 = vld [vmem:[%s277 + $0x14] sm:$0x3]
      %v454 = vld [vmem:[%s277 + $0x18] sm:$0xf]
      %v455 = vld [vmem:[%s277 + $0x1c] sm:$0x3]
      %v456 = vld [vmem:[%s277 + $0x20] sm:$0xf]
      %v457 = vld [vmem:[%s277 + $0x24] sm:$0x3]
      %v458 = vld [vmem:[%s277 + $0x28] sm:$0xf]
      %v459 = vld [vmem:[%s277 + $0x2c] sm:$0x3]
      %v460 = vld [vmem:[%s277 + $0x30] sm:$0xf]
      %v461 = vld [vmem:[%s277 + $0x34] sm:$0x3]
      %v462 = vld [vmem:[%s277 + $0x38] sm:$0xf]
      %v463 = vld [vmem:[%s277 + $0x3c] sm:$0x3]
      %v464 = vld [vmem:[%s277 + $0x40] sm:$0xf]
      %v465 = vld [vmem:[%s277 + $0x44] sm:$0x3]
      %v466 = vld [vmem:[%s277 + $0x48] sm:$0xf]
      %v467 = vld [vmem:[%s277 + $0x4c] sm:$0x3]
      %v468 = vld [vmem:[%s277 + $0x50] sm:$0xf]
      %v469 = vld [vmem:[%s277 + $0x54] sm:$0x3]
      %v470 = vld [vmem:[%s277 + $0x58] sm:$0xf]
      %v471 = vld [vmem:[%s277 + $0x5c] sm:$0x3]
      %v472 = vld [vmem:[%s277 + $0x60] sm:$0xf]
      %v473 = vld [vmem:[%s277 + $0x64] sm:$0x3]
      %v474 = vld [vmem:[%s277 + $0x68] sm:$0xf]
      %v475 = vld [vmem:[%s277 + $0x6c] sm:$0x3]
      %v476 = vld [vmem:[%s277 + $0x70] sm:$0xf]
      %v477 = vld [vmem:[%s277 + $0x74] sm:$0x3]
      %v478 = vld [vmem:[%s277 + $0x78] sm:$0xf]
      %v479 = vld [vmem:[%s277 + $0x7c] sm:$0x3]
      %v480 = vld [vmem:[%s277 + $0x80] sm:$0xf]
      %v481 = vld [vmem:[%s277 + $0x84] sm:$0x3]
      %v482 = vld [vmem:[%s277 + $0x88] sm:$0xf]
      %v483 = vld [vmem:[%s277 + $0x8c] sm:$0x3]
      %v520 = vunpack.c.l.b16 %v448
      %v521 = vunpack.c.l.b16 %v449
      %v522 = vunpack.c.l.b16 %v450
      %v523 = vunpack.c.l.b16 %v451
      %v524 = vunpack.c.l.b16 %v452
      %v525 = vunpack.c.l.b16 %v453
      %v526 = vunpack.c.l.b16 %v454
      %v527 = vunpack.c.l.b16 %v455
      %v528 = vunpack.c.l.b16 %v456
      %v529 = vunpack.c.l.b16 %v457
      %v530 = vunpack.c.l.b16 %v458
      %v531 = vunpack.c.l.b16 %v459
      %v532 = vunpack.c.l.b16 %v460
      %v533 = vunpack.c.l.b16 %v461
      %v534 = vunpack.c.l.b16 %v462
      %v535 = vunpack.c.l.b16 %v463
      %v536 = vunpack.c.l.b16 %v464
      %v537 = vunpack.c.l.b16 %v465
      %v538 = vunpack.c.l.b16 %v466
      %v539 = vunpack.c.l.b16 %v467
      %v540 = vunpack.c.l.b16 %v468
      %v541 = vunpack.c.l.b16 %v469
      %v542 = vunpack.c.l.b16 %v470
      %v543 = vunpack.c.l.b16 %v471
      %v544 = vunpack.c.l.b16 %v472
      %v545 = vunpack.c.l.b16 %v473
      %v546 = vunpack.c.l.b16 %v474
      %v547 = vunpack.c.l.b16 %v475
      %v548 = vunpack.c.l.b16 %v476
      %v549 = vunpack.c.l.b16 %v477
      %v550 = vunpack.c.l.b16 %v478
      %v551 = vunpack.c.l.b16 %v479
      %v552 = vunpack.c.l.b16 %v480
      %v553 = vunpack.c.l.b16 %v481
      %v554 = vunpack.c.l.b16 %v482
      %v555 = vunpack.c.l.b16 %v483
      %v556 = vpack.c.b16 %v521, %v520
      %v557 = vpack.c.b16 %v523, %v522
      %v558 = vpack.c.b16 %v525, %v524
      %v559 = vpack.c.b16 %v527, %v526
      %v560 = vpack.c.b16 %v529, %v528
      %v561 = vpack.c.b16 %v531, %v530
      %v562 = vpack.c.b16 %v533, %v532
      %v563 = vpack.c.b16 %v535, %v534
      %v564 = vpack.c.b16 %v537, %v536
      %v565 = vpack.c.b16 %v539, %v538
      %v566 = vpack.c.b16 %v541, %v540
      %v567 = vpack.c.b16 %v543, %v542
      %v568 = vpack.c.b16 %v545, %v544
      %v569 = vpack.c.b16 %v547, %v546
      %v570 = vpack.c.b16 %v549, %v548
      %v571 = vpack.c.b16 %v551, %v550
      %v572 = vpack.c.b16 %v553, %v552
      %v573 = vpack.c.b16 %v555, %v554
      %v575 = vshrl.u32 %v556, 16
      %v577 = vshll.u32 %v556, 16
      %v579 = vrot.slane %v577, 1
      %v580 = vor.u32 %v575, %v579
      %v582 = vshrl.u32 %v557, 16
      %v584 = vshll.u32 %v557, 16
      %v586 = vrot.slane %v584, 1
      %v587 = vor.u32 %v582, %v586
      %v589 = vshrl.u32 %v558, 16
      %v591 = vshll.u32 %v558, 16
      %v593 = vrot.slane %v591, 1
      %v594 = vor.u32 %v589, %v593
      %v596 = vshrl.u32 %v559, 16
      %v598 = vshll.u32 %v559, 16
      %v600 = vrot.slane %v598, 1
      %v601 = vor.u32 %v596, %v600
      %v603 = vshrl.u32 %v560, 16
      %v605 = vshll.u32 %v560, 16
      %v607 = vrot.slane %v605, 1
      %v608 = vor.u32 %v603, %v607
      %v610 = vshrl.u32 %v561, 16
      %v612 = vshll.u32 %v561, 16
      %v614 = vrot.slane %v612, 1
      %v615 = vor.u32 %v610, %v614
      %v617 = vshrl.u32 %v562, 16
      %v619 = vshll.u32 %v562, 16
      %v621 = vrot.slane %v619, 1
      %v622 = vor.u32 %v617, %v621
      %v624 = vshrl.u32 %v563, 16
      %v626 = vshll.u32 %v563, 16
      %v628 = vrot.slane %v626, 1
      %v629 = vor.u32 %v624, %v628
      %v631 = vshrl.u32 %v564, 16
      %v633 = vshll.u32 %v564, 16
      %v635 = vrot.slane %v633, 1
      %v636 = vor.u32 %v631, %v635
      %v638 = vshrl.u32 %v565, 16
      %v640 = vshll.u32 %v565, 16
      %v642 = vrot.slane %v640, 1
      %v643 = vor.u32 %v638, %v642
      %v645 = vshrl.u32 %v566, 16
      %v647 = vshll.u32 %v566, 16
      %v649 = vrot.slane %v647, 1
      %v650 = vor.u32 %v645, %v649
      %v652 = vshrl.u32 %v567, 16
      %v654 = vshll.u32 %v567, 16
      %v656 = vrot.slane %v654, 1
      %v657 = vor.u32 %v652, %v656
      %v659 = vshrl.u32 %v568, 16
      %v661 = vshll.u32 %v568, 16
      %v663 = vrot.slane %v661, 1
      %v664 = vor.u32 %v659, %v663
      %v666 = vshrl.u32 %v569, 16
      %v668 = vshll.u32 %v569, 16
      %v670 = vrot.slane %v668, 1
      %v671 = vor.u32 %v666, %v670
      %v673 = vshrl.u32 %v570, 16
      %v675 = vshll.u32 %v570, 16
      %v677 = vrot.slane %v675, 1
      %v678 = vor.u32 %v673, %v677
      %v680 = vshrl.u32 %v571, 16
      %v682 = vshll.u32 %v571, 16
      %v684 = vrot.slane %v682, 1
      %v685 = vor.u32 %v680, %v684
      %v687 = vshrl.u32 %v572, 16
      %v689 = vshll.u32 %v572, 16
      %v691 = vrot.slane %v689, 1
      %v692 = vor.u32 %v687, %v691
      %v694 = vshrl.u32 %v573, 16
      %v696 = vshll.u32 %v573, 16
      %v698 = vrot.slane %v696, 1
      %v699 = vor.u32 %v694, %v698
      %700 = vrot.lane.b32.xlu0 %v580, 24
      %v701 = vpop.permute.xlu0 %700
      %702 = vrot.lane.b32.xlu0 %v587, 24
      %v703 = vpop.permute.xlu0 %702
      %704 = vrot.lane.b32.xlu0 %v594, 24
      %v705 = vpop.permute.xlu0 %704
      %706 = vrot.lane.b32.xlu0 %v601, 24
      %v707 = vpop.permute.xlu0 %706
      %708 = vrot.lane.b32.xlu0 %v608, 24
      %v709 = vpop.permute.xlu0 %708
      %710 = vrot.lane.b32.xlu0 %v615, 24
      %v711 = vpop.permute.xlu0 %710
      %712 = vrot.lane.b32.xlu0 %v622, 24
      %v713 = vpop.permute.xlu0 %712
      %714 = vrot.lane.b32.xlu0 %v629, 24
      %v715 = vpop.permute.xlu0 %714
      %716 = vrot.lane.b32.xlu0 %v636, 24
      %v717 = vpop.permute.xlu0 %716
      %718 = vrot.lane.b32.xlu0 %v643, 24
      %v719 = vpop.permute.xlu0 %718
      %720 = vrot.lane.b32.xlu0 %v650, 24
      %v721 = vpop.permute.xlu0 %720
      %722 = vrot.lane.b32.xlu0 %v657, 24
      %v723 = vpop.permute.xlu0 %722
      %724 = vrot.lane.b32.xlu0 %v664, 24
      %v725 = vpop.permute.xlu0 %724
      %726 = vrot.lane.b32.xlu0 %v671, 24
      %v727 = vpop.permute.xlu0 %726
      %728 = vrot.lane.b32.xlu0 %v678, 24
      %v729 = vpop.permute.xlu0 %728
      %730 = vrot.lane.b32.xlu0 %v685, 24
      %v731 = vpop.permute.xlu0 %730
      %732 = vrot.lane.b32.xlu0 %v692, 24
      %v733 = vpop.permute.xlu0 %732
      %734 = vrot.lane.b32.xlu0 %v699, 24
      %v735 = vpop.permute.xlu0 %734
      %vm754 = vcmask 266432
      %755 = vst.msk [vmem:[#allocation2] sm:$0x1f] %vm754, %v701
      %756 = vst.msk [vmem:[#allocation2 + $0x10] sm:$0x1f] %vm754, %v703
      %757 = vst.msk [vmem:[#allocation2 + $0x20] sm:$0x1f] %vm754, %v705
      %758 = vst.msk [vmem:[#allocation2 + $0x30] sm:$0x1f] %vm754, %v707
      %759 = vst.msk [vmem:[#allocation2 + $0x40] sm:$0x1f] %vm754, %v709
      %760 = vst.msk [vmem:[#allocation2 + $0x50] sm:$0x1f] %vm754, %v711
      %761 = vst.msk [vmem:[#allocation2 + $0x60] sm:$0x1f] %vm754, %v713
      %762 = vst.msk [vmem:[#allocation2 + $0x70] sm:$0x1f] %vm754, %v715
      %763 = vst.msk [vmem:[#allocation2 + $0x80] sm:$0x1f] %vm754, %v717
      %764 = vst.msk [vmem:[#allocation2 + $0x90] sm:$0x1f] %vm754, %v719
      %765 = vst.msk [vmem:[#allocation2 + $0xa0] sm:$0x1f] %vm754, %v721
      %766 = vst.msk [vmem:[#allocation2 + $0xb0] sm:$0x1f] %vm754, %v723
      %767 = vst.msk [vmem:[#allocation2 + $0xc0] sm:$0x1f] %vm754, %v725
      %768 = vst.msk [vmem:[#allocation2 + $0xd0] sm:$0x1f] %vm754, %v727
      %769 = vst.msk [vmem:[#allocation2 + $0xe0] sm:$0x1f] %vm754, %v729
      %770 = vst.msk [vmem:[#allocation2 + $0xf0] sm:$0x1f] %vm754, %v731
      %771 = vst.msk [vmem:[#allocation2 + $0x100] sm:$0x1f] %vm754, %v733
      %772 = vst.msk [vmem:[#allocation2 + $0x110] sm:$0x1f] %vm754, %v735
      %s773 = scalar_lea.vmem %s277, 160
      %v774 = vld [vmem:[%s773] sm:$0xf]
      %v775 = vld [vmem:[%s773 + $0x4] sm:$0x1]
      %v776 = vld [vmem:[%s773 + $0x8] sm:$0xf]
      %v777 = vld [vmem:[%s773 + $0xc] sm:$0x1]
      %v778 = vld [vmem:[%s773 + $0x10] sm:$0xf]
      %v779 = vld [vmem:[%s773 + $0x14] sm:$0x1]
      %v780 = vld [vmem:[%s773 + $0x18] sm:$0xf]
      %v781 = vld [vmem:[%s773 + $0x1c] sm:$0x1]
      %v782 = vld [vmem:[%s773 + $0x20] sm:$0xf]
      %v783 = vld [vmem:[%s773 + $0x24] sm:$0x1]
      %v784 = vld [vmem:[%s773 + $0x28] sm:$0xf]
      %v785 = vld [vmem:[%s773 + $0x2c] sm:$0x1]
      %v786 = vld [vmem:[%s773 + $0x30] sm:$0xf]
      %v787 = vld [vmem:[%s773 + $0x34] sm:$0x1]
      %v788 = vld [vmem:[%s773 + $0x38] sm:$0xf]
      %v789 = vld [vmem:[%s773 + $0x3c] sm:$0x1]
      %v790 = vld [vmem:[%s773 + $0x40] sm:$0xf]
      %v791 = vld [vmem:[%s773 + $0x44] sm:$0x1]
      %v792 = vld [vmem:[%s773 + $0x48] sm:$0xf]
      %v793 = vld [vmem:[%s773 + $0x4c] sm:$0x1]
      %v794 = vld [vmem:[%s773 + $0x50] sm:$0xf]
      %v795 = vld [vmem:[%s773 + $0x54] sm:$0x1]
      %v796 = vld [vmem:[%s773 + $0x58] sm:$0xf]
      %v797 = vld [vmem:[%s773 + $0x5c] sm:$0x1]
      %v798 = vld [vmem:[%s773 + $0x60] sm:$0xf]
      %v799 = vld [vmem:[%s773 + $0x64] sm:$0x1]
      %v800 = vld [vmem:[%s773 + $0x68] sm:$0xf]
      %v801 = vld [vmem:[%s773 + $0x6c] sm:$0x1]
      %v802 = vld [vmem:[%s773 + $0x70] sm:$0xf]
      %v803 = vld [vmem:[%s773 + $0x74] sm:$0x1]
      %v804 = vld [vmem:[%s773 + $0x78] sm:$0xf]
      %v805 = vld [vmem:[%s773 + $0x7c] sm:$0x1]
      %v806 = vld [vmem:[%s773 + $0x80] sm:$0xf]
      %v807 = vld [vmem:[%s773 + $0x84] sm:$0x1]
      %v808 = vld [vmem:[%s773 + $0x88] sm:$0xf]
      %v809 = vld [vmem:[%s773 + $0x8c] sm:$0x1]
      %v846 = vunpack.c.l.b16 %v774
      %v847 = vunpack.c.l.b16 %v775
      %v848 = vunpack.c.l.b16 %v776
      %v849 = vunpack.c.l.b16 %v777
      %v850 = vunpack.c.l.b16 %v778
      %v851 = vunpack.c.l.b16 %v779
      %v852 = vunpack.c.l.b16 %v780
      %v853 = vunpack.c.l.b16 %v781
      %v854 = vunpack.c.l.b16 %v782
      %v855 = vunpack.c.l.b16 %v783
      %v856 = vunpack.c.l.b16 %v784
      %v857 = vunpack.c.l.b16 %v785
      %v858 = vunpack.c.l.b16 %v786
      %v859 = vunpack.c.l.b16 %v787
      %v860 = vunpack.c.l.b16 %v788
      %v861 = vunpack.c.l.b16 %v789
      %v862 = vunpack.c.l.b16 %v790
      %v863 = vunpack.c.l.b16 %v791
      %v864 = vunpack.c.l.b16 %v792
      %v865 = vunpack.c.l.b16 %v793
      %v866 = vunpack.c.l.b16 %v794
      %v867 = vunpack.c.l.b16 %v795
      %v868 = vunpack.c.l.b16 %v796
      %v869 = vunpack.c.l.b16 %v797
      %v870 = vunpack.c.l.b16 %v798
      %v871 = vunpack.c.l.b16 %v799
      %v872 = vunpack.c.l.b16 %v800
      %v873 = vunpack.c.l.b16 %v801
      %v874 = vunpack.c.l.b16 %v802
      %v875 = vunpack.c.l.b16 %v803
      %v876 = vunpack.c.l.b16 %v804
      %v877 = vunpack.c.l.b16 %v805
      %v878 = vunpack.c.l.b16 %v806
      %v879 = vunpack.c.l.b16 %v807
      %v880 = vunpack.c.l.b16 %v808
      %v881 = vunpack.c.l.b16 %v809
      %v882 = vpack.c.b16 %v847, %v846
      %v883 = vpack.c.b16 %v849, %v848
      %v884 = vpack.c.b16 %v851, %v850
      %v885 = vpack.c.b16 %v853, %v852
      %v886 = vpack.c.b16 %v855, %v854
      %v887 = vpack.c.b16 %v857, %v856
      %v888 = vpack.c.b16 %v859, %v858
      %v889 = vpack.c.b16 %v861, %v860
      %v890 = vpack.c.b16 %v863, %v862
      %v891 = vpack.c.b16 %v865, %v864
      %v892 = vpack.c.b16 %v867, %v866
      %v893 = vpack.c.b16 %v869, %v868
      %v894 = vpack.c.b16 %v871, %v870
      %v895 = vpack.c.b16 %v873, %v872
      %v896 = vpack.c.b16 %v875, %v874
      %v897 = vpack.c.b16 %v877, %v876
      %v898 = vpack.c.b16 %v879, %v878
      %v899 = vpack.c.b16 %v881, %v880
      %900 = vrot.lane.b32.xlu0 %v882, 33
      %v901 = vpop.permute.xlu0 %900
      %902 = vrot.lane.b32.xlu0 %v883, 33
      %v903 = vpop.permute.xlu0 %902
      %904 = vrot.lane.b32.xlu0 %v884, 33
      %v905 = vpop.permute.xlu0 %904
      %906 = vrot.lane.b32.xlu0 %v885, 33
      %v907 = vpop.permute.xlu0 %906
      %908 = vrot.lane.b32.xlu0 %v886, 33
      %v909 = vpop.permute.xlu0 %908
      %910 = vrot.lane.b32.xlu0 %v887, 33
      %v911 = vpop.permute.xlu0 %910
      %912 = vrot.lane.b32.xlu0 %v888, 33
      %v913 = vpop.permute.xlu0 %912
      %914 = vrot.lane.b32.xlu0 %v889, 33
      %v915 = vpop.permute.xlu0 %914
      %916 = vrot.lane.b32.xlu0 %v890, 33
      %v917 = vpop.permute.xlu0 %916
      %918 = vrot.lane.b32.xlu0 %v891, 33
      %v919 = vpop.permute.xlu0 %918
      %920 = vrot.lane.b32.xlu0 %v892, 33
      %v921 = vpop.permute.xlu0 %920
      %922 = vrot.lane.b32.xlu0 %v893, 33
      %v923 = vpop.permute.xlu0 %922
      %924 = vrot.lane.b32.xlu0 %v894, 33
      %v925 = vpop.permute.xlu0 %924
      %926 = vrot.lane.b32.xlu0 %v895, 33
      %v927 = vpop.permute.xlu0 %926
      %928 = vrot.lane.b32.xlu0 %v896, 33
      %v929 = vpop.permute.xlu0 %928
      %930 = vrot.lane.b32.xlu0 %v897, 33
      %v931 = vpop.permute.xlu0 %930
      %932 = vrot.lane.b32.xlu0 %v898, 33
      %v933 = vpop.permute.xlu0 %932
      %934 = vrot.lane.b32.xlu0 %v899, 33
      %v935 = vpop.permute.xlu0 %934
      %vm954 = vcmask 463112
      %955 = vst.msk [vmem:[#allocation2] sm:$0x1f] %vm954, %v901
      %956 = vst.msk [vmem:[#allocation2 + $0x10] sm:$0x1f] %vm954, %v903
      %957 = vst.msk [vmem:[#allocation2 + $0x20] sm:$0x1f] %vm954, %v905
      %958 = vst.msk [vmem:[#allocation2 + $0x30] sm:$0x1f] %vm954, %v907
      %959 = vst.msk [vmem:[#allocation2 + $0x40] sm:$0x1f] %vm954, %v909
      %960 = vst.msk [vmem:[#allocation2 + $0x50] sm:$0x1f] %vm954, %v911
      %961 = vst.msk [vmem:[#allocation2 + $0x60] sm:$0x1f] %vm954, %v913
      %962 = vst.msk [vmem:[#allocation2 + $0x70] sm:$0x1f] %vm954, %v915
      %963 = vst.msk [vmem:[#allocation2 + $0x80] sm:$0x1f] %vm954, %v917
      %964 = vst.msk [vmem:[#allocation2 + $0x90] sm:$0x1f] %vm954, %v919
      %965 = vst.msk [vmem:[#allocation2 + $0xa0] sm:$0x1f] %vm954, %v921
      %966 = vst.msk [vmem:[#allocation2 + $0xb0] sm:$0x1f] %vm954, %v923
      %967 = vst.msk [vmem:[#allocation2 + $0xc0] sm:$0x1f] %vm954, %v925
      %968 = vst.msk [vmem:[#allocation2 + $0xd0] sm:$0x1f] %vm954, %v927
      %969 = vst.msk [vmem:[#allocation2 + $0xe0] sm:$0x1f] %vm954, %v929
      %970 = vst.msk [vmem:[#allocation2 + $0xf0] sm:$0x1f] %vm954, %v931
      %971 = vst.msk [vmem:[#allocation2 + $0x100] sm:$0x1f] %vm954, %v933
      %972 = vst.msk [vmem:[#allocation2 + $0x110] sm:$0x1f] %vm954, %v935
      %v973 = vld [vmem:[%s773] sm:$0xf]
      %v974 = vld [vmem:[%s773 + $0x4] sm:$0x3]
      %v975 = vld [vmem:[%s773 + $0x8] sm:$0xf]
      %v976 = vld [vmem:[%s773 + $0xc] sm:$0x3]
      %v977 = vld [vmem:[%s773 + $0x10] sm:$0xf]
      %v978 = vld [vmem:[%s773 + $0x14] sm:$0x3]
      %v979 = vld [vmem:[%s773 + $0x18] sm:$0xf]
      %v980 = vld [vmem:[%s773 + $0x1c] sm:$0x3]
      %v981 = vld [vmem:[%s773 + $0x20] sm:$0xf]
      %v982 = vld [vmem:[%s773 + $0x24] sm:$0x3]
      %v983 = vld [vmem:[%s773 + $0x28] sm:$0xf]
      %v984 = vld [vmem:[%s773 + $0x2c] sm:$0x3]
      %v985 = vld [vmem:[%s773 + $0x30] sm:$0xf]
      %v986 = vld [vmem:[%s773 + $0x34] sm:$0x3]
      %v987 = vld [vmem:[%s773 + $0x38] sm:$0xf]
      %v988 = vld [vmem:[%s773 + $0x3c] sm:$0x3]
      %v989 = vld [vmem:[%s773 + $0x40] sm:$0xf]
      %v990 = vld [vmem:[%s773 + $0x44] sm:$0x3]
      %v991 = vld [vmem:[%s773 + $0x48] sm:$0xf]
      %v992 = vld [vmem:[%s773 + $0x4c] sm:$0x3]
      %v993 = vld [vmem:[%s773 + $0x50] sm:$0xf]
      %v994 = vld [vmem:[%s773 + $0x54] sm:$0x3]
      %v995 = vld [vmem:[%s773 + $0x58] sm:$0xf]
      %v996 = vld [vmem:[%s773 + $0x5c] sm:$0x3]
      %v997 = vld [vmem:[%s773 + $0x60] sm:$0xf]
      %v998 = vld [vmem:[%s773 + $0x64] sm:$0x3]
      %v999 = vld [vmem:[%s773 + $0x68] sm:$0xf]
      %v1000 = vld [vmem:[%s773 + $0x6c] sm:$0x3]
      %v1001 = vld [vmem:[%s773 + $0x70] sm:$0xf]
      %v1002 = vld [vmem:[%s773 + $0x74] sm:$0x3]
      %v1003 = vld [vmem:[%s773 + $0x78] sm:$0xf]
      %v1004 = vld [vmem:[%s773 + $0x7c] sm:$0x3]
      %v1005 = vld [vmem:[%s773 + $0x80] sm:$0xf]
      %v1006 = vld [vmem:[%s773 + $0x84] sm:$0x3]
      %v1007 = vld [vmem:[%s773 + $0x88] sm:$0xf]
      %v1008 = vld [vmem:[%s773 + $0x8c] sm:$0x3]
      %v1045 = vunpack.c.l.b16 %v973
      %v1046 = vunpack.c.l.b16 %v974
      %v1047 = vunpack.c.l.b16 %v975
      %v1048 = vunpack.c.l.b16 %v976
      %v1049 = vunpack.c.l.b16 %v977
      %v1050 = vunpack.c.l.b16 %v978
      %v1051 = vunpack.c.l.b16 %v979
      %v1052 = vunpack.c.l.b16 %v980
      %v1053 = vunpack.c.l.b16 %v981
      %v1054 = vunpack.c.l.b16 %v982
      %v1055 = vunpack.c.l.b16 %v983
      %v1056 = vunpack.c.l.b16 %v984
      %v1057 = vunpack.c.l.b16 %v985
      %v1058 = vunpack.c.l.b16 %v986
      %v1059 = vunpack.c.l.b16 %v987
      %v1060 = vunpack.c.l.b16 %v988
      %v1061 = vunpack.c.l.b16 %v989
      %v1062 = vunpack.c.l.b16 %v990
      %v1063 = vunpack.c.l.b16 %v991
      %v1064 = vunpack.c.l.b16 %v992
      %v1065 = vunpack.c.l.b16 %v993
      %v1066 = vunpack.c.l.b16 %v994
      %v1067 = vunpack.c.l.b16 %v995
      %v1068 = vunpack.c.l.b16 %v996
      %v1069 = vunpack.c.l.b16 %v997
      %v1070 = vunpack.c.l.b16 %v998
      %v1071 = vunpack.c.l.b16 %v999
      %v1072 = vunpack.c.l.b16 %v1000
      %v1073 = vunpack.c.l.b16 %v1001
      %v1074 = vunpack.c.l.b16 %v1002
      %v1075 = vunpack.c.l.b16 %v1003
      %v1076 = vunpack.c.l.b16 %v1004
      %v1077 = vunpack.c.l.b16 %v1005
      %v1078 = vunpack.c.l.b16 %v1006
      %v1079 = vunpack.c.l.b16 %v1007
      %v1080 = vunpack.c.l.b16 %v1008
      %v1081 = vpack.c.b16 %v1046, %v1045
      %v1082 = vpack.c.b16 %v1048, %v1047
      %v1083 = vpack.c.b16 %v1050, %v1049
      %v1084 = vpack.c.b16 %v1052, %v1051
      %v1085 = vpack.c.b16 %v1054, %v1053
      %v1086 = vpack.c.b16 %v1056, %v1055
      %v1087 = vpack.c.b16 %v1058, %v1057
      %v1088 = vpack.c.b16 %v1060, %v1059
      %v1089 = vpack.c.b16 %v1062, %v1061
      %v1090 = vpack.c.b16 %v1064, %v1063
      %v1091 = vpack.c.b16 %v1066, %v1065
      %v1092 = vpack.c.b16 %v1068, %v1067
      %v1093 = vpack.c.b16 %v1070, %v1069
      %v1094 = vpack.c.b16 %v1072, %v1071
      %v1095 = vpack.c.b16 %v1074, %v1073
      %v1096 = vpack.c.b16 %v1076, %v1075
      %v1097 = vpack.c.b16 %v1078, %v1077
      %v1098 = vpack.c.b16 %v1080, %v1079
      %v1100 = vshrl.u32 %v1081, 16
      %v1102 = vshll.u32 %v1081, 16
      %v1104 = vrot.slane %v1102, 1
      %v1105 = vor.u32 %v1100, %v1104
      %v1107 = vshrl.u32 %v1082, 16
      %v1109 = vshll.u32 %v1082, 16
      %v1111 = vrot.slane %v1109, 1
      %v1112 = vor.u32 %v1107, %v1111
      %v1114 = vshrl.u32 %v1083, 16
      %v1116 = vshll.u32 %v1083, 16
      %v1118 = vrot.slane %v1116, 1
      %v1119 = vor.u32 %v1114, %v1118
      %v1121 = vshrl.u32 %v1084, 16
      %v1123 = vshll.u32 %v1084, 16
      %v1125 = vrot.slane %v1123, 1
      %v1126 = vor.u32 %v1121, %v1125
      %v1128 = vshrl.u32 %v1085, 16
      %v1130 = vshll.u32 %v1085, 16
      %v1132 = vrot.slane %v1130, 1
      %v1133 = vor.u32 %v1128, %v1132
      %v1135 = vshrl.u32 %v1086, 16
      %v1137 = vshll.u32 %v1086, 16
      %v1139 = vrot.slane %v1137, 1
      %v1140 = vor.u32 %v1135, %v1139
      %v1142 = vshrl.u32 %v1087, 16
      %v1144 = vshll.u32 %v1087, 16
      %v1146 = vrot.slane %v1144, 1
      %v1147 = vor.u32 %v1142, %v1146
      %v1149 = vshrl.u32 %v1088, 16
      %v1151 = vshll.u32 %v1088, 16
      %v1153 = vrot.slane %v1151, 1
      %v1154 = vor.u32 %v1149, %v1153
      %v1156 = vshrl.u32 %v1089, 16
      %v1158 = vshll.u32 %v1089, 16
      %v1160 = vrot.slane %v1158, 1
      %v1161 = vor.u32 %v1156, %v1160
      %v1163 = vshrl.u32 %v1090, 16
      %v1165 = vshll.u32 %v1090, 16
      %v1167 = vrot.slane %v1165, 1
      %v1168 = vor.u32 %v1163, %v1167
      %v1170 = vshrl.u32 %v1091, 16
      %v1172 = vshll.u32 %v1091, 16
      %v1174 = vrot.slane %v1172, 1
      %v1175 = vor.u32 %v1170, %v1174
      %v1177 = vshrl.u32 %v1092, 16
      %v1179 = vshll.u32 %v1092, 16
      %v1181 = vrot.slane %v1179, 1
      %v1182 = vor.u32 %v1177, %v1181
      %v1184 = vshrl.u32 %v1093, 16
      %v1186 = vshll.u32 %v1093, 16
      %v1188 = vrot.slane %v1186, 1
      %v1189 = vor.u32 %v1184, %v1188
      %v1191 = vshrl.u32 %v1094, 16
      %v1193 = vshll.u32 %v1094, 16
      %v1195 = vrot.slane %v1193, 1
      %v1196 = vor.u32 %v1191, %v1195
      %v1198 = vshrl.u32 %v1095, 16
      %v1200 = vshll.u32 %v1095, 16
      %v1202 = vrot.slane %v1200, 1
      %v1203 = vor.u32 %v1198, %v1202
      %v1205 = vshrl.u32 %v1096, 16
      %v1207 = vshll.u32 %v1096, 16
      %v1209 = vrot.slane %v1207, 1
      %v1210 = vor.u32 %v1205, %v1209
      %v1212 = vshrl.u32 %v1097, 16
      %v1214 = vshll.u32 %v1097, 16
      %v1216 = vrot.slane %v1214, 1
      %v1217 = vor.u32 %v1212, %v1216
      %v1219 = vshrl.u32 %v1098, 16
      %v1221 = vshll.u32 %v1098, 16
      %v1223 = vrot.slane %v1221, 1
      %v1224 = vor.u32 %v1219, %v1223
      %1225 = vrot.lane.b32.xlu0 %v1105, 57
      %v1226 = vpop.permute.xlu0 %1225
      %1227 = vrot.lane.b32.xlu0 %v1112, 57
      %v1228 = vpop.permute.xlu0 %1227
      %1229 = vrot.lane.b32.xlu0 %v1119, 57
      %v1230 = vpop.permute.xlu0 %1229
      %1231 = vrot.lane.b32.xlu0 %v1126, 57
      %v1232 = vpop.permute.xlu0 %1231
      %1233 = vrot.lane.b32.xlu0 %v1133, 57
      %v1234 = vpop.permute.xlu0 %1233
      %1235 = vrot.lane.b32.xlu0 %v1140, 57
      %v1236 = vpop.permute.xlu0 %1235
      %1237 = vrot.lane.b32.xlu0 %v1147, 57
      %v1238 = vpop.permute.xlu0 %1237
      %1239 = vrot.lane.b32.xlu0 %v1154, 57
      %v1240 = vpop.permute.xlu0 %1239
      %1241 = vrot.lane.b32.xlu0 %v1161, 57
      %v1242 = vpop.permute.xlu0 %1241
      %1243 = vrot.lane.b32.xlu0 %v1168, 57
      %v1244 = vpop.permute.xlu0 %1243
      %1245 = vrot.lane.b32.xlu0 %v1175, 57
      %v1246 = vpop.permute.xlu0 %1245
      %1247 = vrot.lane.b32.xlu0 %v1182, 57
      %v1248 = vpop.permute.xlu0 %1247
      %1249 = vrot.lane.b32.xlu0 %v1189, 57
      %v1250 = vpop.permute.xlu0 %1249
      %1251 = vrot.lane.b32.xlu0 %v1196, 57
      %v1252 = vpop.permute.xlu0 %1251
      %1253 = vrot.lane.b32.xlu0 %v1203, 57
      %v1254 = vpop.permute.xlu0 %1253
      %1255 = vrot.lane.b32.xlu0 %v1210, 57
      %v1256 = vpop.permute.xlu0 %1255
      %1257 = vrot.lane.b32.xlu0 %v1217, 57
      %v1258 = vpop.permute.xlu0 %1257
      %1259 = vrot.lane.b32.xlu0 %v1224, 57
      %v1260 = vpop.permute.xlu0 %1259
      %vm1279 = vcmask 537032
      %1280 = vst.msk [vmem:[#allocation2] sm:$0x1f] %vm1279, %v1226
      %1281 = vst.msk [vmem:[#allocation2 + $0x10] sm:$0x1f] %vm1279, %v1228
      %1282 = vst.msk [vmem:[#allocation2 + $0x20] sm:$0x1f] %vm1279, %v1230
      %1283 = vst.msk [vmem:[#allocation2 + $0x30] sm:$0x1f] %vm1279, %v1232
      %1284 = vst.msk [vmem:[#allocation2 + $0x40] sm:$0x1f] %vm1279, %v1234
      %1285 = vst.msk [vmem:[#allocation2 + $0x50] sm:$0x1f] %vm1279, %v1236
      %1286 = vst.msk [vmem:[#allocation2 + $0x60] sm:$0x1f] %vm1279, %v1238
      %1287 = vst.msk [vmem:[#allocation2 + $0x70] sm:$0x1f] %vm1279, %v1240
      %1288 = vst.msk [vmem:[#allocation2 + $0x80] sm:$0x1f] %vm1279, %v1242
      %1289 = vst.msk [vmem:[#allocation2 + $0x90] sm:$0x1f] %vm1279, %v1244
      %1290 = vst.msk [vmem:[#allocation2 + $0xa0] sm:$0x1f] %vm1279, %v1246
      %1291 = vst.msk [vmem:[#allocation2 + $0xb0] sm:$0x1f] %vm1279, %v1248
      %1292 = vst.msk [vmem:[#allocation2 + $0xc0] sm:$0x1f] %vm1279, %v1250
      %1293 = vst.msk [vmem:[#allocation2 + $0xd0] sm:$0x1f] %vm1279, %v1252
      %1294 = vst.msk [vmem:[#allocation2 + $0xe0] sm:$0x1f] %vm1279, %v1254
      %1295 = vst.msk [vmem:[#allocation2 + $0xf0] sm:$0x1f] %vm1279, %v1256
      %1296 = vst.msk [vmem:[#allocation2 + $0x100] sm:$0x1f] %vm1279, %v1258
      %1297 = vst.msk [vmem:[#allocation2 + $0x110] sm:$0x1f] %vm1279, %v1260
      %s1298 = scalar_lea.vmem %s277, 8
      %v1299 = vld [vmem:[%s1298] sm:$0xf]
      %v1300 = vld [vmem:[%s1298 + $0x4] sm:$0x1]
      %v1301 = vld [vmem:[%s1298 + $0x8] sm:$0xf]
      %v1302 = vld [vmem:[%s1298 + $0xc] sm:$0x1]
      %v1303 = vld [vmem:[%s1298 + $0x10] sm:$0xf]
      %v1304 = vld [vmem:[%s1298 + $0x14] sm:$0x1]
      %v1305 = vld [vmem:[%s1298 + $0x18] sm:$0xf]
      %v1306 = vld [vmem:[%s1298 + $0x1c] sm:$0x1]
      %v1307 = vld [vmem:[%s1298 + $0x20] sm:$0xf]
      %v1308 = vld [vmem:[%s1298 + $0x24] sm:$0x1]
      %v1309 = vld [vmem:[%s1298 + $0x28] sm:$0xf]
      %v1310 = vld [vmem:[%s1298 + $0x2c] sm:$0x1]
      %v1311 = vld [vmem:[%s1298 + $0x30] sm:$0xf]
      %v1312 = vld [vmem:[%s1298 + $0x34] sm:$0x1]
      %v1313 = vld [vmem:[%s1298 + $0x38] sm:$0xf]
      %v1314 = vld [vmem:[%s1298 + $0x3c] sm:$0x1]
      %v1315 = vld [vmem:[%s1298 + $0x40] sm:$0xf]
      %v1316 = vld [vmem:[%s1298 + $0x44] sm:$0x1]
      %v1317 = vld [vmem:[%s1298 + $0x48] sm:$0xf]
      %v1318 = vld [vmem:[%s1298 + $0x4c] sm:$0x1]
      %v1319 = vld [vmem:[%s1298 + $0x50] sm:$0xf]
      %v1320 = vld [vmem:[%s1298 + $0x54] sm:$0x1]
      %v1321 = vld [vmem:[%s1298 + $0x58] sm:$0xf]
      %v1322 = vld [vmem:[%s1298 + $0x5c] sm:$0x1]
      %v1323 = vld [vmem:[%s1298 + $0x60] sm:$0xf]
      %v1324 = vld [vmem:[%s1298 + $0x64] sm:$0x1]
      %v1325 = vld [vmem:[%s1298 + $0x68] sm:$0xf]
      %v1326 = vld [vmem:[%s1298 + $0x6c] sm:$0x1]
      %v1327 = vld [vmem:[%s1298 + $0x70] sm:$0xf]
      %v1328 = vld [vmem:[%s1298 + $0x74] sm:$0x1]
      %v1329 = vld [vmem:[%s1298 + $0x78] sm:$0xf]
      %v1330 = vld [vmem:[%s1298 + $0x7c] sm:$0x1]
      %v1331 = vld [vmem:[%s1298 + $0x80] sm:$0xf]
      %v1332 = vld [vmem:[%s1298 + $0x84] sm:$0x1]
      %v1333 = vld [vmem:[%s1298 + $0x88] sm:$0xf]
      %v1334 = vld [vmem:[%s1298 + $0x8c] sm:$0x1]
      %v1371 = vunpack.c.l.b16 %v1299
      %v1372 = vunpack.c.l.b16 %v1300
      %v1373 = vunpack.c.l.b16 %v1301
      %v1374 = vunpack.c.l.b16 %v1302
      %v1375 = vunpack.c.l.b16 %v1303
      %v1376 = vunpack.c.l.b16 %v1304
      %v1377 = vunpack.c.l.b16 %v1305
      %v1378 = vunpack.c.l.b16 %v1306
      %v1379 = vunpack.c.l.b16 %v1307
      %v1380 = vunpack.c.l.b16 %v1308
      %v1381 = vunpack.c.l.b16 %v1309
      %v1382 = vunpack.c.l.b16 %v1310
      %v1383 = vunpack.c.l.b16 %v1311
      %v1384 = vunpack.c.l.b16 %v1312
      %v1385 = vunpack.c.l.b16 %v1313
      %v1386 = vunpack.c.l.b16 %v1314
      %v1387 = vunpack.c.l.b16 %v1315
      %v1388 = vunpack.c.l.b16 %v1316
      %v1389 = vunpack.c.l.b16 %v1317
      %v1390 = vunpack.c.l.b16 %v1318
      %v1391 = vunpack.c.l.b16 %v1319
      %v1392 = vunpack.c.l.b16 %v1320
      %v1393 = vunpack.c.l.b16 %v1321
      %v1394 = vunpack.c.l.b16 %v1322
      %v1395 = vunpack.c.l.b16 %v1323
      %v1396 = vunpack.c.l.b16 %v1324
      %v1397 = vunpack.c.l.b16 %v1325
      %v1398 = vunpack.c.l.b16 %v1326
      %v1399 = vunpack.c.l.b16 %v1327
      %v1400 = vunpack.c.l.b16 %v1328
      %v1401 = vunpack.c.l.b16 %v1329
      %v1402 = vunpack.c.l.b16 %v1330
      %v1403 = vunpack.c.l.b16 %v1331
      %v1404 = vunpack.c.l.b16 %v1332
      %v1405 = vunpack.c.l.b16 %v1333
      %v1406 = vunpack.c.l.b16 %v1334
      %v1407 = vpack.c.b16 %v1372, %v1371
      %v1408 = vpack.c.b16 %v1374, %v1373
      %v1409 = vpack.c.b16 %v1376, %v1375
      %v1410 = vpack.c.b16 %v1378, %v1377
      %v1411 = vpack.c.b16 %v1380, %v1379
      %v1412 = vpack.c.b16 %v1382, %v1381
      %v1413 = vpack.c.b16 %v1384, %v1383
      %v1414 = vpack.c.b16 %v1386, %v1385
      %v1415 = vpack.c.b16 %v1388, %v1387
      %v1416 = vpack.c.b16 %v1390, %v1389
      %v1417 = vpack.c.b16 %v1392, %v1391
      %v1418 = vpack.c.b16 %v1394, %v1393
      %v1419 = vpack.c.b16 %v1396, %v1395
      %v1420 = vpack.c.b16 %v1398, %v1397
      %v1421 = vpack.c.b16 %v1400, %v1399
      %v1422 = vpack.c.b16 %v1402, %v1401
      %v1423 = vpack.c.b16 %v1404, %v1403
      %v1424 = vpack.c.b16 %v1406, %v1405
      %1425 = vrot.lane.b32.xlu0 %v1407, 66
      %v1426 = vpop.permute.xlu0 %1425
      %1427 = vrot.lane.b32.xlu0 %v1408, 66
      %v1428 = vpop.permute.xlu0 %1427
      %1429 = vrot.lane.b32.xlu0 %v1409, 66
      %v1430 = vpop.permute.xlu0 %1429
      %1431 = vrot.lane.b32.xlu0 %v1410, 66
      %v1432 = vpop.permute.xlu0 %1431
      %1433 = vrot.lane.b32.xlu0 %v1411, 66
      %v1434 = vpop.permute.xlu0 %1433
      %1435 = vrot.lane.b32.xlu0 %v1412, 66
      %v1436 = vpop.permute.xlu0 %1435
      %1437 = vrot.lane.b32.xlu0 %v1413, 66
      %v1438 = vpop.permute.xlu0 %1437
      %1439 = vrot.lane.b32.xlu0 %v1414, 66
      %v1440 = vpop.permute.xlu0 %1439
      %1441 = vrot.lane.b32.xlu0 %v1415, 66
      %v1442 = vpop.permute.xlu0 %1441
      %1443 = vrot.lane.b32.xlu0 %v1416, 66
      %v1444 = vpop.permute.xlu0 %1443
      %1445 = vrot.lane.b32.xlu0 %v1417, 66
      %v1446 = vpop.permute.xlu0 %1445
      %1447 = vrot.lane.b32.xlu0 %v1418, 66
      %v1448 = vpop.permute.xlu0 %1447
      %1449 = vrot.lane.b32.xlu0 %v1419, 66
      %v1450 = vpop.permute.xlu0 %1449
      %1451 = vrot.lane.b32.xlu0 %v1420, 66
      %v1452 = vpop.permute.xlu0 %1451
      %1453 = vrot.lane.b32.xlu0 %v1421, 66
      %v1454 = vpop.permute.xlu0 %1453
      %1455 = vrot.lane.b32.xlu0 %v1422, 66
      %v1456 = vpop.permute.xlu0 %1455
      %1457 = vrot.lane.b32.xlu0 %v1423, 66
      %v1458 = vpop.permute.xlu0 %1457
      %1459 = vrot.lane.b32.xlu0 %v1424, 66
      %v1460 = vpop.permute.xlu0 %1459
      %vm1479 = vcmask 733712
      %1480 = vst.msk [vmem:[#allocation2] sm:$0x1f] %vm1479, %v1426
      %1481 = vst.msk [vmem:[#allocation2 + $0x10] sm:$0x1f] %vm1479, %v1428
      %1482 = vst.msk [vmem:[#allocation2 + $0x20] sm:$0x1f] %vm1479, %v1430
      %1483 = vst.msk [vmem:[#allocation2 + $0x30] sm:$0x1f] %vm1479, %v1432
      %1484 = vst.msk [vmem:[#allocation2 + $0x40] sm:$0x1f] %vm1479, %v1434
      %1485 = vst.msk [vmem:[#allocation2 + $0x50] sm:$0x1f] %vm1479, %v1436
      %1486 = vst.msk [vmem:[#allocation2 + $0x60] sm:$0x1f] %vm1479, %v1438
      %1487 = vst.msk [vmem:[#allocation2 + $0x70] sm:$0x1f] %vm1479, %v1440
      %1488 = vst.msk [vmem:[#allocation2 + $0x80] sm:$0x1f] %vm1479, %v1442
      %1489 = vst.msk [vmem:[#allocation2 + $0x90] sm:$0x1f] %vm1479, %v1444
      %1490 = vst.msk [vmem:[#allocation2 + $0xa0] sm:$0x1f] %vm1479, %v1446
      %1491 = vst.msk [vmem:[#allocation2 + $0xb0] sm:$0x1f] %vm1479, %v1448
      %1492 = vst.msk [vmem:[#allocation2 + $0xc0] sm:$0x1f] %vm1479, %v1450
      %1493 = vst.msk [vmem:[#allocation2 + $0xd0] sm:$0x1f] %vm1479, %v1452
      %1494 = vst.msk [vmem:[#allocation2 + $0xe0] sm:$0x1f] %vm1479, %v1454
      %1495 = vst.msk [vmem:[#allocation2 + $0xf0] sm:$0x1f] %vm1479, %v1456
      %1496 = vst.msk [vmem:[#allocation2 + $0x100] sm:$0x1f] %vm1479, %v1458
      %1497 = vst.msk [vmem:[#allocation2 + $0x110] sm:$0x1f] %vm1479, %v1460
      %v1498 = vld [vmem:[%s1298] sm:$0xf]
      %v1499 = vld [vmem:[%s1298 + $0x4] sm:$0x3]
      %v1500 = vld [vmem:[%s1298 + $0x8] sm:$0xf]
      %v1501 = vld [vmem:[%s1298 + $0xc] sm:$0x3]
      %v1502 = vld [vmem:[%s1298 + $0x10] sm:$0xf]
      %v1503 = vld [vmem:[%s1298 + $0x14] sm:$0x3]
      %v1504 = vld [vmem:[%s1298 + $0x18] sm:$0xf]
      %v1505 = vld [vmem:[%s1298 + $0x1c] sm:$0x3]
      %v1506 = vld [vmem:[%s1298 + $0x20] sm:$0xf]
      %v1507 = vld [vmem:[%s1298 + $0x24] sm:$0x3]
      %v1508 = vld [vmem:[%s1298 + $0x28] sm:$0xf]
      %v1509 = vld [vmem:[%s1298 + $0x2c] sm:$0x3]
      %v1510 = vld [vmem:[%s1298 + $0x30] sm:$0xf]
      %v1511 = vld [vmem:[%s1298 + $0x34] sm:$0x3]
      %v1512 = vld [vmem:[%s1298 + $0x38] sm:$0xf]
      %v1513 = vld [vmem:[%s1298 + $0x3c] sm:$0x3]
      %v1514 = vld [vmem:[%s1298 + $0x40] sm:$0xf]
      %v1515 = vld [vmem:[%s1298 + $0x44] sm:$0x3]
      %v1516 = vld [vmem:[%s1298 + $0x48] sm:$0xf]
      %v1517 = vld [vmem:[%s1298 + $0x4c] sm:$0x3]
      %v1518 = vld [vmem:[%s1298 + $0x50] sm:$0xf]
      %v1519 = vld [vmem:[%s1298 + $0x54] sm:$0x3]
      %v1520 = vld [vmem:[%s1298 + $0x58] sm:$0xf]
      %v1521 = vld [vmem:[%s1298 + $0x5c] sm:$0x3]
      %v1522 = vld [vmem:[%s1298 + $0x60] sm:$0xf]
      %v1523 = vld [vmem:[%s1298 + $0x64] sm:$0x3]
      %v1524 = vld [vmem:[%s1298 + $0x68] sm:$0xf]
      %v1525 = vld [vmem:[%s1298 + $0x6c] sm:$0x3]
      %v1526 = vld [vmem:[%s1298 + $0x70] sm:$0xf]
      %v1527 = vld [vmem:[%s1298 + $0x74] sm:$0x3]
      %v1528 = vld [vmem:[%s1298 + $0x78] sm:$0xf]
      %v1529 = vld [vmem:[%s1298 + $0x7c] sm:$0x3]
      %v1530 = vld [vmem:[%s1298 + $0x80] sm:$0xf]
      %v1531 = vld [vmem:[%s1298 + $0x84] sm:$0x3]
      %v1532 = vld [vmem:[%s1298 + $0x88] sm:$0xf]
      %v1533 = vld [vmem:[%s1298 + $0x8c] sm:$0x3]
      %v1570 = vunpack.c.l.b16 %v1498
      %v1571 = vunpack.c.l.b16 %v1499
      %v1572 = vunpack.c.l.b16 %v1500
      %v1573 = vunpack.c.l.b16 %v1501
      %v1574 = vunpack.c.l.b16 %v1502
      %v1575 = vunpack.c.l.b16 %v1503
      %v1576 = vunpack.c.l.b16 %v1504
      %v1577 = vunpack.c.l.b16 %v1505
      %v1578 = vunpack.c.l.b16 %v1506
      %v1579 = vunpack.c.l.b16 %v1507
      %v1580 = vunpack.c.l.b16 %v1508
      %v1581 = vunpack.c.l.b16 %v1509
      %v1582 = vunpack.c.l.b16 %v1510
      %v1583 = vunpack.c.l.b16 %v1511
      %v1584 = vunpack.c.l.b16 %v1512
      %v1585 = vunpack.c.l.b16 %v1513
      %v1586 = vunpack.c.l.b16 %v1514
      %v1587 = vunpack.c.l.b16 %v1515
      %v1588 = vunpack.c.l.b16 %v1516
      %v1589 = vunpack.c.l.b16 %v1517
      %v1590 = vunpack.c.l.b16 %v1518
      %v1591 = vunpack.c.l.b16 %v1519
      %v1592 = vunpack.c.l.b16 %v1520
      %v1593 = vunpack.c.l.b16 %v1521
      %v1594 = vunpack.c.l.b16 %v1522
      %v1595 = vunpack.c.l.b16 %v1523
      %v1596 = vunpack.c.l.b16 %v1524
      %v1597 = vunpack.c.l.b16 %v1525
      %v1598 = vunpack.c.l.b16 %v1526
      %v1599 = vunpack.c.l.b16 %v1527
      %v1600 = vunpack.c.l.b16 %v1528
      %v1601 = vunpack.c.l.b16 %v1529
      %v1602 = vunpack.c.l.b16 %v1530
      %v1603 = vunpack.c.l.b16 %v1531
      %v1604 = vunpack.c.l.b16 %v1532
      %v1605 = vunpack.c.l.b16 %v1533
      %v1606 = vpack.c.b16 %v1571, %v1570
      %v1607 = vpack.c.b16 %v1573, %v1572
      %v1608 = vpack.c.b16 %v1575, %v1574
      %v1609 = vpack.c.b16 %v1577, %v1576
      %v1610 = vpack.c.b16 %v1579, %v1578
      %v1611 = vpack.c.b16 %v1581, %v1580
      %v1612 = vpack.c.b16 %v1583, %v1582
      %v1613 = vpack.c.b16 %v1585, %v1584
      %v1614 = vpack.c.b16 %v1587, %v1586
      %v1615 = vpack.c.b16 %v1589, %v1588
      %v1616 = vpack.c.b16 %v1591, %v1590
      %v1617 = vpack.c.b16 %v1593, %v1592
      %v1618 = vpack.c.b16 %v1595, %v1594
      %v1619 = vpack.c.b16 %v1597, %v1596
      %v1620 = vpack.c.b16 %v1599, %v1598
      %v1621 = vpack.c.b16 %v1601, %v1600
      %v1622 = vpack.c.b16 %v1603, %v1602
      %v1623 = vpack.c.b16 %v1605, %v1604
      %v1625 = vshrl.u32 %v1606, 16
      %v1627 = vshll.u32 %v1606, 16
      %v1629 = vrot.slane %v1627, 1
      %v1630 = vor.u32 %v1625, %v1629
      %v1632 = vshrl.u32 %v1607, 16
      %v1634 = vshll.u32 %v1607, 16
      %v1636 = vrot.slane %v1634, 1
      %v1637 = vor.u32 %v1632, %v1636
      %v1639 = vshrl.u32 %v1608, 16
      %v1641 = vshll.u32 %v1608, 16
      %v1643 = vrot.slane %v1641, 1
      %v1644 = vor.u32 %v1639, %v1643
      %v1646 = vshrl.u32 %v1609, 16
      %v1648 = vshll.u32 %v1609, 16
      %v1650 = vrot.slane %v1648, 1
      %v1651 = vor.u32 %v1646, %v1650
      %v1653 = vshrl.u32 %v1610, 16
      %v1655 = vshll.u32 %v1610, 16
      %v1657 = vrot.slane %v1655, 1
      %v1658 = vor.u32 %v1653, %v1657
      %v1660 = vshrl.u32 %v1611, 16
      %v1662 = vshll.u32 %v1611, 16
      %v1664 = vrot.slane %v1662, 1
      %v1665 = vor.u32 %v1660, %v1664
      %v1667 = vshrl.u32 %v1612, 16
      %v1669 = vshll.u32 %v1612, 16
      %v1671 = vrot.slane %v1669, 1
      %v1672 = vor.u32 %v1667, %v1671
      %v1674 = vshrl.u32 %v1613, 16
      %v1676 = vshll.u32 %v1613, 16
      %v1678 = vrot.slane %v1676, 1
      %v1679 = vor.u32 %v1674, %v1678
      %v1681 = vshrl.u32 %v1614, 16
      %v1683 = vshll.u32 %v1614, 16
      %v1685 = vrot.slane %v1683, 1
      %v1686 = vor.u32 %v1681, %v1685
      %v1688 = vshrl.u32 %v1615, 16
      %v1690 = vshll.u32 %v1615, 16
      %v1692 = vrot.slane %v1690, 1
      %v1693 = vor.u32 %v1688, %v1692
      %v1695 = vshrl.u32 %v1616, 16
      %v1697 = vshll.u32 %v1616, 16
      %v1699 = vrot.slane %v1697, 1
      %v1700 = vor.u32 %v1695, %v1699
      %v1702 = vshrl.u32 %v1617, 16
      %v1704 = vshll.u32 %v1617, 16
      %v1706 = vrot.slane %v1704, 1
      %v1707 = vor.u32 %v1702, %v1706
      %v1709 = vshrl.u32 %v1618, 16
      %v1711 = vshll.u32 %v1618, 16
      %v1713 = vrot.slane %v1711, 1
      %v1714 = vor.u32 %v1709, %v1713
      %v1716 = vshrl.u32 %v1619, 16
      %v1718 = vshll.u32 %v1619, 16
      %v1720 = vrot.slane %v1718, 1
      %v1721 = vor.u32 %v1716, %v1720
      %v1723 = vshrl.u32 %v1620, 16
      %v1725 = vshll.u32 %v1620, 16
      %v1727 = vrot.slane %v1725, 1
      %v1728 = vor.u32 %v1723, %v1727
      %v1730 = vshrl.u32 %v1621, 16
      %v1732 = vshll.u32 %v1621, 16
      %v1734 = vrot.slane %v1732, 1
      %v1735 = vor.u32 %v1730, %v1734
      %v1737 = vshrl.u32 %v1622, 16
      %v1739 = vshll.u32 %v1622, 16
      %v1741 = vrot.slane %v1739, 1
      %v1742 = vor.u32 %v1737, %v1741
      %v1744 = vshrl.u32 %v1623, 16
      %v1746 = vshll.u32 %v1623, 16
      %v1748 = vrot.slane %v1746, 1
      %v1749 = vor.u32 %v1744, %v1748
      %1750 = vrot.lane.b32.xlu0 %v1630, 90
      %v1751 = vpop.permute.xlu0 %1750
      %1752 = vrot.lane.b32.xlu0 %v1637, 90
      %v1753 = vpop.permute.xlu0 %1752
      %1754 = vrot.lane.b32.xlu0 %v1644, 90
      %v1755 = vpop.permute.xlu0 %1754
      %1756 = vrot.lane.b32.xlu0 %v1651, 90
      %v1757 = vpop.permute.xlu0 %1756
      %1758 = vrot.lane.b32.xlu0 %v1658, 90
      %v1759 = vpop.permute.xlu0 %1758
      %1760 = vrot.lane.b32.xlu0 %v1665, 90
      %v1761 = vpop.permute.xlu0 %1760
      %1762 = vrot.lane.b32.xlu0 %v1672, 90
      %v1763 = vpop.permute.xlu0 %1762
      %1764 = vrot.lane.b32.xlu0 %v1679, 90
      %v1765 = vpop.permute.xlu0 %1764
      %1766 = vrot.lane.b32.xlu0 %v1686, 90
      %v1767 = vpop.permute.xlu0 %1766
      %1768 = vrot.lane.b32.xlu0 %v1693, 90
      %v1769 = vpop.permute.xlu0 %1768
      %1770 = vrot.lane.b32.xlu0 %v1700, 90
      %v1771 = vpop.permute.xlu0 %1770
      %1772 = vrot.lane.b32.xlu0 %v1707, 90
      %v1773 = vpop.permute.xlu0 %1772
      %1774 = vrot.lane.b32.xlu0 %v1714, 90
      %v1775 = vpop.permute.xlu0 %1774
      %1776 = vrot.lane.b32.xlu0 %v1721, 90
      %v1777 = vpop.permute.xlu0 %1776
      %1778 = vrot.lane.b32.xlu0 %v1728, 90
      %v1779 = vpop.permute.xlu0 %1778
      %1780 = vrot.lane.b32.xlu0 %v1735, 90
      %v1781 = vpop.permute.xlu0 %1780
      %1782 = vrot.lane.b32.xlu0 %v1742, 90
      %v1783 = vpop.permute.xlu0 %1782
      %1784 = vrot.lane.b32.xlu0 %v1749, 90
      %v1785 = vpop.permute.xlu0 %1784
      %vm1804 = vcmask 807632
      %1805 = vst.msk [vmem:[#allocation2] sm:$0x1f] %vm1804, %v1751
      %1806 = vst.msk [vmem:[#allocation2 + $0x10] sm:$0x1f] %vm1804, %v1753
      %1807 = vst.msk [vmem:[#allocation2 + $0x20] sm:$0x1f] %vm1804, %v1755
      %1808 = vst.msk [vmem:[#allocation2 + $0x30] sm:$0x1f] %vm1804, %v1757
      %1809 = vst.msk [vmem:[#allocation2 + $0x40] sm:$0x1f] %vm1804, %v1759
      %1810 = vst.msk [vmem:[#allocation2 + $0x50] sm:$0x1f] %vm1804, %v1761
      %1811 = vst.msk [vmem:[#allocation2 + $0x60] sm:$0x1f] %vm1804, %v1763
      %1812 = vst.msk [vmem:[#allocation2 + $0x70] sm:$0x1f] %vm1804, %v1765
      %1813 = vst.msk [vmem:[#allocation2 + $0x80] sm:$0x1f] %vm1804, %v1767
      %1814 = vst.msk [vmem:[#allocation2 + $0x90] sm:$0x1f] %vm1804, %v1769
      %1815 = vst.msk [vmem:[#allocation2 + $0xa0] sm:$0x1f] %vm1804, %v1771
      %1816 = vst.msk [vmem:[#allocation2 + $0xb0] sm:$0x1f] %vm1804, %v1773
      %1817 = vst.msk [vmem:[#allocation2 + $0xc0] sm:$0x1f] %vm1804, %v1775
      %1818 = vst.msk [vmem:[#allocation2 + $0xd0] sm:$0x1f] %vm1804, %v1777
      %1819 = vst.msk [vmem:[#allocation2 + $0xe0] sm:$0x1f] %vm1804, %v1779
      %1820 = vst.msk [vmem:[#allocation2 + $0xf0] sm:$0x1f] %vm1804, %v1781
      %1821 = vst.msk [vmem:[#allocation2 + $0x100] sm:$0x1f] %vm1804, %v1783
      %1822 = vst.msk [vmem:[#allocation2 + $0x110] sm:$0x1f] %vm1804, %v1785
      %s1823 = scalar_lea.vmem %s277, 168
      %v1824 = vld [vmem:[%s1823] sm:$0xf]
      %v1825 = vld [vmem:[%s1823 + $0x4] sm:$0x1]
      %v1826 = vld [vmem:[%s1823 + $0x8] sm:$0xf]
      %v1827 = vld [vmem:[%s1823 + $0xc] sm:$0x1]
      %v1828 = vld [vmem:[%s1823 + $0x10] sm:$0xf]
      %v1829 = vld [vmem:[%s1823 + $0x14] sm:$0x1]
      %v1830 = vld [vmem:[%s1823 + $0x18] sm:$0xf]
      %v1831 = vld [vmem:[%s1823 + $0x1c] sm:$0x1]
      %v1832 = vld [vmem:[%s1823 + $0x20] sm:$0xf]
      %v1833 = vld [vmem:[%s1823 + $0x24] sm:$0x1]
      %v1834 = vld [vmem:[%s1823 + $0x28] sm:$0xf]
      %v1835 = vld [vmem:[%s1823 + $0x2c] sm:$0x1]
      %v1836 = vld [vmem:[%s1823 + $0x30] sm:$0xf]
      %v1837 = vld [vmem:[%s1823 + $0x34] sm:$0x1]
      %v1838 = vld [vmem:[%s1823 + $0x38] sm:$0xf]
      %v1839 = vld [vmem:[%s1823 + $0x3c] sm:$0x1]
      %v1840 = vld [vmem:[%s1823 + $0x40] sm:$0xf]
      %v1841 = vld [vmem:[%s1823 + $0x44] sm:$0x1]
      %v1842 = vld [vmem:[%s1823 + $0x48] sm:$0xf]
      %v1843 = vld [vmem:[%s1823 + $0x4c] sm:$0x1]
      %v1844 = vld [vmem:[%s1823 + $0x50] sm:$0xf]
      %v1845 = vld [vmem:[%s1823 + $0x54] sm:$0x1]
      %v1846 = vld [vmem:[%s1823 + $0x58] sm:$0xf]
      %v1847 = vld [vmem:[%s1823 + $0x5c] sm:$0x1]
      %v1848 = vld [vmem:[%s1823 + $0x60] sm:$0xf]
      %v1849 = vld [vmem:[%s1823 + $0x64] sm:$0x1]
      %v1850 = vld [vmem:[%s1823 + $0x68] sm:$0xf]
      %v1851 = vld [vmem:[%s1823 + $0x6c] sm:$0x1]
      %v1852 = vld [vmem:[%s1823 + $0x70] sm:$0xf]
      %v1853 = vld [vmem:[%s1823 + $0x74] sm:$0x1]
      %v1854 = vld [vmem:[%s1823 + $0x78] sm:$0xf]
      %v1855 = vld [vmem:[%s1823 + $0x7c] sm:$0x1]
      %v1856 = vld [vmem:[%s1823 + $0x80] sm:$0xf]
      %v1857 = vld [vmem:[%s1823 + $0x84] sm:$0x1]
      %v1858 = vld [vmem:[%s1823 + $0x88] sm:$0xf]
      %v1859 = vld [vmem:[%s1823 + $0x8c] sm:$0x1]
      %v1896 = vunpack.c.l.b16 %v1824
      %v1897 = vunpack.c.l.b16 %v1825
      %v1898 = vunpack.c.l.b16 %v1826
      %v1899 = vunpack.c.l.b16 %v1827
      %v1900 = vunpack.c.l.b16 %v1828
      %v1901 = vunpack.c.l.b16 %v1829
      %v1902 = vunpack.c.l.b16 %v1830
      %v1903 = vunpack.c.l.b16 %v1831
      %v1904 = vunpack.c.l.b16 %v1832
      %v1905 = vunpack.c.l.b16 %v1833
      %v1906 = vunpack.c.l.b16 %v1834
      %v1907 = vunpack.c.l.b16 %v1835
      %v1908 = vunpack.c.l.b16 %v1836
      %v1909 = vunpack.c.l.b16 %v1837
      %v1910 = vunpack.c.l.b16 %v1838
      %v1911 = vunpack.c.l.b16 %v1839
      %v1912 = vunpack.c.l.b16 %v1840
      %v1913 = vunpack.c.l.b16 %v1841
      %v1914 = vunpack.c.l.b16 %v1842
      %v1915 = vunpack.c.l.b16 %v1843
      %v1916 = vunpack.c.l.b16 %v1844
      %v1917 = vunpack.c.l.b16 %v1845
      %v1918 = vunpack.c.l.b16 %v1846
      %v1919 = vunpack.c.l.b16 %v1847
      %v1920 = vunpack.c.l.b16 %v1848
      %v1921 = vunpack.c.l.b16 %v1849
      %v1922 = vunpack.c.l.b16 %v1850
      %v1923 = vunpack.c.l.b16 %v1851
      %v1924 = vunpack.c.l.b16 %v1852
      %v1925 = vunpack.c.l.b16 %v1853
      %v1926 = vunpack.c.l.b16 %v1854
      %v1927 = vunpack.c.l.b16 %v1855
      %v1928 = vunpack.c.l.b16 %v1856
      %v1929 = vunpack.c.l.b16 %v1857
      %v1930 = vunpack.c.l.b16 %v1858
      %v1931 = vunpack.c.l.b16 %v1859
      %v1932 = vpack.c.b16 %v1897, %v1896
      %v1933 = vpack.c.b16 %v1899, %v1898
      %v1934 = vpack.c.b16 %v1901, %v1900
      %v1935 = vpack.c.b16 %v1903, %v1902
      %v1936 = vpack.c.b16 %v1905, %v1904
      %v1937 = vpack.c.b16 %v1907, %v1906
      %v1938 = vpack.c.b16 %v1909, %v1908
      %v1939 = vpack.c.b16 %v1911, %v1910
      %v1940 = vpack.c.b16 %v1913, %v1912
      %v1941 = vpack.c.b16 %v1915, %v1914
      %v1942 = vpack.c.b16 %v1917, %v1916
      %v1943 = vpack.c.b16 %v1919, %v1918
      %v1944 = vpack.c.b16 %v1921, %v1920
      %v1945 = vpack.c.b16 %v1923, %v1922
      %v1946 = vpack.c.b16 %v1925, %v1924
      %v1947 = vpack.c.b16 %v1927, %v1926
      %v1948 = vpack.c.b16 %v1929, %v1928
      %v1949 = vpack.c.b16 %v1931, %v1930
      %1950 = vrot.lane.b32.xlu0 %v1932, 99
      %v1951 = vpop.permute.xlu0 %1950
      %1952 = vrot.lane.b32.xlu0 %v1933, 99
      %v1953 = vpop.permute.xlu0 %1952
      %1954 = vrot.lane.b32.xlu0 %v1934, 99
      %v1955 = vpop.permute.xlu0 %1954
      %1956 = vrot.lane.b32.xlu0 %v1935, 99
      %v1957 = vpop.permute.xlu0 %1956
      %1958 = vrot.lane.b32.xlu0 %v1936, 99
      %v1959 = vpop.permute.xlu0 %1958
      %1960 = vrot.lane.b32.xlu0 %v1937, 99
      %v1961 = vpop.permute.xlu0 %1960
      %1962 = vrot.lane.b32.xlu0 %v1938, 99
      %v1963 = vpop.permute.xlu0 %1962
      %1964 = vrot.lane.b32.xlu0 %v1939, 99
      %v1965 = vpop.permute.xlu0 %1964
      %1966 = vrot.lane.b32.xlu0 %v1940, 99
      %v1967 = vpop.permute.xlu0 %1966
      %1968 = vrot.lane.b32.xlu0 %v1941, 99
      %v1969 = vpop.permute.xlu0 %1968
      %1970 = vrot.lane.b32.xlu0 %v1942, 99
      %v1971 = vpop.permute.xlu0 %1970
      %1972 = vrot.lane.b32.xlu0 %v1943, 99
      %v1973 = vpop.permute.xlu0 %1972
      %1974 = vrot.lane.b32.xlu0 %v1944, 99
      %v1975 = vpop.permute.xlu0 %1974
      %1976 = vrot.lane.b32.xlu0 %v1945, 99
      %v1977 = vpop.permute.xlu0 %1976
      %1978 = vrot.lane.b32.xlu0 %v1946, 99
      %v1979 = vpop.permute.xlu0 %1978
      %1980 = vrot.lane.b32.xlu0 %v1947, 99
      %v1981 = vpop.permute.xlu0 %1980
      %1982 = vrot.lane.b32.xlu0 %v1948, 99
      %v1983 = vpop.permute.xlu0 %1982
      %1984 = vrot.lane.b32.xlu0 %v1949, 99
      %v1985 = vpop.permute.xlu0 %1984
      %vm2004 = vcmask 1004312
      %2005 = vst.msk [vmem:[#allocation2] sm:$0x1f] %vm2004, %v1951
      %2006 = vst.msk [vmem:[#allocation2 + $0x10] sm:$0x1f] %vm2004, %v1953
      %2007 = vst.msk [vmem:[#allocation2 + $0x20] sm:$0x1f] %vm2004, %v1955
      %2008 = vst.msk [vmem:[#allocation2 + $0x30] sm:$0x1f] %vm2004, %v1957
      %2009 = vst.msk [vmem:[#allocation2 + $0x40] sm:$0x1f] %vm2004, %v1959
      %2010 = vst.msk [vmem:[#allocation2 + $0x50] sm:$0x1f] %vm2004, %v1961
      %2011 = vst.msk [vmem:[#allocation2 + $0x60] sm:$0x1f] %vm2004, %v1963
      %2012 = vst.msk [vmem:[#allocation2 + $0x70] sm:$0x1f] %vm2004, %v1965
      %2013 = vst.msk [vmem:[#allocation2 + $0x80] sm:$0x1f] %vm2004, %v1967
      %2014 = vst.msk [vmem:[#allocation2 + $0x90] sm:$0x1f] %vm2004, %v1969
      %2015 = vst.msk [vmem:[#allocation2 + $0xa0] sm:$0x1f] %vm2004, %v1971
      %2016 = vst.msk [vmem:[#allocation2 + $0xb0] sm:$0x1f] %vm2004, %v1973
      %2017 = vst.msk [vmem:[#allocation2 + $0xc0] sm:$0x1f] %vm2004, %v1975
      %2018 = vst.msk [vmem:[#allocation2 + $0xd0] sm:$0x1f] %vm2004, %v1977
      %2019 = vst.msk [vmem:[#allocation2 + $0xe0] sm:$0x1f] %vm2004, %v1979
      %2020 = vst.msk [vmem:[#allocation2 + $0xf0] sm:$0x1f] %vm2004, %v1981
      %2021 = vst.msk [vmem:[#allocation2 + $0x100] sm:$0x1f] %vm2004, %v1983
      %2022 = vst.msk [vmem:[#allocation2 + $0x110] sm:$0x1f] %vm2004, %v1985
      %v2023 = vld [vmem:[%s1823] sm:$0xf]
      %v2024 = vld [vmem:[%s1823 + $0x4] sm:$0x3]
      %v2025 = vld [vmem:[%s1823 + $0x8] sm:$0xf]
      %v2026 = vld [vmem:[%s1823 + $0xc] sm:$0x3]
      %v2027 = vld [vmem:[%s1823 + $0x10] sm:$0xf]
      %v2028 = vld [vmem:[%s1823 + $0x14] sm:$0x3]
      %v2029 = vld [vmem:[%s1823 + $0x18] sm:$0xf]
      %v2030 = vld [vmem:[%s1823 + $0x1c] sm:$0x3]
      %v2031 = vld [vmem:[%s1823 + $0x20] sm:$0xf]
      %v2032 = vld [vmem:[%s1823 + $0x24] sm:$0x3]
      %v2033 = vld [vmem:[%s1823 + $0x28] sm:$0xf]
      %v2034 = vld [vmem:[%s1823 + $0x2c] sm:$0x3]
      %v2035 = vld [vmem:[%s1823 + $0x30] sm:$0xf]
      %v2036 = vld [vmem:[%s1823 + $0x34] sm:$0x3]
      %v2037 = vld [vmem:[%s1823 + $0x38] sm:$0xf]
      %v2038 = vld [vmem:[%s1823 + $0x3c] sm:$0x3]
      %v2039 = vld [vmem:[%s1823 + $0x40] sm:$0xf]
      %v2040 = vld [vmem:[%s1823 + $0x44] sm:$0x3]
      %v2041 = vld [vmem:[%s1823 + $0x48] sm:$0xf]
      %v2042 = vld [vmem:[%s1823 + $0x4c] sm:$0x3]
      %v2043 = vld [vmem:[%s1823 + $0x50] sm:$0xf]
      %v2044 = vld [vmem:[%s1823 + $0x54] sm:$0x3]
      %v2045 = vld [vmem:[%s1823 + $0x58] sm:$0xf]
      %v2046 = vld [vmem:[%s1823 + $0x5c] sm:$0x3]
      %v2047 = vld [vmem:[%s1823 + $0x60] sm:$0xf]
      %v2048 = vld [vmem:[%s1823 + $0x64] sm:$0x3]
      %v2049 = vld [vmem:[%s1823 + $0x68] sm:$0xf]
      %v2050 = vld [vmem:[%s1823 + $0x6c] sm:$0x3]
      %v2051 = vld [vmem:[%s1823 + $0x70] sm:$0xf]
      %v2052 = vld [vmem:[%s1823 + $0x74] sm:$0x3]
      %v2053 = vld [vmem:[%s1823 + $0x78] sm:$0xf]
      %v2054 = vld [vmem:[%s1823 + $0x7c] sm:$0x3]
      %v2055 = vld [vmem:[%s1823 + $0x80] sm:$0xf]
      %v2056 = vld [vmem:[%s1823 + $0x84] sm:$0x3]
      %v2057 = vld [vmem:[%s1823 + $0x88] sm:$0xf]
      %v2058 = vld [vmem:[%s1823 + $0x8c] sm:$0x3]
      %v2095 = vunpack.c.l.b16 %v2023
      %v2096 = vunpack.c.l.b16 %v2024
      %v2097 = vunpack.c.l.b16 %v2025
      %v2098 = vunpack.c.l.b16 %v2026
      %v2099 = vunpack.c.l.b16 %v2027
      %v2100 = vunpack.c.l.b16 %v2028
      %v2101 = vunpack.c.l.b16 %v2029
      %v2102 = vunpack.c.l.b16 %v2030
      %v2103 = vunpack.c.l.b16 %v2031
      %v2104 = vunpack.c.l.b16 %v2032
      %v2105 = vunpack.c.l.b16 %v2033
      %v2106 = vunpack.c.l.b16 %v2034
      %v2107 = vunpack.c.l.b16 %v2035
      %v2108 = vunpack.c.l.b16 %v2036
      %v2109 = vunpack.c.l.b16 %v2037
      %v2110 = vunpack.c.l.b16 %v2038
      %v2111 = vunpack.c.l.b16 %v2039
      %v2112 = vunpack.c.l.b16 %v2040
      %v2113 = vunpack.c.l.b16 %v2041
      %v2114 = vunpack.c.l.b16 %v2042
      %v2115 = vunpack.c.l.b16 %v2043
      %v2116 = vunpack.c.l.b16 %v2044
      %v2117 = vunpack.c.l.b16 %v2045
      %v2118 = vunpack.c.l.b16 %v2046
      %v2119 = vunpack.c.l.b16 %v2047
      %v2120 = vunpack.c.l.b16 %v2048
      %v2121 = vunpack.c.l.b16 %v2049
      %v2122 = vunpack.c.l.b16 %v2050
      %v2123 = vunpack.c.l.b16 %v2051
      %v2124 = vunpack.c.l.b16 %v2052
      %v2125 = vunpack.c.l.b16 %v2053
      %v2126 = vunpack.c.l.b16 %v2054
      %v2127 = vunpack.c.l.b16 %v2055
      %v2128 = vunpack.c.l.b16 %v2056
      %v2129 = vunpack.c.l.b16 %v2057
      %v2130 = vunpack.c.l.b16 %v2058
      %v2131 = vpack.c.b16 %v2096, %v2095
      %v2132 = vpack.c.b16 %v2098, %v2097
      %v2133 = vpack.c.b16 %v2100, %v2099
      %v2134 = vpack.c.b16 %v2102, %v2101
      %v2135 = vpack.c.b16 %v2104, %v2103
      %v2136 = vpack.c.b16 %v2106, %v2105
      %v2137 = vpack.c.b16 %v2108, %v2107
      %v2138 = vpack.c.b16 %v2110, %v2109
      %v2139 = vpack.c.b16 %v2112, %v2111
      %v2140 = vpack.c.b16 %v2114, %v2113
      %v2141 = vpack.c.b16 %v2116, %v2115
      %v2142 = vpack.c.b16 %v2118, %v2117
      %v2143 = vpack.c.b16 %v2120, %v2119
      %v2144 = vpack.c.b16 %v2122, %v2121
      %v2145 = vpack.c.b16 %v2124, %v2123
      %v2146 = vpack.c.b16 %v2126, %v2125
      %v2147 = vpack.c.b16 %v2128, %v2127
      %v2148 = vpack.c.b16 %v2130, %v2129
      %v2150 = vshrl.u32 %v2131, 16
      %v2152 = vshll.u32 %v2131, 16
      %v2154 = vrot.slane %v2152, 1
      %v2155 = vor.u32 %v2150, %v2154
      %v2157 = vshrl.u32 %v2132, 16
      %v2159 = vshll.u32 %v2132, 16
      %v2161 = vrot.slane %v2159, 1
      %v2162 = vor.u32 %v2157, %v2161
      %v2164 = vshrl.u32 %v2133, 16
      %v2166 = vshll.u32 %v2133, 16
      %v2168 = vrot.slane %v2166, 1
      %v2169 = vor.u32 %v2164, %v2168
      %v2171 = vshrl.u32 %v2134, 16
      %v2173 = vshll.u32 %v2134, 16
      %v2175 = vrot.slane %v2173, 1
      %v2176 = vor.u32 %v2171, %v2175
      %v2178 = vshrl.u32 %v2135, 16
      %v2180 = vshll.u32 %v2135, 16
      %v2182 = vrot.slane %v2180, 1
      %v2183 = vor.u32 %v2178, %v2182
      %v2185 = vshrl.u32 %v2136, 16
      %v2187 = vshll.u32 %v2136, 16
      %v2189 = vrot.slane %v2187, 1
      %v2190 = vor.u32 %v2185, %v2189
      %v2192 = vshrl.u32 %v2137, 16
      %v2194 = vshll.u32 %v2137, 16
      %v2196 = vrot.slane %v2194, 1
      %v2197 = vor.u32 %v2192, %v2196
      %v2199 = vshrl.u32 %v2138, 16
      %v2201 = vshll.u32 %v2138, 16
      %v2203 = vrot.slane %v2201, 1
      %v2204 = vor.u32 %v2199, %v2203
      %v2206 = vshrl.u32 %v2139, 16
      %v2208 = vshll.u32 %v2139, 16
      %v2210 = vrot.slane %v2208, 1
      %v2211 = vor.u32 %v2206, %v2210
      %v2213 = vshrl.u32 %v2140, 16
      %v2215 = vshll.u32 %v2140, 16
      %v2217 = vrot.slane %v2215, 1
      %v2218 = vor.u32 %v2213, %v2217
      %v2220 = vshrl.u32 %v2141, 16
      %v2222 = vshll.u32 %v2141, 16
      %v2224 = vrot.slane %v2222, 1
      %v2225 = vor.u32 %v2220, %v2224
      %v2227 = vshrl.u32 %v2142, 16
      %v2229 = vshll.u32 %v2142, 16
      %v2231 = vrot.slane %v2229, 1
      %v2232 = vor.u32 %v2227, %v2231
      %v2234 = vshrl.u32 %v2143, 16
      %v2236 = vshll.u32 %v2143, 16
      %v2238 = vrot.slane %v2236, 1
      %v2239 = vor.u32 %v2234, %v2238
      %v2241 = vshrl.u32 %v2144, 16
      %v2243 = vshll.u32 %v2144, 16
      %v2245 = vrot.slane %v2243, 1
      %v2246 = vor.u32 %v2241, %v2245
      %v2248 = vshrl.u32 %v2145, 16
      %v2250 = vshll.u32 %v2145, 16
      %v2252 = vrot.slane %v2250, 1
      %v2253 = vor.u32 %v2248, %v2252
      %v2255 = vshrl.u32 %v2146, 16
      %v2257 = vshll.u32 %v2146, 16
      %v2259 = vrot.slane %v2257, 1
      %v2260 = vor.u32 %v2255, %v2259
      %v2262 = vshrl.u32 %v2147, 16
      %v2264 = vshll.u32 %v2147, 16
      %v2266 = vrot.slane %v2264, 1
      %v2267 = vor.u32 %v2262, %v2266
      %v2269 = vshrl.u32 %v2148, 16
      %v2271 = vshll.u32 %v2148, 16
      %v2273 = vrot.slane %v2271, 1
      %v2274 = vor.u32 %v2269, %v2273
      %2275 = vrot.lane.b32.xlu0 %v2155, 123
      %v2276 = vpop.permute.xlu0 %2275
      %2277 = vrot.lane.b32.xlu0 %v2162, 123
      %v2278 = vpop.permute.xlu0 %2277
      %2279 = vrot.lane.b32.xlu0 %v2169, 123
      %v2280 = vpop.permute.xlu0 %2279
      %2281 = vrot.lane.b32.xlu0 %v2176, 123
      %v2282 = vpop.permute.xlu0 %2281
      %2283 = vrot.lane.b32.xlu0 %v2183, 123
      %v2284 = vpop.permute.xlu0 %2283
      %2285 = vrot.lane.b32.xlu0 %v2190, 123
      %v2286 = vpop.permute.xlu0 %2285
      %2287 = vrot.lane.b32.xlu0 %v2197, 123
      %v2288 = vpop.permute.xlu0 %2287
      %2289 = vrot.lane.b32.xlu0 %v2204, 123
      %v2290 = vpop.permute.xlu0 %2289
      %2291 = vrot.lane.b32.xlu0 %v2211, 123
      %v2292 = vpop.permute.xlu0 %2291
      %2293 = vrot.lane.b32.xlu0 %v2218, 123
      %v2294 = vpop.permute.xlu0 %2293
      %2295 = vrot.lane.b32.xlu0 %v2225, 123
      %v2296 = vpop.permute.xlu0 %2295
      %2297 = vrot.lane.b32.xlu0 %v2232, 123
      %v2298 = vpop.permute.xlu0 %2297
      %2299 = vrot.lane.b32.xlu0 %v2239, 123
      %v2300 = vpop.permute.xlu0 %2299
      %2301 = vrot.lane.b32.xlu0 %v2246, 123
      %v2302 = vpop.permute.xlu0 %2301
      %2303 = vrot.lane.b32.xlu0 %v2253, 123
      %v2304 = vpop.permute.xlu0 %2303
      %2305 = vrot.lane.b32.xlu0 %v2260, 123
      %v2306 = vpop.permute.xlu0 %2305
      %2307 = vrot.lane.b32.xlu0 %v2267, 123
      %v2308 = vpop.permute.xlu0 %2307
      %2309 = vrot.lane.b32.xlu0 %v2274, 123
      %v2310 = vpop.permute.xlu0 %2309
      %vm2329 = vcmask 1045464
      %2330 = vst.msk [vmem:[#allocation2] sm:$0x1f] %vm2329, %v2276
      %vm2331 = vcmask 28672
      %2332 = vst.msk [vmem:[#allocation2 + $0x8] sm:$0x1f] %vm2331, %v2276
      %2333 = vst.msk [vmem:[#allocation2 + $0x10] sm:$0x1f] %vm2329, %v2278
      %2334 = vst.msk [vmem:[#allocation2 + $0x18] sm:$0x1f] %vm2331, %v2278
      %2335 = vst.msk [vmem:[#allocation2 + $0x20] sm:$0x1f] %vm2329, %v2280
      %2336 = vst.msk [vmem:[#allocation2 + $0x28] sm:$0x1f] %vm2331, %v2280
      %2337 = vst.msk [vmem:[#allocation2 + $0x30] sm:$0x1f] %vm2329, %v2282
      %2338 = vst.msk [vmem:[#allocation2 + $0x38] sm:$0x1f] %vm2331, %v2282
      %2339 = vst.msk [vmem:[#allocation2 + $0x40] sm:$0x1f] %vm2329, %v2284
      %2340 = vst.msk [vmem:[#allocation2 + $0x48] sm:$0x1f] %vm2331, %v2284
      %2341 = vst.msk [vmem:[#allocation2 + $0x50] sm:$0x1f] %vm2329, %v2286
      %2342 = vst.msk [vmem:[#allocation2 + $0x58] sm:$0x1f] %vm2331, %v2286
      %2343 = vst.msk [vmem:[#allocation2 + $0x60] sm:$0x1f] %vm2329, %v2288
      %2344 = vst.msk [vmem:[#allocation2 + $0x68] sm:$0x1f] %vm2331, %v2288
      %2345 = vst.msk [vmem:[#allocation2 + $0x70] sm:$0x1f] %vm2329, %v2290
      %2346 = vst.msk [vmem:[#allocation2 + $0x78] sm:$0x1f] %vm2331, %v2290
      %2347 = vst.msk [vmem:[#allocation2 + $0x80] sm:$0x1f] %vm2329, %v2292
      %2348 = vst.msk [vmem:[#allocation2 + $0x88] sm:$0x1f] %vm2331, %v2292
      %2349 = vst.msk [vmem:[#allocation2 + $0x90] sm:$0x1f] %vm2329, %v2294
      %2350 = vst.msk [vmem:[#allocation2 + $0x98] sm:$0x1f] %vm2331, %v2294
      %2351 = vst.msk [vmem:[#allocation2 + $0xa0] sm:$0x1f] %vm2329, %v2296
      %2352 = vst.msk [vmem:[#allocation2 + $0xa8] sm:$0x1f] %vm2331, %v2296
      %2353 = vst.msk [vmem:[#allocation2 + $0xb0] sm:$0x1f] %vm2329, %v2298
      %2354 = vst.msk [vmem:[#allocation2 + $0xb8] sm:$0x1f] %vm2331, %v2298
      %2355 = vst.msk [vmem:[#allocation2 + $0xc0] sm:$0x1f] %vm2329, %v2300
      %2356 = vst.msk [vmem:[#allocation2 + $0xc8] sm:$0x1f] %vm2331, %v2300
      %2357 = vst.msk [vmem:[#allocation2 + $0xd0] sm:$0x1f] %vm2329, %v2302
      %2358 = vst.msk [vmem:[#allocation2 + $0xd8] sm:$0x1f] %vm2331, %v2302
      %2359 = vst.msk [vmem:[#allocation2 + $0xe0] sm:$0x1f] %vm2329, %v2304
      %2360 = vst.msk [vmem:[#allocation2 + $0xe8] sm:$0x1f] %vm2331, %v2304
      %2361 = vst.msk [vmem:[#allocation2 + $0xf0] sm:$0x1f] %vm2329, %v2306
      %2362 = vst.msk [vmem:[#allocation2 + $0xf8] sm:$0x1f] %vm2331, %v2306
      %2363 = vst.msk [vmem:[#allocation2 + $0x100] sm:$0x1f] %vm2329, %v2308
      %2364 = vst.msk [vmem:[#allocation2 + $0x108] sm:$0x1f] %vm2331, %v2308
      %2365 = vst.msk [vmem:[#allocation2 + $0x110] sm:$0x1f] %vm2329, %v2310
      %2366 = vst.msk [vmem:[#allocation2 + $0x118] sm:$0x1f] %vm2331, %v2310
      %s2367 = scalar_lea.vmem %s277, 16
      %v2368 = vld [vmem:[%s2367] sm:$0xf]
      %v2369 = vld [vmem:[%s2367 + $0x4] sm:$0x1]
      %v2370 = vld [vmem:[%s2367 + $0x8] sm:$0xf]
      %v2371 = vld [vmem:[%s2367 + $0xc] sm:$0x1]
      %v2372 = vld [vmem:[%s2367 + $0x10] sm:$0xf]
      %v2373 = vld [vmem:[%s2367 + $0x14] sm:$0x1]
      %v2374 = vld [vmem:[%s2367 + $0x18] sm:$0xf]
      %v2375 = vld [vmem:[%s2367 + $0x1c] sm:$0x1]
      %v2376 = vld [vmem:[%s2367 + $0x20] sm:$0xf]
      %v2377 = vld [vmem:[%s2367 + $0x24] sm:$0x1]
      %v2378 = vld [vmem:[%s2367 + $0x28] sm:$0xf]
      %v2379 = vld [vmem:[%s2367 + $0x2c] sm:$0x1]
      %v2380 = vld [vmem:[%s2367 + $0x30] sm:$0xf]
      %v2381 = vld [vmem:[%s2367 + $0x34] sm:$0x1]
      %v2382 = vld [vmem:[%s2367 + $0x38] sm:$0xf]
      %v2383 = vld [vmem:[%s2367 + $0x3c] sm:$0x1]
      %v2384 = vld [vmem:[%s2367 + $0x40] sm:$0xf]
      %v2385 = vld [vmem:[%s2367 + $0x44] sm:$0x1]
      %v2386 = vld [vmem:[%s2367 + $0x48] sm:$0xf]
      %v2387 = vld [vmem:[%s2367 + $0x4c] sm:$0x1]
      %v2388 = vld [vmem:[%s2367 + $0x50] sm:$0xf]
      %v2389 = vld [vmem:[%s2367 + $0x54] sm:$0x1]
      %v2390 = vld [vmem:[%s2367 + $0x58] sm:$0xf]
      %v2391 = vld [vmem:[%s2367 + $0x5c] sm:$0x1]
      %v2392 = vld [vmem:[%s2367 + $0x60] sm:$0xf]
      %v2393 = vld [vmem:[%s2367 + $0x64] sm:$0x1]
      %v2394 = vld [vmem:[%s2367 + $0x68] sm:$0xf]
      %v2395 = vld [vmem:[%s2367 + $0x6c] sm:$0x1]
      %v2396 = vld [vmem:[%s2367 + $0x70] sm:$0xf]
      %v2397 = vld [vmem:[%s2367 + $0x74] sm:$0x1]
      %v2398 = vld [vmem:[%s2367 + $0x78] sm:$0xf]
      %v2399 = vld [vmem:[%s2367 + $0x7c] sm:$0x1]
      %v2400 = vld [vmem:[%s2367 + $0x80] sm:$0xf]
      %v2401 = vld [vmem:[%s2367 + $0x84] sm:$0x1]
      %v2402 = vld [vmem:[%s2367 + $0x88] sm:$0xf]
      %v2403 = vld [vmem:[%s2367 + $0x8c] sm:$0x1]
      %v2440 = vunpack.c.l.b16 %v2368
      %v2441 = vunpack.c.l.b16 %v2369
      %v2442 = vunpack.c.l.b16 %v2370
      %v2443 = vunpack.c.l.b16 %v2371
      %v2444 = vunpack.c.l.b16 %v2372
      %v2445 = vunpack.c.l.b16 %v2373
      %v2446 = vunpack.c.l.b16 %v2374
      %v2447 = vunpack.c.l.b16 %v2375
      %v2448 = vunpack.c.l.b16 %v2376
      %v2449 = vunpack.c.l.b16 %v2377
      %v2450 = vunpack.c.l.b16 %v2378
      %v2451 = vunpack.c.l.b16 %v2379
      %v2452 = vunpack.c.l.b16 %v2380
      %v2453 = vunpack.c.l.b16 %v2381
      %v2454 = vunpack.c.l.b16 %v2382
      %v2455 = vunpack.c.l.b16 %v2383
      %v2456 = vunpack.c.l.b16 %v2384
      %v2457 = vunpack.c.l.b16 %v2385
      %v2458 = vunpack.c.l.b16 %v2386
      %v2459 = vunpack.c.l.b16 %v2387
      %v2460 = vunpack.c.l.b16 %v2388
      %v2461 = vunpack.c.l.b16 %v2389
      %v2462 = vunpack.c.l.b16 %v2390
      %v2463 = vunpack.c.l.b16 %v2391
      %v2464 = vunpack.c.l.b16 %v2392
      %v2465 = vunpack.c.l.b16 %v2393
      %v2466 = vunpack.c.l.b16 %v2394
      %v2467 = vunpack.c.l.b16 %v2395
      %v2468 = vunpack.c.l.b16 %v2396
      %v2469 = vunpack.c.l.b16 %v2397
      %v2470 = vunpack.c.l.b16 %v2398
      %v2471 = vunpack.c.l.b16 %v2399
      %v2472 = vunpack.c.l.b16 %v2400
      %v2473 = vunpack.c.l.b16 %v2401
      %v2474 = vunpack.c.l.b16 %v2402
      %v2475 = vunpack.c.l.b16 %v2403
      %v2476 = vpack.c.b16 %v2441, %v2440
      %v2477 = vpack.c.b16 %v2443, %v2442
      %v2478 = vpack.c.b16 %v2445, %v2444
      %v2479 = vpack.c.b16 %v2447, %v2446
      %v2480 = vpack.c.b16 %v2449, %v2448
      %v2481 = vpack.c.b16 %v2451, %v2450
      %v2482 = vpack.c.b16 %v2453, %v2452
      %v2483 = vpack.c.b16 %v2455, %v2454
      %v2484 = vpack.c.b16 %v2457, %v2456
      %v2485 = vpack.c.b16 %v2459, %v2458
      %v2486 = vpack.c.b16 %v2461, %v2460
      %v2487 = vpack.c.b16 %v2463, %v2462
      %v2488 = vpack.c.b16 %v2465, %v2464
      %v2489 = vpack.c.b16 %v2467, %v2466
      %v2490 = vpack.c.b16 %v2469, %v2468
      %v2491 = vpack.c.b16 %v2471, %v2470
      %v2492 = vpack.c.b16 %v2473, %v2472
      %v2493 = vpack.c.b16 %v2475, %v2474
      %2494 = vrot.lane.b32.xlu0 %v2476, 4
      %v2495 = vpop.permute.xlu0 %2494
      %2496 = vrot.lane.b32.xlu0 %v2477, 4
      %v2497 = vpop.permute.xlu0 %2496
      %2498 = vrot.lane.b32.xlu0 %v2478, 4
      %v2499 = vpop.permute.xlu0 %2498
      %2500 = vrot.lane.b32.xlu0 %v2479, 4
      %v2501 = vpop.permute.xlu0 %2500
      %2502 = vrot.lane.b32.xlu0 %v2480, 4
      %v2503 = vpop.permute.xlu0 %2502
      %2504 = vrot.lane.b32.xlu0 %v2481, 4
      %v2505 = vpop.permute.xlu0 %2504
      %2506 = vrot.lane.b32.xlu0 %v2482, 4
      %v2507 = vpop.permute.xlu0 %2506
      %2508 = vrot.lane.b32.xlu0 %v2483, 4
      %v2509 = vpop.permute.xlu0 %2508
      %2510 = vrot.lane.b32.xlu0 %v2484, 4
      %v2511 = vpop.permute.xlu0 %2510
      %2512 = vrot.lane.b32.xlu0 %v2485, 4
      %v2513 = vpop.permute.xlu0 %2512
      %2514 = vrot.lane.b32.xlu0 %v2486, 4
      %v2515 = vpop.permute.xlu0 %2514
      %2516 = vrot.lane.b32.xlu0 %v2487, 4
      %v2517 = vpop.permute.xlu0 %2516
      %2518 = vrot.lane.b32.xlu0 %v2488, 4
      %v2519 = vpop.permute.xlu0 %2518
      %2520 = vrot.lane.b32.xlu0 %v2489, 4
      %v2521 = vpop.permute.xlu0 %2520
      %2522 = vrot.lane.b32.xlu0 %v2490, 4
      %v2523 = vpop.permute.xlu0 %2522
      %2524 = vrot.lane.b32.xlu0 %v2491, 4
      %v2525 = vpop.permute.xlu0 %2524
      %2526 = vrot.lane.b32.xlu0 %v2492, 4
      %v2527 = vpop.permute.xlu0 %2526
      %2528 = vrot.lane.b32.xlu0 %v2493, 4
      %v2529 = vpop.permute.xlu0 %2528
      %vm2548 = vcmask 225312
      %2549 = vst.msk [vmem:[#allocation2 + $0x8] sm:$0x1f] %vm2548, %v2495
      %2550 = vst.msk [vmem:[#allocation2 + $0x18] sm:$0x1f] %vm2548, %v2497
      %2551 = vst.msk [vmem:[#allocation2 + $0x28] sm:$0x1f] %vm2548, %v2499
      %2552 = vst.msk [vmem:[#allocation2 + $0x38] sm:$0x1f] %vm2548, %v2501
      %2553 = vst.msk [vmem:[#allocation2 + $0x48] sm:$0x1f] %vm2548, %v2503
      %2554 = vst.msk [vmem:[#allocation2 + $0x58] sm:$0x1f] %vm2548, %v2505
      %2555 = vst.msk [vmem:[#allocation2 + $0x68] sm:$0x1f] %vm2548, %v2507
      %2556 = vst.msk [vmem:[#allocation2 + $0x78] sm:$0x1f] %vm2548, %v2509
      %2557 = vst.msk [vmem:[#allocation2 + $0x88] sm:$0x1f] %vm2548, %v2511
      %2558 = vst.msk [vmem:[#allocation2 + $0x98] sm:$0x1f] %vm2548, %v2513
      %2559 = vst.msk [vmem:[#allocation2 + $0xa8] sm:$0x1f] %vm2548, %v2515
      %2560 = vst.msk [vmem:[#allocation2 + $0xb8] sm:$0x1f] %vm2548, %v2517
      %2561 = vst.msk [vmem:[#allocation2 + $0xc8] sm:$0x1f] %vm2548, %v2519
      %2562 = vst.msk [vmem:[#allocation2 + $0xd8] sm:$0x1f] %vm2548, %v2521
      %2563 = vst.msk [vmem:[#allocation2 + $0xe8] sm:$0x1f] %vm2548, %v2523
      %2564 = vst.msk [vmem:[#allocation2 + $0xf8] sm:$0x1f] %vm2548, %v2525
      %2565 = vst.msk [vmem:[#allocation2 + $0x108] sm:$0x1f] %vm2548, %v2527
      %2566 = vst.msk [vmem:[#allocation2 + $0x118] sm:$0x1f] %vm2548, %v2529
      %v2567 = vld [vmem:[%s2367] sm:$0xf]
      %v2568 = vld [vmem:[%s2367 + $0x4] sm:$0x3]
      %v2569 = vld [vmem:[%s2367 + $0x8] sm:$0xf]
      %v2570 = vld [vmem:[%s2367 + $0xc] sm:$0x3]
      %v2571 = vld [vmem:[%s2367 + $0x10] sm:$0xf]
      %v2572 = vld [vmem:[%s2367 + $0x14] sm:$0x3]
      %v2573 = vld [vmem:[%s2367 + $0x18] sm:$0xf]
      %v2574 = vld [vmem:[%s2367 + $0x1c] sm:$0x3]
      %v2575 = vld [vmem:[%s2367 + $0x20] sm:$0xf]
      %v2576 = vld [vmem:[%s2367 + $0x24] sm:$0x3]
      %v2577 = vld [vmem:[%s2367 + $0x28] sm:$0xf]
      %v2578 = vld [vmem:[%s2367 + $0x2c] sm:$0x3]
      %v2579 = vld [vmem:[%s2367 + $0x30] sm:$0xf]
      %v2580 = vld [vmem:[%s2367 + $0x34] sm:$0x3]
      %v2581 = vld [vmem:[%s2367 + $0x38] sm:$0xf]
      %v2582 = vld [vmem:[%s2367 + $0x3c] sm:$0x3]
      %v2583 = vld [vmem:[%s2367 + $0x40] sm:$0xf]
      %v2584 = vld [vmem:[%s2367 + $0x44] sm:$0x3]
      %v2585 = vld [vmem:[%s2367 + $0x48] sm:$0xf]
      %v2586 = vld [vmem:[%s2367 + $0x4c] sm:$0x3]
      %v2587 = vld [vmem:[%s2367 + $0x50] sm:$0xf]
      %v2588 = vld [vmem:[%s2367 + $0x54] sm:$0x3]
      %v2589 = vld [vmem:[%s2367 + $0x58] sm:$0xf]
      %v2590 = vld [vmem:[%s2367 + $0x5c] sm:$0x3]
      %v2591 = vld [vmem:[%s2367 + $0x60] sm:$0xf]
      %v2592 = vld [vmem:[%s2367 + $0x64] sm:$0x3]
      %v2593 = vld [vmem:[%s2367 + $0x68] sm:$0xf]
      %v2594 = vld [vmem:[%s2367 + $0x6c] sm:$0x3]
      %v2595 = vld [vmem:[%s2367 + $0x70] sm:$0xf]
      %v2596 = vld [vmem:[%s2367 + $0x74] sm:$0x3]
      %v2597 = vld [vmem:[%s2367 + $0x78] sm:$0xf]
      %v2598 = vld [vmem:[%s2367 + $0x7c] sm:$0x3]
      %v2599 = vld [vmem:[%s2367 + $0x80] sm:$0xf]
      %v2600 = vld [vmem:[%s2367 + $0x84] sm:$0x3]
      %v2601 = vld [vmem:[%s2367 + $0x88] sm:$0xf]
      %v2602 = vld [vmem:[%s2367 + $0x8c] sm:$0x3]
      %v2639 = vunpack.c.l.b16 %v2567
      %v2640 = vunpack.c.l.b16 %v2568
      %v2641 = vunpack.c.l.b16 %v2569
      %v2642 = vunpack.c.l.b16 %v2570
      %v2643 = vunpack.c.l.b16 %v2571
      %v2644 = vunpack.c.l.b16 %v2572
      %v2645 = vunpack.c.l.b16 %v2573
      %v2646 = vunpack.c.l.b16 %v2574
      %v2647 = vunpack.c.l.b16 %v2575
      %v2648 = vunpack.c.l.b16 %v2576
      %v2649 = vunpack.c.l.b16 %v2577
      %v2650 = vunpack.c.l.b16 %v2578
      %v2651 = vunpack.c.l.b16 %v2579
      %v2652 = vunpack.c.l.b16 %v2580
      %v2653 = vunpack.c.l.b16 %v2581
      %v2654 = vunpack.c.l.b16 %v2582
      %v2655 = vunpack.c.l.b16 %v2583
      %v2656 = vunpack.c.l.b16 %v2584
      %v2657 = vunpack.c.l.b16 %v2585
      %v2658 = vunpack.c.l.b16 %v2586
      %v2659 = vunpack.c.l.b16 %v2587
      %v2660 = vunpack.c.l.b16 %v2588
      %v2661 = vunpack.c.l.b16 %v2589
      %v2662 = vunpack.c.l.b16 %v2590
      %v2663 = vunpack.c.l.b16 %v2591
      %v2664 = vunpack.c.l.b16 %v2592
      %v2665 = vunpack.c.l.b16 %v2593
      %v2666 = vunpack.c.l.b16 %v2594
      %v2667 = vunpack.c.l.b16 %v2595
      %v2668 = vunpack.c.l.b16 %v2596
      %v2669 = vunpack.c.l.b16 %v2597
      %v2670 = vunpack.c.l.b16 %v2598
      %v2671 = vunpack.c.l.b16 %v2599
      %v2672 = vunpack.c.l.b16 %v2600
      %v2673 = vunpack.c.l.b16 %v2601
      %v2674 = vunpack.c.l.b16 %v2602
      %v2675 = vpack.c.b16 %v2640, %v2639
      %v2676 = vpack.c.b16 %v2642, %v2641
      %v2677 = vpack.c.b16 %v2644, %v2643
      %v2678 = vpack.c.b16 %v2646, %v2645
      %v2679 = vpack.c.b16 %v2648, %v2647
      %v2680 = vpack.c.b16 %v2650, %v2649
      %v2681 = vpack.c.b16 %v2652, %v2651
      %v2682 = vpack.c.b16 %v2654, %v2653
      %v2683 = vpack.c.b16 %v2656, %v2655
      %v2684 = vpack.c.b16 %v2658, %v2657
      %v2685 = vpack.c.b16 %v2660, %v2659
      %v2686 = vpack.c.b16 %v2662, %v2661
      %v2687 = vpack.c.b16 %v2664, %v2663
      %v2688 = vpack.c.b16 %v2666, %v2665
      %v2689 = vpack.c.b16 %v2668, %v2667
      %v2690 = vpack.c.b16 %v2670, %v2669
      %v2691 = vpack.c.b16 %v2672, %v2671
      %v2692 = vpack.c.b16 %v2674, %v2673
      %v2694 = vshrl.u32 %v2675, 16
      %v2696 = vshll.u32 %v2675, 16
      %v2698 = vrot.slane %v2696, 1
      %v2699 = vor.u32 %v2694, %v2698
      %v2701 = vshrl.u32 %v2676, 16
      %v2703 = vshll.u32 %v2676, 16
      %v2705 = vrot.slane %v2703, 1
      %v2706 = vor.u32 %v2701, %v2705
      %v2708 = vshrl.u32 %v2677, 16
      %v2710 = vshll.u32 %v2677, 16
      %v2712 = vrot.slane %v2710, 1
      %v2713 = vor.u32 %v2708, %v2712
      %v2715 = vshrl.u32 %v2678, 16
      %v2717 = vshll.u32 %v2678, 16
      %v2719 = vrot.slane %v2717, 1
      %v2720 = vor.u32 %v2715, %v2719
      %v2722 = vshrl.u32 %v2679, 16
      %v2724 = vshll.u32 %v2679, 16
      %v2726 = vrot.slane %v2724, 1
      %v2727 = vor.u32 %v2722, %v2726
      %v2729 = vshrl.u32 %v2680, 16
      %v2731 = vshll.u32 %v2680, 16
      %v2733 = vrot.slane %v2731, 1
      %v2734 = vor.u32 %v2729, %v2733
      %v2736 = vshrl.u32 %v2681, 16
      %v2738 = vshll.u32 %v2681, 16
      %v2740 = vrot.slane %v2738, 1
      %v2741 = vor.u32 %v2736, %v2740
      %v2743 = vshrl.u32 %v2682, 16
      %v2745 = vshll.u32 %v2682, 16
      %v2747 = vrot.slane %v2745, 1
      %v2748 = vor.u32 %v2743, %v2747
      %v2750 = vshrl.u32 %v2683, 16
      %v2752 = vshll.u32 %v2683, 16
      %v2754 = vrot.slane %v2752, 1
      %v2755 = vor.u32 %v2750, %v2754
      %v2757 = vshrl.u32 %v2684, 16
      %v2759 = vshll.u32 %v2684, 16
      %v2761 = vrot.slane %v2759, 1
      %v2762 = vor.u32 %v2757, %v2761
      %v2764 = vshrl.u32 %v2685, 16
      %v2766 = vshll.u32 %v2685, 16
      %v2768 = vrot.slane %v2766, 1
      %v2769 = vor.u32 %v2764, %v2768
      %v2771 = vshrl.u32 %v2686, 16
      %v2773 = vshll.u32 %v2686, 16
      %v2775 = vrot.slane %v2773, 1
      %v2776 = vor.u32 %v2771, %v2775
      %v2778 = vshrl.u32 %v2687, 16
      %v2780 = vshll.u32 %v2687, 16
      %v2782 = vrot.slane %v2780, 1
      %v2783 = vor.u32 %v2778, %v2782
      %v2785 = vshrl.u32 %v2688, 16
      %v2787 = vshll.u32 %v2688, 16
      %v2789 = vrot.slane %v2787, 1
      %v2790 = vor.u32 %v2785, %v2789
      %v2792 = vshrl.u32 %v2689, 16
      %v2794 = vshll.u32 %v2689, 16
      %v2796 = vrot.slane %v2794, 1
      %v2797 = vor.u32 %v2792, %v2796
      %v2799 = vshrl.u32 %v2690, 16
      %v2801 = vshll.u32 %v2690, 16
      %v2803 = vrot.slane %v2801, 1
      %v2804 = vor.u32 %v2799, %v2803
      %v2806 = vshrl.u32 %v2691, 16
      %v2808 = vshll.u32 %v2691, 16
      %v2810 = vrot.slane %v2808, 1
      %v2811 = vor.u32 %v2806, %v2810
      %v2813 = vshrl.u32 %v2692, 16
      %v2815 = vshll.u32 %v2692, 16
      %v2817 = vrot.slane %v2815, 1
      %v2818 = vor.u32 %v2813, %v2817
      %2819 = vrot.lane.b32.xlu0 %v2699, 28
      %v2820 = vpop.permute.xlu0 %2819
      %2821 = vrot.lane.b32.xlu0 %v2706, 28
      %v2822 = vpop.permute.xlu0 %2821
      %2823 = vrot.lane.b32.xlu0 %v2713, 28
      %v2824 = vpop.permute.xlu0 %2823
      %2825 = vrot.lane.b32.xlu0 %v2720, 28
      %v2826 = vpop.permute.xlu0 %2825
      %2827 = vrot.lane.b32.xlu0 %v2727, 28
      %v2828 = vpop.permute.xlu0 %2827
      %2829 = vrot.lane.b32.xlu0 %v2734, 28
      %v2830 = vpop.permute.xlu0 %2829
      %2831 = vrot.lane.b32.xlu0 %v2741, 28
      %v2832 = vpop.permute.xlu0 %2831
      %2833 = vrot.lane.b32.xlu0 %v2748, 28
      %v2834 = vpop.permute.xlu0 %2833
      %2835 = vrot.lane.b32.xlu0 %v2755, 28
      %v2836 = vpop.permute.xlu0 %2835
      %2837 = vrot.lane.b32.xlu0 %v2762, 28
      %v2838 = vpop.permute.xlu0 %2837
      %2839 = vrot.lane.b32.xlu0 %v2769, 28
      %v2840 = vpop.permute.xlu0 %2839
      %2841 = vrot.lane.b32.xlu0 %v2776, 28
      %v2842 = vpop.permute.xlu0 %2841
      %2843 = vrot.lane.b32.xlu0 %v2783, 28
      %v2844 = vpop.permute.xlu0 %2843
      %2845 = vrot.lane.b32.xlu0 %v2790, 28
      %v2846 = vpop.permute.xlu0 %2845
      %2847 = vrot.lane.b32.xlu0 %v2797, 28
      %v2848 = vpop.permute.xlu0 %2847
      %2849 = vrot.lane.b32.xlu0 %v2804, 28
      %v2850 = vpop.permute.xlu0 %2849
      %2851 = vrot.lane.b32.xlu0 %v2811, 28
      %v2852 = vpop.permute.xlu0 %2851
      %2853 = vrot.lane.b32.xlu0 %v2818, 28
      %v2854 = vpop.permute.xlu0 %2853
      %vm2873 = vcmask 299232
      %2874 = vst.msk [vmem:[#allocation2 + $0x8] sm:$0x1f] %vm2873, %v2820
      %2875 = vst.msk [vmem:[#allocation2 + $0x18] sm:$0x1f] %vm2873, %v2822
      %2876 = vst.msk [vmem:[#allocation2 + $0x28] sm:$0x1f] %vm2873, %v2824
      %2877 = vst.msk [vmem:[#allocation2 + $0x38] sm:$0x1f] %vm2873, %v2826
      %2878 = vst.msk [vmem:[#allocation2 + $0x48] sm:$0x1f] %vm2873, %v2828
      %2879 = vst.msk [vmem:[#allocation2 + $0x58] sm:$0x1f] %vm2873, %v2830
      %2880 = vst.msk [vmem:[#allocation2 + $0x68] sm:$0x1f] %vm2873, %v2832
      %2881 = vst.msk [vmem:[#allocation2 + $0x78] sm:$0x1f] %vm2873, %v2834
      %2882 = vst.msk [vmem:[#allocation2 + $0x88] sm:$0x1f] %vm2873, %v2836
      %2883 = vst.msk [vmem:[#allocation2 + $0x98] sm:$0x1f] %vm2873, %v2838
      %2884 = vst.msk [vmem:[#allocation2 + $0xa8] sm:$0x1f] %vm2873, %v2840
      %2885 = vst.msk [vmem:[#allocation2 + $0xb8] sm:$0x1f] %vm2873, %v2842
      %2886 = vst.msk [vmem:[#allocation2 + $0xc8] sm:$0x1f] %vm2873, %v2844
      %2887 = vst.msk [vmem:[#allocation2 + $0xd8] sm:$0x1f] %vm2873, %v2846
      %2888 = vst.msk [vmem:[#allocation2 + $0xe8] sm:$0x1f] %vm2873, %v2848
      %2889 = vst.msk [vmem:[#allocation2 + $0xf8] sm:$0x1f] %vm2873, %v2850
      %2890 = vst.msk [vmem:[#allocation2 + $0x108] sm:$0x1f] %vm2873, %v2852
      %2891 = vst.msk [vmem:[#allocation2 + $0x118] sm:$0x1f] %vm2873, %v2854
      %v2892 = vld [vmem:[#allocation2] sm:$0xff]
      %v2893 = vld [vmem:[#allocation2 + $0x8] sm:$0xff]
      %v2894 = vld [vmem:[#allocation2 + $0x10] sm:$0xff]
      %v2895 = vld [vmem:[#allocation2 + $0x18] sm:$0xff]
      %v2896 = vld [vmem:[#allocation2 + $0x20] sm:$0xff]
      %v2897 = vld [vmem:[#allocation2 + $0x28] sm:$0xff]
      %v2898 = vld [vmem:[#allocation2 + $0x30] sm:$0xff]
      %v2899 = vld [vmem:[#allocation2 + $0x38] sm:$0xff]
      %v2900 = vld [vmem:[#allocation2 + $0x40] sm:$0xff]
      %v2901 = vld [vmem:[#allocation2 + $0x48] sm:$0xff]
      %v2902 = vld [vmem:[#allocation2 + $0x50] sm:$0xff]
      %v2903 = vld [vmem:[#allocation2 + $0x58] sm:$0xff]
      %v2904 = vld [vmem:[#allocation2 + $0x60] sm:$0xff]
      %v2905 = vld [vmem:[#allocation2 + $0x68] sm:$0xff]
      %v2906 = vld [vmem:[#allocation2 + $0x70] sm:$0xff]
      %v2907 = vld [vmem:[#allocation2 + $0x78] sm:$0xff]
      %v2908 = vld [vmem:[#allocation2 + $0x80] sm:$0xff]
      %v2909 = vld [vmem:[#allocation2 + $0x88] sm:$0xff]
      %v2910 = vld [vmem:[#allocation2 + $0x90] sm:$0xff]
      %v2911 = vld [vmem:[#allocation2 + $0x98] sm:$0xff]
      %v2912 = vld [vmem:[#allocation2 + $0xa0] sm:$0xff]
      %v2913 = vld [vmem:[#allocation2 + $0xa8] sm:$0xff]
      %v2914 = vld [vmem:[#allocation2 + $0xb0] sm:$0xff]
      %v2915 = vld [vmem:[#allocation2 + $0xb8] sm:$0xff]
      %v2916 = vld [vmem:[#allocation2 + $0xc0] sm:$0xff]
      %v2917 = vld [vmem:[#allocation2 + $0xc8] sm:$0xff]
      %v2918 = vld [vmem:[#allocation2 + $0xd0] sm:$0xff]
      %v2919 = vld [vmem:[#allocation2 + $0xd8] sm:$0xff]
      %v2920 = vld [vmem:[#allocation2 + $0xe0] sm:$0xff]
      %v2921 = vld [vmem:[#allocation2 + $0xe8] sm:$0xff]
      %v2922 = vld [vmem:[#allocation2 + $0xf0] sm:$0xff]
      %v2923 = vld [vmem:[#allocation2 + $0xf8] sm:$0xff]
      %v2924 = vld [vmem:[#allocation2 + $0x100] sm:$0xff]
      %v2925 = vld [vmem:[#allocation2 + $0x108] sm:$0xff]
      %v2926 = vld [vmem:[#allocation2 + $0x110] sm:$0xff]
      %v2927 = vld [vmem:[#allocation2 + $0x118] sm:$0xff]
      %v2928 = vld [vmem:[%s1] sm:$0xf]
      %v2929 = vld [vmem:[%s1 + $0x4] sm:$0xf]
      %v2930 = vld [vmem:[%s1 + $0x8] sm:$0xf]
      %v2931 = vld [vmem:[%s1 + $0xc] sm:$0xf]
      %v2932 = vld [vmem:[%s1 + $0x10] sm:$0xf]
      %v2933 = vld [vmem:[%s1 + $0x14] sm:$0xf]
      %v2934 = vld [vmem:[%s1 + $0x18] sm:$0xf]
      %v2935 = vld [vmem:[%s1 + $0x1c] sm:$0xf]
      %v2936 = vld [vmem:[%s1 + $0x20] sm:$0xf]
      %v2937 = vld [vmem:[%s1 + $0x24] sm:$0xf]
      %v2938 = vld [vmem:[%s1 + $0x28] sm:$0xf]
      %v2939 = vld [vmem:[%s1 + $0x2c] sm:$0xf]
      %v2940 = vld [vmem:[%s1 + $0x30] sm:$0xf]
      %v2941 = vld [vmem:[%s1 + $0x34] sm:$0xf]
      %v2942 = vld [vmem:[%s1 + $0x38] sm:$0xf]
      %v2943 = vld [vmem:[%s1 + $0x3c] sm:$0xf]
      %v2944 = vld [vmem:[%s1 + $0x40] sm:$0xf]
      %v2945 = vld [vmem:[%s1 + $0x44] sm:$0xf]
      %v2946 = vld [vmem:[%s1 + $0x48] sm:$0xf]
      %v2947 = vld [vmem:[%s1 + $0x4c] sm:$0xf]
      %v2948 = vld [vmem:[%s1 + $0x50] sm:$0x7]
      %v2949 = vld [vmem:[%s4] sm:$0x1]
      %v2951 = vlaneseq
      %v2952 = vshrl.u32 %v2951, 7
      %v2953 = vsub.s32 0, %v2952
      %v2954 = vrot.slane %v2949, %v2953
      %v2977 = vunpack.c.l.b16 %v2928
      %v2978 = vunpack.c.l.b16 %v2929
      %v2979 = vunpack.c.l.b16 %v2930
      %v2980 = vunpack.c.l.b16 %v2931
      %v2981 = vunpack.c.l.b16 %v2932
      %v2982 = vunpack.c.l.b16 %v2933
      %v2983 = vunpack.c.l.b16 %v2934
      %v2984 = vunpack.c.l.b16 %v2935
      %v2985 = vunpack.c.l.b16 %v2936
      %v2986 = vunpack.c.l.b16 %v2937
      %v2987 = vunpack.c.l.b16 %v2938
      %v2988 = vunpack.c.l.b16 %v2939
      %v2989 = vunpack.c.l.b16 %v2940
      %v2990 = vunpack.c.l.b16 %v2941
      %v2991 = vunpack.c.l.b16 %v2942
      %v2992 = vunpack.c.l.b16 %v2943
      %v2993 = vunpack.c.l.b16 %v2944
      %v2994 = vunpack.c.l.b16 %v2945
      %v2995 = vunpack.c.l.b16 %v2946
      %v2996 = vunpack.c.l.b16 %v2947
      %v2997 = vunpack.c.l.b16 %v2948
      %v2998 = vpack.c.b16 %v2978, %v2977
      %v2999 = vpack.c.b16 %v2980, %v2979
      %v3000 = vpack.c.b16 %v2982, %v2981
      %v3001 = vpack.c.b16 %v2984, %v2983
      %v3002 = vpack.c.b16 %v2986, %v2985
      %v3003 = vpack.c.b16 %v2988, %v2987
      %v3004 = vpack.c.b16 %v2990, %v2989
      %v3005 = vpack.c.b16 %v2992, %v2991
      %v3006 = vpack.c.b16 %v2994, %v2993
      %v3007 = vpack.c.b16 %v2996, %v2995
      %v3008 = vpack.c.b16 %v2997, %v2997
      %vm3019 = vcmask 302080
      %v3021 = vsel %vm3019, %v2893, 0
      %v3024 = vsel %vm3019, %v2895, 0
      %v3027 = vsel %vm3019, %v2897, 0
      %v3030 = vsel %vm3019, %v2899, 0
      %v3033 = vsel %vm3019, %v2901, 0
      %v3036 = vsel %vm3019, %v2903, 0
      %v3039 = vsel %vm3019, %v2905, 0
      %v3042 = vsel %vm3019, %v2907, 0
      %v3045 = vsel %vm3019, %v2909, 0
      %v3048 = vsel %vm3019, %v2911, 0
      %v3051 = vsel %vm3019, %v2913, 0
      %v3054 = vsel %vm3019, %v2915, 0
      %v3057 = vsel %vm3019, %v2917, 0
      %v3060 = vsel %vm3019, %v2919, 0
      %v3063 = vsel %vm3019, %v2921, 0
      %v3066 = vsel %vm3019, %v2923, 0
      %v3069 = vsel %vm3019, %v2925, 0
      %v3072 = vsel %vm3019, %v2927, 0
      %vm3074 = vcmask 1041408
      %vm3075 = vcmask 1042432
      %v3076 = vsel %vm3074, 4294967295, 65535
      %v3077 = vsel %vm3075, %v3076, 0
      %v3079 = vand.u32 %v3008, %v3077
      %3081 = vmatprep.subr.bf16.mxu0 0
      %3082 = vmatpush1.bf16.msra.mxu0 %v2998
      %3083 = vmatprep.subr.bf16.mxu0 0
      %3084 = vmatpush1.bf16.msra.mxu0 %v2999
      %3085 = vmatprep.subr.bf16.mxu0 0
      %3086 = vmatpush1.bf16.msra.mxu0 %v3000
      %3087 = vmatprep.subr.bf16.mxu0 0
      %3088 = vmatpush1.bf16.msra.mxu0 %v3001
      %3089 = vmatprep.subr.bf16.mxu0 0
      %3090 = vmatpush1.bf16.msra.mxu0 %v3002
      %3091 = vmatprep.subr.bf16.mxu0 0
      %3092 = vmatpush1.bf16.msra.mxu0 %v3003
      %3093 = vmatprep.subr.bf16.mxu0 0
      %3094 = vmatpush1.bf16.msra.mxu0 %v3004
      %3095 = vmatprep.subr.bf16.mxu0 0
      %3096 = vmatpush1.bf16.msra.mxu0 %v3005
      %3097 = vmatprep.subr.bf16.mxu0 0
      %3098 = vmatpush1.bf16.msra.mxu0 %v3006
      %3099 = vmatprep.subr.bf16.mxu0 0
      %3100 = vmatpush1.bf16.msra.mxu0 %v3007
      %3101 = vmatprep.subr.bf16.mxu0 0
      %3102 = vmatpush1.bf16.msra.mxu0 %v3079
      %3103 = vmatprep.subr.bf16.mxu0 0
      %3104 = vmatpush1.bf16.msra.mxu0 0
      %3105 = vmatprep.subr.bf16.mxu0 0
      %3106 = vmatpush1.bf16.msra.mxu0 0
      %3107 = vmatprep.subr.bf16.mxu0 0
      %3108 = vmatpush1.bf16.msra.mxu0 0
      %3109 = vmatprep.subr.bf16.mxu0 0
      %3110 = vmatpush1.bf16.msra.mxu0 0
      %3111 = vmatprep.subr.bf16.mxu0 0
      %3112 = vmatpush1.bf16.msra.mxu0 0
      %3113 = vmatprep.mubr.bf16.mxu0 %v3021
      %3114 = vmatmul.mubr.bf16.gmra.mrb[0].mxu0 %v2892
      %v3115 = vpop.f32.mrb[0].mxu0
      %v3116 = vadd.f32 %v2954, %v3115
      %v3117 = vpop.f32.mrb[0].mxu0
      %v3118 = vpop.f32.mrb[0].mxu0
      %v3119 = vadd.f32 %v2954, %v3118
      %v3120 = vpop.f32.mrb[0].mxu0
      %3121 = vmatprep.mubr.bf16.mxu0 %v3024
      %3122 = vmatmul.mubr.bf16.gmra.mrb[0].mxu0 %v2894
      %v3123 = vpop.f32.mrb[0].mxu0
      %v3124 = vadd.f32 %v2954, %v3123
      %v3125 = vpop.f32.mrb[0].mxu0
      %v3126 = vpop.f32.mrb[0].mxu0
      %v3127 = vadd.f32 %v2954, %v3126
      %v3128 = vpop.f32.mrb[0].mxu0
      %3129 = vmatprep.mubr.bf16.mxu0 %v3027
      %3130 = vmatmul.mubr.bf16.gmra.mrb[0].mxu0 %v2896
      %v3131 = vpop.f32.mrb[0].mxu0
      %v3132 = vadd.f32 %v2954, %v3131
      %v3133 = vpop.f32.mrb[0].mxu0
      %v3134 = vpop.f32.mrb[0].mxu0
      %v3135 = vadd.f32 %v2954, %v3134
      %v3136 = vpop.f32.mrb[0].mxu0
      %3137 = vmatprep.mubr.bf16.mxu0 %v3030
      %3138 = vmatmul.mubr.bf16.gmra.mrb[0].mxu0 %v2898
      %v3139 = vpop.f32.mrb[0].mxu0
      %v3140 = vadd.f32 %v2954, %v3139
      %v3141 = vpop.f32.mrb[0].mxu0
      %v3142 = vpop.f32.mrb[0].mxu0
      %v3143 = vadd.f32 %v2954, %v3142
      %v3144 = vpop.f32.mrb[0].mxu0
      %3145 = vmatprep.mubr.bf16.mxu0 %v3033
      %3146 = vmatmul.mubr.bf16.gmra.mrb[0].mxu0 %v2900
      %v3147 = vpop.f32.mrb[0].mxu0
      %v3148 = vadd.f32 %v2954, %v3147
      %v3149 = vpop.f32.mrb[0].mxu0
      %v3150 = vpop.f32.mrb[0].mxu0
      %v3151 = vadd.f32 %v2954, %v3150
      %v3152 = vpop.f32.mrb[0].mxu0
      %3153 = vmatprep.mubr.bf16.mxu0 %v3036
      %3154 = vmatmul.mubr.bf16.gmra.mrb[0].mxu0 %v2902
      %v3155 = vpop.f32.mrb[0].mxu0
      %v3156 = vadd.f32 %v2954, %v3155
      %v3157 = vpop.f32.mrb[0].mxu0
      %v3158 = vpop.f32.mrb[0].mxu0
      %v3159 = vadd.f32 %v2954, %v3158
      %v3160 = vpop.f32.mrb[0].mxu0
      %3161 = vmatprep.mubr.bf16.mxu0 %v3039
      %3162 = vmatmul.mubr.bf16.gmra.mrb[0].mxu0 %v2904
      %v3163 = vpop.f32.mrb[0].mxu0
      %v3164 = vadd.f32 %v2954, %v3163
      %v3165 = vpop.f32.mrb[0].mxu0
      %v3166 = vpop.f32.mrb[0].mxu0
      %v3167 = vadd.f32 %v2954, %v3166
      %v3168 = vpop.f32.mrb[0].mxu0
      %3169 = vmatprep.mubr.bf16.mxu0 %v3042
      %3170 = vmatmul.mubr.bf16.gmra.mrb[0].mxu0 %v2906
      %v3171 = vpop.f32.mrb[0].mxu0
      %v3172 = vadd.f32 %v2954, %v3171
      %v3173 = vpop.f32.mrb[0].mxu0
      %v3174 = vpop.f32.mrb[0].mxu0
      %v3175 = vadd.f32 %v2954, %v3174
      %v3176 = vpop.f32.mrb[0].mxu0
      %3177 = vmatprep.mubr.bf16.mxu0 %v3045
      %3178 = vmatmul.mubr.bf16.gmra.mrb[0].mxu0 %v2908
      %v3179 = vpop.f32.mrb[0].mxu0
      %v3180 = vadd.f32 %v2954, %v3179
      %v3181 = vpop.f32.mrb[0].mxu0
      %v3182 = vpop.f32.mrb[0].mxu0
      %v3183 = vadd.f32 %v2954, %v3182
      %v3184 = vpop.f32.mrb[0].mxu0
      %3185 = vmatprep.mubr.bf16.mxu0 %v3048
      %3186 = vmatmul.mubr.bf16.gmra.mrb[0].mxu0 %v2910
      %v3187 = vpop.f32.mrb[0].mxu0
      %v3188 = vadd.f32 %v2954, %v3187
      %v3189 = vpop.f32.mrb[0].mxu0
      %v3190 = vpop.f32.mrb[0].mxu0
      %v3191 = vadd.f32 %v2954, %v3190
      %v3192 = vpop.f32.mrb[0].mxu0
      %3193 = vmatprep.mubr.bf16.mxu0 %v3051
      %3194 = vmatmul.mubr.bf16.gmra.mrb[0].mxu0 %v2912
      %v3195 = vpop.f32.mrb[0].mxu0
      %v3196 = vadd.f32 %v2954, %v3195
      %v3197 = vpop.f32.mrb[0].mxu0
      %v3198 = vpop.f32.mrb[0].mxu0
      %v3199 = vadd.f32 %v2954, %v3198
      %v3200 = vpop.f32.mrb[0].mxu0
      %3201 = vmatprep.mubr.bf16.mxu0 %v3054
      %3202 = vmatmul.mubr.bf16.gmra.mrb[0].mxu0 %v2914
      %v3203 = vpop.f32.mrb[0].mxu0
      %v3204 = vadd.f32 %v2954, %v3203
      %v3205 = vpop.f32.mrb[0].mxu0
      %v3206 = vpop.f32.mrb[0].mxu0
      %v3207 = vadd.f32 %v2954, %v3206
      %v3208 = vpop.f32.mrb[0].mxu0
      %3209 = vmatprep.mubr.bf16.mxu0 %v3057
      %3210 = vmatmul.mubr.bf16.gmra.mrb[0].mxu0 %v2916
      %v3211 = vpop.f32.mrb[0].mxu0
      %v3212 = vadd.f32 %v2954, %v3211
      %v3213 = vpop.f32.mrb[0].mxu0
      %v3214 = vpop.f32.mrb[0].mxu0
      %v3215 = vadd.f32 %v2954, %v3214
      %v3216 = vpop.f32.mrb[0].mxu0
      %3217 = vmatprep.mubr.bf16.mxu0 %v3060
      %3218 = vmatmul.mubr.bf16.gmra.mrb[0].mxu0 %v2918
      %v3219 = vpop.f32.mrb[0].mxu0
      %v3220 = vadd.f32 %v2954, %v3219
      %v3221 = vpop.f32.mrb[0].mxu0
      %v3222 = vpop.f32.mrb[0].mxu0
      %v3223 = vadd.f32 %v2954, %v3222
      %v3224 = vpop.f32.mrb[0].mxu0
      %3225 = vmatprep.mubr.bf16.mxu0 %v3063
      %3226 = vmatmul.mubr.bf16.gmra.mrb[0].mxu0 %v2920
      %v3227 = vpop.f32.mrb[0].mxu0
      %v3228 = vadd.f32 %v2954, %v3227
      %v3229 = vpop.f32.mrb[0].mxu0
      %v3230 = vpop.f32.mrb[0].mxu0
      %v3231 = vadd.f32 %v2954, %v3230
      %v3232 = vpop.f32.mrb[0].mxu0
      %3233 = vmatprep.mubr.bf16.mxu0 %v3066
      %3234 = vmatmul.mubr.bf16.gmra.mrb[0].mxu0 %v2922
      %v3235 = vpop.f32.mrb[0].mxu0
      %v3236 = vadd.f32 %v2954, %v3235
      %v3237 = vpop.f32.mrb[0].mxu0
      %v3238 = vpop.f32.mrb[0].mxu0
      %v3239 = vadd.f32 %v2954, %v3238
      %v3240 = vpop.f32.mrb[0].mxu0
      %3241 = vmatprep.mubr.bf16.mxu0 %v3069
      %3242 = vmatmul.mubr.bf16.gmra.mrb[0].mxu0 %v2924
      %v3243 = vpop.f32.mrb[0].mxu0
      %v3244 = vadd.f32 %v2954, %v3243
      %v3245 = vpop.f32.mrb[0].mxu0
      %v3246 = vpop.f32.mrb[0].mxu0
      %v3247 = vadd.f32 %v2954, %v3246
      %v3248 = vpop.f32.mrb[0].mxu0
      %3249 = vmatprep.mubr.bf16.mxu0 %v3072
      %3250 = vmatmul.mubr.bf16.gmra.mrb[0].mxu0 %v2926
      %v3251 = vpop.f32.mrb[0].mxu0
      %v3252 = vadd.f32 %v2954, %v3251
      %v3253 = vpop.f32.mrb[0].mxu0
      %v3254 = vpop.f32.mrb[0].mxu0
      %v3255 = vadd.f32 %v2954, %v3254
      %v3256 = vpop.f32.mrb[0].mxu0
      %3257 = vdwg.mxu0
      %v3258 = vmax.f32 %v3116, 0.0
      %v3259 = vmax.f32 %v3119, 0.0
      %v3260 = vmax.f32 %v3124, 0.0
      %v3261 = vmax.f32 %v3127, 0.0
      %v3262 = vmax.f32 %v3132, 0.0
      %v3263 = vmax.f32 %v3135, 0.0
      %v3264 = vmax.f32 %v3140, 0.0
      %v3265 = vmax.f32 %v3143, 0.0
      %v3266 = vmax.f32 %v3148, 0.0
      %v3267 = vmax.f32 %v3151, 0.0
      %v3268 = vmax.f32 %v3156, 0.0
      %v3269 = vmax.f32 %v3159, 0.0
      %v3270 = vmax.f32 %v3164, 0.0
      %v3271 = vmax.f32 %v3167, 0.0
      %v3272 = vmax.f32 %v3172, 0.0
      %v3273 = vmax.f32 %v3175, 0.0
      %v3274 = vmax.f32 %v3180, 0.0
      %v3275 = vmax.f32 %v3183, 0.0
      %v3276 = vmax.f32 %v3188, 0.0
      %v3277 = vmax.f32 %v3191, 0.0
      %v3278 = vmax.f32 %v3196, 0.0
      %v3279 = vmax.f32 %v3199, 0.0
      %v3280 = vmax.f32 %v3204, 0.0
      %v3281 = vmax.f32 %v3207, 0.0
      %v3282 = vmax.f32 %v3212, 0.0
      %v3283 = vmax.f32 %v3215, 0.0
      %v3284 = vmax.f32 %v3220, 0.0
      %v3285 = vmax.f32 %v3223, 0.0
      %v3286 = vmax.f32 %v3228, 0.0
      %v3287 = vmax.f32 %v3231, 0.0
      %v3288 = vmax.f32 %v3236, 0.0
      %v3289 = vmax.f32 %v3239, 0.0
      %v3290 = vmax.f32 %v3244, 0.0
      %v3291 = vmax.f32 %v3247, 0.0
      %v3292 = vmax.f32 %v3252, 0.0
      %v3293 = vmax.f32 %v3255, 0.0
      %v3294 = vpack.c.bf16 %v3259, %v3258
      %v3295 = vpack.c.bf16 %v3261, %v3260
      %v3296 = vpack.c.bf16 %v3263, %v3262
      %v3297 = vpack.c.bf16 %v3265, %v3264
      %v3298 = vpack.c.bf16 %v3267, %v3266
      %v3299 = vpack.c.bf16 %v3269, %v3268
      %v3300 = vpack.c.bf16 %v3271, %v3270
      %v3301 = vpack.c.bf16 %v3273, %v3272
      %v3302 = vpack.c.bf16 %v3275, %v3274
      %v3303 = vpack.c.bf16 %v3277, %v3276
      %v3304 = vpack.c.bf16 %v3279, %v3278
      %v3305 = vpack.c.bf16 %v3281, %v3280
      %v3306 = vpack.c.bf16 %v3283, %v3282
      %v3307 = vpack.c.bf16 %v3285, %v3284
      %v3308 = vpack.c.bf16 %v3287, %v3286
      %v3309 = vpack.c.bf16 %v3289, %v3288
      %v3310 = vpack.c.bf16 %v3291, %v3290
      %v3311 = vpack.c.bf16 %v3293, %v3292
      %v3313 = vunpack.c.l.b16 %v3294
      %v3314 = vunpack.c.h.b16 %v3294
      %v3315 = vpack.c.b16 %v3313, %v3313
      %v3316 = vpack.c.b16 %v3314, %v3314
      %vm3319 = vcmask 519168
      %3320 = vst.msk [vmem:[#allocation3] sm:$0xf] %vm3319, %v3315
      %vm3321 = vcmask 516096
      %3322 = vst.msk [vmem:[#allocation3 + $0x4] sm:$0x1] %vm3321, %v3316
      %v3324 = vunpack.c.l.b16 %v3295
      %v3325 = vunpack.c.h.b16 %v3295
      %v3326 = vpack.c.b16 %v3324, %v3324
      %v3327 = vpack.c.b16 %v3325, %v3325
      %s3330 = scalar_lea.vmem [#allocation3], 72
      %3331 = vst.msk [vmem:[%s3330] sm:$0xf] %vm3319, %v3326
      %3332 = vst.msk [vmem:[%s3330 + $0x4] sm:$0x1] %vm3321, %v3327
      %v3334 = vunpack.c.l.b16 %v3296
      %v3335 = vunpack.c.h.b16 %v3296
      %v3336 = vpack.c.b16 %v3334, %v3334
      %v3337 = vpack.c.b16 %v3335, %v3335
      %s3340 = scalar_lea.vmem [#allocation3], 8
      %3341 = vst.msk [vmem:[%s3340] sm:$0xf] %vm3319, %v3336
      %3342 = vst.msk [vmem:[%s3340 + $0x4] sm:$0x1] %vm3321, %v3337
      %v3344 = vunpack.c.l.b16 %v3297
      %v3345 = vunpack.c.h.b16 %v3297
      %v3346 = vpack.c.b16 %v3344, %v3344
      %v3347 = vpack.c.b16 %v3345, %v3345
      %s3350 = scalar_lea.vmem [#allocation3], 80
      %3351 = vst.msk [vmem:[%s3350] sm:$0xf] %vm3319, %v3346
      %3352 = vst.msk [vmem:[%s3350 + $0x4] sm:$0x1] %vm3321, %v3347
      %v3354 = vunpack.c.l.b16 %v3298
      %v3355 = vunpack.c.h.b16 %v3298
      %v3356 = vpack.c.b16 %v3354, %v3354
      %v3357 = vpack.c.b16 %v3355, %v3355
      %s3360 = scalar_lea.vmem [#allocation3], 16
      %3361 = vst.msk [vmem:[%s3360] sm:$0xf] %vm3319, %v3356
      %3362 = vst.msk [vmem:[%s3360 + $0x4] sm:$0x1] %vm3321, %v3357
      %v3364 = vunpack.c.l.b16 %v3299
      %v3365 = vunpack.c.h.b16 %v3299
      %v3366 = vpack.c.b16 %v3364, %v3364
      %v3367 = vpack.c.b16 %v3365, %v3365
      %s3370 = scalar_lea.vmem [#allocation3], 88
      %3371 = vst.msk [vmem:[%s3370] sm:$0xf] %vm3319, %v3366
      %3372 = vst.msk [vmem:[%s3370 + $0x4] sm:$0x1] %vm3321, %v3367
      %v3374 = vunpack.c.l.b16 %v3300
      %v3375 = vunpack.c.h.b16 %v3300
      %v3376 = vpack.c.b16 %v3374, %v3374
      %v3377 = vpack.c.b16 %v3375, %v3375
      %s3380 = scalar_lea.vmem [#allocation3], 24
      %3381 = vst.msk [vmem:[%s3380] sm:$0xf] %vm3319, %v3376
      %3382 = vst.msk [vmem:[%s3380 + $0x4] sm:$0x1] %vm3321, %v3377
      %v3384 = vunpack.c.l.b16 %v3301
      %v3385 = vunpack.c.h.b16 %v3301
      %v3386 = vpack.c.b16 %v3384, %v3384
      %v3387 = vpack.c.b16 %v3385, %v3385
      %s3390 = scalar_lea.vmem [#allocation3], 96
      %3391 = vst.msk [vmem:[%s3390] sm:$0xf] %vm3319, %v3386
      %3392 = vst.msk [vmem:[%s3390 + $0x4] sm:$0x1] %vm3321, %v3387
      %v3394 = vunpack.c.l.b16 %v3302
      %v3395 = vunpack.c.h.b16 %v3302
      %v3396 = vpack.c.b16 %v3394, %v3394
      %v3397 = vpack.c.b16 %v3395, %v3395
      %s3400 = scalar_lea.vmem [#allocation3], 32
      %3401 = vst.msk [vmem:[%s3400] sm:$0xf] %vm3319, %v3396
      %3402 = vst.msk [vmem:[%s3400 + $0x4] sm:$0x1] %vm3321, %v3397
      %v3404 = vunpack.c.l.b16 %v3303
      %v3405 = vunpack.c.h.b16 %v3303
      %v3406 = vpack.c.b16 %v3404, %v3404
      %v3407 = vpack.c.b16 %v3405, %v3405
      %s3410 = scalar_lea.vmem [#allocation3], 104
      %3411 = vst.msk [vmem:[%s3410] sm:$0xf] %vm3319, %v3406
      %3412 = vst.msk [vmem:[%s3410 + $0x4] sm:$0x1] %vm3321, %v3407
      %v3414 = vunpack.c.l.b16 %v3304
      %v3415 = vunpack.c.h.b16 %v3304
      %v3416 = vpack.c.b16 %v3414, %v3414
      %v3417 = vpack.c.b16 %v3415, %v3415
      %s3420 = scalar_lea.vmem [#allocation3], 40
      %3421 = vst.msk [vmem:[%s3420] sm:$0xf] %vm3319, %v3416
      %3422 = vst.msk [vmem:[%s3420 + $0x4] sm:$0x1] %vm3321, %v3417
      %v3424 = vunpack.c.l.b16 %v3305
      %v3425 = vunpack.c.h.b16 %v3305
      %v3426 = vpack.c.b16 %v3424, %v3424
      %v3427 = vpack.c.b16 %v3425, %v3425
      %s3430 = scalar_lea.vmem [#allocation3], 112
      %3431 = vst.msk [vmem:[%s3430] sm:$0xf] %vm3319, %v3426
      %3432 = vst.msk [vmem:[%s3430 + $0x4] sm:$0x1] %vm3321, %v3427
      %v3434 = vunpack.c.l.b16 %v3306
      %v3435 = vunpack.c.h.b16 %v3306
      %v3436 = vpack.c.b16 %v3434, %v3434
      %v3437 = vpack.c.b16 %v3435, %v3435
      %s3440 = scalar_lea.vmem [#allocation3], 48
      %3441 = vst.msk [vmem:[%s3440] sm:$0xf] %vm3319, %v3436
      %3442 = vst.msk [vmem:[%s3440 + $0x4] sm:$0x1] %vm3321, %v3437
      %v3444 = vunpack.c.l.b16 %v3307
      %v3445 = vunpack.c.h.b16 %v3307
      %v3446 = vpack.c.b16 %v3444, %v3444
      %v3447 = vpack.c.b16 %v3445, %v3445
      %s3450 = scalar_lea.vmem [#allocation3], 120
      %3451 = vst.msk [vmem:[%s3450] sm:$0xf] %vm3319, %v3446
      %3452 = vst.msk [vmem:[%s3450 + $0x4] sm:$0x1] %vm3321, %v3447
      %v3454 = vunpack.c.l.b16 %v3308
      %v3455 = vunpack.c.h.b16 %v3308
      %v3456 = vpack.c.b16 %v3454, %v3454
      %v3457 = vpack.c.b16 %v3455, %v3455
      %s3460 = scalar_lea.vmem [#allocation3], 56
      %3461 = vst.msk [vmem:[%s3460] sm:$0xf] %vm3319, %v3456
      %3462 = vst.msk [vmem:[%s3460 + $0x4] sm:$0x1] %vm3321, %v3457
      %v3464 = vunpack.c.l.b16 %v3309
      %v3465 = vunpack.c.h.b16 %v3309
      %v3466 = vpack.c.b16 %v3464, %v3464
      %v3467 = vpack.c.b16 %v3465, %v3465
      %s3470 = scalar_lea.vmem [#allocation3], 128
      %3471 = vst.msk [vmem:[%s3470] sm:$0xf] %vm3319, %v3466
      %3472 = vst.msk [vmem:[%s3470 + $0x4] sm:$0x1] %vm3321, %v3467
      %v3474 = vunpack.c.l.b16 %v3310
      %v3475 = vunpack.c.h.b16 %v3310
      %v3476 = vpack.c.b16 %v3474, %v3474
      %v3477 = vpack.c.b16 %v3475, %v3475
      %s3480 = scalar_lea.vmem [#allocation3], 64
      %3481 = vst.msk [vmem:[%s3480] sm:$0xf] %vm3319, %v3476
      %3482 = vst.msk [vmem:[%s3480 + $0x4] sm:$0x1] %vm3321, %v3477
      %v3484 = vunpack.c.l.b16 %v3311
      %v3485 = vunpack.c.h.b16 %v3311
      %v3486 = vpack.c.b16 %v3484, %v3484
      %v3487 = vpack.c.b16 %v3485, %v3485
      %s3490 = scalar_lea.vmem [#allocation3], 136
      %3491 = vst.msk [vmem:[%s3490] sm:$0xf] %vm3319, %v3486
      %3492 = vst.msk [vmem:[%s3490 + $0x4] sm:$0x1] %vm3321, %v3487
      %v3493 = vld [vmem:[#allocation3] sm:$0xf]
      %v3494 = vld [vmem:[#allocation3 + $0x4] sm:$0x1]
      %v3495 = vld [vmem:[#allocation3 + $0x8] sm:$0xf]
      %v3496 = vld [vmem:[#allocation3 + $0xc] sm:$0x1]
      %v3497 = vld [vmem:[#allocation3 + $0x10] sm:$0xf]
      %v3498 = vld [vmem:[#allocation3 + $0x14] sm:$0x1]
      %v3499 = vld [vmem:[#allocation3 + $0x18] sm:$0xf]
      %v3500 = vld [vmem:[#allocation3 + $0x1c] sm:$0x1]
      %v3501 = vld [vmem:[#allocation3 + $0x20] sm:$0xf]
      %v3502 = vld [vmem:[#allocation3 + $0x24] sm:$0x1]
      %v3503 = vld [vmem:[#allocation3 + $0x28] sm:$0xf]
      %v3504 = vld [vmem:[#allocation3 + $0x2c] sm:$0x1]
      %v3505 = vld [vmem:[#allocation3 + $0x30] sm:$0xf]
      %v3506 = vld [vmem:[#allocation3 + $0x34] sm:$0x1]
      %v3521 = vunpack.c.l.b16 %v3493
      %v3522 = vunpack.c.l.b16 %v3494
      %v3523 = vunpack.c.l.b16 %v3495
      %v3524 = vunpack.c.l.b16 %v3496
      %v3525 = vunpack.c.l.b16 %v3497
      %v3526 = vunpack.c.l.b16 %v3498
      %v3527 = vunpack.c.l.b16 %v3499
      %v3528 = vunpack.c.l.b16 %v3500
      %v3529 = vunpack.c.l.b16 %v3501
      %v3530 = vunpack.c.l.b16 %v3502
      %v3531 = vunpack.c.l.b16 %v3503
      %v3532 = vunpack.c.l.b16 %v3504
      %v3533 = vunpack.c.l.b16 %v3505
      %v3534 = vunpack.c.l.b16 %v3506
      %v3535 = vpack.c.b16 %v3522, %v3521
      %v3536 = vpack.c.b16 %v3524, %v3523
      %v3537 = vpack.c.b16 %v3526, %v3525
      %v3538 = vpack.c.b16 %v3528, %v3527
      %v3539 = vpack.c.b16 %v3530, %v3529
      %v3540 = vpack.c.b16 %v3532, %v3531
      %v3541 = vpack.c.b16 %v3534, %v3533
      %vm3549 = vcmask 520192
      %vm3550 = vsmask.f32 4352
      %vm3551 = vmand %vm3549, %vm3550
      %v3552 = vld [vmem:[#allocation4] sm:$0x1f]
      %v3553 = vsel %vm3551, %v3535, %v3552
      %3554 = vst [vmem:[#allocation4] sm:$0x1f] %v3553
      %v3555 = vld [vmem:[#allocation4 + $0x28] sm:$0x1f]
      %v3556 = vsel %vm3551, %v3536, %v3555
      %3557 = vst [vmem:[#allocation4 + $0x28] sm:$0x1f] %v3556
      %v3558 = vld [vmem:[#allocation4 + $0x50] sm:$0x1f]
      %v3559 = vsel %vm3551, %v3537, %v3558
      %3560 = vst [vmem:[#allocation4 + $0x50] sm:$0x1f] %v3559
      %v3561 = vld [vmem:[#allocation4 + $0x78] sm:$0x1f]
      %v3562 = vsel %vm3551, %v3538, %v3561
      %3563 = vst [vmem:[#allocation4 + $0x78] sm:$0x1f] %v3562
      %v3564 = vld [vmem:[#allocation4 + $0xa0] sm:$0x1f]
      %v3565 = vsel %vm3551, %v3539, %v3564
      %3566 = vst [vmem:[#allocation4 + $0xa0] sm:$0x1f] %v3565
      %v3567 = vld [vmem:[#allocation4 + $0xc8] sm:$0x1f]
      %v3568 = vsel %vm3551, %v3540, %v3567
      %3569 = vst [vmem:[#allocation4 + $0xc8] sm:$0x1f] %v3568
      %v3570 = vld [vmem:[#allocation4 + $0xf0] sm:$0x1f]
      %v3571 = vsel %vm3551, %v3541, %v3570
      %3572 = vst [vmem:[#allocation4 + $0xf0] sm:$0x1f] %v3571
      %v3573 = vld [vmem:[#allocation3] sm:$0xf]
      %v3574 = vld [vmem:[#allocation3 + $0x4] sm:$0x1]
      %v3575 = vld [vmem:[#allocation3 + $0x8] sm:$0xf]
      %v3576 = vld [vmem:[#allocation3 + $0xc] sm:$0x1]
      %v3577 = vld [vmem:[#allocation3 + $0x10] sm:$0xf]
      %v3578 = vld [vmem:[#allocation3 + $0x14] sm:$0x1]
      %v3579 = vld [vmem:[#allocation3 + $0x18] sm:$0xf]
      %v3580 = vld [vmem:[#allocation3 + $0x1c] sm:$0x1]
      %v3581 = vld [vmem:[#allocation3 + $0x20] sm:$0xf]
      %v3582 = vld [vmem:[#allocation3 + $0x24] sm:$0x1]
      %v3583 = vld [vmem:[#allocation3 + $0x28] sm:$0xf]
      %v3584 = vld [vmem:[#allocation3 + $0x2c] sm:$0x1]
      %v3585 = vld [vmem:[#allocation3 + $0x30] sm:$0xf]
      %v3586 = vld [vmem:[#allocation3 + $0x34] sm:$0x1]
      %v3601 = vunpack.c.l.b16 %v3573
      %v3602 = vunpack.c.l.b16 %v3574
      %v3603 = vunpack.c.l.b16 %v3575
      %v3604 = vunpack.c.l.b16 %v3576
      %v3605 = vunpack.c.l.b16 %v3577
      %v3606 = vunpack.c.l.b16 %v3578
      %v3607 = vunpack.c.l.b16 %v3579
      %v3608 = vunpack.c.l.b16 %v3580
      %v3609 = vunpack.c.l.b16 %v3581
      %v3610 = vunpack.c.l.b16 %v3582
      %v3611 = vunpack.c.l.b16 %v3583
      %v3612 = vunpack.c.l.b16 %v3584
      %v3613 = vunpack.c.l.b16 %v3585
      %v3614 = vunpack.c.l.b16 %v3586
      %v3615 = vpack.c.b16 %v3602, %v3601
      %v3616 = vpack.c.b16 %v3604, %v3603
      %v3617 = vpack.c.b16 %v3606, %v3605
      %v3618 = vpack.c.b16 %v3608, %v3607
      %v3619 = vpack.c.b16 %v3610, %v3609
      %v3620 = vpack.c.b16 %v3612, %v3611
      %v3621 = vpack.c.b16 %v3614, %v3613
      %v3623 = vshrl.u32 %v3615, 16
      %v3625 = vshll.u32 %v3615, 16
      %v3627 = vrot.slane %v3625, 1
      %v3628 = vor.u32 %v3623, %v3627
      %v3630 = vshrl.u32 %v3616, 16
      %v3632 = vshll.u32 %v3616, 16
      %v3634 = vrot.slane %v3632, 1
      %v3635 = vor.u32 %v3630, %v3634
      %v3637 = vshrl.u32 %v3617, 16
      %v3639 = vshll.u32 %v3617, 16
      %v3641 = vrot.slane %v3639, 1
      %v3642 = vor.u32 %v3637, %v3641
      %v3644 = vshrl.u32 %v3618, 16
      %v3646 = vshll.u32 %v3618, 16
      %v3648 = vrot.slane %v3646, 1
      %v3649 = vor.u32 %v3644, %v3648
      %v3651 = vshrl.u32 %v3619, 16
      %v3653 = vshll.u32 %v3619, 16
      %v3655 = vrot.slane %v3653, 1
      %v3656 = vor.u32 %v3651, %v3655
      %v3658 = vshrl.u32 %v3620, 16
      %v3660 = vshll.u32 %v3620, 16
      %v3662 = vrot.slane %v3660, 1
      %v3663 = vor.u32 %v3658, %v3662
      %v3665 = vshrl.u32 %v3621, 16
      %v3667 = vshll.u32 %v3621, 16
      %v3669 = vrot.slane %v3667, 1
      %v3670 = vor.u32 %v3665, %v3669
      %3671 = vrot.lane.b32.xlu0 %v3628, 64
      %v3672 = vpop.permute.xlu0 %3671
      %3673 = vrot.lane.b32.xlu0 %v3635, 64
      %v3674 = vpop.permute.xlu0 %3673
      %3675 = vrot.lane.b32.xlu0 %v3642, 64
      %v3676 = vpop.permute.xlu0 %3675
      %3677 = vrot.lane.b32.xlu0 %v3649, 64
      %v3678 = vpop.permute.xlu0 %3677
      %3679 = vrot.lane.b32.xlu0 %v3656, 64
      %v3680 = vpop.permute.xlu0 %3679
      %3681 = vrot.lane.b32.xlu0 %v3663, 64
      %v3682 = vpop.permute.xlu0 %3681
      %3683 = vrot.lane.b32.xlu0 %v3670, 64
      %v3684 = vpop.permute.xlu0 %3683
      %vm3692 = vcmask 913920
      %vm3693 = vmand %vm3692, %vm3550
      %v3694 = vld [vmem:[#allocation4] sm:$0x1f]
      %v3695 = vsel %vm3693, %v3672, %v3694
      %3696 = vst [vmem:[#allocation4] sm:$0x1f] %v3695
      %v3697 = vld [vmem:[#allocation4 + $0x28] sm:$0x1f]
      %v3698 = vsel %vm3693, %v3674, %v3697
      %3699 = vst [vmem:[#allocation4 + $0x28] sm:$0x1f] %v3698
      %v3700 = vld [vmem:[#allocation4 + $0x50] sm:$0x1f]
      %v3701 = vsel %vm3693, %v3676, %v3700
      %3702 = vst [vmem:[#allocation4 + $0x50] sm:$0x1f] %v3701
      %v3703 = vld [vmem:[#allocation4 + $0x78] sm:$0x1f]
      %v3704 = vsel %vm3693, %v3678, %v3703
      %3705 = vst [vmem:[#allocation4 + $0x78] sm:$0x1f] %v3704
      %v3706 = vld [vmem:[#allocation4 + $0xa0] sm:$0x1f]
      %v3707 = vsel %vm3693, %v3680, %v3706
      %3708 = vst [vmem:[#allocation4 + $0xa0] sm:$0x1f] %v3707
      %v3709 = vld [vmem:[#allocation4 + $0xc8] sm:$0x1f]
      %v3710 = vsel %vm3693, %v3682, %v3709
      %3711 = vst [vmem:[#allocation4 + $0xc8] sm:$0x1f] %v3710
      %v3712 = vld [vmem:[#allocation4 + $0xf0] sm:$0x1f]
      %v3713 = vsel %vm3693, %v3684, %v3712
      %3714 = vst [vmem:[#allocation4 + $0xf0] sm:$0x1f] %v3713
      %v3715 = vld [vmem:[%s3330] sm:$0xf]
      %v3716 = vld [vmem:[%s3330 + $0x4] sm:$0x1]
      %v3717 = vld [vmem:[%s3330 + $0x8] sm:$0xf]
      %v3718 = vld [vmem:[%s3330 + $0xc] sm:$0x1]
      %v3719 = vld [vmem:[%s3330 + $0x10] sm:$0xf]
      %v3720 = vld [vmem:[%s3330 + $0x14] sm:$0x1]
      %v3721 = vld [vmem:[%s3330 + $0x18] sm:$0xf]
      %v3722 = vld [vmem:[%s3330 + $0x1c] sm:$0x1]
      %v3723 = vld [vmem:[%s3330 + $0x20] sm:$0xf]
      %v3724 = vld [vmem:[%s3330 + $0x24] sm:$0x1]
      %v3725 = vld [vmem:[%s3330 + $0x28] sm:$0xf]
      %v3726 = vld [vmem:[%s3330 + $0x2c] sm:$0x1]
      %v3727 = vld [vmem:[%s3330 + $0x30] sm:$0xf]
      %v3728 = vld [vmem:[%s3330 + $0x34] sm:$0x1]
      %v3743 = vunpack.c.l.b16 %v3715
      %v3744 = vunpack.c.l.b16 %v3716
      %v3745 = vunpack.c.l.b16 %v3717
      %v3746 = vunpack.c.l.b16 %v3718
      %v3747 = vunpack.c.l.b16 %v3719
      %v3748 = vunpack.c.l.b16 %v3720
      %v3749 = vunpack.c.l.b16 %v3721
      %v3750 = vunpack.c.l.b16 %v3722
      %v3751 = vunpack.c.l.b16 %v3723
      %v3752 = vunpack.c.l.b16 %v3724
      %v3753 = vunpack.c.l.b16 %v3725
      %v3754 = vunpack.c.l.b16 %v3726
      %v3755 = vunpack.c.l.b16 %v3727
      %v3756 = vunpack.c.l.b16 %v3728
      %v3757 = vpack.c.b16 %v3744, %v3743
      %v3758 = vpack.c.b16 %v3746, %v3745
      %v3759 = vpack.c.b16 %v3748, %v3747
      %v3760 = vpack.c.b16 %v3750, %v3749
      %v3761 = vpack.c.b16 %v3752, %v3751
      %v3762 = vpack.c.b16 %v3754, %v3753
      %v3763 = vpack.c.b16 %v3756, %v3755
      %3764 = vrot.lane.b32.xlu0 %v3757, 112
      %v3765 = vpop.permute.xlu0 %3764
      %3766 = vrot.lane.b32.xlu0 %v3758, 112
      %v3767 = vpop.permute.xlu0 %3766
      %3768 = vrot.lane.b32.xlu0 %v3759, 112
      %v3769 = vpop.permute.xlu0 %3768
      %3770 = vrot.lane.b32.xlu0 %v3760, 112
      %v3771 = vpop.permute.xlu0 %3770
      %3772 = vrot.lane.b32.xlu0 %v3761, 112
      %v3773 = vpop.permute.xlu0 %3772
      %3774 = vrot.lane.b32.xlu0 %v3762, 112
      %v3775 = vpop.permute.xlu0 %3774
      %3776 = vrot.lane.b32.xlu0 %v3763, 112
      %v3777 = vpop.permute.xlu0 %3776
      %vm3785 = vcmask 1045376
      %vm3786 = vmand %vm3785, %vm3550
      %v3787 = vld [vmem:[#allocation4] sm:$0x1f]
      %v3788 = vsel %vm3786, %v3765, %v3787
      %3789 = vst [vmem:[#allocation4] sm:$0x1f] %v3788
      %vm3790 = vcmask 389120
      %vm3791 = vmand %vm3790, %vm3550
      %v3792 = vld [vmem:[#allocation4 + $0x8] sm:$0x1f]
      %v3793 = vsel %vm3791, %v3765, %v3792
      %3794 = vst [vmem:[#allocation4 + $0x8] sm:$0x1f] %v3793
      %v3795 = vld [vmem:[#allocation4 + $0x28] sm:$0x1f]
      %v3796 = vsel %vm3786, %v3767, %v3795
      %3797 = vst [vmem:[#allocation4 + $0x28] sm:$0x1f] %v3796
      %v3798 = vld [vmem:[#allocation4 + $0x30] sm:$0x1f]
      %v3799 = vsel %vm3791, %v3767, %v3798
      %3800 = vst [vmem:[#allocation4 + $0x30] sm:$0x1f] %v3799
      %v3801 = vld [vmem:[#allocation4 + $0x50] sm:$0x1f]
      %v3802 = vsel %vm3786, %v3769, %v3801
      %3803 = vst [vmem:[#allocation4 + $0x50] sm:$0x1f] %v3802
      %v3804 = vld [vmem:[#allocation4 + $0x58] sm:$0x1f]
      %v3805 = vsel %vm3791, %v3769, %v3804
      %3806 = vst [vmem:[#allocation4 + $0x58] sm:$0x1f] %v3805
      %v3807 = vld [vmem:[#allocation4 + $0x78] sm:$0x1f]
      %v3808 = vsel %vm3786, %v3771, %v3807
      %3809 = vst [vmem:[#allocation4 + $0x78] sm:$0x1f] %v3808
      %v3810 = vld [vmem:[#allocation4 + $0x80] sm:$0x1f]
      %v3811 = vsel %vm3791, %v3771, %v3810
      %3812 = vst [vmem:[#allocation4 + $0x80] sm:$0x1f] %v3811
      %v3813 = vld [vmem:[#allocation4 + $0xa0] sm:$0x1f]
      %v3814 = vsel %vm3786, %v3773, %v3813
      %3815 = vst [vmem:[#allocation4 + $0xa0] sm:$0x1f] %v3814
      %v3816 = vld [vmem:[#allocation4 + $0xa8] sm:$0x1f]
      %v3817 = vsel %vm3791, %v3773, %v3816
      %3818 = vst [vmem:[#allocation4 + $0xa8] sm:$0x1f] %v3817
      %v3819 = vld [vmem:[#allocation4 + $0xc8] sm:$0x1f]
      %v3820 = vsel %vm3786, %v3775, %v3819
      %3821 = vst [vmem:[#allocation4 + $0xc8] sm:$0x1f] %v3820
      %v3822 = vld [vmem:[#allocation4 + $0xd0] sm:$0x1f]
      %v3823 = vsel %vm3791, %v3775, %v3822
      %3824 = vst [vmem:[#allocation4 + $0xd0] sm:$0x1f] %v3823
      %v3825 = vld [vmem:[#allocation4 + $0xf0] sm:$0x1f]
      %v3826 = vsel %vm3786, %v3777, %v3825
      %3827 = vst [vmem:[#allocation4 + $0xf0] sm:$0x1f] %v3826
      %v3828 = vld [vmem:[#allocation4 + $0xf8] sm:$0x1f]
      %v3829 = vsel %vm3791, %v3777, %v3828
      %3830 = vst [vmem:[#allocation4 + $0xf8] sm:$0x1f] %v3829
      %v3831 = vld [vmem:[%s3330] sm:$0xf]
      %v3832 = vld [vmem:[%s3330 + $0x4] sm:$0x1]
      %v3833 = vld [vmem:[%s3330 + $0x8] sm:$0xf]
      %v3834 = vld [vmem:[%s3330 + $0xc] sm:$0x1]
      %v3835 = vld [vmem:[%s3330 + $0x10] sm:$0xf]
      %v3836 = vld [vmem:[%s3330 + $0x14] sm:$0x1]
      %v3837 = vld [vmem:[%s3330 + $0x18] sm:$0xf]
      %v3838 = vld [vmem:[%s3330 + $0x1c] sm:$0x1]
      %v3839 = vld [vmem:[%s3330 + $0x20] sm:$0xf]
      %v3840 = vld [vmem:[%s3330 + $0x24] sm:$0x1]
      %v3841 = vld [vmem:[%s3330 + $0x28] sm:$0xf]
      %v3842 = vld [vmem:[%s3330 + $0x2c] sm:$0x1]
      %v3843 = vld [vmem:[%s3330 + $0x30] sm:$0xf]
      %v3844 = vld [vmem:[%s3330 + $0x34] sm:$0x1]
      %v3859 = vunpack.c.l.b16 %v3831
      %v3860 = vunpack.c.l.b16 %v3832
      %v3861 = vunpack.c.l.b16 %v3833
      %v3862 = vunpack.c.l.b16 %v3834
      %v3863 = vunpack.c.l.b16 %v3835
      %v3864 = vunpack.c.l.b16 %v3836
      %v3865 = vunpack.c.l.b16 %v3837
      %v3866 = vunpack.c.l.b16 %v3838
      %v3867 = vunpack.c.l.b16 %v3839
      %v3868 = vunpack.c.l.b16 %v3840
      %v3869 = vunpack.c.l.b16 %v3841
      %v3870 = vunpack.c.l.b16 %v3842
      %v3871 = vunpack.c.l.b16 %v3843
      %v3872 = vunpack.c.l.b16 %v3844
      %v3873 = vpack.c.b16 %v3860, %v3859
      %v3874 = vpack.c.b16 %v3862, %v3861
      %v3875 = vpack.c.b16 %v3864, %v3863
      %v3876 = vpack.c.b16 %v3866, %v3865
      %v3877 = vpack.c.b16 %v3868, %v3867
      %v3878 = vpack.c.b16 %v3870, %v3869
      %v3879 = vpack.c.b16 %v3872, %v3871
      %v3881 = vshrl.u32 %v3873, 16
      %v3883 = vshll.u32 %v3873, 16
      %v3885 = vrot.slane %v3883, 1
      %v3886 = vor.u32 %v3881, %v3885
      %v3888 = vshrl.u32 %v3874, 16
      %v3890 = vshll.u32 %v3874, 16
      %v3892 = vrot.slane %v3890, 1
      %v3893 = vor.u32 %v3888, %v3892
      %v3895 = vshrl.u32 %v3875, 16
      %v3897 = vshll.u32 %v3875, 16
      %v3899 = vrot.slane %v3897, 1
      %v3900 = vor.u32 %v3895, %v3899
      %v3902 = vshrl.u32 %v3876, 16
      %v3904 = vshll.u32 %v3876, 16
      %v3906 = vrot.slane %v3904, 1
      %v3907 = vor.u32 %v3902, %v3906
      %v3909 = vshrl.u32 %v3877, 16
      %v3911 = vshll.u32 %v3877, 16
      %v3913 = vrot.slane %v3911, 1
      %v3914 = vor.u32 %v3909, %v3913
      %v3916 = vshrl.u32 %v3878, 16
      %v3918 = vshll.u32 %v3878, 16
      %v3920 = vrot.slane %v3918, 1
      %v3921 = vor.u32 %v3916, %v3920
      %v3923 = vshrl.u32 %v3879, 16
      %v3925 = vshll.u32 %v3879, 16
      %v3927 = vrot.slane %v3925, 1
      %v3928 = vor.u32 %v3923, %v3927
      %3929 = vrot.lane.b32.xlu0 %v3886, 48
      %v3930 = vpop.permute.xlu0 %3929
      %3931 = vrot.lane.b32.xlu0 %v3893, 48
      %v3932 = vpop.permute.xlu0 %3931
      %3933 = vrot.lane.b32.xlu0 %v3900, 48
      %v3934 = vpop.permute.xlu0 %3933
      %3935 = vrot.lane.b32.xlu0 %v3907, 48
      %v3936 = vpop.permute.xlu0 %3935
      %3937 = vrot.lane.b32.xlu0 %v3914, 48
      %v3938 = vpop.permute.xlu0 %3937
      %3939 = vrot.lane.b32.xlu0 %v3921, 48
      %v3940 = vpop.permute.xlu0 %3939
      %3941 = vrot.lane.b32.xlu0 %v3928, 48
      %v3942 = vpop.permute.xlu0 %3941
      %vm3950 = vcmask 782720
      %vm3951 = vmand %vm3950, %vm3550
      %v3952 = vld [vmem:[#allocation4 + $0x8] sm:$0x1f]
      %v3953 = vsel %vm3951, %v3930, %v3952
      %3954 = vst [vmem:[#allocation4 + $0x8] sm:$0x1f] %v3953
      %v3955 = vld [vmem:[#allocation4 + $0x30] sm:$0x1f]
      %v3956 = vsel %vm3951, %v3932, %v3955
      %3957 = vst [vmem:[#allocation4 + $0x30] sm:$0x1f] %v3956
      %v3958 = vld [vmem:[#allocation4 + $0x58] sm:$0x1f]
      %v3959 = vsel %vm3951, %v3934, %v3958
      %3960 = vst [vmem:[#allocation4 + $0x58] sm:$0x1f] %v3959
      %v3961 = vld [vmem:[#allocation4 + $0x80] sm:$0x1f]
      %v3962 = vsel %vm3951, %v3936, %v3961
      %3963 = vst [vmem:[#allocation4 + $0x80] sm:$0x1f] %v3962
      %v3964 = vld [vmem:[#allocation4 + $0xa8] sm:$0x1f]
      %v3965 = vsel %vm3951, %v3938, %v3964
      %3966 = vst [vmem:[#allocation4 + $0xa8] sm:$0x1f] %v3965
      %v3967 = vld [vmem:[#allocation4 + $0xd0] sm:$0x1f]
      %v3968 = vsel %vm3951, %v3940, %v3967
      %3969 = vst [vmem:[#allocation4 + $0xd0] sm:$0x1f] %v3968
      %v3970 = vld [vmem:[#allocation4 + $0xf8] sm:$0x1f]
      %v3971 = vsel %vm3951, %v3942, %v3970
      %3972 = vst [vmem:[#allocation4 + $0xf8] sm:$0x1f] %v3971
      %v3973 = vld [vmem:[%s3340] sm:$0xf]
      %v3974 = vld [vmem:[%s3340 + $0x4] sm:$0x1]
      %v3975 = vld [vmem:[%s3340 + $0x8] sm:$0xf]
      %v3976 = vld [vmem:[%s3340 + $0xc] sm:$0x1]
      %v3977 = vld [vmem:[%s3340 + $0x10] sm:$0xf]
      %v3978 = vld [vmem:[%s3340 + $0x14] sm:$0x1]
      %v3979 = vld [vmem:[%s3340 + $0x18] sm:$0xf]
      %v3980 = vld [vmem:[%s3340 + $0x1c] sm:$0x1]
      %v3981 = vld [vmem:[%s3340 + $0x20] sm:$0xf]
      %v3982 = vld [vmem:[%s3340 + $0x24] sm:$0x1]
      %v3983 = vld [vmem:[%s3340 + $0x28] sm:$0xf]
      %v3984 = vld [vmem:[%s3340 + $0x2c] sm:$0x1]
      %v3985 = vld [vmem:[%s3340 + $0x30] sm:$0xf]
      %v3986 = vld [vmem:[%s3340 + $0x34] sm:$0x1]
      %v4001 = vunpack.c.l.b16 %v3973
      %v4002 = vunpack.c.l.b16 %v3974
      %v4003 = vunpack.c.l.b16 %v3975
      %v4004 = vunpack.c.l.b16 %v3976
      %v4005 = vunpack.c.l.b16 %v3977
      %v4006 = vunpack.c.l.b16 %v3978
      %v4007 = vunpack.c.l.b16 %v3979
      %v4008 = vunpack.c.l.b16 %v3980
      %v4009 = vunpack.c.l.b16 %v3981
      %v4010 = vunpack.c.l.b16 %v3982
      %v4011 = vunpack.c.l.b16 %v3983
      %v4012 = vunpack.c.l.b16 %v3984
      %v4013 = vunpack.c.l.b16 %v3985
      %v4014 = vunpack.c.l.b16 %v3986
      %v4015 = vpack.c.b16 %v4002, %v4001
      %v4016 = vpack.c.b16 %v4004, %v4003
      %v4017 = vpack.c.b16 %v4006, %v4005
      %v4018 = vpack.c.b16 %v4008, %v4007
      %v4019 = vpack.c.b16 %v4010, %v4009
      %v4020 = vpack.c.b16 %v4012, %v4011
      %v4021 = vpack.c.b16 %v4014, %v4013
      %4022 = vrot.lane.b32.xlu0 %v4015, 96
      %v4023 = vpop.permute.xlu0 %4022
      %4024 = vrot.lane.b32.xlu0 %v4016, 96
      %v4025 = vpop.permute.xlu0 %4024
      %4026 = vrot.lane.b32.xlu0 %v4017, 96
      %v4027 = vpop.permute.xlu0 %4026
      %4028 = vrot.lane.b32.xlu0 %v4018, 96
      %v4029 = vpop.permute.xlu0 %4028
      %4030 = vrot.lane.b32.xlu0 %v4019, 96
      %v4031 = vpop.permute.xlu0 %4030
      %4032 = vrot.lane.b32.xlu0 %v4020, 96
      %v4033 = vpop.permute.xlu0 %4032
      %4034 = vrot.lane.b32.xlu0 %v4021, 96
      %v4035 = vpop.permute.xlu0 %4034
      %vm4043 = vcmask 1045248
      %vm4044 = vmand %vm4043, %vm3550
      %v4045 = vld [vmem:[#allocation4 + $0x8] sm:$0x1f]
      %v4046 = vsel %vm4044, %v4023, %v4045
      %4047 = vst [vmem:[#allocation4 + $0x8] sm:$0x1f] %v4046
      %vm4048 = vcmask 258048
      %vm4049 = vmand %vm4048, %vm3550
      %v4050 = vld [vmem:[#allocation4 + $0x10] sm:$0x1f]
      %v4051 = vsel %vm4049, %v4023, %v4050
      %4052 = vst [vmem:[#allocation4 + $0x10] sm:$0x1f] %v4051
      %v4053 = vld [vmem:[#allocation4 + $0x30] sm:$0x1f]
      %v4054 = vsel %vm4044, %v4025, %v4053
      %4055 = vst [vmem:[#allocation4 + $0x30] sm:$0x1f] %v4054
      %v4056 = vld [vmem:[#allocation4 + $0x38] sm:$0x1f]
      %v4057 = vsel %vm4049, %v4025, %v4056
      %4058 = vst [vmem:[#allocation4 + $0x38] sm:$0x1f] %v4057
      %v4059 = vld [vmem:[#allocation4 + $0x58] sm:$0x1f]
      %v4060 = vsel %vm4044, %v4027, %v4059
      %4061 = vst [vmem:[#allocation4 + $0x58] sm:$0x1f] %v4060
      %v4062 = vld [vmem:[#allocation4 + $0x60] sm:$0x1f]
      %v4063 = vsel %vm4049, %v4027, %v4062
      %4064 = vst [vmem:[#allocation4 + $0x60] sm:$0x1f] %v4063
      %v4065 = vld [vmem:[#allocation4 + $0x80] sm:$0x1f]
      %v4066 = vsel %vm4044, %v4029, %v4065
      %4067 = vst [vmem:[#allocation4 + $0x80] sm:$0x1f] %v4066
      %v4068 = vld [vmem:[#allocation4 + $0x88] sm:$0x1f]
      %v4069 = vsel %vm4049, %v4029, %v4068
      %4070 = vst [vmem:[#allocation4 + $0x88] sm:$0x1f] %v4069
      %v4071 = vld [vmem:[#allocation4 + $0xa8] sm:$0x1f]
      %v4072 = vsel %vm4044, %v4031, %v4071
      %4073 = vst [vmem:[#allocation4 + $0xa8] sm:$0x1f] %v4072
      %v4074 = vld [vmem:[#allocation4 + $0xb0] sm:$0x1f]
      %v4075 = vsel %vm4049, %v4031, %v4074
      %4076 = vst [vmem:[#allocation4 + $0xb0] sm:$0x1f] %v4075
      %v4077 = vld [vmem:[#allocation4 + $0xd0] sm:$0x1f]
      %v4078 = vsel %vm4044, %v4033, %v4077
      %4079 = vst [vmem:[#allocation4 + $0xd0] sm:$0x1f] %v4078
      %v4080 = vld [vmem:[#allocation4 + $0xd8] sm:$0x1f]
      %v4081 = vsel %vm4049, %v4033, %v4080
      %4082 = vst [vmem:[#allocation4 + $0xd8] sm:$0x1f] %v4081
      %v4083 = vld [vmem:[#allocation4 + $0xf8] sm:$0x1f]
      %v4084 = vsel %vm4044, %v4035, %v4083
      %4085 = vst [vmem:[#allocation4 + $0xf8] sm:$0x1f] %v4084
      %v4086 = vld [vmem:[#allocation4 + $0x100] sm:$0x1f]
      %v4087 = vsel %vm4049, %v4035, %v4086
      %4088 = vst [vmem:[#allocation4 + $0x100] sm:$0x1f] %v4087
      %v4089 = vld [vmem:[%s3340] sm:$0xf]
      %v4090 = vld [vmem:[%s3340 + $0x4] sm:$0x1]
      %v4091 = vld [vmem:[%s3340 + $0x8] sm:$0xf]
      %v4092 = vld [vmem:[%s3340 + $0xc] sm:$0x1]
      %v4093 = vld [vmem:[%s3340 + $0x10] sm:$0xf]
      %v4094 = vld [vmem:[%s3340 + $0x14] sm:$0x1]
      %v4095 = vld [vmem:[%s3340 + $0x18] sm:$0xf]
      %v4096 = vld [vmem:[%s3340 + $0x1c] sm:$0x1]
      %v4097 = vld [vmem:[%s3340 + $0x20] sm:$0xf]
      %v4098 = vld [vmem:[%s3340 + $0x24] sm:$0x1]
      %v4099 = vld [vmem:[%s3340 + $0x28] sm:$0xf]
      %v4100 = vld [vmem:[%s3340 + $0x2c] sm:$0x1]
      %v4101 = vld [vmem:[%s3340 + $0x30] sm:$0xf]
      %v4102 = vld [vmem:[%s3340 + $0x34] sm:$0x1]
      %v4117 = vunpack.c.l.b16 %v4089
      %v4118 = vunpack.c.l.b16 %v4090
      %v4119 = vunpack.c.l.b16 %v4091
      %v4120 = vunpack.c.l.b16 %v4092
      %v4121 = vunpack.c.l.b16 %v4093
      %v4122 = vunpack.c.l.b16 %v4094
      %v4123 = vunpack.c.l.b16 %v4095
      %v4124 = vunpack.c.l.b16 %v4096
      %v4125 = vunpack.c.l.b16 %v4097
      %v4126 = vunpack.c.l.b16 %v4098
      %v4127 = vunpack.c.l.b16 %v4099
      %v4128 = vunpack.c.l.b16 %v4100
      %v4129 = vunpack.c.l.b16 %v4101
      %v4130 = vunpack.c.l.b16 %v4102
      %v4131 = vpack.c.b16 %v4118, %v4117
      %v4132 = vpack.c.b16 %v4120, %v4119
      %v4133 = vpack.c.b16 %v4122, %v4121
      %v4134 = vpack.c.b16 %v4124, %v4123
      %v4135 = vpack.c.b16 %v4126, %v4125
      %v4136 = vpack.c.b16 %v4128, %v4127
      %v4137 = vpack.c.b16 %v4130, %v4129
      %v4139 = vshrl.u32 %v4131, 16
      %v4141 = vshll.u32 %v4131, 16
      %v4143 = vrot.slane %v4141, 1
      %v4144 = vor.u32 %v4139, %v4143
      %v4146 = vshrl.u32 %v4132, 16
      %v4148 = vshll.u32 %v4132, 16
      %v4150 = vrot.slane %v4148, 1
      %v4151 = vor.u32 %v4146, %v4150
      %v4153 = vshrl.u32 %v4133, 16
      %v4155 = vshll.u32 %v4133, 16
      %v4157 = vrot.slane %v4155, 1
      %v4158 = vor.u32 %v4153, %v4157
      %v4160 = vshrl.u32 %v4134, 16
      %v4162 = vshll.u32 %v4134, 16
      %v4164 = vrot.slane %v4162, 1
      %v4165 = vor.u32 %v4160, %v4164
      %v4167 = vshrl.u32 %v4135, 16
      %v4169 = vshll.u32 %v4135, 16
      %v4171 = vrot.slane %v4169, 1
      %v4172 = vor.u32 %v4167, %v4171
      %v4174 = vshrl.u32 %v4136, 16
      %v4176 = vshll.u32 %v4136, 16
      %v4178 = vrot.slane %v4176, 1
      %v4179 = vor.u32 %v4174, %v4178
      %v4181 = vshrl.u32 %v4137, 16
      %v4183 = vshll.u32 %v4137, 16
      %v4185 = vrot.slane %v4183, 1
      %v4186 = vor.u32 %v4181, %v4185
      %4187 = vrot.lane.b32.xlu0 %v4144, 32
      %v4188 = vpop.permute.xlu0 %4187
      %4189 = vrot.lane.b32.xlu0 %v4151, 32
      %v4190 = vpop.permute.xlu0 %4189
      %4191 = vrot.lane.b32.xlu0 %v4158, 32
      %v4192 = vpop.permute.xlu0 %4191
      %4193 = vrot.lane.b32.xlu0 %v4165, 32
      %v4194 = vpop.permute.xlu0 %4193
      %4195 = vrot.lane.b32.xlu0 %v4172, 32
      %v4196 = vpop.permute.xlu0 %4195
      %4197 = vrot.lane.b32.xlu0 %v4179, 32
      %v4198 = vpop.permute.xlu0 %4197
      %4199 = vrot.lane.b32.xlu0 %v4186, 32
      %v4200 = vpop.permute.xlu0 %4199
      %vm4208 = vcmask 651520
      %vm4209 = vmand %vm4208, %vm3550
      %v4210 = vld [vmem:[#allocation4 + $0x10] sm:$0x1f]
      %v4211 = vsel %vm4209, %v4188, %v4210
      %4212 = vst [vmem:[#allocation4 + $0x10] sm:$0x1f] %v4211
      %v4213 = vld [vmem:[#allocation4 + $0x38] sm:$0x1f]
      %v4214 = vsel %vm4209, %v4190, %v4213
      %4215 = vst [vmem:[#allocation4 + $0x38] sm:$0x1f] %v4214
      %v4216 = vld [vmem:[#allocation4 + $0x60] sm:$0x1f]
      %v4217 = vsel %vm4209, %v4192, %v4216
      %4218 = vst [vmem:[#allocation4 + $0x60] sm:$0x1f] %v4217
      %v4219 = vld [vmem:[#allocation4 + $0x88] sm:$0x1f]
      %v4220 = vsel %vm4209, %v4194, %v4219
      %4221 = vst [vmem:[#allocation4 + $0x88] sm:$0x1f] %v4220
      %v4222 = vld [vmem:[#allocation4 + $0xb0] sm:$0x1f]
      %v4223 = vsel %vm4209, %v4196, %v4222
      %4224 = vst [vmem:[#allocation4 + $0xb0] sm:$0x1f] %v4223
      %v4225 = vld [vmem:[#allocation4 + $0xd8] sm:$0x1f]
      %v4226 = vsel %vm4209, %v4198, %v4225
      %4227 = vst [vmem:[#allocation4 + $0xd8] sm:$0x1f] %v4226
      %v4228 = vld [vmem:[#allocation4 + $0x100] sm:$0x1f]
      %v4229 = vsel %vm4209, %v4200, %v4228
      %4230 = vst [vmem:[#allocation4 + $0x100] sm:$0x1f] %v4229
      %v4231 = vld [vmem:[%s3350] sm:$0xf]
      %v4232 = vld [vmem:[%s3350 + $0x4] sm:$0x1]
      %v4233 = vld [vmem:[%s3350 + $0x8] sm:$0xf]
      %v4234 = vld [vmem:[%s3350 + $0xc] sm:$0x1]
      %v4235 = vld [vmem:[%s3350 + $0x10] sm:$0xf]
      %v4236 = vld [vmem:[%s3350 + $0x14] sm:$0x1]
      %v4237 = vld [vmem:[%s3350 + $0x18] sm:$0xf]
      %v4238 = vld [vmem:[%s3350 + $0x1c] sm:$0x1]
      %v4239 = vld [vmem:[%s3350 + $0x20] sm:$0xf]
      %v4240 = vld [vmem:[%s3350 + $0x24] sm:$0x1]
      %v4241 = vld [vmem:[%s3350 + $0x28] sm:$0xf]
      %v4242 = vld [vmem:[%s3350 + $0x2c] sm:$0x1]
      %v4243 = vld [vmem:[%s3350 + $0x30] sm:$0xf]
      %v4244 = vld [vmem:[%s3350 + $0x34] sm:$0x1]
      %v4259 = vunpack.c.l.b16 %v4231
      %v4260 = vunpack.c.l.b16 %v4232
      %v4261 = vunpack.c.l.b16 %v4233
      %v4262 = vunpack.c.l.b16 %v4234
      %v4263 = vunpack.c.l.b16 %v4235
      %v4264 = vunpack.c.l.b16 %v4236
      %v4265 = vunpack.c.l.b16 %v4237
      %v4266 = vunpack.c.l.b16 %v4238
      %v4267 = vunpack.c.l.b16 %v4239
      %v4268 = vunpack.c.l.b16 %v4240
      %v4269 = vunpack.c.l.b16 %v4241
      %v4270 = vunpack.c.l.b16 %v4242
      %v4271 = vunpack.c.l.b16 %v4243
      %v4272 = vunpack.c.l.b16 %v4244
      %v4273 = vpack.c.b16 %v4260, %v4259
      %v4274 = vpack.c.b16 %v4262, %v4261
      %v4275 = vpack.c.b16 %v4264, %v4263
      %v4276 = vpack.c.b16 %v4266, %v4265
      %v4277 = vpack.c.b16 %v4268, %v4267
      %v4278 = vpack.c.b16 %v4270, %v4269
      %v4279 = vpack.c.b16 %v4272, %v4271
      %4280 = vrot.lane.b32.xlu0 %v4273, 80
      %v4281 = vpop.permute.xlu0 %4280
      %4282 = vrot.lane.b32.xlu0 %v4274, 80
      %v4283 = vpop.permute.xlu0 %4282
      %4284 = vrot.lane.b32.xlu0 %v4275, 80
      %v4285 = vpop.permute.xlu0 %4284
      %4286 = vrot.lane.b32.xlu0 %v4276, 80
      %v4287 = vpop.permute.xlu0 %4286
      %4288 = vrot.lane.b32.xlu0 %v4277, 80
      %v4289 = vpop.permute.xlu0 %4288
      %4290 = vrot.lane.b32.xlu0 %v4278, 80
      %v4291 = vpop.permute.xlu0 %4290
      %4292 = vrot.lane.b32.xlu0 %v4279, 80
      %v4293 = vpop.permute.xlu0 %4292
      %vm4301 = vcmask 1045120
      %vm4302 = vmand %vm4301, %vm3550
      %v4303 = vld [vmem:[#allocation4 + $0x10] sm:$0x1f]
      %v4304 = vsel %vm4302, %v4281, %v4303
      %4305 = vst [vmem:[#allocation4 + $0x10] sm:$0x1f] %v4304
      %vm4306 = vcmask 126976
      %vm4307 = vmand %vm4306, %vm3550
      %v4308 = vld [vmem:[#allocation4 + $0x18] sm:$0x1f]
      %v4309 = vsel %vm4307, %v4281, %v4308
      %4310 = vst [vmem:[#allocation4 + $0x18] sm:$0x1f] %v4309
      %v4311 = vld [vmem:[#allocation4 + $0x38] sm:$0x1f]
      %v4312 = vsel %vm4302, %v4283, %v4311
      %4313 = vst [vmem:[#allocation4 + $0x38] sm:$0x1f] %v4312
      %v4314 = vld [vmem:[#allocation4 + $0x40] sm:$0x1f]
      %v4315 = vsel %vm4307, %v4283, %v4314
      %4316 = vst [vmem:[#allocation4 + $0x40] sm:$0x1f] %v4315
      %v4317 = vld [vmem:[#allocation4 + $0x60] sm:$0x1f]
      %v4318 = vsel %vm4302, %v4285, %v4317
      %4319 = vst [vmem:[#allocation4 + $0x60] sm:$0x1f] %v4318
      %v4320 = vld [vmem:[#allocation4 + $0x68] sm:$0x1f]
      %v4321 = vsel %vm4307, %v4285, %v4320
      %4322 = vst [vmem:[#allocation4 + $0x68] sm:$0x1f] %v4321
      %v4323 = vld [vmem:[#allocation4 + $0x88] sm:$0x1f]
      %v4324 = vsel %vm4302, %v4287, %v4323
      %4325 = vst [vmem:[#allocation4 + $0x88] sm:$0x1f] %v4324
      %v4326 = vld [vmem:[#allocation4 + $0x90] sm:$0x1f]
      %v4327 = vsel %vm4307, %v4287, %v4326
      %4328 = vst [vmem:[#allocation4 + $0x90] sm:$0x1f] %v4327
      %v4329 = vld [vmem:[#allocation4 + $0xb0] sm:$0x1f]
      %v4330 = vsel %vm4302, %v4289, %v4329
      %4331 = vst [vmem:[#allocation4 + $0xb0] sm:$0x1f] %v4330
      %v4332 = vld [vmem:[#allocation4 + $0xb8] sm:$0x1f]
      %v4333 = vsel %vm4307, %v4289, %v4332
      %4334 = vst [vmem:[#allocation4 + $0xb8] sm:$0x1f] %v4333
      %v4335 = vld [vmem:[#allocation4 + $0xd8] sm:$0x1f]
      %v4336 = vsel %vm4302, %v4291, %v4335
      %4337 = vst [vmem:[#allocation4 + $0xd8] sm:$0x1f] %v4336
      %v4338 = vld [vmem:[#allocation4 + $0xe0] sm:$0x1f]
      %v4339 = vsel %vm4307, %v4291, %v4338
      %4340 = vst [vmem:[#allocation4 + $0xe0] sm:$0x1f] %v4339
      %v4341 = vld [vmem:[#allocation4 + $0x100] sm:$0x1f]
      %v4342 = vsel %vm4302, %v4293, %v4341
      %4343 = vst [vmem:[#allocation4 + $0x100] sm:$0x1f] %v4342
      %v4344 = vld [vmem:[#allocation4 + $0x108] sm:$0x1f]
      %v4345 = vsel %vm4307, %v4293, %v4344
      %4346 = vst [vmem:[#allocation4 + $0x108] sm:$0x1f] %v4345
      %v4347 = vld [vmem:[%s3350] sm:$0xf]
      %v4348 = vld [vmem:[%s3350 + $0x4] sm:$0x1]
      %v4349 = vld [vmem:[%s3350 + $0x8] sm:$0xf]
      %v4350 = vld [vmem:[%s3350 + $0xc] sm:$0x1]
      %v4351 = vld [vmem:[%s3350 + $0x10] sm:$0xf]
      %v4352 = vld [vmem:[%s3350 + $0x14] sm:$0x1]
      %v4353 = vld [vmem:[%s3350 + $0x18] sm:$0xf]
      %v4354 = vld [vmem:[%s3350 + $0x1c] sm:$0x1]
      %v4355 = vld [vmem:[%s3350 + $0x20] sm:$0xf]
      %v4356 = vld [vmem:[%s3350 + $0x24] sm:$0x1]
      %v4357 = vld [vmem:[%s3350 + $0x28] sm:$0xf]
      %v4358 = vld [vmem:[%s3350 + $0x2c] sm:$0x1]
      %v4359 = vld [vmem:[%s3350 + $0x30] sm:$0xf]
      %v4360 = vld [vmem:[%s3350 + $0x34] sm:$0x1]
      %v4375 = vunpack.c.l.b16 %v4347
      %v4376 = vunpack.c.l.b16 %v4348
      %v4377 = vunpack.c.l.b16 %v4349
      %v4378 = vunpack.c.l.b16 %v4350
      %v4379 = vunpack.c.l.b16 %v4351
      %v4380 = vunpack.c.l.b16 %v4352
      %v4381 = vunpack.c.l.b16 %v4353
      %v4382 = vunpack.c.l.b16 %v4354
      %v4383 = vunpack.c.l.b16 %v4355
      %v4384 = vunpack.c.l.b16 %v4356
      %v4385 = vunpack.c.l.b16 %v4357
      %v4386 = vunpack.c.l.b16 %v4358
      %v4387 = vunpack.c.l.b16 %v4359
      %v4388 = vunpack.c.l.b16 %v4360
      %v4389 = vpack.c.b16 %v4376, %v4375
      %v4390 = vpack.c.b16 %v4378, %v4377
      %v4391 = vpack.c.b16 %v4380, %v4379
      %v4392 = vpack.c.b16 %v4382, %v4381
      %v4393 = vpack.c.b16 %v4384, %v4383
      %v4394 = vpack.c.b16 %v4386, %v4385
      %v4395 = vpack.c.b16 %v4388, %v4387
      %v4397 = vshrl.u32 %v4389, 16
      %v4399 = vshll.u32 %v4389, 16
      %v4401 = vrot.slane %v4399, 1
      %v4402 = vor.u32 %v4397, %v4401
      %v4404 = vshrl.u32 %v4390, 16
      %v4406 = vshll.u32 %v4390, 16
      %v4408 = vrot.slane %v4406, 1
      %v4409 = vor.u32 %v4404, %v4408
      %v4411 = vshrl.u32 %v4391, 16
      %v4413 = vshll.u32 %v4391, 16
      %v4415 = vrot.slane %v4413, 1
      %v4416 = vor.u32 %v4411, %v4415
      %v4418 = vshrl.u32 %v4392, 16
      %v4420 = vshll.u32 %v4392, 16
      %v4422 = vrot.slane %v4420, 1
      %v4423 = vor.u32 %v4418, %v4422
      %v4425 = vshrl.u32 %v4393, 16
      %v4427 = vshll.u32 %v4393, 16
      %v4429 = vrot.slane %v4427, 1
      %v4430 = vor.u32 %v4425, %v4429
      %v4432 = vshrl.u32 %v4394, 16
      %v4434 = vshll.u32 %v4394, 16
      %v4436 = vrot.slane %v4434, 1
      %v4437 = vor.u32 %v4432, %v4436
      %v4439 = vshrl.u32 %v4395, 16
      %v4441 = vshll.u32 %v4395, 16
      %v4443 = vrot.slane %v4441, 1
      %v4444 = vor.u32 %v4439, %v4443
      %4445 = vrot.lane.b32.xlu0 %v4402, 16
      %v4446 = vpop.permute.xlu0 %4445
      %4447 = vrot.lane.b32.xlu0 %v4409, 16
      %v4448 = vpop.permute.xlu0 %4447
      %4449 = vrot.lane.b32.xlu0 %v4416, 16
      %v4450 = vpop.permute.xlu0 %4449
      %4451 = vrot.lane.b32.xlu0 %v4423, 16
      %v4452 = vpop.permute.xlu0 %4451
      %4453 = vrot.lane.b32.xlu0 %v4430, 16
      %v4454 = vpop.permute.xlu0 %4453
      %4455 = vrot.lane.b32.xlu0 %v4437, 16
      %v4456 = vpop.permute.xlu0 %4455
      %4457 = vrot.lane.b32.xlu0 %v4444, 16
      %v4458 = vpop.permute.xlu0 %4457
      %vm4466 = vcmask 520320
      %vm4467 = vmand %vm4466, %vm3550
      %v4468 = vld [vmem:[#allocation4 + $0x18] sm:$0x1f]
      %v4469 = vsel %vm4467, %v4446, %v4468
      %4470 = vst [vmem:[#allocation4 + $0x18] sm:$0x1f] %v4469
      %v4471 = vld [vmem:[#allocation4 + $0x40] sm:$0x1f]
      %v4472 = vsel %vm4467, %v4448, %v4471
      %4473 = vst [vmem:[#allocation4 + $0x40] sm:$0x1f] %v4472
      %v4474 = vld [vmem:[#allocation4 + $0x68] sm:$0x1f]
      %v4475 = vsel %vm4467, %v4450, %v4474
      %4476 = vst [vmem:[#allocation4 + $0x68] sm:$0x1f] %v4475
      %v4477 = vld [vmem:[#allocation4 + $0x90] sm:$0x1f]
      %v4478 = vsel %vm4467, %v4452, %v4477
      %4479 = vst [vmem:[#allocation4 + $0x90] sm:$0x1f] %v4478
      %v4480 = vld [vmem:[#allocation4 + $0xb8] sm:$0x1f]
      %v4481 = vsel %vm4467, %v4454, %v4480
      %4482 = vst [vmem:[#allocation4 + $0xb8] sm:$0x1f] %v4481
      %v4483 = vld [vmem:[#allocation4 + $0xe0] sm:$0x1f]
      %v4484 = vsel %vm4467, %v4456, %v4483
      %4485 = vst [vmem:[#allocation4 + $0xe0] sm:$0x1f] %v4484
      %v4486 = vld [vmem:[#allocation4 + $0x108] sm:$0x1f]
      %v4487 = vsel %vm4467, %v4458, %v4486
      %4488 = vst [vmem:[#allocation4 + $0x108] sm:$0x1f] %v4487
      %v4489 = vld [vmem:[%s3360] sm:$0xf]
      %v4490 = vld [vmem:[%s3360 + $0x4] sm:$0x1]
      %v4491 = vld [vmem:[%s3360 + $0x8] sm:$0xf]
      %v4492 = vld [vmem:[%s3360 + $0xc] sm:$0x1]
      %v4493 = vld [vmem:[%s3360 + $0x10] sm:$0xf]
      %v4494 = vld [vmem:[%s3360 + $0x14] sm:$0x1]
      %v4495 = vld [vmem:[%s3360 + $0x18] sm:$0xf]
      %v4496 = vld [vmem:[%s3360 + $0x1c] sm:$0x1]
      %v4497 = vld [vmem:[%s3360 + $0x20] sm:$0xf]
      %v4498 = vld [vmem:[%s3360 + $0x24] sm:$0x1]
      %v4499 = vld [vmem:[%s3360 + $0x28] sm:$0xf]
      %v4500 = vld [vmem:[%s3360 + $0x2c] sm:$0x1]
      %v4501 = vld [vmem:[%s3360 + $0x30] sm:$0xf]
      %v4502 = vld [vmem:[%s3360 + $0x34] sm:$0x1]
      %v4517 = vunpack.c.l.b16 %v4489
      %v4518 = vunpack.c.l.b16 %v4490
      %v4519 = vunpack.c.l.b16 %v4491
      %v4520 = vunpack.c.l.b16 %v4492
      %v4521 = vunpack.c.l.b16 %v4493
      %v4522 = vunpack.c.l.b16 %v4494
      %v4523 = vunpack.c.l.b16 %v4495
      %v4524 = vunpack.c.l.b16 %v4496
      %v4525 = vunpack.c.l.b16 %v4497
      %v4526 = vunpack.c.l.b16 %v4498
      %v4527 = vunpack.c.l.b16 %v4499
      %v4528 = vunpack.c.l.b16 %v4500
      %v4529 = vunpack.c.l.b16 %v4501
      %v4530 = vunpack.c.l.b16 %v4502
      %v4531 = vpack.c.b16 %v4518, %v4517
      %v4532 = vpack.c.b16 %v4520, %v4519
      %v4533 = vpack.c.b16 %v4522, %v4521
      %v4534 = vpack.c.b16 %v4524, %v4523
      %v4535 = vpack.c.b16 %v4526, %v4525
      %v4536 = vpack.c.b16 %v4528, %v4527
      %v4537 = vpack.c.b16 %v4530, %v4529
      %4538 = vrot.lane.b32.xlu0 %v4531, 64
      %v4539 = vpop.permute.xlu0 %4538
      %4540 = vrot.lane.b32.xlu0 %v4532, 64
      %v4541 = vpop.permute.xlu0 %4540
      %4542 = vrot.lane.b32.xlu0 %v4533, 64
      %v4543 = vpop.permute.xlu0 %4542
      %4544 = vrot.lane.b32.xlu0 %v4534, 64
      %v4545 = vpop.permute.xlu0 %4544
      %4546 = vrot.lane.b32.xlu0 %v4535, 64
      %v4547 = vpop.permute.xlu0 %4546
      %4548 = vrot.lane.b32.xlu0 %v4536, 64
      %v4549 = vpop.permute.xlu0 %4548
      %4550 = vrot.lane.b32.xlu0 %v4537, 64
      %v4551 = vpop.permute.xlu0 %4550
      %vm4559 = vcmask 1044992
      %vm4560 = vmand %vm4559, %vm3550
      %v4561 = vld [vmem:[#allocation4 + $0x18] sm:$0x1f]
      %v4562 = vsel %vm4560, %v4539, %v4561
      %4563 = vst [vmem:[#allocation4 + $0x18] sm:$0x1f] %v4562
      %v4564 = vld [vmem:[#allocation4 + $0x40] sm:$0x1f]
      %v4565 = vsel %vm4560, %v4541, %v4564
      %4566 = vst [vmem:[#allocation4 + $0x40] sm:$0x1f] %v4565
      %v4567 = vld [vmem:[#allocation4 + $0x68] sm:$0x1f]
      %v4568 = vsel %vm4560, %v4543, %v4567
      %4569 = vst [vmem:[#allocation4 + $0x68] sm:$0x1f] %v4568
      %v4570 = vld [vmem:[#allocation4 + $0x90] sm:$0x1f]
      %v4571 = vsel %vm4560, %v4545, %v4570
      %4572 = vst [vmem:[#allocation4 + $0x90] sm:$0x1f] %v4571
      %v4573 = vld [vmem:[#allocation4 + $0xb8] sm:$0x1f]
      %v4574 = vsel %vm4560, %v4547, %v4573
      %4575 = vst [vmem:[#allocation4 + $0xb8] sm:$0x1f] %v4574
      %v4576 = vld [vmem:[#allocation4 + $0xe0] sm:$0x1f]
      %v4577 = vsel %vm4560, %v4549, %v4576
      %4578 = vst [vmem:[#allocation4 + $0xe0] sm:$0x1f] %v4577
      %v4579 = vld [vmem:[#allocation4 + $0x108] sm:$0x1f]
      %v4580 = vsel %vm4560, %v4551, %v4579
      %4581 = vst [vmem:[#allocation4 + $0x108] sm:$0x1f] %v4580
      %v4582 = vld [vmem:[%s3360] sm:$0xf]
      %v4583 = vld [vmem:[%s3360 + $0x4] sm:$0x1]
      %v4584 = vld [vmem:[%s3360 + $0x8] sm:$0xf]
      %v4585 = vld [vmem:[%s3360 + $0xc] sm:$0x1]
      %v4586 = vld [vmem:[%s3360 + $0x10] sm:$0xf]
      %v4587 = vld [vmem:[%s3360 + $0x14] sm:$0x1]
      %v4588 = vld [vmem:[%s3360 + $0x18] sm:$0xf]
      %v4589 = vld [vmem:[%s3360 + $0x1c] sm:$0x1]
      %v4590 = vld [vmem:[%s3360 + $0x20] sm:$0xf]
      %v4591 = vld [vmem:[%s3360 + $0x24] sm:$0x1]
      %v4592 = vld [vmem:[%s3360 + $0x28] sm:$0xf]
      %v4593 = vld [vmem:[%s3360 + $0x2c] sm:$0x1]
      %v4594 = vld [vmem:[%s3360 + $0x30] sm:$0xf]
      %v4595 = vld [vmem:[%s3360 + $0x34] sm:$0x1]
      %v4610 = vunpack.c.l.b16 %v4582
      %v4611 = vunpack.c.l.b16 %v4583
      %v4612 = vunpack.c.l.b16 %v4584
      %v4613 = vunpack.c.l.b16 %v4585
      %v4614 = vunpack.c.l.b16 %v4586
      %v4615 = vunpack.c.l.b16 %v4587
      %v4616 = vunpack.c.l.b16 %v4588
      %v4617 = vunpack.c.l.b16 %v4589
      %v4618 = vunpack.c.l.b16 %v4590
      %v4619 = vunpack.c.l.b16 %v4591
      %v4620 = vunpack.c.l.b16 %v4592
      %v4621 = vunpack.c.l.b16 %v4593
      %v4622 = vunpack.c.l.b16 %v4594
      %v4623 = vunpack.c.l.b16 %v4595
      %v4624 = vpack.c.b16 %v4611, %v4610
      %v4625 = vpack.c.b16 %v4613, %v4612
      %v4626 = vpack.c.b16 %v4615, %v4614
      %v4627 = vpack.c.b16 %v4617, %v4616
      %v4628 = vpack.c.b16 %v4619, %v4618
      %v4629 = vpack.c.b16 %v4621, %v4620
      %v4630 = vpack.c.b16 %v4623, %v4622
      %v4632 = vshrl.u32 %v4624, 16
      %v4634 = vshll.u32 %v4624, 16
      %v4636 = vrot.slane %v4634, 1
      %v4637 = vor.u32 %v4632, %v4636
      %v4639 = vshrl.u32 %v4625, 16
      %v4641 = vshll.u32 %v4625, 16
      %v4643 = vrot.slane %v4641, 1
      %v4644 = vor.u32 %v4639, %v4643
      %v4646 = vshrl.u32 %v4626, 16
      %v4648 = vshll.u32 %v4626, 16
      %v4650 = vrot.slane %v4648, 1
      %v4651 = vor.u32 %v4646, %v4650
      %v4653 = vshrl.u32 %v4627, 16
      %v4655 = vshll.u32 %v4627, 16
      %v4657 = vrot.slane %v4655, 1
      %v4658 = vor.u32 %v4653, %v4657
      %v4660 = vshrl.u32 %v4628, 16
      %v4662 = vshll.u32 %v4628, 16
      %v4664 = vrot.slane %v4662, 1
      %v4665 = vor.u32 %v4660, %v4664
      %v4667 = vshrl.u32 %v4629, 16
      %v4669 = vshll.u32 %v4629, 16
      %v4671 = vrot.slane %v4669, 1
      %v4672 = vor.u32 %v4667, %v4671
      %v4674 = vshrl.u32 %v4630, 16
      %v4676 = vshll.u32 %v4630, 16
      %v4678 = vrot.slane %v4676, 1
      %v4679 = vor.u32 %v4674, %v4678
      %v4687 = vld [vmem:[#allocation4 + $0x20] sm:$0x1f]
      %v4688 = vsel %vm3791, %v4637, %v4687
      %4689 = vst [vmem:[#allocation4 + $0x20] sm:$0x1f] %v4688
      %v4690 = vld [vmem:[#allocation4 + $0x48] sm:$0x1f]
      %v4691 = vsel %vm3791, %v4644, %v4690
      %4692 = vst [vmem:[#allocation4 + $0x48] sm:$0x1f] %v4691
      %v4693 = vld [vmem:[#allocation4 + $0x70] sm:$0x1f]
      %v4694 = vsel %vm3791, %v4651, %v4693
      %4695 = vst [vmem:[#allocation4 + $0x70] sm:$0x1f] %v4694
      %v4696 = vld [vmem:[#allocation4 + $0x98] sm:$0x1f]
      %v4697 = vsel %vm3791, %v4658, %v4696
      %4698 = vst [vmem:[#allocation4 + $0x98] sm:$0x1f] %v4697
      %v4699 = vld [vmem:[#allocation4 + $0xc0] sm:$0x1f]
      %v4700 = vsel %vm3791, %v4665, %v4699
      %4701 = vst [vmem:[#allocation4 + $0xc0] sm:$0x1f] %v4700
      %v4702 = vld [vmem:[#allocation4 + $0xe8] sm:$0x1f]
      %v4703 = vsel %vm3791, %v4672, %v4702
      %4704 = vst [vmem:[#allocation4 + $0xe8] sm:$0x1f] %v4703
      %v4705 = vld [vmem:[#allocation4 + $0x110] sm:$0x1f]
      %v4706 = vsel %vm3791, %v4679, %v4705
      %4707 = vst [vmem:[#allocation4 + $0x110] sm:$0x1f] %v4706
      %v4708 = vld [vmem:[#allocation4] sm:$0xff]
      %v4709 = vld [vmem:[#allocation4 + $0x8] sm:$0xff]
      %v4710 = vld [vmem:[#allocation4 + $0x10] sm:$0xff]
      %v4711 = vld [vmem:[#allocation4 + $0x18] sm:$0xff]
      %v4712 = vld [vmem:[#allocation4 + $0x20] sm:$0xff]
      %v4713 = vld [vmem:[#allocation4 + $0x28] sm:$0xff]
      %v4714 = vld [vmem:[#allocation4 + $0x30] sm:$0xff]
      %v4715 = vld [vmem:[#allocation4 + $0x38] sm:$0xff]
      %v4716 = vld [vmem:[#allocation4 + $0x40] sm:$0xff]
      %v4717 = vld [vmem:[#allocation4 + $0x48] sm:$0xff]
      %v4718 = vld [vmem:[#allocation4 + $0x50] sm:$0xff]
      %v4719 = vld [vmem:[#allocation4 + $0x58] sm:$0xff]
      %v4720 = vld [vmem:[#allocation4 + $0x60] sm:$0xff]
      %v4721 = vld [vmem:[#allocation4 + $0x68] sm:$0xff]
      %v4722 = vld [vmem:[#allocation4 + $0x70] sm:$0xff]
      %v4723 = vld [vmem:[#allocation4 + $0x78] sm:$0xff]
      %v4724 = vld [vmem:[#allocation4 + $0x80] sm:$0xff]
      %v4725 = vld [vmem:[#allocation4 + $0x88] sm:$0xff]
      %v4726 = vld [vmem:[#allocation4 + $0x90] sm:$0xff]
      %v4727 = vld [vmem:[#allocation4 + $0x98] sm:$0xff]
      %v4728 = vld [vmem:[#allocation4 + $0xa0] sm:$0xff]
      %v4729 = vld [vmem:[#allocation4 + $0xa8] sm:$0xff]
      %v4730 = vld [vmem:[#allocation4 + $0xb0] sm:$0xff]
      %v4731 = vld [vmem:[#allocation4 + $0xb8] sm:$0xff]
      %v4732 = vld [vmem:[#allocation4 + $0xc0] sm:$0xff]
      %v4733 = vld [vmem:[#allocation4 + $0xc8] sm:$0xff]
      %v4734 = vld [vmem:[#allocation4 + $0xd0] sm:$0xff]
      %v4735 = vld [vmem:[#allocation4 + $0xd8] sm:$0xff]
      %v4736 = vld [vmem:[#allocation4 + $0xe0] sm:$0xff]
      %v4737 = vld [vmem:[#allocation4 + $0xe8] sm:$0xff]
      %v4738 = vld [vmem:[#allocation4 + $0xf0] sm:$0xff]
      %v4739 = vld [vmem:[#allocation4 + $0xf8] sm:$0xff]
      %v4740 = vld [vmem:[#allocation4 + $0x100] sm:$0xff]
      %v4741 = vld [vmem:[#allocation4 + $0x108] sm:$0xff]
      %v4742 = vld [vmem:[#allocation4 + $0x110] sm:$0xff]
      %v4743 = vld [vmem:[%s2] sm:$0xf]
      %v4744 = vld [vmem:[%s2 + $0x4] sm:$0xf]
      %v4745 = vld [vmem:[%s2 + $0x8] sm:$0xf]
      %v4746 = vld [vmem:[%s2 + $0xc] sm:$0xf]
      %v4747 = vld [vmem:[%s2 + $0x10] sm:$0xf]
      %v4748 = vld [vmem:[%s2 + $0x14] sm:$0xf]
      %v4749 = vld [vmem:[%s2 + $0x18] sm:$0xf]
      %v4750 = vld [vmem:[%s2 + $0x1c] sm:$0xf]
      %v4751 = vld [vmem:[%s2 + $0x20] sm:$0xf]
      %v4752 = vld [vmem:[%s2 + $0x24] sm:$0xf]
      %v4753 = vld [vmem:[%s2 + $0x28] sm:$0xf]
      %v4754 = vld [vmem:[%s2 + $0x2c] sm:$0xf]
      %v4755 = vld [vmem:[%s2 + $0x30] sm:$0xf]
      %v4756 = vld [vmem:[%s2 + $0x34] sm:$0xf]
      %v4757 = vld [vmem:[%s2 + $0x38] sm:$0xf]
      %v4758 = vld [vmem:[%s2 + $0x3c] sm:$0xf]
      %v4759 = vld [vmem:[%s2 + $0x40] sm:$0xf]
      %v4760 = vld [vmem:[%s2 + $0x44] sm:$0xf]
      %v4761 = vld [vmem:[%s2 + $0x48] sm:$0xf]
      %v4762 = vld [vmem:[%s2 + $0x4c] sm:$0xf]
      %v4763 = vld [vmem:[%s2 + $0x50] sm:$0xf]
      %v4764 = vld [vmem:[%s2 + $0x54] sm:$0xf]
      %v4765 = vld [vmem:[%s2 + $0x58] sm:$0xf]
      %v4766 = vld [vmem:[%s2 + $0x5c] sm:$0xf]
      %v4767 = vld [vmem:[%s2 + $0x60] sm:$0xf]
      %v4768 = vld [vmem:[%s2 + $0x64] sm:$0xf]
      %v4769 = vld [vmem:[%s2 + $0x68] sm:$0xf]
      %v4770 = vld [vmem:[%s2 + $0x6c] sm:$0xf]
      %v4771 = vld [vmem:[%s2 + $0x70] sm:$0xf]
      %v4772 = vld [vmem:[%s2 + $0x74] sm:$0xf]
      %v4773 = vld [vmem:[%s2 + $0x78] sm:$0xf]
      %v4774 = vld [vmem:[%s2 + $0x7c] sm:$0xf]
      %v4775 = vld [vmem:[%s2 + $0x80] sm:$0xf]
      %v4776 = vld [vmem:[%s2 + $0x84] sm:$0xf]
      %v4777 = vld [vmem:[%s2 + $0x88] sm:$0xf]
      %v4778 = vld [vmem:[%s2 + $0x8c] sm:$0xf]
      %v4779 = vld [vmem:[%s2 + $0x90] sm:$0xf]
      %v4780 = vld [vmem:[%s2 + $0x94] sm:$0xf]
      %v4781 = vld [vmem:[%s2 + $0x98] sm:$0xf]
      %v4782 = vld [vmem:[%s2 + $0x9c] sm:$0xf]
      %v4783 = vld [vmem:[%s2 + $0xa0] sm:$0xf]
      %v4784 = vld [vmem:[%s2 + $0xa4] sm:$0xf]
      %v4785 = vld [vmem:[%s2 + $0xa8] sm:$0xf]
      %v4786 = vld [vmem:[%s2 + $0xac] sm:$0xf]
      %v4787 = vld [vmem:[%s2 + $0xb0] sm:$0xf]
      %v4788 = vld [vmem:[%s2 + $0xb4] sm:$0xf]
      %v4789 = vld [vmem:[%s2 + $0xb8] sm:$0xf]
      %v4790 = vld [vmem:[%s2 + $0xbc] sm:$0xf]
      %v4791 = vld [vmem:[%s2 + $0xc0] sm:$0xf]
      %v4792 = vld [vmem:[%s2 + $0xc4] sm:$0xf]
      %v4793 = vld [vmem:[%s2 + $0xc8] sm:$0xf]
      %v4794 = vld [vmem:[%s2 + $0xcc] sm:$0xf]
      %v4795 = vld [vmem:[%s2 + $0xd0] sm:$0xf]
      %v4796 = vld [vmem:[%s2 + $0xd4] sm:$0xf]
      %v4797 = vld [vmem:[%s2 + $0xd8] sm:$0xf]
      %v4798 = vld [vmem:[%s2 + $0xdc] sm:$0xf]
      %v4799 = vld [vmem:[%s2 + $0xe0] sm:$0xf]
      %v4800 = vld [vmem:[%s2 + $0xe4] sm:$0xf]
      %v4801 = vld [vmem:[%s2 + $0xe8] sm:$0xf]
      %v4802 = vld [vmem:[%s2 + $0xec] sm:$0xf]
      %v4803 = vld [vmem:[%s2 + $0xf0] sm:$0xf]
      %v4804 = vld [vmem:[%s2 + $0xf4] sm:$0xf]
      %v4805 = vld [vmem:[%s2 + $0xf8] sm:$0xf]
      %v4806 = vld [vmem:[%s2 + $0xfc] sm:$0xf]
      %v4807 = vld [vmem:[%s2 + $0x100] sm:$0xf]
      %v4808 = vld [vmem:[%s2 + $0x104] sm:$0xf]
      %v4809 = vld [vmem:[%s2 + $0x108] sm:$0xf]
      %v4810 = vld [vmem:[%s2 + $0x10c] sm:$0xf]
      %v4811 = vld [vmem:[%s2 + $0x110] sm:$0xf]
      %v4812 = vld [vmem:[%s2 + $0x114] sm:$0xf]
      %v4813 = vld [vmem:[%s5] sm:$0x1]
      %v4815 = vlaneseq
      %v4816 = vshrl.u32 %v4815, 7
      %v4817 = vsub.s32 0, %v4816
      %v4818 = vrot.slane %v4813, %v4817
      %v4890 = vunpack.c.l.b16 %v4743
      %v4891 = vunpack.c.l.b16 %v4744
      %v4892 = vunpack.c.l.b16 %v4745
      %v4893 = vunpack.c.l.b16 %v4746
      %v4894 = vunpack.c.l.b16 %v4747
      %v4895 = vunpack.c.l.b16 %v4748
      %v4896 = vunpack.c.l.b16 %v4749
      %v4897 = vunpack.c.l.b16 %v4750
      %v4898 = vunpack.c.l.b16 %v4751
      %v4899 = vunpack.c.l.b16 %v4752
      %v4900 = vunpack.c.l.b16 %v4753
      %v4901 = vunpack.c.l.b16 %v4754
      %v4902 = vunpack.c.l.b16 %v4755
      %v4903 = vunpack.c.l.b16 %v4756
      %v4904 = vunpack.c.l.b16 %v4757
      %v4905 = vunpack.c.l.b16 %v4758
      %v4906 = vunpack.c.l.b16 %v4759
      %v4907 = vunpack.c.l.b16 %v4760
      %v4908 = vunpack.c.l.b16 %v4761
      %v4909 = vunpack.c.l.b16 %v4762
      %v4910 = vunpack.c.l.b16 %v4763
      %v4911 = vunpack.c.l.b16 %v4764
      %v4912 = vunpack.c.l.b16 %v4765
      %v4913 = vunpack.c.l.b16 %v4766
      %v4914 = vunpack.c.l.b16 %v4767
      %v4915 = vunpack.c.l.b16 %v4768
      %v4916 = vunpack.c.l.b16 %v4769
      %v4917 = vunpack.c.l.b16 %v4770
      %v4918 = vunpack.c.l.b16 %v4771
      %v4919 = vunpack.c.l.b16 %v4772
      %v4920 = vunpack.c.l.b16 %v4773
      %v4921 = vunpack.c.l.b16 %v4774
      %v4922 = vunpack.c.l.b16 %v4775
      %v4923 = vunpack.c.l.b16 %v4776
      %v4924 = vunpack.c.l.b16 %v4777
      %v4925 = vunpack.c.l.b16 %v4778
      %v4926 = vunpack.c.l.b16 %v4779
      %v4927 = vunpack.c.l.b16 %v4780
      %v4928 = vunpack.c.l.b16 %v4781
      %v4929 = vunpack.c.l.b16 %v4782
      %v4930 = vunpack.c.l.b16 %v4783
      %v4931 = vunpack.c.l.b16 %v4784
      %v4932 = vunpack.c.l.b16 %v4785
      %v4933 = vunpack.c.l.b16 %v4786
      %v4934 = vunpack.c.l.b16 %v4787
      %v4935 = vunpack.c.l.b16 %v4788
      %v4936 = vunpack.c.l.b16 %v4789
      %v4937 = vunpack.c.l.b16 %v4790
      %v4938 = vunpack.c.l.b16 %v4791
      %v4939 = vunpack.c.l.b16 %v4792
      %v4940 = vunpack.c.l.b16 %v4793
      %v4941 = vunpack.c.l.b16 %v4794
      %v4942 = vunpack.c.l.b16 %v4795
      %v4943 = vunpack.c.l.b16 %v4796
      %v4944 = vunpack.c.l.b16 %v4797
      %v4945 = vunpack.c.l.b16 %v4798
      %v4946 = vunpack.c.l.b16 %v4799
      %v4947 = vunpack.c.l.b16 %v4800
      %v4948 = vunpack.c.l.b16 %v4801
      %v4949 = vunpack.c.l.b16 %v4802
      %v4950 = vunpack.c.l.b16 %v4803
      %v4951 = vunpack.c.l.b16 %v4804
      %v4952 = vunpack.c.l.b16 %v4805
      %v4953 = vunpack.c.l.b16 %v4806
      %v4954 = vunpack.c.l.b16 %v4807
      %v4955 = vunpack.c.l.b16 %v4808
      %v4956 = vunpack.c.l.b16 %v4809
      %v4957 = vunpack.c.l.b16 %v4810
      %v4958 = vunpack.c.l.b16 %v4811
      %v4959 = vunpack.c.l.b16 %v4812
      %v4960 = vpack.c.b16 %v4891, %v4890
      %v4961 = vpack.c.b16 %v4893, %v4892
      %v4962 = vpack.c.b16 %v4895, %v4894
      %v4963 = vpack.c.b16 %v4897, %v4896
      %v4964 = vpack.c.b16 %v4899, %v4898
      %v4965 = vpack.c.b16 %v4901, %v4900
      %v4966 = vpack.c.b16 %v4903, %v4902
      %v4967 = vpack.c.b16 %v4905, %v4904
      %v4968 = vpack.c.b16 %v4907, %v4906
      %v4969 = vpack.c.b16 %v4909, %v4908
      %v4970 = vpack.c.b16 %v4911, %v4910
      %v4971 = vpack.c.b16 %v4913, %v4912
      %v4972 = vpack.c.b16 %v4915, %v4914
      %v4973 = vpack.c.b16 %v4917, %v4916
      %v4974 = vpack.c.b16 %v4919, %v4918
      %v4975 = vpack.c.b16 %v4921, %v4920
      %v4976 = vpack.c.b16 %v4923, %v4922
      %v4977 = vpack.c.b16 %v4925, %v4924
      %v4978 = vpack.c.b16 %v4927, %v4926
      %v4979 = vpack.c.b16 %v4929, %v4928
      %v4980 = vpack.c.b16 %v4931, %v4930
      %v4981 = vpack.c.b16 %v4933, %v4932
      %v4982 = vpack.c.b16 %v4935, %v4934
      %v4983 = vpack.c.b16 %v4937, %v4936
      %v4984 = vpack.c.b16 %v4939, %v4938
      %v4985 = vpack.c.b16 %v4941, %v4940
      %v4986 = vpack.c.b16 %v4943, %v4942
      %v4987 = vpack.c.b16 %v4945, %v4944
      %v4988 = vpack.c.b16 %v4947, %v4946
      %v4989 = vpack.c.b16 %v4949, %v4948
      %v4990 = vpack.c.b16 %v4951, %v4950
      %v4991 = vpack.c.b16 %v4953, %v4952
      %v4992 = vpack.c.b16 %v4955, %v4954
      %v4993 = vpack.c.b16 %v4957, %v4956
      %v4994 = vpack.c.b16 %v4959, %v4958
      %vm5030 = vcmask 392192
      %v5032 = vsel %vm5030, %v4712, 0
      %v5035 = vsel %vm5030, %v4717, 0
      %v5038 = vsel %vm5030, %v4722, 0
      %v5041 = vsel %vm5030, %v4727, 0
      %v5044 = vsel %vm5030, %v4732, 0
      %v5047 = vsel %vm5030, %v4737, 0
      %v5050 = vsel %vm5030, %v4742, 0
      %5052 = vmatprep.subr.bf16.mxu0 0
      %5053 = vmatpush1.bf16.msra.mxu0 %v4960
      %5054 = vmatprep.subr.bf16.mxu0 0
      %5055 = vmatpush1.bf16.msra.mxu0 %v4961
      %5056 = vmatprep.subr.bf16.mxu0 0
      %5057 = vmatpush1.bf16.msra.mxu0 %v4962
      %5058 = vmatprep.subr.bf16.mxu0 0
      %5059 = vmatpush1.bf16.msra.mxu0 %v4963
      %5060 = vmatprep.subr.bf16.mxu0 0
      %5061 = vmatpush1.bf16.msra.mxu0 %v4964
      %5062 = vmatprep.subr.bf16.mxu0 0
      %5063 = vmatpush1.bf16.msra.mxu0 %v4965
      %5064 = vmatprep.subr.bf16.mxu0 0
      %5065 = vmatpush1.bf16.msra.mxu0 %v4966
      %5066 = vmatprep.subr.bf16.mxu0 0
      %5067 = vmatpush1.bf16.msra.mxu0 %v4967
      %5068 = vmatprep.subr.bf16.mxu0 0
      %5069 = vmatpush1.bf16.msra.mxu0 %v4968
      %5070 = vmatprep.subr.bf16.mxu0 0
      %5071 = vmatpush1.bf16.msra.mxu0 %v4969
      %5072 = vmatprep.subr.bf16.mxu0 0
      %5073 = vmatpush1.bf16.msra.mxu0 %v4970
      %5074 = vmatprep.subr.bf16.mxu0 0
      %5075 = vmatpush1.bf16.msra.mxu0 %v4971
      %5076 = vmatprep.subr.bf16.mxu0 0
      %5077 = vmatpush1.bf16.msra.mxu0 %v4972
      %5078 = vmatprep.subr.bf16.mxu0 0
      %5079 = vmatpush1.bf16.msra.mxu0 %v4973
      %5080 = vmatprep.subr.bf16.mxu0 0
      %5081 = vmatpush1.bf16.msra.mxu0 %v4974
      %5082 = vmatprep.subr.bf16.mxu0 0
      %5083 = vmatpush1.bf16.msra.mxu0 %v4975
      %5084 = vmatprep.mubr.bf16.mxu0 %v4709
      %5085 = vmatmul.mubr.bf16.gmra.mrb[0].mxu0 %v4708
      %v5086 = vpop.f32.mrb[0].mxu0
      %v5087 = vadd.f32 %v4818, %v5086
      %v5088 = vpop.f32.mrb[0].mxu0
      %v5089 = vpop.f32.mrb[0].mxu0
      %v5090 = vadd.f32 %v4818, %v5089
      %v5091 = vpop.f32.mrb[0].mxu0
      %5092 = vmatprep.mubr.bf16.mxu0 %v4714
      %5093 = vmatmul.mubr.bf16.gmra.mrb[0].mxu0 %v4713
      %v5094 = vpop.f32.mrb[0].mxu0
      %v5095 = vadd.f32 %v4818, %v5094
      %v5096 = vpop.f32.mrb[0].mxu0
      %v5097 = vpop.f32.mrb[0].mxu0
      %v5098 = vadd.f32 %v4818, %v5097
      %v5099 = vpop.f32.mrb[0].mxu0
      %5100 = vmatprep.mubr.bf16.mxu0 %v4719
      %5101 = vmatmul.mubr.bf16.gmra.mrb[0].mxu0 %v4718
      %v5102 = vpop.f32.mrb[0].mxu0
      %v5103 = vadd.f32 %v4818, %v5102
      %v5104 = vpop.f32.mrb[0].mxu0
      %v5105 = vpop.f32.mrb[0].mxu0
      %v5106 = vadd.f32 %v4818, %v5105
      %v5107 = vpop.f32.mrb[0].mxu0
      %5108 = vmatprep.mubr.bf16.mxu0 %v4724
      %5109 = vmatmul.mubr.bf16.gmra.mrb[0].mxu0 %v4723
      %v5110 = vpop.f32.mrb[0].mxu0
      %v5111 = vadd.f32 %v4818, %v5110
      %v5112 = vpop.f32.mrb[0].mxu0
      %v5113 = vpop.f32.mrb[0].mxu0
      %v5114 = vadd.f32 %v4818, %v5113
      %v5115 = vpop.f32.mrb[0].mxu0
      %5116 = vmatprep.mubr.bf16.mxu0 %v4729
      %5117 = vmatmul.mubr.bf16.gmra.mrb[0].mxu0 %v4728
      %v5118 = vpop.f32.mrb[0].mxu0
      %v5119 = vadd.f32 %v4818, %v5118
      %v5120 = vpop.f32.mrb[0].mxu0
      %v5121 = vpop.f32.mrb[0].mxu0
      %v5122 = vadd.f32 %v4818, %v5121
      %v5123 = vpop.f32.mrb[0].mxu0
      %5124 = vmatprep.mubr.bf16.mxu0 %v4734
      %5125 = vmatmul.mubr.bf16.gmra.mrb[0].mxu0 %v4733
      %v5126 = vpop.f32.mrb[0].mxu0
      %v5127 = vadd.f32 %v4818, %v5126
      %v5128 = vpop.f32.mrb[0].mxu0
      %v5129 = vpop.f32.mrb[0].mxu0
      %v5130 = vadd.f32 %v4818, %v5129
      %v5131 = vpop.f32.mrb[0].mxu0
      %5132 = vmatprep.mubr.bf16.mxu0 %v4739
      %5133 = vmatmul.mubr.bf16.gmra.mrb[0].mxu0 %v4738
      %v5134 = vpop.f32.mrb[0].mxu0
      %v5135 = vadd.f32 %v4818, %v5134
      %v5136 = vpop.f32.mrb[0].mxu0
      %v5137 = vpop.f32.mrb[0].mxu0
      %v5138 = vadd.f32 %v4818, %v5137
      %v5139 = vpop.f32.mrb[0].mxu0
      %5140 = vdwg.mxu0
      %5141 = vmatprep.subr.bf16.mxu0 0
      %5142 = vmatpush1.bf16.msra.mxu0 %v4976
      %5143 = vmatprep.subr.bf16.mxu0 0
      %5144 = vmatpush1.bf16.msra.mxu0 %v4977
      %5145 = vmatprep.subr.bf16.mxu0 0
      %5146 = vmatpush1.bf16.msra.mxu0 %v4978
      %5147 = vmatprep.subr.bf16.mxu0 0
      %5148 = vmatpush1.bf16.msra.mxu0 %v4979
      %5149 = vmatprep.subr.bf16.mxu0 0
      %5150 = vmatpush1.bf16.msra.mxu0 %v4980
      %5151 = vmatprep.subr.bf16.mxu0 0
      %5152 = vmatpush1.bf16.msra.mxu0 %v4981
      %5153 = vmatprep.subr.bf16.mxu0 0
      %5154 = vmatpush1.bf16.msra.mxu0 %v4982
      %5155 = vmatprep.subr.bf16.mxu0 0
      %5156 = vmatpush1.bf16.msra.mxu0 %v4983
      %5157 = vmatprep.subr.bf16.mxu0 0
      %5158 = vmatpush1.bf16.msra.mxu0 %v4984
      %5159 = vmatprep.subr.bf16.mxu0 0
      %5160 = vmatpush1.bf16.msra.mxu0 %v4985
      %5161 = vmatprep.subr.bf16.mxu0 0
      %5162 = vmatpush1.bf16.msra.mxu0 %v4986
      %5163 = vmatprep.subr.bf16.mxu0 0
      %5164 = vmatpush1.bf16.msra.mxu0 %v4987
      %5165 = vmatprep.subr.bf16.mxu0 0
      %5166 = vmatpush1.bf16.msra.mxu0 %v4988
      %5167 = vmatprep.subr.bf16.mxu0 0
      %5168 = vmatpush1.bf16.msra.mxu0 %v4989
      %5169 = vmatprep.subr.bf16.mxu0 0
      %5170 = vmatpush1.bf16.msra.mxu0 %v4990
      %5171 = vmatprep.subr.bf16.mxu0 0
      %5172 = vmatpush1.bf16.msra.mxu0 %v4991
      %5173 = vmatprep.mubr.bf16.mxu0 %v4711
      %5174 = vmatmul.mubr.bf16.gmra.mrb[0].mxu0 %v4710
      %v5175 = vpop.f32.mrb[0].mxu0
      %v5176 = vadd.f32 %v5087, %v5175
      %v5177 = vpop.f32.mrb[0].mxu0
      %v5178 = vpop.f32.mrb[0].mxu0
      %v5179 = vadd.f32 %v5090, %v5178
      %v5180 = vpop.f32.mrb[0].mxu0
      %5181 = vmatprep.mubr.bf16.mxu0 %v4716
      %5182 = vmatmul.mubr.bf16.gmra.mrb[0].mxu0 %v4715
      %v5183 = vpop.f32.mrb[0].mxu0
      %v5184 = vadd.f32 %v5095, %v5183
      %v5185 = vpop.f32.mrb[0].mxu0
      %v5186 = vpop.f32.mrb[0].mxu0
      %v5187 = vadd.f32 %v5098, %v5186
      %v5188 = vpop.f32.mrb[0].mxu0
      %5189 = vmatprep.mubr.bf16.mxu0 %v4721
      %5190 = vmatmul.mubr.bf16.gmra.mrb[0].mxu0 %v4720
      %v5191 = vpop.f32.mrb[0].mxu0
      %v5192 = vadd.f32 %v5103, %v5191
      %v5193 = vpop.f32.mrb[0].mxu0
      %v5194 = vpop.f32.mrb[0].mxu0
      %v5195 = vadd.f32 %v5106, %v5194
      %v5196 = vpop.f32.mrb[0].mxu0
      %5197 = vmatprep.mubr.bf16.mxu0 %v4726
      %5198 = vmatmul.mubr.bf16.gmra.mrb[0].mxu0 %v4725
      %v5199 = vpop.f32.mrb[0].mxu0
      %v5200 = vadd.f32 %v5111, %v5199
      %v5201 = vpop.f32.mrb[0].mxu0
      %v5202 = vpop.f32.mrb[0].mxu0
      %v5203 = vadd.f32 %v5114, %v5202
      %v5204 = vpop.f32.mrb[0].mxu0
      %5205 = vmatprep.mubr.bf16.mxu0 %v4731
      %5206 = vmatmul.mubr.bf16.gmra.mrb[0].mxu0 %v4730
      %v5207 = vpop.f32.mrb[0].mxu0
      %v5208 = vadd.f32 %v5119, %v5207
      %v5209 = vpop.f32.mrb[0].mxu0
      %v5210 = vpop.f32.mrb[0].mxu0
      %v5211 = vadd.f32 %v5122, %v5210
      %v5212 = vpop.f32.mrb[0].mxu0
      %5213 = vmatprep.mubr.bf16.mxu0 %v4736
      %5214 = vmatmul.mubr.bf16.gmra.mrb[0].mxu0 %v4735
      %v5215 = vpop.f32.mrb[0].mxu0
      %v5216 = vadd.f32 %v5127, %v5215
      %v5217 = vpop.f32.mrb[0].mxu0
      %v5218 = vpop.f32.mrb[0].mxu0
      %v5219 = vadd.f32 %v5130, %v5218
      %v5220 = vpop.f32.mrb[0].mxu0
      %5221 = vmatprep.mubr.bf16.mxu0 %v4741
      %5222 = vmatmul.mubr.bf16.gmra.mrb[0].mxu0 %v4740
      %v5223 = vpop.f32.mrb[0].mxu0
      %v5224 = vadd.f32 %v5135, %v5223
      %v5225 = vpop.f32.mrb[0].mxu0
      %v5226 = vpop.f32.mrb[0].mxu0
      %v5227 = vadd.f32 %v5138, %v5226
      %v5228 = vpop.f32.mrb[0].mxu0
      %5229 = vdwg.mxu0
      %5230 = vmatprep.subr.bf16.mxu0 0
      %5231 = vmatpush1.bf16.msra.mxu0 %v4992
      %5232 = vmatprep.subr.bf16.mxu0 0
      %5233 = vmatpush1.bf16.msra.mxu0 %v4993
      %5234 = vmatprep.subr.bf16.mxu0 0
      %5235 = vmatpush1.bf16.msra.mxu0 %v4994
      %5236 = vmatprep.subr.bf16.mxu0 0
      %5237 = vmatpush1.bf16.msra.mxu0 0
      %5238 = vmatprep.subr.bf16.mxu0 0
      %5239 = vmatpush1.bf16.msra.mxu0 0
      %5240 = vmatprep.subr.bf16.mxu0 0
      %5241 = vmatpush1.bf16.msra.mxu0 0
      %5242 = vmatprep.subr.bf16.mxu0 0
      %5243 = vmatpush1.bf16.msra.mxu0 0
      %5244 = vmatprep.subr.bf16.mxu0 0
      %5245 = vmatpush1.bf16.msra.mxu0 0
      %5246 = vmatprep.subr.bf16.mxu0 0
      %5247 = vmatpush1.bf16.msra.mxu0 0
      %5248 = vmatprep.subr.bf16.mxu0 0
      %5249 = vmatpush1.bf16.msra.mxu0 0
      %5250 = vmatprep.subr.bf16.mxu0 0
      %5251 = vmatpush1.bf16.msra.mxu0 0
      %5252 = vmatprep.subr.bf16.mxu0 0
      %5253 = vmatpush1.bf16.msra.mxu0 0
      %5254 = vmatprep.subr.bf16.mxu0 0
      %5255 = vmatpush1.bf16.msra.mxu0 0
      %5256 = vmatprep.subr.bf16.mxu0 0
      %5257 = vmatpush1.bf16.msra.mxu0 0
      %5258 = vmatprep.subr.bf16.mxu0 0
      %5259 = vmatpush1.bf16.msra.mxu0 0
      %5260 = vmatprep.subr.bf16.mxu0 0
      %5261 = vmatpush1.bf16.msra.mxu0 0
      %5262 = vmatprep.mubr.bf16.mxu0 0
      %5263 = vmatmul.mubr.bf16.gmra.mrb[0].mxu0 %v5032
      %v5264 = vpop.f32.mrb[0].mxu0
      %v5265 = vadd.f32 %v5176, %v5264
      %v5266 = vpop.f32.mrb[0].mxu0
      %v5267 = vpop.f32.mrb[0].mxu0
      %v5268 = vadd.f32 %v5179, %v5267
      %v5269 = vpop.f32.mrb[0].mxu0
      %5270 = vmatprep.mubr.bf16.mxu0 0
      %5271 = vmatmul.mubr.bf16.gmra.mrb[0].mxu0 %v5035
      %v5272 = vpop.f32.mrb[0].mxu0
      %v5273 = vadd.f32 %v5184, %v5272
      %v5274 = vpop.f32.mrb[0].mxu0
      %v5275 = vpop.f32.mrb[0].mxu0
      %v5276 = vadd.f32 %v5187, %v5275
      %v5277 = vpop.f32.mrb[0].mxu0
      %5278 = vmatprep.mubr.bf16.mxu0 0
      %5279 = vmatmul.mubr.bf16.gmra.mrb[0].mxu0 %v5038
      %v5280 = vpop.f32.mrb[0].mxu0
      %v5281 = vadd.f32 %v5192, %v5280
      %v5282 = vpop.f32.mrb[0].mxu0
      %v5283 = vpop.f32.mrb[0].mxu0
      %v5284 = vadd.f32 %v5195, %v5283
      %v5285 = vpop.f32.mrb[0].mxu0
      %5286 = vmatprep.mubr.bf16.mxu0 0
      %5287 = vmatmul.mubr.bf16.gmra.mrb[0].mxu0 %v5041
      %v5288 = vpop.f32.mrb[0].mxu0
      %v5289 = vadd.f32 %v5200, %v5288
      %v5290 = vpop.f32.mrb[0].mxu0
      %v5291 = vpop.f32.mrb[0].mxu0
      %v5292 = vadd.f32 %v5203, %v5291
      %v5293 = vpop.f32.mrb[0].mxu0
      %5294 = vmatprep.mubr.bf16.mxu0 0
      %5295 = vmatmul.mubr.bf16.gmra.mrb[0].mxu0 %v5044
      %v5296 = vpop.f32.mrb[0].mxu0
      %v5297 = vadd.f32 %v5208, %v5296
      %v5298 = vpop.f32.mrb[0].mxu0
      %v5299 = vpop.f32.mrb[0].mxu0
      %v5300 = vadd.f32 %v5211, %v5299
      %v5301 = vpop.f32.mrb[0].mxu0
      %5302 = vmatprep.mubr.bf16.mxu0 0
      %5303 = vmatmul.mubr.bf16.gmra.mrb[0].mxu0 %v5047
      %v5304 = vpop.f32.mrb[0].mxu0
      %v5305 = vadd.f32 %v5216, %v5304
      %v5306 = vpop.f32.mrb[0].mxu0
      %v5307 = vpop.f32.mrb[0].mxu0
      %v5308 = vadd.f32 %v5219, %v5307
      %v5309 = vpop.f32.mrb[0].mxu0
      %5310 = vmatprep.mubr.bf16.mxu0 0
      %5311 = vmatmul.mubr.bf16.gmra.mrb[0].mxu0 %v5050
      %v5312 = vpop.f32.mrb[0].mxu0
      %v5313 = vadd.f32 %v5224, %v5312
      %v5314 = vpop.f32.mrb[0].mxu0
      %v5315 = vpop.f32.mrb[0].mxu0
      %v5316 = vadd.f32 %v5227, %v5315
      %v5317 = vpop.f32.mrb[0].mxu0
      %5318 = vdwg.mxu0
      %v5319 = vmax.f32 %v5265, 0.0
      %v5320 = vmax.f32 %v5268, 0.0
      %v5321 = vmax.f32 %v5273, 0.0
      %v5322 = vmax.f32 %v5276, 0.0
      %v5323 = vmax.f32 %v5281, 0.0
      %v5324 = vmax.f32 %v5284, 0.0
      %v5325 = vmax.f32 %v5289, 0.0
      %v5326 = vmax.f32 %v5292, 0.0
      %v5327 = vmax.f32 %v5297, 0.0
      %v5328 = vmax.f32 %v5300, 0.0
      %v5329 = vmax.f32 %v5305, 0.0
      %v5330 = vmax.f32 %v5308, 0.0
      %v5331 = vmax.f32 %v5313, 0.0
      %v5332 = vmax.f32 %v5316, 0.0
      %v5333 = vpack.c.bf16 %v5320, %v5319
      %v5334 = vpack.c.bf16 %v5322, %v5321
      %v5335 = vpack.c.bf16 %v5324, %v5323
      %v5336 = vpack.c.bf16 %v5326, %v5325
      %v5337 = vpack.c.bf16 %v5328, %v5327
      %v5338 = vpack.c.bf16 %v5330, %v5329
      %v5339 = vpack.c.bf16 %v5332, %v5331
      %v5341 = vunpack.c.l.b16 %v5333
      %v5342 = vunpack.c.h.b16 %v5333
      %v5343 = vpack.c.b16 %v5341, %v5341
      %v5344 = vpack.c.b16 %v5342, %v5342
      %5347 = vst.msk [vmem:[#allocation5] sm:$0xf] %vm3319, %v5343
      %vm5348 = vcmask 516096
      %vm5349 = vsmask.f32 256
      %vm5350 = vmand %vm5348, %vm5349
      %v5351 = vld [vmem:[#allocation5 + $0x4] sm:$0x1]
      %v5352 = vsel %vm5350, %v5344, %v5351
      %5353 = vst [vmem:[#allocation5 + $0x4] sm:$0x1] %v5352
      %v5355 = vunpack.c.l.b16 %v5334
      %v5356 = vunpack.c.h.b16 %v5334
      %v5357 = vpack.c.b16 %v5355, %v5355
      %v5358 = vpack.c.b16 %v5356, %v5356
      %s5361 = scalar_lea.vmem [#allocation5], 32
      %5362 = vst.msk [vmem:[%s5361] sm:$0xf] %vm3319, %v5357
      %v5363 = vld [vmem:[%s5361 + $0x4] sm:$0x1]
      %v5364 = vsel %vm5350, %v5358, %v5363
      %5365 = vst [vmem:[%s5361 + $0x4] sm:$0x1] %v5364
      %v5367 = vunpack.c.l.b16 %v5335
      %v5368 = vunpack.c.h.b16 %v5335
      %v5369 = vpack.c.b16 %v5367, %v5367
      %v5370 = vpack.c.b16 %v5368, %v5368
      %s5373 = scalar_lea.vmem [#allocation5], 8
      %5374 = vst.msk [vmem:[%s5373] sm:$0xf] %vm3319, %v5369
      %v5375 = vld [vmem:[%s5373 + $0x4] sm:$0x1]
      %v5376 = vsel %vm5350, %v5370, %v5375
      %5377 = vst [vmem:[%s5373 + $0x4] sm:$0x1] %v5376
      %v5379 = vunpack.c.l.b16 %v5336
      %v5380 = vunpack.c.h.b16 %v5336
      %v5381 = vpack.c.b16 %v5379, %v5379
      %v5382 = vpack.c.b16 %v5380, %v5380
      %s5385 = scalar_lea.vmem [#allocation5], 40
      %5386 = vst.msk [vmem:[%s5385] sm:$0xf] %vm3319, %v5381
      %v5387 = vld [vmem:[%s5385 + $0x4] sm:$0x1]
      %v5388 = vsel %vm5350, %v5382, %v5387
      %5389 = vst [vmem:[%s5385 + $0x4] sm:$0x1] %v5388
      %v5391 = vunpack.c.l.b16 %v5337
      %v5392 = vunpack.c.h.b16 %v5337
      %v5393 = vpack.c.b16 %v5391, %v5391
      %v5394 = vpack.c.b16 %v5392, %v5392
      %s5397 = scalar_lea.vmem [#allocation5], 16
      %5398 = vst.msk [vmem:[%s5397] sm:$0xf] %vm3319, %v5393
      %v5399 = vld [vmem:[%s5397 + $0x4] sm:$0x1]
      %v5400 = vsel %vm5350, %v5394, %v5399
      %5401 = vst [vmem:[%s5397 + $0x4] sm:$0x1] %v5400
      %v5403 = vunpack.c.l.b16 %v5338
      %v5404 = vunpack.c.h.b16 %v5338
      %v5405 = vpack.c.b16 %v5403, %v5403
      %v5406 = vpack.c.b16 %v5404, %v5404
      %s5409 = scalar_lea.vmem [#allocation5], 48
      %5410 = vst.msk [vmem:[%s5409] sm:$0xf] %vm3319, %v5405
      %v5411 = vld [vmem:[%s5409 + $0x4] sm:$0x1]
      %v5412 = vsel %vm5350, %v5406, %v5411
      %5413 = vst [vmem:[%s5409 + $0x4] sm:$0x1] %v5412
      %v5415 = vunpack.c.l.b16 %v5339
      %v5416 = vunpack.c.h.b16 %v5339
      %v5417 = vpack.c.b16 %v5415, %v5415
      %v5418 = vpack.c.b16 %v5416, %v5416
      %s5421 = scalar_lea.vmem [#allocation5], 24
      %5422 = vst.msk [vmem:[%s5421] sm:$0xf] %vm3319, %v5417
      %v5423 = vld [vmem:[%s5421 + $0x4] sm:$0x1]
      %v5424 = vsel %vm5350, %v5418, %v5423
      %5425 = vst [vmem:[%s5421 + $0x4] sm:$0x1] %v5424
      %v5426 = vld [vmem:[#allocation5] sm:$0xf]
      %v5427 = vld [vmem:[#allocation5 + $0x8] sm:$0xf]
      %vm5428 = vcmask 519168
      %vm5429 = vsmask.f32 3328
      %vm5430 = vmand %vm5428, %vm5429
      %v5431 = vld [vmem:[#allocation6] sm:$0xf]
      %v5432 = vsel %vm5430, %v5426, %v5431
      %5433 = vst [vmem:[#allocation6] sm:$0xf] %v5432
      %v5434 = vld [vmem:[#allocation6 + $0x38] sm:$0xf]
      %v5435 = vsel %vm5430, %v5427, %v5434
      %5436 = vst [vmem:[#allocation6 + $0x38] sm:$0xf] %v5435
      %v5437 = vld [vmem:[#allocation5] sm:$0xf]
      %v5438 = vld [vmem:[#allocation5 + $0x8] sm:$0xf]
      %v5441 = vunpack.c.l.b16 %v5437
      %v5442 = vunpack.c.l.b16 %v5438
      %v5443 = vpack.c.b16 %v5441, %v5441
      %v5444 = vpack.c.b16 %v5442, %v5442
      %v5446 = vshrl.u32 %v5443, 16
      %v5448 = vshll.u32 %v5443, 16
      %v5450 = vrot.slane %v5448, 1
      %v5451 = vor.u32 %v5446, %v5450
      %v5453 = vshrl.u32 %v5444, 16
      %v5455 = vshll.u32 %v5444, 16
      %v5457 = vrot.slane %v5455, 1
      %v5458 = vor.u32 %v5453, %v5457
      %5459 = vrot.lane.b32.xlu0 %v5451, 64
      %v5460 = vpop.permute.xlu0 %5459
      %5461 = vrot.lane.b32.xlu0 %v5458, 64
      %v5462 = vpop.permute.xlu0 %5461
      %vm5465 = vcmask 1043968
      %vm5466 = vmand %vm5465, %vm5429
      %v5467 = vld [vmem:[#allocation6] sm:$0xf]
      %v5468 = vsel %vm5466, %v5460, %v5467
      %5469 = vst [vmem:[#allocation6] sm:$0xf] %v5468
      %v5470 = vld [vmem:[#allocation6 + $0x38] sm:$0xf]
      %v5471 = vsel %vm5466, %v5462, %v5470
      %5472 = vst [vmem:[#allocation6 + $0x38] sm:$0xf] %v5471
      %v5473 = vld [vmem:[#allocation5] sm:$0xe]
      %v5474 = vld [vmem:[#allocation5 + $0x4] sm:$0x1]
      %v5475 = vld [vmem:[#allocation5 + $0x8] sm:$0xe]
      %v5476 = vld [vmem:[#allocation5 + $0xc] sm:$0x1]
      %v5481 = vunpack.c.l.b16 %v5473
      %v5482 = vunpack.c.l.b16 %v5474
      %v5483 = vunpack.c.l.b16 %v5475
      %v5484 = vunpack.c.l.b16 %v5476
      %v5485 = vpack.c.b16 %v5482, %v5481
      %v5486 = vpack.c.b16 %v5484, %v5483
      %v5487 = vrot.slane %v5485, 1
      %v5488 = vrot.slane %v5486, 1
      %vm5491 = vcmask 257024
      %vm5492 = vmand %vm5491, %vm5429
      %v5493 = vld [vmem:[#allocation6 + $0x8] sm:$0xf]
      %v5494 = vsel %vm5492, %v5487, %v5493
      %5495 = vst [vmem:[#allocation6 + $0x8] sm:$0xf] %v5494
      %v5496 = vld [vmem:[#allocation6 + $0x40] sm:$0xf]
      %v5497 = vsel %vm5492, %v5488, %v5496
      %5498 = vst [vmem:[#allocation6 + $0x40] sm:$0xf] %v5497
      %v5499 = vld [vmem:[%s5361] sm:$0xf]
      %v5500 = vld [vmem:[%s5361 + $0x8] sm:$0xf]
      %v5503 = vunpack.c.l.b16 %v5499
      %v5504 = vunpack.c.l.b16 %v5500
      %v5505 = vpack.c.b16 %v5503, %v5503
      %v5506 = vpack.c.b16 %v5504, %v5504
      %5507 = vrot.lane.b32.xlu0 %v5505, 32
      %v5508 = vpop.permute.xlu0 %5507
      %5509 = vrot.lane.b32.xlu0 %v5506, 32
      %v5510 = vpop.permute.xlu0 %5509
      %vm5513 = vcmask 781568
      %vm5514 = vmand %vm5513, %vm5429
      %v5515 = vld [vmem:[#allocation6 + $0x8] sm:$0xf]
      %v5516 = vsel %vm5514, %v5508, %v5515
      %5517 = vst [vmem:[#allocation6 + $0x8] sm:$0xf] %v5516
      %v5518 = vld [vmem:[#allocation6 + $0x40] sm:$0xf]
      %v5519 = vsel %vm5514, %v5510, %v5518
      %5520 = vst [vmem:[#allocation6 + $0x40] sm:$0xf] %v5519
      %v5521 = vld [vmem:[%s5361] sm:$0xf]
      %v5522 = vld [vmem:[%s5361 + $0x8] sm:$0xf]
      %v5525 = vunpack.c.l.b16 %v5521
      %v5526 = vunpack.c.l.b16 %v5522
      %v5527 = vpack.c.b16 %v5525, %v5525
      %v5528 = vpack.c.b16 %v5526, %v5526
      %v5530 = vshrl.u32 %v5527, 16
      %v5532 = vshll.u32 %v5527, 16
      %v5534 = vrot.slane %v5532, 1
      %v5535 = vor.u32 %v5530, %v5534
      %v5537 = vshrl.u32 %v5528, 16
      %v5539 = vshll.u32 %v5528, 16
      %v5541 = vrot.slane %v5539, 1
      %v5542 = vor.u32 %v5537, %v5541
      %5543 = vrot.lane.b32.xlu0 %v5535, 96
      %v5544 = vpop.permute.xlu0 %5543
      %5545 = vrot.lane.b32.xlu0 %v5542, 96
      %v5546 = vpop.permute.xlu0 %5545
      %vm5549 = vcmask 1044224
      %vm5550 = vmand %vm5549, %vm5429
      %v5551 = vld [vmem:[#allocation6 + $0x8] sm:$0xf]
      %v5552 = vsel %vm5550, %v5544, %v5551
      %5553 = vst [vmem:[#allocation6 + $0x8] sm:$0xf] %v5552
      %v5554 = vld [vmem:[#allocation6 + $0x10] sm:$0xf]
      %v5555 = vsel %vm5492, %v5544, %v5554
      %5556 = vst [vmem:[#allocation6 + $0x10] sm:$0xf] %v5555
      %v5557 = vld [vmem:[#allocation6 + $0x40] sm:$0xf]
      %v5558 = vsel %vm5550, %v5546, %v5557
      %5559 = vst [vmem:[#allocation6 + $0x40] sm:$0xf] %v5558
      %v5560 = vld [vmem:[#allocation6 + $0x48] sm:$0xf]
      %v5561 = vsel %vm5492, %v5546, %v5560
      %5562 = vst [vmem:[#allocation6 + $0x48] sm:$0xf] %v5561
      %v5563 = vld [vmem:[%s5361] sm:$0xe]
      %v5564 = vld [vmem:[%s5361 + $0x4] sm:$0x1]
      %v5565 = vld [vmem:[%s5361 + $0x8] sm:$0xe]
      %v5566 = vld [vmem:[%s5361 + $0xc] sm:$0x1]
      %v5571 = vunpack.c.l.b16 %v5563
      %v5572 = vunpack.c.l.b16 %v5564
      %v5573 = vunpack.c.l.b16 %v5565
      %v5574 = vunpack.c.l.b16 %v5566
      %v5575 = vpack.c.b16 %v5572, %v5571
      %v5576 = vpack.c.b16 %v5574, %v5573
      %v5577 = vrot.slane %v5575, 1
      %v5578 = vrot.slane %v5576, 1
      %5579 = vrot.lane.b32.xlu0 %v5577, 32
      %v5580 = vpop.permute.xlu0 %5579
      %5581 = vrot.lane.b32.xlu0 %v5578, 32
      %v5582 = vpop.permute.xlu0 %5581
      %vm5585 = vcmask 519424
      %vm5586 = vmand %vm5585, %vm5429
      %v5587 = vld [vmem:[#allocation6 + $0x10] sm:$0xf]
      %v5588 = vsel %vm5586, %v5580, %v5587
      %5589 = vst [vmem:[#allocation6 + $0x10] sm:$0xf] %v5588
      %v5590 = vld [vmem:[#allocation6 + $0x48] sm:$0xf]
      %v5591 = vsel %vm5586, %v5582, %v5590
      %5592 = vst [vmem:[#allocation6 + $0x48] sm:$0xf] %v5591
      %v5593 = vld [vmem:[%s5373] sm:$0xf]
      %v5594 = vld [vmem:[%s5373 + $0x8] sm:$0xf]
      %v5597 = vunpack.c.l.b16 %v5593
      %v5598 = vunpack.c.l.b16 %v5594
      %v5599 = vpack.c.b16 %v5597, %v5597
      %v5600 = vpack.c.b16 %v5598, %v5598
      %5601 = vrot.lane.b32.xlu0 %v5599, 64
      %v5602 = vpop.permute.xlu0 %5601
      %5603 = vrot.lane.b32.xlu0 %v5600, 64
      %v5604 = vpop.permute.xlu0 %5603
      %v5607 = vld [vmem:[#allocation6 + $0x10] sm:$0xf]
      %v5608 = vsel %vm5466, %v5602, %v5607
      %5609 = vst [vmem:[#allocation6 + $0x10] sm:$0xf] %v5608
      %v5610 = vld [vmem:[#allocation6 + $0x48] sm:$0xf]
      %v5611 = vsel %vm5466, %v5604, %v5610
      %5612 = vst [vmem:[#allocation6 + $0x48] sm:$0xf] %v5611
      %v5613 = vld [vmem:[%s5373] sm:$0xf]
      %v5614 = vld [vmem:[%s5373 + $0x8] sm:$0xf]
      %v5617 = vunpack.c.l.b16 %v5613
      %v5618 = vunpack.c.l.b16 %v5614
      %v5619 = vpack.c.b16 %v5617, %v5617
      %v5620 = vpack.c.b16 %v5618, %v5618
      %v5622 = vshrl.u32 %v5619, 16
      %v5624 = vshll.u32 %v5619, 16
      %v5626 = vrot.slane %v5624, 1
      %v5627 = vor.u32 %v5622, %v5626
      %v5629 = vshrl.u32 %v5620, 16
      %v5631 = vshll.u32 %v5620, 16
      %v5633 = vrot.slane %v5631, 1
      %v5634 = vor.u32 %v5629, %v5633
      %v5637 = vld [vmem:[#allocation6 + $0x18] sm:$0xf]
      %v5638 = vsel %vm5430, %v5627, %v5637
      %5639 = vst [vmem:[#allocation6 + $0x18] sm:$0xf] %v5638
      %v5640 = vld [vmem:[#allocation6 + $0x50] sm:$0xf]
      %v5641 = vsel %vm5430, %v5634, %v5640
      %5642 = vst [vmem:[#allocation6 + $0x50] sm:$0xf] %v5641
      %v5643 = vld [vmem:[%s5373] sm:$0xe]
      %v5644 = vld [vmem:[%s5373 + $0x4] sm:$0x1]
      %v5645 = vld [vmem:[%s5373 + $0x8] sm:$0xe]
      %v5646 = vld [vmem:[%s5373 + $0xc] sm:$0x1]
      %v5651 = vunpack.c.l.b16 %v5643
      %v5652 = vunpack.c.l.b16 %v5644
      %v5653 = vunpack.c.l.b16 %v5645
      %v5654 = vunpack.c.l.b16 %v5646
      %v5655 = vpack.c.b16 %v5652, %v5651
      %v5656 = vpack.c.b16 %v5654, %v5653
      %v5657 = vrot.slane %v5655, 1
      %v5658 = vrot.slane %v5656, 1
      %5659 = vrot.lane.b32.xlu0 %v5657, 64
      %v5660 = vpop.permute.xlu0 %5659
      %5661 = vrot.lane.b32.xlu0 %v5658, 64
      %v5662 = vpop.permute.xlu0 %5661
      %vm5665 = vcmask 781824
      %vm5666 = vmand %vm5665, %vm5429
      %v5667 = vld [vmem:[#allocation6 + $0x18] sm:$0xf]
      %v5668 = vsel %vm5666, %v5660, %v5667
      %5669 = vst [vmem:[#allocation6 + $0x18] sm:$0xf] %v5668
      %v5670 = vld [vmem:[#allocation6 + $0x50] sm:$0xf]
      %v5671 = vsel %vm5666, %v5662, %v5670
      %5672 = vst [vmem:[#allocation6 + $0x50] sm:$0xf] %v5671
      %v5673 = vld [vmem:[%s5385] sm:$0xf]
      %v5674 = vld [vmem:[%s5385 + $0x8] sm:$0xf]
      %v5677 = vunpack.c.l.b16 %v5673
      %v5678 = vunpack.c.l.b16 %v5674
      %v5679 = vpack.c.b16 %v5677, %v5677
      %v5680 = vpack.c.b16 %v5678, %v5678
      %5681 = vrot.lane.b32.xlu0 %v5679, 96
      %v5682 = vpop.permute.xlu0 %5681
      %5683 = vrot.lane.b32.xlu0 %v5680, 96
      %v5684 = vpop.permute.xlu0 %5683
      %v5687 = vld [vmem:[#allocation6 + $0x18] sm:$0xf]
      %v5688 = vsel %vm5550, %v5682, %v5687
      %5689 = vst [vmem:[#allocation6 + $0x18] sm:$0xf] %v5688
      %v5690 = vld [vmem:[#allocation6 + $0x20] sm:$0xf]
      %v5691 = vsel %vm5492, %v5682, %v5690
      %5692 = vst [vmem:[#allocation6 + $0x20] sm:$0xf] %v5691
      %v5693 = vld [vmem:[#allocation6 + $0x50] sm:$0xf]
      %v5694 = vsel %vm5550, %v5684, %v5693
      %5695 = vst [vmem:[#allocation6 + $0x50] sm:$0xf] %v5694
      %v5696 = vld [vmem:[#allocation6 + $0x58] sm:$0xf]
      %v5697 = vsel %vm5492, %v5684, %v5696
      %5698 = vst [vmem:[#allocation6 + $0x58] sm:$0xf] %v5697
      %v5699 = vld [vmem:[%s5385] sm:$0xf]
      %v5700 = vld [vmem:[%s5385 + $0x8] sm:$0xf]
      %v5703 = vunpack.c.l.b16 %v5699
      %v5704 = vunpack.c.l.b16 %v5700
      %v5705 = vpack.c.b16 %v5703, %v5703
      %v5706 = vpack.c.b16 %v5704, %v5704
      %v5708 = vshrl.u32 %v5705, 16
      %v5710 = vshll.u32 %v5705, 16
      %v5712 = vrot.slane %v5710, 1
      %v5713 = vor.u32 %v5708, %v5712
      %v5715 = vshrl.u32 %v5706, 16
      %v5717 = vshll.u32 %v5706, 16
      %v5719 = vrot.slane %v5717, 1
      %v5720 = vor.u32 %v5715, %v5719
      %5721 = vrot.lane.b32.xlu0 %v5713, 32
      %v5722 = vpop.permute.xlu0 %5721
      %5723 = vrot.lane.b32.xlu0 %v5720, 32
      %v5724 = vpop.permute.xlu0 %5723
      %v5727 = vld [vmem:[#allocation6 + $0x20] sm:$0xf]
      %v5728 = vsel %vm5514, %v5722, %v5727
      %5729 = vst [vmem:[#allocation6 + $0x20] sm:$0xf] %v5728
      %v5730 = vld [vmem:[#allocation6 + $0x58] sm:$0xf]
      %v5731 = vsel %vm5514, %v5724, %v5730
      %5732 = vst [vmem:[#allocation6 + $0x58] sm:$0xf] %v5731
      %v5733 = vld [vmem:[%s5385] sm:$0xe]
      %v5734 = vld [vmem:[%s5385 + $0x4] sm:$0x1]
      %v5735 = vld [vmem:[%s5385 + $0x8] sm:$0xe]
      %v5736 = vld [vmem:[%s5385 + $0xc] sm:$0x1]
      %v5741 = vunpack.c.l.b16 %v5733
      %v5742 = vunpack.c.l.b16 %v5734
      %v5743 = vunpack.c.l.b16 %v5735
      %v5744 = vunpack.c.l.b16 %v5736
      %v5745 = vpack.c.b16 %v5742, %v5741
      %v5746 = vpack.c.b16 %v5744, %v5743
      %v5747 = vrot.slane %v5745, 1
      %v5748 = vrot.slane %v5746, 1
      %5749 = vrot.lane.b32.xlu0 %v5747, 96
      %v5750 = vpop.permute.xlu0 %5749
      %5751 = vrot.lane.b32.xlu0 %v5748, 96
      %v5752 = vpop.permute.xlu0 %5751
      %v5755 = vld [vmem:[#allocation6 + $0x20] sm:$0xf]
      %v5756 = vsel %vm5550, %v5750, %v5755
      %5757 = vst [vmem:[#allocation6 + $0x20] sm:$0xf] %v5756
      %v5758 = vld [vmem:[#allocation6 + $0x58] sm:$0xf]
      %v5759 = vsel %vm5550, %v5752, %v5758
      %5760 = vst [vmem:[#allocation6 + $0x58] sm:$0xf] %v5759
      %v5761 = vld [vmem:[%s5397] sm:$0xf]
      %v5762 = vld [vmem:[%s5397 + $0x8] sm:$0xf]
      %v5763 = vld [vmem:[#allocation6 + $0x28] sm:$0xf]
      %v5764 = vsel %vm5430, %v5761, %v5763
      %5765 = vst [vmem:[#allocation6 + $0x28] sm:$0xf] %v5764
      %v5766 = vld [vmem:[#allocation6 + $0x60] sm:$0xf]
      %v5767 = vsel %vm5430, %v5762, %v5766
      %5768 = vst [vmem:[#allocation6 + $0x60] sm:$0xf] %v5767
      %v5769 = vld [vmem:[%s5397] sm:$0xf]
      %v5770 = vld [vmem:[%s5397 + $0x8] sm:$0xf]
      %v5773 = vunpack.c.l.b16 %v5769
      %v5774 = vunpack.c.l.b16 %v5770
      %v5775 = vpack.c.b16 %v5773, %v5773
      %v5776 = vpack.c.b16 %v5774, %v5774
      %v5778 = vshrl.u32 %v5775, 16
      %v5780 = vshll.u32 %v5775, 16
      %v5782 = vrot.slane %v5780, 1
      %v5783 = vor.u32 %v5778, %v5782
      %v5785 = vshrl.u32 %v5776, 16
      %v5787 = vshll.u32 %v5776, 16
      %v5789 = vrot.slane %v5787, 1
      %v5790 = vor.u32 %v5785, %v5789
      %5791 = vrot.lane.b32.xlu0 %v5783, 64
      %v5792 = vpop.permute.xlu0 %5791
      %5793 = vrot.lane.b32.xlu0 %v5790, 64
      %v5794 = vpop.permute.xlu0 %5793
      %v5797 = vld [vmem:[#allocation6 + $0x28] sm:$0xf]
      %v5798 = vsel %vm5466, %v5792, %v5797
      %5799 = vst [vmem:[#allocation6 + $0x28] sm:$0xf] %v5798
      %v5800 = vld [vmem:[#allocation6 + $0x60] sm:$0xf]
      %v5801 = vsel %vm5466, %v5794, %v5800
      %5802 = vst [vmem:[#allocation6 + $0x60] sm:$0xf] %v5801
      %v5803 = vld [vmem:[%s5397] sm:$0xe]
      %v5804 = vld [vmem:[%s5397 + $0x4] sm:$0x1]
      %v5805 = vld [vmem:[%s5397 + $0x8] sm:$0xe]
      %v5806 = vld [vmem:[%s5397 + $0xc] sm:$0x1]
      %v5811 = vunpack.c.l.b16 %v5803
      %v5812 = vunpack.c.l.b16 %v5804
      %v5813 = vunpack.c.l.b16 %v5805
      %v5814 = vunpack.c.l.b16 %v5806
      %v5815 = vpack.c.b16 %v5812, %v5811
      %v5816 = vpack.c.b16 %v5814, %v5813
      %v5817 = vrot.slane %v5815, 1
      %v5818 = vrot.slane %v5816, 1
      %v5821 = vld [vmem:[#allocation6 + $0x30] sm:$0xf]
      %v5822 = vsel %vm5492, %v5817, %v5821
      %5823 = vst [vmem:[#allocation6 + $0x30] sm:$0xf] %v5822
      %v5824 = vld [vmem:[#allocation6 + $0x68] sm:$0xf]
      %v5825 = vsel %vm5492, %v5818, %v5824
      %5826 = vst [vmem:[#allocation6 + $0x68] sm:$0xf] %v5825
      %v5827 = vld [vmem:[#allocation6] sm:$0xff]
      %v5828 = vld [vmem:[#allocation6 + $0x8] sm:$0xff]
      %v5829 = vld [vmem:[#allocation6 + $0x10] sm:$0xff]
      %v5830 = vld [vmem:[#allocation6 + $0x18] sm:$0xff]
      %v5831 = vld [vmem:[#allocation6 + $0x20] sm:$0xff]
      %v5832 = vld [vmem:[#allocation6 + $0x28] sm:$0xff]
      %v5833 = vld [vmem:[#allocation6 + $0x30] sm:$0xff]
      %v5834 = vld [vmem:[#allocation6 + $0x38] sm:$0xff]
      %v5835 = vld [vmem:[#allocation6 + $0x40] sm:$0xff]
      %v5836 = vld [vmem:[#allocation6 + $0x48] sm:$0xff]
      %v5837 = vld [vmem:[#allocation6 + $0x50] sm:$0xff]
      %v5838 = vld [vmem:[#allocation6 + $0x58] sm:$0xff]
      %v5839 = vld [vmem:[#allocation6 + $0x60] sm:$0xff]
      %v5840 = vld [vmem:[#allocation6 + $0x68] sm:$0xff]
      %v5841 = vld [vmem:[%s3] sm:$0xf]
      %v5842 = vld [vmem:[%s3 + $0x4] sm:$0xf]
      %v5843 = vld [vmem:[%s3 + $0x8] sm:$0xf]
      %v5844 = vld [vmem:[%s3 + $0xc] sm:$0xf]
      %v5845 = vld [vmem:[%s3 + $0x10] sm:$0xf]
      %v5846 = vld [vmem:[%s3 + $0x14] sm:$0xf]
      %v5847 = vld [vmem:[%s3 + $0x18] sm:$0xf]
      %v5848 = vld [vmem:[%s3 + $0x1c] sm:$0xf]
      %v5849 = vld [vmem:[%s3 + $0x20] sm:$0xf]
      %v5850 = vld [vmem:[%s3 + $0x24] sm:$0xf]
      %v5851 = vld [vmem:[%s3 + $0x28] sm:$0xf]
      %v5852 = vld [vmem:[%s3 + $0x2c] sm:$0xf]
      %v5853 = vld [vmem:[%s3 + $0x30] sm:$0xf]
      %v5854 = vld [vmem:[%s3 + $0x34] sm:$0xf]
      %v5855 = vld [vmem:[%s3 + $0x38] sm:$0xf]
      %v5856 = vld [vmem:[%s3 + $0x3c] sm:$0xf]
      %v5857 = vld [vmem:[%s3 + $0x40] sm:$0xf]
      %v5858 = vld [vmem:[%s3 + $0x44] sm:$0xf]
      %v5859 = vld [vmem:[%s3 + $0x48] sm:$0xf]
      %v5860 = vld [vmem:[%s3 + $0x4c] sm:$0xf]
      %v5861 = vld [vmem:[%s3 + $0x50] sm:$0xf]
      %v5862 = vld [vmem:[%s3 + $0x54] sm:$0xf]
      %v5863 = vld [vmem:[%s3 + $0x58] sm:$0xf]
      %v5864 = vld [vmem:[%s3 + $0x5c] sm:$0xf]
      %v5865 = vld [vmem:[%s3 + $0x60] sm:$0xf]
      %v5866 = vld [vmem:[%s3 + $0x64] sm:$0xf]
      %v5867 = vld [vmem:[%s3 + $0x68] sm:$0xf]
      %v5868 = vld [vmem:[%s3 + $0x6c] sm:$0xf]
      %v5869 = vld [vmem:[%s3 + $0x70] sm:$0xf]
      %v5870 = vld [vmem:[%s3 + $0x74] sm:$0xf]
      %v5871 = vld [vmem:[%s3 + $0x78] sm:$0xf]
      %v5872 = vld [vmem:[%s3 + $0x7c] sm:$0xf]
      %v5873 = vld [vmem:[%s3 + $0x80] sm:$0xf]
      %v5874 = vld [vmem:[%s3 + $0x84] sm:$0xf]
      %v5875 = vld [vmem:[%s3 + $0x88] sm:$0xf]
      %v5876 = vld [vmem:[%s3 + $0x8c] sm:$0xf]
      %v5877 = vld [vmem:[%s3 + $0x90] sm:$0xf]
      %v5878 = vld [vmem:[%s3 + $0x94] sm:$0xf]
      %v5879 = vld [vmem:[%s3 + $0x98] sm:$0xf]
      %v5880 = vld [vmem:[%s3 + $0x9c] sm:$0xf]
      %v5881 = vld [vmem:[%s3 + $0xa0] sm:$0xf]
      %v5882 = vld [vmem:[%s3 + $0xa4] sm:$0xf]
      %v5883 = vld [vmem:[%s3 + $0xa8] sm:$0xf]
      %v5884 = vld [vmem:[%s3 + $0xac] sm:$0xf]
      %v5885 = vld [vmem:[%s3 + $0xb0] sm:$0xf]
      %v5886 = vld [vmem:[%s3 + $0xb4] sm:$0xf]
      %v5887 = vld [vmem:[%s3 + $0xb8] sm:$0xf]
      %v5888 = vld [vmem:[%s3 + $0xbc] sm:$0xf]
      %v5889 = vld [vmem:[%s3 + $0xc0] sm:$0xf]
      %v5890 = vld [vmem:[%s3 + $0xc4] sm:$0xf]
      %v5891 = vld [vmem:[%s3 + $0xc8] sm:$0xf]
      %v5892 = vld [vmem:[%s3 + $0xcc] sm:$0xf]
      %v5893 = vld [vmem:[%s3 + $0xd0] sm:$0xf]
      %v5894 = vld [vmem:[%s3 + $0xd4] sm:$0xf]
      %v5895 = vld [vmem:[%s3 + $0xd8] sm:$0xf]
      %v5896 = vld [vmem:[%s3 + $0xdc] sm:$0xf]
      %v5897 = vld [vmem:[%s3 + $0xe0] sm:$0xf]
      %v5898 = vld [vmem:[%s3 + $0xe4] sm:$0xf]
      %v5899 = vld [vmem:[%s3 + $0xe8] sm:$0xf]
      %v5900 = vld [vmem:[%s3 + $0xec] sm:$0xf]
      %v5901 = vld [vmem:[%s3 + $0xf0] sm:$0xf]
      %v5902 = vld [vmem:[%s3 + $0xf4] sm:$0xf]
      %v5903 = vld [vmem:[%s3 + $0xf8] sm:$0xf]
      %v5904 = vld [vmem:[%s3 + $0xfc] sm:$0xf]
      %v5905 = vld [vmem:[%s3 + $0x100] sm:$0xf]
      %v5906 = vld [vmem:[%s3 + $0x104] sm:$0xf]
      %v5907 = vld [vmem:[%s3 + $0x108] sm:$0xf]
      %v5908 = vld [vmem:[%s3 + $0x10c] sm:$0xf]
      %v5909 = vld [vmem:[%s3 + $0x110] sm:$0xf]
      %v5910 = vld [vmem:[%s3 + $0x114] sm:$0xf]
      %v5911 = vld [vmem:[%s3 + $0x118] sm:$0xf]
      %v5912 = vld [vmem:[%s3 + $0x11c] sm:$0xf]
      %v5913 = vld [vmem:[%s3 + $0x120] sm:$0xf]
      %v5914 = vld [vmem:[%s3 + $0x124] sm:$0xf]
      %v5915 = vld [vmem:[%s3 + $0x128] sm:$0xf]
      %v5916 = vld [vmem:[%s3 + $0x12c] sm:$0xf]
      %v5917 = vld [vmem:[%s3 + $0x130] sm:$0xf]
      %v5918 = vld [vmem:[%s3 + $0x134] sm:$0xf]
      %v5919 = vld [vmem:[%s3 + $0x138] sm:$0xf]
      %v5920 = vld [vmem:[%s3 + $0x13c] sm:$0xf]
      %v5921 = vld [vmem:[%s3 + $0x140] sm:$0xf]
      %v5922 = vld [vmem:[%s3 + $0x144] sm:$0xf]
      %v5923 = vld [vmem:[%s3 + $0x148] sm:$0xf]
      %v5924 = vld [vmem:[%s3 + $0x14c] sm:$0xf]
      %v5925 = vld [vmem:[%s3 + $0x150] sm:$0xf]
      %v5926 = vld [vmem:[%s3 + $0x154] sm:$0xf]
      %v5927 = vld [vmem:[%s3 + $0x158] sm:$0xf]
      %v5928 = vld [vmem:[%s3 + $0x15c] sm:$0xf]
      %v5929 = vld [vmem:[%s3 + $0x160] sm:$0xf]
      %v5930 = vld [vmem:[%s3 + $0x164] sm:$0xf]
      %v5931 = vld [vmem:[%s3 + $0x168] sm:$0xf]
      %v5932 = vld [vmem:[%s3 + $0x16c] sm:$0xf]
      %v5933 = vld [vmem:[%s3 + $0x170] sm:$0xf]
      %v5934 = vld [vmem:[%s3 + $0x174] sm:$0xf]
      %v5935 = vld [vmem:[%s3 + $0x178] sm:$0xf]
      %v5936 = vld [vmem:[%s3 + $0x17c] sm:$0xf]
      %v5937 = vld [vmem:[%s3 + $0x180] sm:$0xf]
      %v5938 = vld [vmem:[%s3 + $0x184] sm:$0xf]
      %v5939 = vld [vmem:[%s3 + $0x188] sm:$0xf]
      %v5940 = vld [vmem:[%s3 + $0x18c] sm:$0xf]
      %v5941 = vld [vmem:[%s6] sm:$0x1]
      %v5943 = vlaneseq
      %v5944 = vshrl.u32 %v5943, 7
      %v5945 = vsub.s32 0, %v5944
      %v5946 = vrot.slane %v5941, %v5945
      %v6048 = vunpack.c.l.b16 %v5841
      %v6049 = vunpack.c.l.b16 %v5842
      %v6050 = vunpack.c.l.b16 %v5843
      %v6051 = vunpack.c.l.b16 %v5844
      %v6052 = vunpack.c.l.b16 %v5845
      %v6053 = vunpack.c.l.b16 %v5846
      %v6054 = vunpack.c.l.b16 %v5847
      %v6055 = vunpack.c.l.b16 %v5848
      %v6056 = vunpack.c.l.b16 %v5849
      %v6057 = vunpack.c.l.b16 %v5850
      %v6058 = vunpack.c.l.b16 %v5851
      %v6059 = vunpack.c.l.b16 %v5852
      %v6060 = vunpack.c.l.b16 %v5853
      %v6061 = vunpack.c.l.b16 %v5854
      %v6062 = vunpack.c.l.b16 %v5855
      %v6063 = vunpack.c.l.b16 %v5856
      %v6064 = vunpack.c.l.b16 %v5857
      %v6065 = vunpack.c.l.b16 %v5858
      %v6066 = vunpack.c.l.b16 %v5859
      %v6067 = vunpack.c.l.b16 %v5860
      %v6068 = vunpack.c.l.b16 %v5861
      %v6069 = vunpack.c.l.b16 %v5862
      %v6070 = vunpack.c.l.b16 %v5863
      %v6071 = vunpack.c.l.b16 %v5864
      %v6072 = vunpack.c.l.b16 %v5865
      %v6073 = vunpack.c.l.b16 %v5866
      %v6074 = vunpack.c.l.b16 %v5867
      %v6075 = vunpack.c.l.b16 %v5868
      %v6076 = vunpack.c.l.b16 %v5869
      %v6077 = vunpack.c.l.b16 %v5870
      %v6078 = vunpack.c.l.b16 %v5871
      %v6079 = vunpack.c.l.b16 %v5872
      %v6080 = vunpack.c.l.b16 %v5873
      %v6081 = vunpack.c.l.b16 %v5874
      %v6082 = vunpack.c.l.b16 %v5875
      %v6083 = vunpack.c.l.b16 %v5876
      %v6084 = vunpack.c.l.b16 %v5877
      %v6085 = vunpack.c.l.b16 %v5878
      %v6086 = vunpack.c.l.b16 %v5879
      %v6087 = vunpack.c.l.b16 %v5880
      %v6088 = vunpack.c.l.b16 %v5881
      %v6089 = vunpack.c.l.b16 %v5882
      %v6090 = vunpack.c.l.b16 %v5883
      %v6091 = vunpack.c.l.b16 %v5884
      %v6092 = vunpack.c.l.b16 %v5885
      %v6093 = vunpack.c.l.b16 %v5886
      %v6094 = vunpack.c.l.b16 %v5887
      %v6095 = vunpack.c.l.b16 %v5888
      %v6096 = vunpack.c.l.b16 %v5889
      %v6097 = vunpack.c.l.b16 %v5890
      %v6098 = vunpack.c.l.b16 %v5891
      %v6099 = vunpack.c.l.b16 %v5892
      %v6100 = vunpack.c.l.b16 %v5893
      %v6101 = vunpack.c.l.b16 %v5894
      %v6102 = vunpack.c.l.b16 %v5895
      %v6103 = vunpack.c.l.b16 %v5896
      %v6104 = vunpack.c.l.b16 %v5897
      %v6105 = vunpack.c.l.b16 %v5898
      %v6106 = vunpack.c.l.b16 %v5899
      %v6107 = vunpack.c.l.b16 %v5900
      %v6108 = vunpack.c.l.b16 %v5901
      %v6109 = vunpack.c.l.b16 %v5902
      %v6110 = vunpack.c.l.b16 %v5903
      %v6111 = vunpack.c.l.b16 %v5904
      %v6112 = vunpack.c.l.b16 %v5905
      %v6113 = vunpack.c.l.b16 %v5906
      %v6114 = vunpack.c.l.b16 %v5907
      %v6115 = vunpack.c.l.b16 %v5908
      %v6116 = vunpack.c.l.b16 %v5909
      %v6117 = vunpack.c.l.b16 %v5910
      %v6118 = vunpack.c.l.b16 %v5911
      %v6119 = vunpack.c.l.b16 %v5912
      %v6120 = vunpack.c.l.b16 %v5913
      %v6121 = vunpack.c.l.b16 %v5914
      %v6122 = vunpack.c.l.b16 %v5915
      %v6123 = vunpack.c.l.b16 %v5916
      %v6124 = vunpack.c.l.b16 %v5917
      %v6125 = vunpack.c.l.b16 %v5918
      %v6126 = vunpack.c.l.b16 %v5919
      %v6127 = vunpack.c.l.b16 %v5920
      %v6128 = vunpack.c.l.b16 %v5921
      %v6129 = vunpack.c.l.b16 %v5922
      %v6130 = vunpack.c.l.b16 %v5923
      %v6131 = vunpack.c.l.b16 %v5924
      %v6132 = vunpack.c.l.b16 %v5925
      %v6133 = vunpack.c.l.b16 %v5926
      %v6134 = vunpack.c.l.b16 %v5927
      %v6135 = vunpack.c.l.b16 %v5928
      %v6136 = vunpack.c.l.b16 %v5929
      %v6137 = vunpack.c.l.b16 %v5930
      %v6138 = vunpack.c.l.b16 %v5931
      %v6139 = vunpack.c.l.b16 %v5932
      %v6140 = vunpack.c.l.b16 %v5933
      %v6141 = vunpack.c.l.b16 %v5934
      %v6142 = vunpack.c.l.b16 %v5935
      %v6143 = vunpack.c.l.b16 %v5936
      %v6144 = vunpack.c.l.b16 %v5937
      %v6145 = vunpack.c.l.b16 %v5938
      %v6146 = vunpack.c.l.b16 %v5939
      %v6147 = vunpack.c.l.b16 %v5940
      %v6148 = vpack.c.b16 %v6049, %v6048
      %v6149 = vpack.c.b16 %v6051, %v6050
      %v6150 = vpack.c.b16 %v6053, %v6052
      %v6151 = vpack.c.b16 %v6055, %v6054
      %v6152 = vpack.c.b16 %v6057, %v6056
      %v6153 = vpack.c.b16 %v6059, %v6058
      %v6154 = vpack.c.b16 %v6061, %v6060
      %v6155 = vpack.c.b16 %v6063, %v6062
      %v6156 = vpack.c.b16 %v6065, %v6064
      %v6157 = vpack.c.b16 %v6067, %v6066
      %v6158 = vpack.c.b16 %v6069, %v6068
      %v6159 = vpack.c.b16 %v6071, %v6070
      %v6160 = vpack.c.b16 %v6073, %v6072
      %v6161 = vpack.c.b16 %v6075, %v6074
      %v6162 = vpack.c.b16 %v6077, %v6076
      %v6163 = vpack.c.b16 %v6079, %v6078
      %v6164 = vpack.c.b16 %v6081, %v6080
      %v6165 = vpack.c.b16 %v6083, %v6082
      %v6166 = vpack.c.b16 %v6085, %v6084
      %v6167 = vpack.c.b16 %v6087, %v6086
      %v6168 = vpack.c.b16 %v6089, %v6088
      %v6169 = vpack.c.b16 %v6091, %v6090
      %v6170 = vpack.c.b16 %v6093, %v6092
      %v6171 = vpack.c.b16 %v6095, %v6094
      %v6172 = vpack.c.b16 %v6097, %v6096
      %v6173 = vpack.c.b16 %v6099, %v6098
      %v6174 = vpack.c.b16 %v6101, %v6100
      %v6175 = vpack.c.b16 %v6103, %v6102
      %v6176 = vpack.c.b16 %v6105, %v6104
      %v6177 = vpack.c.b16 %v6107, %v6106
      %v6178 = vpack.c.b16 %v6109, %v6108
      %v6179 = vpack.c.b16 %v6111, %v6110
      %v6180 = vpack.c.b16 %v6113, %v6112
      %v6181 = vpack.c.b16 %v6115, %v6114
      %v6182 = vpack.c.b16 %v6117, %v6116
      %v6183 = vpack.c.b16 %v6119, %v6118
      %v6184 = vpack.c.b16 %v6121, %v6120
      %v6185 = vpack.c.b16 %v6123, %v6122
      %v6186 = vpack.c.b16 %v6125, %v6124
      %v6187 = vpack.c.b16 %v6127, %v6126
      %v6188 = vpack.c.b16 %v6129, %v6128
      %v6189 = vpack.c.b16 %v6131, %v6130
      %v6190 = vpack.c.b16 %v6133, %v6132
      %v6191 = vpack.c.b16 %v6135, %v6134
      %v6192 = vpack.c.b16 %v6137, %v6136
      %v6193 = vpack.c.b16 %v6139, %v6138
      %v6194 = vpack.c.b16 %v6141, %v6140
      %v6195 = vpack.c.b16 %v6143, %v6142
      %v6196 = vpack.c.b16 %v6145, %v6144
      %v6197 = vpack.c.b16 %v6147, %v6146
      %vm6248 = vcmask 261120
      %v6250 = vsel %vm6248, %v5833, 0
      %v6253 = vsel %vm6248, %v5840, 0
      %6255 = vmatprep.subr.bf16.mxu0 0
      %6256 = vmatpush1.bf16.msra.mxu0 %v6148
      %6257 = vmatprep.subr.bf16.mxu0 0
      %6258 = vmatpush1.bf16.msra.mxu0 %v6149
      %6259 = vmatprep.subr.bf16.mxu0 0
      %6260 = vmatpush1.bf16.msra.mxu0 %v6150
      %6261 = vmatprep.subr.bf16.mxu0 0
      %6262 = vmatpush1.bf16.msra.mxu0 %v6151
      %6263 = vmatprep.subr.bf16.mxu0 0
      %6264 = vmatpush1.bf16.msra.mxu0 %v6152
      %6265 = vmatprep.subr.bf16.mxu0 0
      %6266 = vmatpush1.bf16.msra.mxu0 %v6153
      %6267 = vmatprep.subr.bf16.mxu0 0
      %6268 = vmatpush1.bf16.msra.mxu0 %v6154
      %6269 = vmatprep.subr.bf16.mxu0 0
      %6270 = vmatpush1.bf16.msra.mxu0 %v6155
      %6271 = vmatprep.subr.bf16.mxu0 0
      %6272 = vmatpush1.bf16.msra.mxu0 %v6156
      %6273 = vmatprep.subr.bf16.mxu0 0
      %6274 = vmatpush1.bf16.msra.mxu0 %v6157
      %6275 = vmatprep.subr.bf16.mxu0 0
      %6276 = vmatpush1.bf16.msra.mxu0 %v6158
      %6277 = vmatprep.subr.bf16.mxu0 0
      %6278 = vmatpush1.bf16.msra.mxu0 %v6159
      %6279 = vmatprep.subr.bf16.mxu0 0
      %6280 = vmatpush1.bf16.msra.mxu0 %v6160
      %6281 = vmatprep.subr.bf16.mxu0 0
      %6282 = vmatpush1.bf16.msra.mxu0 %v6161
      %6283 = vmatprep.subr.bf16.mxu0 0
      %6284 = vmatpush1.bf16.msra.mxu0 %v6162
      %6285 = vmatprep.subr.bf16.mxu0 0
      %6286 = vmatpush1.bf16.msra.mxu0 %v6163
      %6287 = vmatprep.mubr.bf16.mxu0 %v5828
      %6288 = vmatmul.mubr.bf16.gmra.mrb[0].mxu0 %v5827
      %v6289 = vpop.f32.mrb[0].mxu0
      %v6290 = vadd.f32 %v5946, %v6289
      %v6291 = vpop.f32.mrb[0].mxu0
      %v6292 = vpop.f32.mrb[0].mxu0
      %v6293 = vpop.f32.mrb[0].mxu0
      %6294 = vmatprep.mubr.bf16.mxu0 %v5835
      %6295 = vmatmul.mubr.bf16.gmra.mrb[0].mxu0 %v5834
      %v6296 = vpop.f32.mrb[0].mxu0
      %v6297 = vadd.f32 %v5946, %v6296
      %v6298 = vpop.f32.mrb[0].mxu0
      %v6299 = vpop.f32.mrb[0].mxu0
      %v6300 = vpop.f32.mrb[0].mxu0
      %6301 = vdwg.mxu0
      %6302 = vmatprep.subr.bf16.mxu0 0
      %6303 = vmatpush1.bf16.msra.mxu0 %v6164
      %6304 = vmatprep.subr.bf16.mxu0 0
      %6305 = vmatpush1.bf16.msra.mxu0 %v6165
      %6306 = vmatprep.subr.bf16.mxu0 0
      %6307 = vmatpush1.bf16.msra.mxu0 %v6166
      %6308 = vmatprep.subr.bf16.mxu0 0
      %6309 = vmatpush1.bf16.msra.mxu0 %v6167
      %6310 = vmatprep.subr.bf16.mxu0 0
      %6311 = vmatpush1.bf16.msra.mxu0 %v6168
      %6312 = vmatprep.subr.bf16.mxu0 0
      %6313 = vmatpush1.bf16.msra.mxu0 %v6169
      %6314 = vmatprep.subr.bf16.mxu0 0
      %6315 = vmatpush1.bf16.msra.mxu0 %v6170
      %6316 = vmatprep.subr.bf16.mxu0 0
      %6317 = vmatpush1.bf16.msra.mxu0 %v6171
      %6318 = vmatprep.subr.bf16.mxu0 0
      %6319 = vmatpush1.bf16.msra.mxu0 %v6172
      %6320 = vmatprep.subr.bf16.mxu0 0
      %6321 = vmatpush1.bf16.msra.mxu0 %v6173
      %6322 = vmatprep.subr.bf16.mxu0 0
      %6323 = vmatpush1.bf16.msra.mxu0 %v6174
      %6324 = vmatprep.subr.bf16.mxu0 0
      %6325 = vmatpush1.bf16.msra.mxu0 %v6175
      %6326 = vmatprep.subr.bf16.mxu0 0
      %6327 = vmatpush1.bf16.msra.mxu0 %v6176
      %6328 = vmatprep.subr.bf16.mxu0 0
      %6329 = vmatpush1.bf16.msra.mxu0 %v6177
      %6330 = vmatprep.subr.bf16.mxu0 0
      %6331 = vmatpush1.bf16.msra.mxu0 %v6178
      %6332 = vmatprep.subr.bf16.mxu0 0
      %6333 = vmatpush1.bf16.msra.mxu0 %v6179
      %6334 = vmatprep.mubr.bf16.mxu0 %v5830
      %6335 = vmatmul.mubr.bf16.gmra.mrb[0].mxu0 %v5829
      %v6336 = vpop.f32.mrb[0].mxu0
      %v6337 = vadd.f32 %v6290, %v6336
      %v6338 = vpop.f32.mrb[0].mxu0
      %v6339 = vpop.f32.mrb[0].mxu0
      %v6340 = vpop.f32.mrb[0].mxu0
      %6341 = vmatprep.mubr.bf16.mxu0 %v5837
      %6342 = vmatmul.mubr.bf16.gmra.mrb[0].mxu0 %v5836
      %v6343 = vpop.f32.mrb[0].mxu0
      %v6344 = vadd.f32 %v6297, %v6343
      %v6345 = vpop.f32.mrb[0].mxu0
      %v6346 = vpop.f32.mrb[0].mxu0
      %v6347 = vpop.f32.mrb[0].mxu0
      %6348 = vdwg.mxu0
      %6349 = vmatprep.subr.bf16.mxu0 0
      %6350 = vmatpush1.bf16.msra.mxu0 %v6180
      %6351 = vmatprep.subr.bf16.mxu0 0
      %6352 = vmatpush1.bf16.msra.mxu0 %v6181
      %6353 = vmatprep.subr.bf16.mxu0 0
      %6354 = vmatpush1.bf16.msra.mxu0 %v6182
      %6355 = vmatprep.subr.bf16.mxu0 0
      %6356 = vmatpush1.bf16.msra.mxu0 %v6183
      %6357 = vmatprep.subr.bf16.mxu0 0
      %6358 = vmatpush1.bf16.msra.mxu0 %v6184
      %6359 = vmatprep.subr.bf16.mxu0 0
      %6360 = vmatpush1.bf16.msra.mxu0 %v6185
      %6361 = vmatprep.subr.bf16.mxu0 0
      %6362 = vmatpush1.bf16.msra.mxu0 %v6186
      %6363 = vmatprep.subr.bf16.mxu0 0
      %6364 = vmatpush1.bf16.msra.mxu0 %v6187
      %6365 = vmatprep.subr.bf16.mxu0 0
      %6366 = vmatpush1.bf16.msra.mxu0 %v6188
      %6367 = vmatprep.subr.bf16.mxu0 0
      %6368 = vmatpush1.bf16.msra.mxu0 %v6189
      %6369 = vmatprep.subr.bf16.mxu0 0
      %6370 = vmatpush1.bf16.msra.mxu0 %v6190
      %6371 = vmatprep.subr.bf16.mxu0 0
      %6372 = vmatpush1.bf16.msra.mxu0 %v6191
      %6373 = vmatprep.subr.bf16.mxu0 0
      %6374 = vmatpush1.bf16.msra.mxu0 %v6192
      %6375 = vmatprep.subr.bf16.mxu0 0
      %6376 = vmatpush1.bf16.msra.mxu0 %v6193
      %6377 = vmatprep.subr.bf16.mxu0 0
      %6378 = vmatpush1.bf16.msra.mxu0 %v6194
      %6379 = vmatprep.subr.bf16.mxu0 0
      %6380 = vmatpush1.bf16.msra.mxu0 %v6195
      %6381 = vmatprep.mubr.bf16.mxu0 %v5832
      %6382 = vmatmul.mubr.bf16.gmra.mrb[0].mxu0 %v5831
      %v6383 = vpop.f32.mrb[0].mxu0
      %v6384 = vadd.f32 %v6337, %v6383
      %v6385 = vpop.f32.mrb[0].mxu0
      %v6386 = vpop.f32.mrb[0].mxu0
      %v6387 = vpop.f32.mrb[0].mxu0
      %6388 = vmatprep.mubr.bf16.mxu0 %v5839
      %6389 = vmatmul.mubr.bf16.gmra.mrb[0].mxu0 %v5838
      %v6390 = vpop.f32.mrb[0].mxu0
      %v6391 = vadd.f32 %v6344, %v6390
      %v6392 = vpop.f32.mrb[0].mxu0
      %v6393 = vpop.f32.mrb[0].mxu0
      %v6394 = vpop.f32.mrb[0].mxu0
      %6395 = vdwg.mxu0
      %6396 = vmatprep.subr.bf16.mxu0 0
      %6397 = vmatpush1.bf16.msra.mxu0 %v6196
      %6398 = vmatprep.subr.bf16.mxu0 0
      %6399 = vmatpush1.bf16.msra.mxu0 %v6197
      %6400 = vmatprep.subr.bf16.mxu0 0
      %6401 = vmatpush1.bf16.msra.mxu0 0
      %6402 = vmatprep.subr.bf16.mxu0 0
      %6403 = vmatpush1.bf16.msra.mxu0 0
      %6404 = vmatprep.subr.bf16.mxu0 0
      %6405 = vmatpush1.bf16.msra.mxu0 0
      %6406 = vmatprep.subr.bf16.mxu0 0
      %6407 = vmatpush1.bf16.msra.mxu0 0
      %6408 = vmatprep.subr.bf16.mxu0 0
      %6409 = vmatpush1.bf16.msra.mxu0 0
      %6410 = vmatprep.subr.bf16.mxu0 0
      %6411 = vmatpush1.bf16.msra.mxu0 0
      %6412 = vmatprep.subr.bf16.mxu0 0
      %6413 = vmatpush1.bf16.msra.mxu0 0
      %6414 = vmatprep.subr.bf16.mxu0 0
      %6415 = vmatpush1.bf16.msra.mxu0 0
      %6416 = vmatprep.subr.bf16.mxu0 0
      %6417 = vmatpush1.bf16.msra.mxu0 0
      %6418 = vmatprep.subr.bf16.mxu0 0
      %6419 = vmatpush1.bf16.msra.mxu0 0
      %6420 = vmatprep.subr.bf16.mxu0 0
      %6421 = vmatpush1.bf16.msra.mxu0 0
      %6422 = vmatprep.subr.bf16.mxu0 0
      %6423 = vmatpush1.bf16.msra.mxu0 0
      %6424 = vmatprep.subr.bf16.mxu0 0
      %6425 = vmatpush1.bf16.msra.mxu0 0
      %6426 = vmatprep.subr.bf16.mxu0 0
      %6427 = vmatpush1.bf16.msra.mxu0 0
      %6428 = vmatprep.mubr.bf16.mxu0 0
      %6429 = vmatmul.mubr.bf16.gmra.mrb[0].mxu0 %v6250
      %v6430 = vpop.f32.mrb[0].mxu0
      %v6431 = vadd.f32 %v6384, %v6430
      %v6432 = vpop.f32.mrb[0].mxu0
      %v6433 = vpop.f32.mrb[0].mxu0
      %v6434 = vpop.f32.mrb[0].mxu0
      %6435 = vmatprep.mubr.bf16.mxu0 0
      %6436 = vmatmul.mubr.bf16.gmra.mrb[0].mxu0 %v6253
      %v6437 = vpop.f32.mrb[0].mxu0
      %v6438 = vadd.f32 %v6391, %v6437
      %v6439 = vpop.f32.mrb[0].mxu0
      %v6440 = vpop.f32.mrb[0].mxu0
      %v6441 = vpop.f32.mrb[0].mxu0
      %6442 = vdwg.mxu0
      %v6443 = vmax.f32 %v6431, 0.0
      %v6444 = vmax.f32 %v6438, 0.0
      %vm6445 = vcmask 260096
      %6446 = vst.msk [vmem:[%s283] sm:$0x7f] %vm6445, %v6443
      %s6447 = scalar_lea.vmem %s283, 8
      %6448 = vst.msk [vmem:[%s6447] sm:$0x7f] %vm6445, %v6444
      %p6449 = scmp.lt.s32.totalorder %s18, 1
      %s6450 = scalar_select %p6449, %s18, 1
      %s6451 = smul.addr %s6450, 2
      %s6452 = smul.addr %s6451, 8
      %s6453 = scalar_lea.vmem %s7, %s6452
      // Predicated region
      $region49: #{convnn_forward.1} parent=47 // pred_check
        %p6454 = pneg %p188
      $region50: #{convnn_forward.1} parent=47 // pred_check_branch
        %6456 = sbr.rel (%p6454) target = $region52
      $region51: #{convnn_forward.1} parent=47 // pred_region
        _
      $region52: #{convnn_forward.1} parent=47 // pred_fallthru
        _
    $region48: #{convnn_forward.1} parent=5 // pred_fallthru
      _
    %p6457 = scmp.le.s32.totalorder 2, %s13
    // Predicated region
    $region53: #{convnn_forward.1} parent=5 // pred_check
      %p6458 = pneg %p6457
    $region54: #{convnn_forward.1} parent=5 // pred_check_branch
      %6460 = sbr.rel (%p6458) target = $region56
    $region55: #{convnn_forward.1} parent=5 // pred_region
      %s6461 = ssub.s32 %s13, 2
      // Predicated region
      $region57: #{convnn_forward.1} parent=55 // pred_check
        %p6462 = pneg %p194
      $region58: #{convnn_forward.1} parent=55 // pred_check_branch
        %6464 = sbr.rel (%p6462) target = $region60
      $region59: #{convnn_forward.1} parent=55 // pred_region
        %p6465 = scmp.lt.s32.totalorder %s19, 1
        %s6466 = scalar_select %p6465, %s19, 1
        %s6467 = smul.addr %s6466, 2
        %s6468 = smul.addr %s6467, 8
        %s6469 = scalar_lea.vmem %s7, %s6468
      $region60: #{convnn_forward.1} parent=55 // pred_fallthru
        _
    $region56: #{convnn_forward.1} parent=5 // pred_fallthru
      _
  $region6: #{convnn_forward.1} parent=0 // loop_footer
    %s17 = sadd.s32 1, %s13
  $region7: #{convnn_forward.1} parent=0 // loop_footer_branch
    %12 = sbr.rel target = $region3
  $region8: #{convnn_forward.1} parent=0 // loop_exit
    _

</llo_original>
